<compile_context>
chip_gen: v7x
topology: tpu7x:2x2x1
jax: 0.10.0
libtpu: 0.0.40
codegen_flags: <defaults>
</compile_context>

<pallas_src>
from functools import partial

import numpy as np
import jax
import jax.numpy as jnp
from jax.experimental import pallas as pl
from jax.experimental.pallas import tpu as pltpu

EPS = 1e-5


def _bilinear_matrix(n_in, n_out):
    """1-D bilinear-resize matrix with align_corners=True semantics."""
    if n_out == 1:
        m = np.zeros((1, n_in), np.float32)
        m[0, 0] = 1.0
        return m
    i = np.arange(n_out, dtype=np.float64)
    src = i * (n_in - 1) / (n_out - 1)
    i0 = np.clip(np.floor(src).astype(np.int64), 0, n_in - 1)
    i1 = np.minimum(i0 + 1, n_in - 1)
    w1 = (src - i0).astype(np.float32)
    w0 = 1.0 - w1
    m = np.zeros((n_out, n_in), np.float32)
    m[np.arange(n_out), i0] += w0
    m[np.arange(n_out), i1] += w1
    return m


def _base21_kernel(s4_ref, s3_ref, up_ref, w1u_ref, w1s_ref, bi1_ref,
                   w2_hbm_ref, bi2_ref, out_ref,
                   w2_vmem, w2_sem, ypad_ref, *, W2):
    Cmid = w1u_ref.shape[1]
    PAD = ypad_ref.shape[0]
    HW2 = PAD - 2 * W2

    # Kick off the conv2 weight DMA immediately so it overlaps conv1 + im2col
    # prep.  Issued unconditionally every grid step so it stays correct when
    # the batch axis is split across TensorCores (v7x megacore); the redundant
    # re-fetch on later steps is itself hidden behind conv1.
    w2_copy = pltpu.make_async_copy(w2_hbm_ref, w2_vmem, w2_sem)
    w2_copy.start()

    s4 = s4_ref[0]                                   # (HW,  C4)  bf16
    s3 = s3_ref[0]                                   # (HW2, C3)  bf16

    # ---- conv1_2 (1x1) with the bilinear upsample reassociated ----
    #   (UP @ s4) @ W_up  ==  UP @ (s4 @ W_up)
    t = jnp.dot(s4, w1u_ref[...], preferred_element_type=jnp.float32)      # (HW, Cmid)
    y1 = jnp.dot(up_ref[...], t.astype(jnp.bfloat16),
                 preferred_element_type=jnp.float32)                        # (HW2, Cmid)
    y1 = y1 + jnp.dot(s3, w1s_ref[...], preferred_element_type=jnp.float32)
    y1 = jnp.maximum(y1 + bi1_ref[...], 0.0)                                # f32

    # ---- conv2_2 (3x3, pad=1) ----
    # Persistent padded scratch: W2 zero rows above/below the row-flattened
    # activation so every dy tap is a sublane-aligned static row slice.
    ypad_ref[0:W2, :] = jnp.zeros((W2, Cmid), jnp.float32)
    ypad_ref[W2 + HW2:PAD, :] = jnp.zeros((W2, Cmid), jnp.float32)
    ypad_ref[W2:W2 + HW2, :] = y1
    yp = ypad_ref[...]                                                      # (PAD, Cmid)

    col = jax.lax.broadcasted_iota(jnp.int32, (PAD, 1), 0) % W2

    # im2col the 9 taps along the lane (K) axis: dx taps are circular rolls of
    # the flattened-row buffer plus a boundary mask (no misaligned slices),
    # dy taps are aligned static row slices.  A single K = 9*Cmid MXU matmul
    # then performs the whole tap reduction.
    taps = []
    for dx in range(3):
        if dx == 0:
            ypd = jnp.where(col == 0, 0.0, pltpu.roll(yp, 1, 0))        # col q-1
        elif dx == 1:
            ypd = yp
        else:
            ypd = jnp.where(col == W2 - 1, 0.0, pltpu.roll(yp, PAD - 1, 0))  # col q+1
        ypd = ypd.astype(jnp.bfloat16)
        for dy in range(3):
            taps.append(ypd[dy * W2:dy * W2 + HW2, :])                  # row p+dy-1
    patches = jnp.concatenate(taps, axis=1)                             # (HW2, 9*Cmid)

    w2_copy.wait()
    y2 = jnp.dot(patches, w2_vmem[...], preferred_element_type=jnp.float32)
    y2 = jnp.maximum(y2 + bi2_ref[...], 0.0)
    out_ref[0] = y2.astype(out_ref.dtype)


def init_params(key):
    """Deterministic init matching Base21.__init__ (conv N(0,0.01), bias 0, BN 1/0)."""
    k1, k2 = jax.random.split(key)
    Cmid, Cin, Cout = 256, 1024, 256
    w1 = 0.01 * jax.random.normal(k1, (Cmid, Cin, 1, 1), jnp.float32)   # torch OIHW
    w2 = 0.01 * jax.random.normal(k2, (Cout, Cmid, 3, 3), jnp.float32)  # torch OIHW
    zeros = lambda n: jnp.zeros((n,), jnp.float32)
    ones = lambda n: jnp.ones((n,), jnp.float32)
    # TODO(synk): BatchNorm is realized in eval mode with fresh running stats
    # (mean=0, var=1, gamma=1, beta=0); PyTorch's default train-mode batch
    # statistics are not reproduced.
    return dict(
        w1=w1, b1=zeros(Cmid),
        bn1_gamma=ones(Cmid), bn1_beta=zeros(Cmid),
        bn1_mean=zeros(Cmid), bn1_var=ones(Cmid),
        w2=w2, b2=zeros(Cout),
        bn2_gamma=ones(Cout), bn2_beta=zeros(Cout),
        bn2_mean=zeros(Cout), bn2_var=ones(Cout),
    )


def base21_forward(s4_nchw, s3_nchw, params):
    B, C4, H, W = s4_nchw.shape
    _, C3, H2, W2 = s3_nchw.shape
    assert H2 == 2 * H and W2 == 2 * W
    HW, HW2 = H * W, H2 * W2

    # NCHW -> row-flattened NHWC (B, H*W, C), bf16 operands for the MXU.
    s4 = jnp.transpose(s4_nchw, (0, 2, 3, 1)).reshape(B, HW, C4).astype(jnp.bfloat16)
    s3 = jnp.transpose(s3_nchw, (0, 2, 3, 1)).reshape(B, HW2, C3).astype(jnp.bfloat16)

    # TODO(synk): for large H/W switch to the separable (H2,H)/(W2,W) upsample
    # matrices; the dense Kron matrix scales as (H*W)^2 (fine at 8x8 -> 16x16).
    up_mat = jnp.asarray(
        np.kron(_bilinear_matrix(H, H2), _bilinear_matrix(W, W2)),
        jnp.float32).astype(jnp.bfloat16)                      # (HW2, HW)

    Cmid = params["w1"].shape[0]
    Cin = params["w1"].shape[1]
    Cout = params["w2"].shape[0]
    assert Cin == C4 + C3

    # Fold conv bias + eval-mode BN: scale goes into the conv weights, the
    # additive part stays as a per-channel bias (kernel does add + ReLU only).
    def fold(bias, gamma, beta, mean, var):
        s = gamma / jnp.sqrt(var + EPS)
        return s, bias * s + beta - mean * s

    sc1, bi1 = fold(params["b1"], params["bn1_gamma"], params["bn1_beta"],
                    params["bn1_mean"], params["bn1_var"])
    sc2, bi2 = fold(params["b2"], params["bn2_gamma"], params["bn2_beta"],
                    params["bn2_mean"], params["bn2_var"])

    w1_full = (params["w1"].reshape(Cmid, Cin) * sc1[:, None]).T   # (Cin, Cmid)
    w1_up = w1_full[:C4].astype(jnp.bfloat16)                      # (C4, Cmid)
    w1_s3 = w1_full[C4:].astype(jnp.bfloat16)                      # (C3, Cmid)

    # Flatten the 3x3 weight in (dx, dy, cin) order to match the in-kernel
    # im2col tap order: row (dx*3+dy)*Cmid + c pairs with patches column block.
    w2_sc = params["w2"] * sc2[:, None, None, None]                # (Cout, Cmid, 3, 3)
    w2_flat = jnp.transpose(w2_sc, (3, 2, 1, 0)).reshape(9 * Cmid, Cout).astype(jnp.bfloat16)

    PAD = HW2 + 2 * W2

    out_flat = pl.pallas_call(
        partial(_base21_kernel, W2=W2),
        out_shape=jax.ShapeDtypeStruct((B, HW2, Cout), jnp.bfloat16),
        grid_spec=pltpu.PrefetchScalarGridSpec(
            num_scalar_prefetch=0,
            grid=(B,),
            in_specs=[
                pl.BlockSpec((1, HW, C4), lambda b: (b, 0, 0)),
                pl.BlockSpec((1, HW2, C3), lambda b: (b, 0, 0)),
                pl.BlockSpec((HW2, HW), lambda b: (0, 0)),
                pl.BlockSpec((C4, Cmid), lambda b: (0, 0)),
                pl.BlockSpec((C3, Cmid), lambda b: (0, 0)),
                pl.BlockSpec((1, Cmid), lambda b: (0, 0)),
                pl.BlockSpec(memory_space=pl.ANY),          # conv2 weight: manual DMA
                pl.BlockSpec((1, Cout), lambda b: (0, 0)),
            ],
            out_specs=pl.BlockSpec((1, HW2, Cout), lambda b: (b, 0, 0)),
            scratch_shapes=[
                pltpu.VMEM((9 * Cmid, Cout), jnp.bfloat16),   # conv2 weight buffer
                pltpu.SemaphoreType.DMA(()),                  # its DMA semaphore
                pltpu.VMEM((PAD, Cmid), jnp.float32),         # zero-row-padded conv2 input
            ],
        ),
        compiler_params=pltpu.CompilerParams(dimension_semantics=("parallel",)),
    )(s4, s3, up_mat, w1_up, w1_s3, bi1.reshape(1, Cmid), w2_flat,
      bi2.reshape(1, Cout))

    out = out_flat.reshape(B, H2, W2, Cout)
    return jnp.transpose(out, (0, 3, 1, 2)).astype(jnp.float32)   # NCHW, f32


def reference_forward(s4_nchw, s3_nchw, params):
    """Pure-JAX f32 reference (XLA convs) for validation."""
    s4 = jnp.transpose(s4_nchw, (0, 2, 3, 1)).astype(jnp.float32)
    s3 = jnp.transpose(s3_nchw, (0, 2, 3, 1)).astype(jnp.float32)
    B, H, W, C4 = s4.shape
    _, H2, W2, C3 = s3.shape
    M = jnp.asarray(
        np.kron(_bilinear_matrix(H, H2), _bilinear_matrix(W, W2)), jnp.float32)
    up = jnp.einsum('pq,bqc->bpc', M, s4.reshape(B, H * W, C4)).reshape(B, H2, W2, C4)
    x = jnp.concatenate([up, s3], axis=-1)

    def conv_bn_relu(x, w_oihw, b, gamma, beta, mean, var, pad):
        w = jnp.transpose(w_oihw, (2, 3, 1, 0))   # HWIO
        y = jax.lax.conv_general_dilated(
            x, w, window_strides=(1, 1),
            padding=((pad, pad), (pad, pad)),
            dimension_numbers=('NHWC', 'HWIO', 'NHWC'))
        y = y + b
        y = (y - mean) / jnp.sqrt(var + EPS) * gamma + beta
        return jnp.maximum(y, 0.0)

    y = conv_bn_relu(x, params["w1"], params["b1"], params["bn1_gamma"],
                     params["bn1_beta"], params["bn1_mean"], params["bn1_var"], 0)
    y = conv_bn_relu(y, params["w2"], params["b2"], params["bn2_gamma"],
                     params["bn2_beta"], params["bn2_mean"], params["bn2_var"], 1)
    return jnp.transpose(y, (0, 3, 1, 2))


if __name__ == "__main__":
    key = jax.random.PRNGKey(0)
    kp, k4, k3 = jax.random.split(key, 3)
    params = init_params(kp)

    # s4: deep low-res feature (2, 512, 8, 8); s3: skip feature (2, 512, 16, 16)
    # -> after x2 upsample + channel concat: 1024 channels, as conv1_2 requires.
    s4 = jax.random.normal(k4, (2, 512, 8, 8), jnp.float32)
    s3 = jax.random.normal(k3, (2, 512, 16, 16), jnp.float32)

    out = jax.block_until_ready(base21_forward(s4, s3, params))
    ref = jax.block_until_ready(reference_forward(s4, s3, params))

    assert out.shape == (2, 256, 16, 16), out.shape
    np.testing.assert_allclose(np.asarray(out), np.asarray(ref),
                               rtol=5e-2, atol=1e-2)
    print("KERNEL_OK")
</pallas_src>

<mosaic_0001>
module attributes {stable_mosaic.version = 11 : i64} {
  func.func @_base21_kernel(%arg0: i32, %arg1: memref<1x64x512xbf16, #tpu.memory_space<vmem>>, %arg2: memref<1x256x512xbf16, #tpu.memory_space<vmem>>, %arg3: memref<256x64xbf16, #tpu.memory_space<vmem>>, %arg4: memref<512x256xbf16, #tpu.memory_space<vmem>>, %arg5: memref<512x256xbf16, #tpu.memory_space<vmem>>, %arg6: memref<1x256xf32, #tpu.memory_space<vmem>>, %arg7: memref<2304x256xbf16, #tpu.memory_space<any>>, %arg8: memref<1x256xf32, #tpu.memory_space<vmem>>, %arg9: memref<1x256x256xbf16, #tpu.memory_space<vmem>>, %arg10: memref<2304x256xbf16, #tpu.memory_space<vmem>>, %arg11: memref<!tpu.dma_semaphore, #tpu.memory_space<semaphore_mem>>, %arg12: memref<288x256xf32, #tpu.memory_space<vmem>>) attributes {dimension_semantics = [#tpu.dimension_semantics<parallel>], iteration_bounds = array<i64: 2>, scalar_prefetch = 0 : i64, scratch_operands = 3 : i64, tpu.core_type = #tpu.core_type<tc>, window_params = [{transform_indices = @transform_0, window_bounds = array<i64: 1, 64, 512>}, {transform_indices = @transform_1, window_bounds = array<i64: 1, 256, 512>}, {pipeline_mode = #tpu.pipeline_mode<synchronous>, transform_indices = @transform_2, window_bounds = array<i64: 256, 64>}, {pipeline_mode = #tpu.pipeline_mode<synchronous>, transform_indices = @transform_3, window_bounds = array<i64: 512, 256>}, {pipeline_mode = #tpu.pipeline_mode<synchronous>, transform_indices = @transform_4, window_bounds = array<i64: 512, 256>}, {pipeline_mode = #tpu.pipeline_mode<synchronous>, transform_indices = @transform_5, window_bounds = array<i64: 1, 256>}, {}, {pipeline_mode = #tpu.pipeline_mode<synchronous>, transform_indices = @transform_7, window_bounds = array<i64: 1, 256>}, {transform_indices = @transform_8, window_bounds = array<i64: 1, 256, 256>}]} {
    tpu.enqueue_dma source(%arg7 : memref<2304x256xbf16, #tpu.memory_space<any>>) target(%arg10 : memref<2304x256xbf16, #tpu.memory_space<vmem>>) target_semaphore(%arg11 : memref<!tpu.dma_semaphore, #tpu.memory_space<semaphore_mem>>)
    %c0 = arith.constant 0 : index
    %c0_0 = arith.constant 0 : index
    %c0_1 = arith.constant 0 : index
    %0 = vector.load %arg1[%c0, %c0_0, %c0_1] : memref<1x64x512xbf16, #tpu.memory_space<vmem>>, vector<1x64x512xbf16>
    %1 = vector.shape_cast %0 : vector<1x64x512xbf16> to vector<64x512xbf16>
    %c0_2 = arith.constant 0 : index
    %c0_3 = arith.constant 0 : index
    %c0_4 = arith.constant 0 : index
    %2 = vector.load %arg2[%c0_2, %c0_3, %c0_4] : memref<1x256x512xbf16, #tpu.memory_space<vmem>>, vector<1x256x512xbf16>
    %3 = vector.shape_cast %2 : vector<1x256x512xbf16> to vector<256x512xbf16>
    %c0_5 = arith.constant 0 : index
    %c0_6 = arith.constant 0 : index
    %4 = vector.load %arg4[%c0_5, %c0_6] : memref<512x256xbf16, #tpu.memory_space<vmem>>, vector<512x256xbf16>
    %cst = arith.constant dense<0.000000e+00> : vector<64x256xf32>
    %5 = tpu.matmul %1, %4, %cst {dimension_numbers = #tpu.dot_dimension_numbers<[1], [0], [0], [1], [0, 0, 1, 1], [], []>} : vector<64x512xbf16>, vector<512x256xbf16>, vector<64x256xf32> -> vector<64x256xf32>
    %c0_7 = arith.constant 0 : index
    %c0_8 = arith.constant 0 : index
    %6 = vector.load %arg3[%c0_7, %c0_8] : memref<256x64xbf16, #tpu.memory_space<vmem>>, vector<256x64xbf16>
    %7 = arith.truncf %5 : vector<64x256xf32> to vector<64x256xbf16>
    %cst_9 = arith.constant dense<0.000000e+00> : vector<256x256xf32>
    %8 = tpu.matmul %6, %7, %cst_9 {dimension_numbers = #tpu.dot_dimension_numbers<[1], [0], [0], [1], [0, 0, 1, 1], [], []>} : vector<256x64xbf16>, vector<64x256xbf16>, vector<256x256xf32> -> vector<256x256xf32>
    %c0_10 = arith.constant 0 : index
    %c0_11 = arith.constant 0 : index
    %9 = vector.load %arg5[%c0_10, %c0_11] : memref<512x256xbf16, #tpu.memory_space<vmem>>, vector<512x256xbf16>
    %cst_12 = arith.constant dense<0.000000e+00> : vector<256x256xf32>
    %10 = tpu.matmul %3, %9, %cst_12 {dimension_numbers = #tpu.dot_dimension_numbers<[1], [0], [0], [1], [0, 0, 1, 1], [], []>} : vector<256x512xbf16>, vector<512x256xbf16>, vector<256x256xf32> -> vector<256x256xf32>
    %11 = arith.addf %8, %10 : vector<256x256xf32>
    %c0_13 = arith.constant 0 : index
    %c0_14 = arith.constant 0 : index
    %12 = vector.load %arg6[%c0_13, %c0_14] : memref<1x256xf32, #tpu.memory_space<vmem>>, vector<1x256xf32>
    %13 = vector.broadcast %12 : vector<1x256xf32> to vector<256x256xf32>
    %14 = arith.addf %11, %13 : vector<256x256xf32>
    %cst_15 = arith.constant 0.000000e+00 : f32
    %15 = vector.broadcast %cst_15 : f32 to vector<256x256xf32>
    %16 = arith.maximumf %14, %15 : vector<256x256xf32>
    %cst_16 = arith.constant 0.000000e+00 : f32
    %17 = vector.broadcast %cst_16 : f32 to vector<16x256xf32>
    %c0_17 = arith.constant 0 : index
    %c0_18 = arith.constant 0 : index
    %18 = vector.load %arg12[%c0_17, %c0_18] : memref<288x256xf32, #tpu.memory_space<vmem>>, vector<16x256xf32>
    tpu.vector_store %arg12[%c0_17, %c0_18], %17 {strides = array<i32>} : memref<288x256xf32, #tpu.memory_space<vmem>>, vector<16x256xf32>,
    %cst_19 = arith.constant 0.000000e+00 : f32
    %19 = vector.broadcast %cst_19 : f32 to vector<16x256xf32>
    %c272 = arith.constant 272 : index
    %c0_20 = arith.constant 0 : index
    %20 = vector.load %arg12[%c272, %c0_20] : memref<288x256xf32, #tpu.memory_space<vmem>>, vector<16x256xf32>
    tpu.vector_store %arg12[%c272, %c0_20], %19 {strides = array<i32>} : memref<288x256xf32, #tpu.memory_space<vmem>>, vector<16x256xf32>,
    %c16 = arith.constant 16 : index
    %c0_21 = arith.constant 0 : index
    %21 = vector.load %arg12[%c16, %c0_21] : memref<288x256xf32, #tpu.memory_space<vmem>>, vector<256x256xf32>
    tpu.vector_store %arg12[%c16, %c0_21], %16 {strides = array<i32>} : memref<288x256xf32, #tpu.memory_space<vmem>>, vector<256x256xf32>,
    %c0_22 = arith.constant 0 : index
    %c0_23 = arith.constant 0 : index
    %22 = vector.load %arg12[%c0_22, %c0_23] : memref<288x256xf32, #tpu.memory_space<vmem>>, vector<288x256xf32>
    %23 = tpu.iota {dimensions = array<i32: 0>} : vector<288x1xi32>
    %c16_i32 = arith.constant 16 : i32
    %c0_i32 = arith.constant 0 : i32
    %24 = arith.cmpi eq, %c16_i32, %c0_i32 : i32
    %c1_i32 = arith.constant 1 : i32
    %25 = arith.select %24, %c1_i32, %c16_i32 : i32
    %26 = vector.broadcast %25 : i32 to vector<288x1xi32>
    %27 = arith.remsi %23, %26 : vector<288x1xi32>
    %c0_i32_24 = arith.constant 0 : i32
    %28 = vector.broadcast %c0_i32_24 : i32 to vector<288x1xi32>
    %29 = arith.cmpi ne, %27, %28 : vector<288x1xi32>
    %c0_i32_25 = arith.constant 0 : i32
    %30 = vector.broadcast %c0_i32_25 : i32 to vector<288x1xi32>
    %31 = arith.cmpi slt, %27, %30 : vector<288x1xi32>
    %c0_i32_26 = arith.constant 0 : i32
    %32 = arith.cmpi slt, %25, %c0_i32_26 : i32
    %33 = vector.broadcast %32 : i1 to vector<288x1xi1>
    %34 = vector.broadcast %33 : vector<288x1xi1> to vector<288x1xi1>
    %35 = arith.xori %31, %34 : vector<288x1xi1>
    %36 = arith.andi %35, %29 : vector<288x1xi1>
    %37 = vector.broadcast %25 : i32 to vector<288x1xi32>
    %38 = arith.addi %27, %37 : vector<288x1xi32>
    %39 = arith.select %36, %38, %27 : vector<288x1xi1>, vector<288x1xi32>
    %c0_i32_27 = arith.constant 0 : i32
    %40 = vector.broadcast %c0_i32_27 : i32 to vector<288x1xi32>
    %41 = arith.cmpi eq, %39, %40 : vector<288x1xi32>
    %c1_i32_28 = arith.constant 1 : i32
    %42 = tpu.dynamic_rotate %22 by %c1_i32_28 dim 0 : vector<288x256xf32>, i32 -> vector<288x256xf32>
    %cst_29 = arith.constant 0.000000e+00 : f32
    %43 = vector.shape_cast %41 : vector<288x1xi1> to vector<288x1xi1>
    %44 = vector.broadcast %43 : vector<288x1xi1> to vector<288x256xi1>
    %45 = vector.broadcast %cst_29 : f32 to vector<288x256xf32>
    %46 = arith.select %44, %45, %42 : vector<288x256xi1>, vector<288x256xf32>
    %47 = arith.truncf %46 : vector<288x256xf32> to vector<288x256xbf16>
    %48 = vector.extract_strided_slice %47 {offsets = [0, 0], sizes = [256, 256], strides = [1, 1]} : vector<288x256xbf16> to vector<256x256xbf16>
    %49 = vector.extract_strided_slice %47 {offsets = [16, 0], sizes = [256, 256], strides = [1, 1]} : vector<288x256xbf16> to vector<256x256xbf16>
    %50 = vector.extract_strided_slice %47 {offsets = [32, 0], sizes = [256, 256], strides = [1, 1]} : vector<288x256xbf16> to vector<256x256xbf16>
    %51 = arith.truncf %22 : vector<288x256xf32> to vector<288x256xbf16>
    %52 = vector.extract_strided_slice %51 {offsets = [0, 0], sizes = [256, 256], strides = [1, 1]} : vector<288x256xbf16> to vector<256x256xbf16>
    %53 = vector.extract_strided_slice %51 {offsets = [16, 0], sizes = [256, 256], strides = [1, 1]} : vector<288x256xbf16> to vector<256x256xbf16>
    %54 = vector.extract_strided_slice %51 {offsets = [32, 0], sizes = [256, 256], strides = [1, 1]} : vector<288x256xbf16> to vector<256x256xbf16>
    %c15_i32 = arith.constant 15 : i32
    %55 = vector.broadcast %c15_i32 : i32 to vector<288x1xi32>
    %56 = arith.cmpi eq, %39, %55 : vector<288x1xi32>
    %c287_i32 = arith.constant 287 : i32
    %57 = tpu.dynamic_rotate %22 by %c287_i32 dim 0 : vector<288x256xf32>, i32 -> vector<288x256xf32>
    %cst_30 = arith.constant 0.000000e+00 : f32
    %58 = vector.shape_cast %56 : vector<288x1xi1> to vector<288x1xi1>
    %59 = vector.broadcast %58 : vector<288x1xi1> to vector<288x256xi1>
    %60 = vector.broadcast %cst_30 : f32 to vector<288x256xf32>
    %61 = arith.select %59, %60, %57 : vector<288x256xi1>, vector<288x256xf32>
    %62 = arith.truncf %61 : vector<288x256xf32> to vector<288x256xbf16>
    %63 = vector.extract_strided_slice %62 {offsets = [0, 0], sizes = [256, 256], strides = [1, 1]} : vector<288x256xbf16> to vector<256x256xbf16>
    %64 = vector.extract_strided_slice %62 {offsets = [16, 0], sizes = [256, 256], strides = [1, 1]} : vector<288x256xbf16> to vector<256x256xbf16>
    %65 = vector.extract_strided_slice %62 {offsets = [32, 0], sizes = [256, 256], strides = [1, 1]} : vector<288x256xbf16> to vector<256x256xbf16>
    %66 = tpu.concatenate %48, %49, %50, %52, %53, %54, %63, %64, %65 in 1 : vector<256x256xbf16>, vector<256x256xbf16>, vector<256x256xbf16>, vector<256x256xbf16>, vector<256x256xbf16>, vector<256x256xbf16>, vector<256x256xbf16>, vector<256x256xbf16>, vector<256x256xbf16> -> vector<256x2304xbf16>
    tpu.wait_dma2 semaphore(%arg11 : memref<!tpu.dma_semaphore, #tpu.memory_space<semaphore_mem>>) src(%arg7 : memref<2304x256xbf16, #tpu.memory_space<any>>) dst(%arg10 : memref<2304x256xbf16, #tpu.memory_space<vmem>>)
    %c0_31 = arith.constant 0 : index
    %c0_32 = arith.constant 0 : index
    %67 = vector.load %arg10[%c0_31, %c0_32] : memref<2304x256xbf16, #tpu.memory_space<vmem>>, vector<2304x256xbf16>
    %cst_33 = arith.constant dense<0.000000e+00> : vector<256x256xf32>
    %68 = tpu.matmul %66, %67, %cst_33 {dimension_numbers = #tpu.dot_dimension_numbers<[1], [0], [0], [1], [0, 0, 1, 1], [], []>} : vector<256x2304xbf16>, vector<2304x256xbf16>, vector<256x256xf32> -> vector<256x256xf32>
    %c0_34 = arith.constant 0 : index
    %c0_35 = arith.constant 0 : index
    %69 = vector.load %arg8[%c0_34, %c0_35] : memref<1x256xf32, #tpu.memory_space<vmem>>, vector<1x256xf32>
    %70 = vector.broadcast %69 : vector<1x256xf32> to vector<256x256xf32>
    %71 = arith.addf %68, %70 : vector<256x256xf32>
    %cst_36 = arith.constant 0.000000e+00 : f32
    %72 = vector.broadcast %cst_36 : f32 to vector<256x256xf32>
    %73 = arith.maximumf %71, %72 : vector<256x256xf32>
    %74 = arith.truncf %73 : vector<256x256xf32> to vector<256x256xbf16>
    %c0_37 = arith.constant 0 : index
    %c0_38 = arith.constant 0 : index
    %c0_39 = arith.constant 0 : index
    %75 = vector.load %arg9[%c0_37, %c0_38, %c0_39] : memref<1x256x256xbf16, #tpu.memory_space<vmem>>, vector<1x256x256xbf16>
    %76 = vector.shape_cast %75 : vector<1x256x256xbf16> to vector<256x256xbf16>
    %77 = vector.shape_cast %74 : vector<256x256xbf16> to vector<1x256x256xbf16>
    tpu.vector_store %arg9[%c0_37, %c0_38, %c0_39], %77 {strides = array<i32>} : memref<1x256x256xbf16, #tpu.memory_space<vmem>>, vector<1x256x256xbf16>,
    return
  }
  func.func @transform_0(%arg0: i32) -> (i32, i32, i32) {
    %c0_i32 = arith.constant 0 : i32
    %c0_i32_0 = arith.constant 0 : i32
    %c0_i32_1 = arith.constant 0 : i32
    return %arg0, %c0_i32, %c0_i32_0 : i32, i32, i32
  }
  func.func @transform_1(%arg0: i32) -> (i32, i32, i32) {
    %c0_i32 = arith.constant 0 : i32
    %c0_i32_0 = arith.constant 0 : i32
    %c0_i32_1 = arith.constant 0 : i32
    return %arg0, %c0_i32, %c0_i32_0 : i32, i32, i32
  }
  func.func @transform_2(%arg0: i32) -> (i32, i32) {
    %c0_i32 = arith.constant 0 : i32
    %c0_i32_0 = arith.constant 0 : i32
    %c0_i32_1 = arith.constant 0 : i32
    return %c0_i32, %c0_i32_0 : i32, i32
  }
  func.func @transform_3(%arg0: i32) -> (i32, i32) {
    %c0_i32 = arith.constant 0 : i32
    %c0_i32_0 = arith.constant 0 : i32
    %c0_i32_1 = arith.constant 0 : i32
    return %c0_i32, %c0_i32_0 : i32, i32
  }
  func.func @transform_4(%arg0: i32) -> (i32, i32) {
    %c0_i32 = arith.constant 0 : i32
    %c0_i32_0 = arith.constant 0 : i32
    %c0_i32_1 = arith.constant 0 : i32
    return %c0_i32, %c0_i32_0 : i32, i32
  }
  func.func @transform_5(%arg0: i32) -> (i32, i32) {
    %c0_i32 = arith.constant 0 : i32
    %c0_i32_0 = arith.constant 0 : i32
    %c0_i32_1 = arith.constant 0 : i32
    return %c0_i32, %c0_i32_0 : i32, i32
  }
  func.func @transform_7(%arg0: i32) -> (i32, i32) {
    %c0_i32 = arith.constant 0 : i32
    %c0_i32_0 = arith.constant 0 : i32
    %c0_i32_1 = arith.constant 0 : i32
    return %c0_i32, %c0_i32_0 : i32, i32
  }
  func.func @transform_8(%arg0: i32) -> (i32, i32, i32) {
    %c0_i32 = arith.constant 0 : i32
    %c0_i32_0 = arith.constant 0 : i32
    %c0_i32_1 = arith.constant 0 : i32
    return %arg0, %c0_i32, %c0_i32_0 : i32, i32, i32
  }
}

</mosaic_0001>

<llo_original>
// kernel: tpu_custom_call.1
$region0: #{tpu_custom_call.1}
  #allocation0 [shape = 'u32[]', space=smem, size = 0x4, offset = 0x4, fixed_abs, tag = 'smem constant byte address 0x4 - core index']
  #allocation1 [shape = 'u32[144,128]{1,0:T(1,128)}', space=vmem, size = 0x12000, scoped, tag = 'internal scratch']
  #allocation2 [shape = 'bf16[2304,256]{1,0:T(16,128)(2,1)}', space=vmem, size = 0x120000, scoped, tag = 'scratch operand']
  #allocation3 [shape = 's32[1]{0}', space=sflag, size = 0x4, scoped, tag = 'scratch operand']
  #allocation4 [shape = 'f32[288,256]{1,0:T(8,128)}', space=vmem, size = 0x48000, scoped, tag = 'scratch operand']
  #allocation17 [shape = 's32[]', space=sflag, size = 0x4, offset = 0, fixed_abs, tag = 'sflag constant byte address 0x0 - dummy sync flag']
  %s0 = inlined_call_operand.hbm [shape: bf16[2,64,512], index: 0, kind: input, shape index: {}]
  %s1 = inlined_call_operand.hbm [shape: bf16[2,256,512], index: 1, kind: input, shape index: {}]
  %s2 = inlined_call_operand.vmem [shape: bf16[256,64], index: 2, kind: input, shape index: {}]
  %s3 = inlined_call_operand.hbm [shape: bf16[512,256], index: 3, kind: input, shape index: {}]
  %s4 = inlined_call_operand.hbm [shape: bf16[512,256], index: 4, kind: input, shape index: {}]
  %s5 = inlined_call_operand.hbm [shape: f32[1,256], index: 5, kind: input, shape index: {}]
  %s6 = inlined_call_operand.hbm [shape: bf16[2304,256], index: 6, kind: input, shape index: {}]
  %s7 = inlined_call_operand.hbm [shape: f32[1,256], index: 7, kind: input, shape index: {}]
  %s8 = inlined_call_operand.hbm [shape: bf16[2,256,256], index: 8, kind: output, shape index: {}]
  %s9 = sld [smem:[#allocation0]]
  $region85: #{tpu_custom_call.1} parent=0
    _
  %s11 = ssub.s32 1, %s9
  %s12 = scalar_select 0, %s11, %s9
  $region1: #{tpu_custom_call.1} parent=0
    #allocation5 [shape = 'u8[131072]{0}', space=vmem, size = 0x20000, scoped, tag = 'input window, operand 0']
    #allocation6 [shape = 's32[2]{0}', space=sflag, size = 0x8, scoped, tag = 'scoped memory for tpu_custom_call.1']
    #allocation7 [shape = 's32[2]{0}', space=sflag, size = 0x8, scoped, tag = 'scoped memory for tpu_custom_call.1']
    #allocation8 [shape = 'u8[524288]{0}', space=vmem, size = 0x80000, scoped, tag = 'input window, operand 1']
    #allocation9 [shape = 's32[2]{0}', space=sflag, size = 0x8, scoped, tag = 'scoped memory for tpu_custom_call.1']
    #allocation10 [shape = 'u8[262144]{0}', space=vmem, size = 0x40000, scoped, tag = 'input window, operand 3, single buffered']
    #allocation11 [shape = 'u8[262144]{0}', space=vmem, size = 0x40000, scoped, tag = 'input window, operand 4, single buffered']
    #allocation12 [shape = 's32[1]{0}', space=sflag, size = 0x4, scoped, tag = 'scoped memory for tpu_custom_call.1']
    #allocation13 [shape = 'u8[1024]{0}', space=vmem, size = 0x400, scoped, tag = 'input window, operand 5, single buffered']
    #allocation14 [shape = 'u8[1024]{0}', space=vmem, size = 0x400, scoped, tag = 'input window, operand 7, single buffered']
    #allocation15 [shape = 's32[1]{0}', space=sflag, size = 0x4, scoped, tag = 'scoped memory for tpu_custom_call.1']
    #allocation16 [shape = 'u8[262144]{0}', space=vmem, size = 0x40000, scoped, tag = 'output window, operand 0']
    %13 = vsyncpa [#allocation6], 0
    %s14 = scalar_lea.sflag [#allocation6], 1
    %15 = vsyncpa %s14, 0
    %16 = vsyncpa [#allocation9], 0
    %s17 = scalar_lea.sflag [#allocation9], 1
    %18 = vsyncpa %s17, 0
    %19 = vsyncpa [#allocation12], 0
    %20 = vsyncpa [#allocation15], 0
    %21 = vsyncpa [#allocation7], 0
    %s22 = scalar_lea.sflag [#allocation7], 1
    %23 = vsyncpa %s22, 0
    loop: start=0, step=1, limit=4
    $region2: #{tpu_custom_call.1} parent=1 // loop_pre_header
      _
    $region3: #{tpu_custom_call.1} parent=1 // loop_header
      %s25 = sphi 0, %s29
      %p26 = scmp.ge.s32.totalorder %s25, 4
      %s35 = sphi 0, %s37
      %s38 = sphi 0, %s35
      %s39 = sphi 0, %s38
      %s55 = sphi 0, %s39
      %s61 = sphi 0, %s63
      %s64 = sphi 0, %s61
      %s65 = sphi 0, %s64
      %s81 = sphi 0, %s65
      %s85 = sphi 0, %s85
      %s87 = sphi 0, %s85
      %s88 = sphi 0, %s87
      %s102 = sphi 0, %s88
      %s106 = sphi 0, %s106
      %s108 = sphi 0, %s106
      %s109 = sphi 0, %s108
      %s123 = sphi 0, %s109
      %s127 = sphi 0, %s127
      %s129 = sphi 0, %s127
      %s130 = sphi 0, %s129
      %s144 = sphi 0, %s130
      %s148 = sphi 0, %s148
      %s150 = sphi 0, %s148
      %s151 = sphi 0, %s150
      %s165 = sphi 0, %s151
      %s169 = sphi 0, %s169
      %s171 = sphi 0, %s169
      %s172 = sphi 0, %s171
      %s186 = sphi 0, %s172
      %s192 = sphi 0, %s194
      %s195 = sphi 0, %s192
      %s196 = sphi 0, %s195
      %s212 = sphi 0, %s196
    $region4: #{tpu_custom_call.1} parent=1 // loop_header_branch
      %28 = sbr.rel (%p26) target = $region8
    $region5: #{tpu_custom_call.1} parent=1 // loop_body
      %s30 = ssub.s32 %s25, 1
      %s31 = ssub.s32 %s25, 2
      %s32 = sadd.s32 %s25, 1
      %s33 = ssub.s32 %s25, %s32
      %p34 = scmp.eq.s32.totalorder %s33, 0
      %s36 = sadd.s32 %s35, 1
      %s37 = scalar_select %p34, %s35, %s36
      %p40 = pneg %p34
      %p41 = scmp.eq.s32.totalorder %s25, 1
      %p42 = por %p40, %p41
      %p43 = scmp.ne.s32.totalorder %s35, %s38
      %p44 = scmp.eq.s32.totalorder %s25, 0
      %p45 = por %p43, %p44
      %p46 = scmp.ne.s32.totalorder %s35, %s38
      %p47 = scmp.eq.s32.totalorder %s30, 1
      %p48 = por %p46, %p47
      %p49 = scmp.ne.s32.totalorder %s38, %s39
      %p50 = scmp.eq.s32.totalorder %s30, 0
      %p51 = por %p49, %p50
      %p52 = scmp.ne.s32.totalorder %s38, %s39
      %p53 = scmp.eq.s32.totalorder %s31, 1
      %p54 = por %p52, %p53
      %p56 = scmp.ne.s32.totalorder %s39, %s55
      %p57 = scmp.eq.s32.totalorder %s31, 0
      %p58 = por %p56, %p57
      %s59 = ssub.s32 %s25, %s32
      %p60 = scmp.eq.s32.totalorder %s59, 0
      %s62 = sadd.s32 %s61, 1
      %s63 = scalar_select %p60, %s61, %s62
      %p66 = pneg %p60
      %p67 = scmp.eq.s32.totalorder %s25, 1
      %p68 = por %p66, %p67
      %p69 = scmp.ne.s32.totalorder %s61, %s64
      %p70 = scmp.eq.s32.totalorder %s25, 0
      %p71 = por %p69, %p70
      %p72 = scmp.ne.s32.totalorder %s61, %s64
      %p73 = scmp.eq.s32.totalorder %s30, 1
      %p74 = por %p72, %p73
      %p75 = scmp.ne.s32.totalorder %s64, %s65
      %p76 = scmp.eq.s32.totalorder %s30, 0
      %p77 = por %p75, %p76
      %p78 = scmp.ne.s32.totalorder %s64, %s65
      %p79 = scmp.eq.s32.totalorder %s31, 1
      %p80 = por %p78, %p79
      %p82 = scmp.ne.s32.totalorder %s65, %s81
      %p83 = scmp.eq.s32.totalorder %s31, 0
      %p84 = por %p82, %p83
      %s86 = sadd.s32 %s85, 1
      %p89 = scmp.eq.s32.totalorder %s25, 1
      %p90 = scmp.ne.s32.totalorder %s85, %s87
      %p91 = scmp.eq.s32.totalorder %s25, 0
      %p92 = por %p90, %p91
      %p93 = scmp.ne.s32.totalorder %s85, %s87
      %p94 = scmp.eq.s32.totalorder %s30, 1
      %p95 = por %p93, %p94
      %p96 = scmp.ne.s32.totalorder %s87, %s88
      %p97 = scmp.eq.s32.totalorder %s30, 0
      %p98 = por %p96, %p97
      %p99 = scmp.ne.s32.totalorder %s87, %s88
      %p100 = scmp.eq.s32.totalorder %s31, 1
      %p101 = por %p99, %p100
      %p103 = scmp.ne.s32.totalorder %s88, %s102
      %p104 = scmp.eq.s32.totalorder %s31, 0
      %p105 = por %p103, %p104
      %s107 = sadd.s32 %s106, 1
      %p110 = scmp.eq.s32.totalorder %s25, 1
      %p111 = scmp.ne.s32.totalorder %s106, %s108
      %p112 = scmp.eq.s32.totalorder %s25, 0
      %p113 = por %p111, %p112
      %p114 = scmp.ne.s32.totalorder %s106, %s108
      %p115 = scmp.eq.s32.totalorder %s30, 1
      %p116 = por %p114, %p115
      %p117 = scmp.ne.s32.totalorder %s108, %s109
      %p118 = scmp.eq.s32.totalorder %s30, 0
      %p119 = por %p117, %p118
      %p120 = scmp.ne.s32.totalorder %s108, %s109
      %p121 = scmp.eq.s32.totalorder %s31, 1
      %p122 = por %p120, %p121
      %p124 = scmp.ne.s32.totalorder %s109, %s123
      %p125 = scmp.eq.s32.totalorder %s31, 0
      %p126 = por %p124, %p125
      %s128 = sadd.s32 %s127, 1
      %p131 = scmp.eq.s32.totalorder %s25, 1
      %p132 = scmp.ne.s32.totalorder %s127, %s129
      %p133 = scmp.eq.s32.totalorder %s25, 0
      %p134 = por %p132, %p133
      %p135 = scmp.ne.s32.totalorder %s127, %s129
      %p136 = scmp.eq.s32.totalorder %s30, 1
      %p137 = por %p135, %p136
      %p138 = scmp.ne.s32.totalorder %s129, %s130
      %p139 = scmp.eq.s32.totalorder %s30, 0
      %p140 = por %p138, %p139
      %p141 = scmp.ne.s32.totalorder %s129, %s130
      %p142 = scmp.eq.s32.totalorder %s31, 1
      %p143 = por %p141, %p142
      %p145 = scmp.ne.s32.totalorder %s130, %s144
      %p146 = scmp.eq.s32.totalorder %s31, 0
      %p147 = por %p145, %p146
      %s149 = sadd.s32 %s148, 1
      %p152 = scmp.eq.s32.totalorder %s25, 1
      %p153 = scmp.ne.s32.totalorder %s148, %s150
      %p154 = scmp.eq.s32.totalorder %s25, 0
      %p155 = por %p153, %p154
      %p156 = scmp.ne.s32.totalorder %s148, %s150
      %p157 = scmp.eq.s32.totalorder %s30, 1
      %p158 = por %p156, %p157
      %p159 = scmp.ne.s32.totalorder %s150, %s151
      %p160 = scmp.eq.s32.totalorder %s30, 0
      %p161 = por %p159, %p160
      %p162 = scmp.ne.s32.totalorder %s150, %s151
      %p163 = scmp.eq.s32.totalorder %s31, 1
      %p164 = por %p162, %p163
      %p166 = scmp.ne.s32.totalorder %s151, %s165
      %p167 = scmp.eq.s32.totalorder %s31, 0
      %p168 = por %p166, %p167
      %s170 = sadd.s32 %s169, 1
      %p173 = scmp.eq.s32.totalorder %s25, 1
      %p174 = scmp.ne.s32.totalorder %s169, %s171
      %p175 = scmp.eq.s32.totalorder %s25, 0
      %p176 = por %p174, %p175
      %p177 = scmp.ne.s32.totalorder %s169, %s171
      %p178 = scmp.eq.s32.totalorder %s30, 1
      %p179 = por %p177, %p178
      %p180 = scmp.ne.s32.totalorder %s171, %s172
      %p181 = scmp.eq.s32.totalorder %s30, 0
      %p182 = por %p180, %p181
      %p183 = scmp.ne.s32.totalorder %s171, %s172
      %p184 = scmp.eq.s32.totalorder %s31, 1
      %p185 = por %p183, %p184
      %p187 = scmp.ne.s32.totalorder %s172, %s186
      %p188 = scmp.eq.s32.totalorder %s31, 0
      %p189 = por %p187, %p188
      %s190 = ssub.s32 %s25, %s32
      %p191 = scmp.eq.s32.totalorder %s190, 0
      %s193 = sadd.s32 %s192, 1
      %s194 = scalar_select %p191, %s192, %s193
      %p197 = pneg %p191
      %p198 = scmp.eq.s32.totalorder %s25, 1
      %p199 = por %p197, %p198
      %p200 = scmp.ne.s32.totalorder %s192, %s195
      %p201 = scmp.eq.s32.totalorder %s25, 0
      %p202 = por %p200, %p201
      %p203 = scmp.ne.s32.totalorder %s192, %s195
      %p204 = scmp.eq.s32.totalorder %s30, 1
      %p205 = por %p203, %p204
      %p206 = scmp.ne.s32.totalorder %s195, %s196
      %p207 = scmp.eq.s32.totalorder %s30, 0
      %p208 = por %p206, %p207
      %p209 = scmp.ne.s32.totalorder %s195, %s196
      %p210 = scmp.eq.s32.totalorder %s31, 1
      %p211 = por %p209, %p210
      %p213 = scmp.ne.s32.totalorder %s196, %s212
      %p214 = scmp.eq.s32.totalorder %s31, 0
      %p215 = por %p213, %p214
      %p216 = scmp.le.s32.totalorder 1, %s25
      %p217 = scmp.lt.s32.totalorder %s25, 3
      %p218 = pnand %p216, %p217
      %p219 = pneg %p218
      // Predicated region
      $region9: #{tpu_custom_call.1} parent=5 // pred_check
        _
      $region10: #{tpu_custom_call.1} parent=5 // pred_check_branch
        %221 = sbr.rel (%p218) target = $region12
      $region11: #{tpu_custom_call.1} parent=5 // pred_region
        %s222 = ssub.s32 %s25, 1
        // Predicated region
        $region13: #{tpu_custom_call.1} parent=11 // pred_check
          %p223 = pneg %p98
        $region14: #{tpu_custom_call.1} parent=11 // pred_check_branch
          %225 = sbr.rel (%p223) target = $region16
        $region15: #{tpu_custom_call.1} parent=11 // pred_region
          _
        $region16: #{tpu_custom_call.1} parent=11 // pred_fallthru
          _
        // Predicated region
        $region17: #{tpu_custom_call.1} parent=11 // pred_check
          %p226 = pneg %p119
        $region18: #{tpu_custom_call.1} parent=11 // pred_check_branch
          %228 = sbr.rel (%p226) target = $region20
        $region19: #{tpu_custom_call.1} parent=11 // pred_region
          %s230 = ssub.s32 8192, 8192
          %231 = vsyncadd [#allocation9], %s230
          %s232 = sshll.u32 [#allocation10], 4
          %s233 = int_to_ptr.vmem [resolvable:$true] %s232
          %238 = dma.hbm_to_vmem [thread:$0]  %s3, 8192, %s233, [#allocation9], 128, 128, 8
        $region20: #{tpu_custom_call.1} parent=11 // pred_fallthru
          _
        // Predicated region
        $region21: #{tpu_custom_call.1} parent=11 // pred_check
          %p239 = pneg %p140
        $region22: #{tpu_custom_call.1} parent=11 // pred_check_branch
          %241 = sbr.rel (%p239) target = $region24
        $region23: #{tpu_custom_call.1} parent=11 // pred_region
          %s243 = ssub.s32 8192, 8192
          %244 = vsyncadd [#allocation12], %s243
          %s245 = sshll.u32 [#allocation11], 4
          %s246 = int_to_ptr.vmem [resolvable:$true] %s245
          %251 = dma.hbm_to_vmem [thread:$0]  %s4, 8192, %s246, [#allocation12], 128, 128, 8
        $region24: #{tpu_custom_call.1} parent=11 // pred_fallthru
          _
        // Predicated region
        $region25: #{tpu_custom_call.1} parent=11 // pred_check
          %p252 = pneg %p161
        $region26: #{tpu_custom_call.1} parent=11 // pred_check_branch
          %254 = sbr.rel (%p252) target = $region28
        $region27: #{tpu_custom_call.1} parent=11 // pred_region
          %s256 = ssub.s32 32, 32
          %257 = vsyncadd [#allocation12], %s256
          %s259 = sshll.u32 [#allocation13], 4
          %s260 = int_to_ptr.vmem [resolvable:$true] %s259
          %262 = dma.hbm_to_vmem [thread:$0]  %s5, 32, %s260, [#allocation12]
        $region28: #{tpu_custom_call.1} parent=11 // pred_fallthru
          _
        // Predicated region
        $region29: #{tpu_custom_call.1} parent=11 // pred_check
          %p263 = pneg %p182
        $region30: #{tpu_custom_call.1} parent=11 // pred_check_branch
          %265 = sbr.rel (%p263) target = $region32
        $region31: #{tpu_custom_call.1} parent=11 // pred_region
          %s267 = ssub.s32 32, 32
          %268 = vsyncadd [#allocation15], %s267
          %s270 = sshll.u32 [#allocation14], 4
          %s271 = int_to_ptr.vmem [resolvable:$true] %s270
          %273 = dma.hbm_to_vmem [thread:$0]  %s7, 32, %s271, [#allocation15]
        $region32: #{tpu_custom_call.1} parent=11 // pred_fallthru
          _
      $region12: #{tpu_custom_call.1} parent=5 // pred_fallthru
        _
      %p274 = scmp.lt.s32.totalorder %s25, 2
      // Predicated region
      $region33: #{tpu_custom_call.1} parent=5 // pred_check
        %p275 = pneg %p274
      $region34: #{tpu_custom_call.1} parent=5 // pred_check_branch
        %277 = sbr.rel (%p275) target = $region36
      $region35: #{tpu_custom_call.1} parent=5 // pred_region
        // Predicated region
        $region37: #{tpu_custom_call.1} parent=35 // pred_check
          %p278 = pneg %p45
        $region38: #{tpu_custom_call.1} parent=35 // pred_check_branch
          %280 = sbr.rel (%p278) target = $region40
        $region39: #{tpu_custom_call.1} parent=35 // pred_region
          %s281 = sand.u32 %s35, 1
          %s282 = scalar_lea.sflag [#allocation6], %s281
          %s283 = sand.u32 %s35, 1
          %s284 = smul.addr %s283, 128
          %s285 = scalar_lea.vmem [#allocation5], %s284
          %s287 = ssub.s32 2048, 2048
          %288 = vsyncadd %s282, %s287
          %s289 = smul.addr %s25, 32
          %s290 = smul.addr %s289, 64
          %s291 = scalar_lea.hbm %s0, %s290
          %s292 = sshll.u32 %s285, 4
          %s293 = int_to_ptr.vmem [resolvable:$true] %s292
          %298 = dma.hbm_to_vmem [thread:$0]  %s291, 2048, %s293, %s282, 256, 256, 16
        $region40: #{tpu_custom_call.1} parent=35 // pred_fallthru
          _
        // Predicated region
        $region41: #{tpu_custom_call.1} parent=35 // pred_check
          %p299 = pneg %p71
        $region42: #{tpu_custom_call.1} parent=35 // pred_check_branch
          %301 = sbr.rel (%p299) target = $region44
        $region43: #{tpu_custom_call.1} parent=35 // pred_region
          %s302 = sand.u32 %s25, 1
          %s303 = scalar_lea.sflag [#allocation9], %s302
          %s304 = sand.u32 %s61, 1
          %s305 = smul.addr %s304, 512
          %s306 = scalar_lea.vmem [#allocation8], %s305
          %s308 = ssub.s32 8192, 8192
          %309 = vsyncadd %s303, %s308
          %s310 = smul.addr %s25, 128
          %s311 = smul.addr %s310, 64
          %s312 = scalar_lea.hbm %s1, %s311
          %s313 = sshll.u32 %s306, 4
          %s314 = int_to_ptr.vmem [resolvable:$true] %s313
          %319 = dma.hbm_to_vmem [thread:$0]  %s312, 8192, %s314, %s303, 256, 256, 16
        $region44: #{tpu_custom_call.1} parent=35 // pred_fallthru
          _
      $region36: #{tpu_custom_call.1} parent=5 // pred_fallthru
        _
      %p320 = scmp.le.s32.totalorder 1, %s25
      %p321 = scmp.lt.s32.totalorder %s25, 3
      %p322 = pnand %p320, %p321
      %p323 = pneg %p322
      // Predicated region
      $region45: #{tpu_custom_call.1} parent=5 // pred_check
        _
      $region46: #{tpu_custom_call.1} parent=5 // pred_check_branch
        %325 = sbr.rel (%p322) target = $region48
      $region47: #{tpu_custom_call.1} parent=5 // pred_region
        #allocation18 [shape = 'u32[9]{0}', space=smem, size = 0x24, scoped, tag = 'DMA stride descriptor']
        %s326 = ssub.s32 %s25, 1
        %s327 = sand.u32 %s38, 1
        %s328 = scalar_lea.sflag [#allocation6], %s327
        %s329 = sand.u32 %s38, 1
        %s330 = smul.addr %s329, 128
        %s331 = scalar_lea.vmem [#allocation5], %s330
        // Predicated region
        $region49: #{tpu_custom_call.1} parent=47 // pred_check
          %p332 = pneg %p51
        $region50: #{tpu_custom_call.1} parent=47 // pred_check_branch
          %334 = sbr.rel (%p332) target = $region52
        $region51: #{tpu_custom_call.1} parent=47 // pred_region
          %335 = dma.done %s328, 2048
        $region52: #{tpu_custom_call.1} parent=47 // pred_fallthru
          _
        %s336 = sand.u32 %s30, 1
        %s337 = scalar_lea.sflag [#allocation9], %s336
        %s338 = sand.u32 %s64, 1
        %s339 = smul.addr %s338, 512
        %s340 = scalar_lea.vmem [#allocation8], %s339
        // Predicated region
        $region53: #{tpu_custom_call.1} parent=47 // pred_check
          %p341 = pneg %p77
        $region54: #{tpu_custom_call.1} parent=47 // pred_check_branch
          %343 = sbr.rel (%p341) target = $region56
        $region55: #{tpu_custom_call.1} parent=47 // pred_region
          %344 = dma.done %s337, 8192
        $region56: #{tpu_custom_call.1} parent=47 // pred_fallthru
          _
        // Predicated region
        $region57: #{tpu_custom_call.1} parent=47 // pred_check
          %p345 = pneg %p119
        $region58: #{tpu_custom_call.1} parent=47 // pred_check_branch
          %347 = sbr.rel (%p345) target = $region60
        $region59: #{tpu_custom_call.1} parent=47 // pred_region
          %348 = dma.done [#allocation9], 8192
        $region60: #{tpu_custom_call.1} parent=47 // pred_fallthru
          _
        // Predicated region
        $region61: #{tpu_custom_call.1} parent=47 // pred_check
          %p349 = pneg %p140
        $region62: #{tpu_custom_call.1} parent=47 // pred_check_branch
          %351 = sbr.rel (%p349) target = $region64
        $region63: #{tpu_custom_call.1} parent=47 // pred_region
          %352 = dma.done [#allocation12], 8192
        $region64: #{tpu_custom_call.1} parent=47 // pred_fallthru
          _
        // Predicated region
        $region65: #{tpu_custom_call.1} parent=47 // pred_check
          %p353 = pneg %p161
        $region66: #{tpu_custom_call.1} parent=47 // pred_check_branch
          %355 = sbr.rel (%p353) target = $region68
        $region67: #{tpu_custom_call.1} parent=47 // pred_region
          %356 = dma.done [#allocation12], 32
        $region68: #{tpu_custom_call.1} parent=47 // pred_fallthru
          _
        // Predicated region
        $region69: #{tpu_custom_call.1} parent=47 // pred_check
          %p357 = pneg %p182
        $region70: #{tpu_custom_call.1} parent=47 // pred_check_branch
          %359 = sbr.rel (%p357) target = $region72
        $region71: #{tpu_custom_call.1} parent=47 // pred_region
          %360 = dma.done [#allocation15], 32
        $region72: #{tpu_custom_call.1} parent=47 // pred_fallthru
          _
        %s361 = sand.u32 %s38, 1
        %s362 = scalar_lea.sflag [#allocation6], %s361
        %s363 = sand.u32 %s38, 1
        %s364 = smul.addr %s363, 128
        %s365 = scalar_lea.vmem [#allocation5], %s364
        %p366 = pneg %p51
        %p367 = pneg %p48
        %s368 = sand.u32 %s30, 1
        %s369 = scalar_lea.sflag [#allocation9], %s368
        %s370 = sand.u32 %s64, 1
        %s371 = smul.addr %s370, 512
        %s372 = scalar_lea.vmem [#allocation8], %s371
        %p373 = pneg %p77
        %p374 = pneg %p74
        %p375 = pneg %p98
        %p376 = pneg %p95
        %p377 = pneg %p119
        %p378 = pneg %p116
        %p379 = pneg %p140
        %p380 = pneg %p137
        %p381 = pneg %p161
        %p382 = pneg %p158
        %p383 = pneg %p182
        %p384 = pneg %p179
        %p385 = pneg %p208
        %p386 = pneg %p205
        %s387 = sand.u32 %s195, 1
        %s388 = scalar_lea.sflag [#allocation7], %s387
        %s389 = sand.u32 %s195, 1
        %s390 = smul.addr %s389, 256
        %s391 = scalar_lea.vmem [#allocation16], %s390
        %s394 = sshll.u32 1, 14
        %s395 = sxor.u32 4294967295, %s394
        %s397 = sld [smem:[#allocation0]]
        %s398 = sadd.s32 2, %s397
        %s400 = sshll.u32 7, 26
        %s401 = sxor.u32 4294967295, %s400
        %s402 = sand.u32 0, %s401
        %s403 = sshll.u32 %s398, 26
        %s404 = sor.u32 %s402, %s403
        %s405 = sshll.u32 [#allocation2], 4
        %s406 = int_to_ptr.vmem [resolvable:$true] %s405
        %409 = sst [smem:[#allocation18]] 256
        %s410 = scalar_lea.smem [#allocation18], 1
        %411 = sst [smem:[%s410]] 256
        %s412 = scalar_lea.smem [#allocation18], 2
        %413 = sst [smem:[%s412]] 2
        %s414 = scalar_lea.smem [#allocation18], 3
        %415 = sst [smem:[%s414]] 64
        %s416 = scalar_lea.smem [#allocation18], 4
        %417 = sst [smem:[%s416]] 128
        %s418 = scalar_lea.smem [#allocation18], 5
        %419 = sst [smem:[%s418]] 2
        %s420 = scalar_lea.smem [#allocation18], 6
        %421 = sst [smem:[%s420]] 128
        %s422 = scalar_lea.smem [#allocation18], 7
        %423 = sst [smem:[%s422]] 64
        %s424 = scalar_lea.smem [#allocation18], 8
        %425 = sst [smem:[%s424]] 4
        %427 = dma.general %s6, 36864, %s406, [#allocation3], [#allocation17], [#allocation18], %s404, 0
        %v428 = vld [vmem:[%s331] sm:$0xff]
        %v429 = vld [vmem:[%s331 + $0x8] sm:$0xff]
        %v430 = vld [vmem:[%s331 + $0x10] sm:$0xff]
        %v431 = vld [vmem:[%s331 + $0x18] sm:$0xff]
        %v432 = vld [vmem:[%s331 + $0x20] sm:$0xff]
        %v433 = vld [vmem:[%s331 + $0x28] sm:$0xff]
        %v434 = vld [vmem:[%s331 + $0x30] sm:$0xff]
        %v435 = vld [vmem:[%s331 + $0x38] sm:$0xff]
        %v436 = vld [vmem:[%s331 + $0x40] sm:$0xff]
        %v437 = vld [vmem:[%s331 + $0x48] sm:$0xff]
        %v438 = vld [vmem:[%s331 + $0x50] sm:$0xff]
        %v439 = vld [vmem:[%s331 + $0x58] sm:$0xff]
        %v440 = vld [vmem:[%s331 + $0x60] sm:$0xff]
        %v441 = vld [vmem:[%s331 + $0x68] sm:$0xff]
        %v442 = vld [vmem:[%s331 + $0x70] sm:$0xff]
        %v443 = vld [vmem:[%s331 + $0x78] sm:$0xff]
        %v444 = vld [vmem:[%s340] sm:$0xff]
        %v445 = vld [vmem:[%s340 + $0x8] sm:$0xff]
        %v446 = vld [vmem:[%s340 + $0x10] sm:$0xff]
        %v447 = vld [vmem:[%s340 + $0x18] sm:$0xff]
        %v448 = vld [vmem:[%s340 + $0x20] sm:$0xff]
        %v449 = vld [vmem:[%s340 + $0x28] sm:$0xff]
        %v450 = vld [vmem:[%s340 + $0x30] sm:$0xff]
        %v451 = vld [vmem:[%s340 + $0x38] sm:$0xff]
        %v452 = vld [vmem:[%s340 + $0x40] sm:$0xff]
        %v453 = vld [vmem:[%s340 + $0x48] sm:$0xff]
        %v454 = vld [vmem:[%s340 + $0x50] sm:$0xff]
        %v455 = vld [vmem:[%s340 + $0x58] sm:$0xff]
        %v456 = vld [vmem:[%s340 + $0x60] sm:$0xff]
        %v457 = vld [vmem:[%s340 + $0x68] sm:$0xff]
        %v458 = vld [vmem:[%s340 + $0x70] sm:$0xff]
        %v459 = vld [vmem:[%s340 + $0x78] sm:$0xff]
        %v460 = vld [vmem:[%s340 + $0x80] sm:$0xff]
        %v461 = vld [vmem:[%s340 + $0x88] sm:$0xff]
        %v462 = vld [vmem:[%s340 + $0x90] sm:$0xff]
        %v463 = vld [vmem:[%s340 + $0x98] sm:$0xff]
        %v464 = vld [vmem:[%s340 + $0xa0] sm:$0xff]
        %v465 = vld [vmem:[%s340 + $0xa8] sm:$0xff]
        %v466 = vld [vmem:[%s340 + $0xb0] sm:$0xff]
        %v467 = vld [vmem:[%s340 + $0xb8] sm:$0xff]
        %v468 = vld [vmem:[%s340 + $0xc0] sm:$0xff]
        %v469 = vld [vmem:[%s340 + $0xc8] sm:$0xff]
        %v470 = vld [vmem:[%s340 + $0xd0] sm:$0xff]
        %v471 = vld [vmem:[%s340 + $0xd8] sm:$0xff]
        %v472 = vld [vmem:[%s340 + $0xe0] sm:$0xff]
        %v473 = vld [vmem:[%s340 + $0xe8] sm:$0xff]
        %v474 = vld [vmem:[%s340 + $0xf0] sm:$0xff]
        %v475 = vld [vmem:[%s340 + $0xf8] sm:$0xff]
        %v476 = vld [vmem:[%s340 + $0x100] sm:$0xff]
        %v477 = vld [vmem:[%s340 + $0x108] sm:$0xff]
        %v478 = vld [vmem:[%s340 + $0x110] sm:$0xff]
        %v479 = vld [vmem:[%s340 + $0x118] sm:$0xff]
        %v480 = vld [vmem:[%s340 + $0x120] sm:$0xff]
        %v481 = vld [vmem:[%s340 + $0x128] sm:$0xff]
        %v482 = vld [vmem:[%s340 + $0x130] sm:$0xff]
        %v483 = vld [vmem:[%s340 + $0x138] sm:$0xff]
        %v484 = vld [vmem:[%s340 + $0x140] sm:$0xff]
        %v485 = vld [vmem:[%s340 + $0x148] sm:$0xff]
        %v486 = vld [vmem:[%s340 + $0x150] sm:$0xff]
        %v487 = vld [vmem:[%s340 + $0x158] sm:$0xff]
        %v488 = vld [vmem:[%s340 + $0x160] sm:$0xff]
        %v489 = vld [vmem:[%s340 + $0x168] sm:$0xff]
        %v490 = vld [vmem:[%s340 + $0x170] sm:$0xff]
        %v491 = vld [vmem:[%s340 + $0x178] sm:$0xff]
        %v492 = vld [vmem:[%s340 + $0x180] sm:$0xff]
        %v493 = vld [vmem:[%s340 + $0x188] sm:$0xff]
        %v494 = vld [vmem:[%s340 + $0x190] sm:$0xff]
        %v495 = vld [vmem:[%s340 + $0x198] sm:$0xff]
        %v496 = vld [vmem:[%s340 + $0x1a0] sm:$0xff]
        %v497 = vld [vmem:[%s340 + $0x1a8] sm:$0xff]
        %v498 = vld [vmem:[%s340 + $0x1b0] sm:$0xff]
        %v499 = vld [vmem:[%s340 + $0x1b8] sm:$0xff]
        %v500 = vld [vmem:[%s340 + $0x1c0] sm:$0xff]
        %v501 = vld [vmem:[%s340 + $0x1c8] sm:$0xff]
        %v502 = vld [vmem:[%s340 + $0x1d0] sm:$0xff]
        %v503 = vld [vmem:[%s340 + $0x1d8] sm:$0xff]
        %v504 = vld [vmem:[%s340 + $0x1e0] sm:$0xff]
        %v505 = vld [vmem:[%s340 + $0x1e8] sm:$0xff]
        %v506 = vld [vmem:[%s340 + $0x1f0] sm:$0xff]
        %v507 = vld [vmem:[%s340 + $0x1f8] sm:$0xff]
        %v508 = vld [vmem:[#allocation10] sm:$0xff]
        %v509 = vld [vmem:[#allocation10 + $0x8] sm:$0xff]
        %v510 = vld [vmem:[#allocation10 + $0x10] sm:$0xff]
        %v511 = vld [vmem:[#allocation10 + $0x18] sm:$0xff]
        %v512 = vld [vmem:[#allocation10 + $0x20] sm:$0xff]
        %v513 = vld [vmem:[#allocation10 + $0x28] sm:$0xff]
        %v514 = vld [vmem:[#allocation10 + $0x30] sm:$0xff]
        %v515 = vld [vmem:[#allocation10 + $0x38] sm:$0xff]
        %v516 = vld [vmem:[#allocation10 + $0x40] sm:$0xff]
        %v517 = vld [vmem:[#allocation10 + $0x48] sm:$0xff]
        %v518 = vld [vmem:[#allocation10 + $0x50] sm:$0xff]
        %v519 = vld [vmem:[#allocation10 + $0x58] sm:$0xff]
        %v520 = vld [vmem:[#allocation10 + $0x60] sm:$0xff]
        %v521 = vld [vmem:[#allocation10 + $0x68] sm:$0xff]
        %v522 = vld [vmem:[#allocation10 + $0x70] sm:$0xff]
        %v523 = vld [vmem:[#allocation10 + $0x78] sm:$0xff]
        %v524 = vld [vmem:[#allocation10 + $0x80] sm:$0xff]
        %v525 = vld [vmem:[#allocation10 + $0x88] sm:$0xff]
        %v526 = vld [vmem:[#allocation10 + $0x90] sm:$0xff]
        %v527 = vld [vmem:[#allocation10 + $0x98] sm:$0xff]
        %v528 = vld [vmem:[#allocation10 + $0xa0] sm:$0xff]
        %v529 = vld [vmem:[#allocation10 + $0xa8] sm:$0xff]
        %v530 = vld [vmem:[#allocation10 + $0xb0] sm:$0xff]
        %v531 = vld [vmem:[#allocation10 + $0xb8] sm:$0xff]
        %v532 = vld [vmem:[#allocation10 + $0xc0] sm:$0xff]
        %v533 = vld [vmem:[#allocation10 + $0xc8] sm:$0xff]
        %v534 = vld [vmem:[#allocation10 + $0xd0] sm:$0xff]
        %v535 = vld [vmem:[#allocation10 + $0xd8] sm:$0xff]
        %v536 = vld [vmem:[#allocation10 + $0xe0] sm:$0xff]
        %v537 = vld [vmem:[#allocation10 + $0xe8] sm:$0xff]
        %v538 = vld [vmem:[#allocation10 + $0xf0] sm:$0xff]
        %v539 = vld [vmem:[#allocation10 + $0xf8] sm:$0xff]
        %v540 = vld [vmem:[#allocation10 + $0x100] sm:$0xff]
        %v541 = vld [vmem:[#allocation10 + $0x108] sm:$0xff]
        %v542 = vld [vmem:[#allocation10 + $0x110] sm:$0xff]
        %v543 = vld [vmem:[#allocation10 + $0x118] sm:$0xff]
        %v544 = vld [vmem:[#allocation10 + $0x120] sm:$0xff]
        %v545 = vld [vmem:[#allocation10 + $0x128] sm:$0xff]
        %v546 = vld [vmem:[#allocation10 + $0x130] sm:$0xff]
        %v547 = vld [vmem:[#allocation10 + $0x138] sm:$0xff]
        %v548 = vld [vmem:[#allocation10 + $0x140] sm:$0xff]
        %v549 = vld [vmem:[#allocation10 + $0x148] sm:$0xff]
        %v550 = vld [vmem:[#allocation10 + $0x150] sm:$0xff]
        %v551 = vld [vmem:[#allocation10 + $0x158] sm:$0xff]
        %v552 = vld [vmem:[#allocation10 + $0x160] sm:$0xff]
        %v553 = vld [vmem:[#allocation10 + $0x168] sm:$0xff]
        %v554 = vld [vmem:[#allocation10 + $0x170] sm:$0xff]
        %v555 = vld [vmem:[#allocation10 + $0x178] sm:$0xff]
        %v556 = vld [vmem:[#allocation10 + $0x180] sm:$0xff]
        %v557 = vld [vmem:[#allocation10 + $0x188] sm:$0xff]
        %v558 = vld [vmem:[#allocation10 + $0x190] sm:$0xff]
        %v559 = vld [vmem:[#allocation10 + $0x198] sm:$0xff]
        %v560 = vld [vmem:[#allocation10 + $0x1a0] sm:$0xff]
        %v561 = vld [vmem:[#allocation10 + $0x1a8] sm:$0xff]
        %v562 = vld [vmem:[#allocation10 + $0x1b0] sm:$0xff]
        %v563 = vld [vmem:[#allocation10 + $0x1b8] sm:$0xff]
        %v564 = vld [vmem:[#allocation10 + $0x1c0] sm:$0xff]
        %v565 = vld [vmem:[#allocation10 + $0x1c8] sm:$0xff]
        %v566 = vld [vmem:[#allocation10 + $0x1d0] sm:$0xff]
        %v567 = vld [vmem:[#allocation10 + $0x1d8] sm:$0xff]
        %v568 = vld [vmem:[#allocation10 + $0x1e0] sm:$0xff]
        %v569 = vld [vmem:[#allocation10 + $0x1e8] sm:$0xff]
        %v570 = vld [vmem:[#allocation10 + $0x1f0] sm:$0xff]
        %v571 = vld [vmem:[#allocation10 + $0x1f8] sm:$0xff]
        %v588 = vunpack.c.l.b16 %v428
        %v589 = vunpack.c.h.b16 %v428
        %v590 = vunpack.c.l.b16 %v429
        %v591 = vunpack.c.h.b16 %v429
        %v592 = vunpack.c.l.b16 %v430
        %v593 = vunpack.c.h.b16 %v430
        %v594 = vunpack.c.l.b16 %v431
        %v595 = vunpack.c.h.b16 %v431
        %v596 = vunpack.c.l.b16 %v432
        %v597 = vunpack.c.h.b16 %v432
        %v598 = vunpack.c.l.b16 %v433
        %v599 = vunpack.c.h.b16 %v433
        %v600 = vunpack.c.l.b16 %v434
        %v601 = vunpack.c.h.b16 %v434
        %v602 = vunpack.c.l.b16 %v435
        %v603 = vunpack.c.h.b16 %v435
        %v604 = vunpack.c.l.b16 %v436
        %v605 = vunpack.c.h.b16 %v436
        %v606 = vunpack.c.l.b16 %v437
        %v607 = vunpack.c.h.b16 %v437
        %v608 = vunpack.c.l.b16 %v438
        %v609 = vunpack.c.h.b16 %v438
        %v610 = vunpack.c.l.b16 %v439
        %v611 = vunpack.c.h.b16 %v439
        %v612 = vunpack.c.l.b16 %v440
        %v613 = vunpack.c.h.b16 %v440
        %v614 = vunpack.c.l.b16 %v441
        %v615 = vunpack.c.h.b16 %v441
        %v616 = vunpack.c.l.b16 %v442
        %v617 = vunpack.c.h.b16 %v442
        %v618 = vunpack.c.l.b16 %v443
        %v619 = vunpack.c.h.b16 %v443
        %v620 = vpack.c.b16 %v592, %v588
        %v621 = vpack.c.b16 %v593, %v589
        %v622 = vpack.c.b16 %v594, %v590
        %v623 = vpack.c.b16 %v595, %v591
        %v624 = vpack.c.b16 %v600, %v596
        %v625 = vpack.c.b16 %v601, %v597
        %v626 = vpack.c.b16 %v602, %v598
        %v627 = vpack.c.b16 %v603, %v599
        %v628 = vpack.c.b16 %v608, %v604
        %v629 = vpack.c.b16 %v609, %v605
        %v630 = vpack.c.b16 %v610, %v606
        %v631 = vpack.c.b16 %v611, %v607
        %v632 = vpack.c.b16 %v616, %v612
        %v633 = vpack.c.b16 %v617, %v613
        %v634 = vpack.c.b16 %v618, %v614
        %v635 = vpack.c.b16 %v619, %v615
        %v716 = vunpack.c.l.b16 %v508
        %v717 = vunpack.c.h.b16 %v508
        %v718 = vunpack.c.l.b16 %v509
        %v719 = vunpack.c.h.b16 %v509
        %v720 = vunpack.c.l.b16 %v510
        %v721 = vunpack.c.h.b16 %v510
        %v722 = vunpack.c.l.b16 %v511
        %v723 = vunpack.c.h.b16 %v511
        %v724 = vunpack.c.l.b16 %v512
        %v725 = vunpack.c.h.b16 %v512
        %v726 = vunpack.c.l.b16 %v513
        %v727 = vunpack.c.h.b16 %v513
        %v728 = vunpack.c.l.b16 %v514
        %v729 = vunpack.c.h.b16 %v514
        %v730 = vunpack.c.l.b16 %v515
        %v731 = vunpack.c.h.b16 %v515
        %v732 = vunpack.c.l.b16 %v516
        %v733 = vunpack.c.h.b16 %v516
        %v734 = vunpack.c.l.b16 %v517
        %v735 = vunpack.c.h.b16 %v517
        %v736 = vunpack.c.l.b16 %v518
        %v737 = vunpack.c.h.b16 %v518
        %v738 = vunpack.c.l.b16 %v519
        %v739 = vunpack.c.h.b16 %v519
        %v740 = vunpack.c.l.b16 %v520
        %v741 = vunpack.c.h.b16 %v520
        %v742 = vunpack.c.l.b16 %v521
        %v743 = vunpack.c.h.b16 %v521
        %v744 = vunpack.c.l.b16 %v522
        %v745 = vunpack.c.h.b16 %v522
        %v746 = vunpack.c.l.b16 %v523
        %v747 = vunpack.c.h.b16 %v523
        %v748 = vunpack.c.l.b16 %v524
        %v749 = vunpack.c.h.b16 %v524
        %v750 = vunpack.c.l.b16 %v525
        %v751 = vunpack.c.h.b16 %v525
        %v752 = vunpack.c.l.b16 %v526
        %v753 = vunpack.c.h.b16 %v526
        %v754 = vunpack.c.l.b16 %v527
        %v755 = vunpack.c.h.b16 %v527
        %v756 = vunpack.c.l.b16 %v528
        %v757 = vunpack.c.h.b16 %v528
        %v758 = vunpack.c.l.b16 %v529
        %v759 = vunpack.c.h.b16 %v529
        %v760 = vunpack.c.l.b16 %v530
        %v761 = vunpack.c.h.b16 %v530
        %v762 = vunpack.c.l.b16 %v531
        %v763 = vunpack.c.h.b16 %v531
        %v764 = vunpack.c.l.b16 %v532
        %v765 = vunpack.c.h.b16 %v532
        %v766 = vunpack.c.l.b16 %v533
        %v767 = vunpack.c.h.b16 %v533
        %v768 = vunpack.c.l.b16 %v534
        %v769 = vunpack.c.h.b16 %v534
        %v770 = vunpack.c.l.b16 %v535
        %v771 = vunpack.c.h.b16 %v535
        %v772 = vunpack.c.l.b16 %v536
        %v773 = vunpack.c.h.b16 %v536
        %v774 = vunpack.c.l.b16 %v537
        %v775 = vunpack.c.h.b16 %v537
        %v776 = vunpack.c.l.b16 %v538
        %v777 = vunpack.c.h.b16 %v538
        %v778 = vunpack.c.l.b16 %v539
        %v779 = vunpack.c.h.b16 %v539
        %v780 = vunpack.c.l.b16 %v540
        %v781 = vunpack.c.h.b16 %v540
        %v782 = vunpack.c.l.b16 %v541
        %v783 = vunpack.c.h.b16 %v541
        %v784 = vunpack.c.l.b16 %v542
        %v785 = vunpack.c.h.b16 %v542
        %v786 = vunpack.c.l.b16 %v543
        %v787 = vunpack.c.h.b16 %v543
        %v788 = vunpack.c.l.b16 %v544
        %v789 = vunpack.c.h.b16 %v544
        %v790 = vunpack.c.l.b16 %v545
        %v791 = vunpack.c.h.b16 %v545
        %v792 = vunpack.c.l.b16 %v546
        %v793 = vunpack.c.h.b16 %v546
        %v794 = vunpack.c.l.b16 %v547
        %v795 = vunpack.c.h.b16 %v547
        %v796 = vunpack.c.l.b16 %v548
        %v797 = vunpack.c.h.b16 %v548
        %v798 = vunpack.c.l.b16 %v549
        %v799 = vunpack.c.h.b16 %v549
        %v800 = vunpack.c.l.b16 %v550
        %v801 = vunpack.c.h.b16 %v550
        %v802 = vunpack.c.l.b16 %v551
        %v803 = vunpack.c.h.b16 %v551
        %v804 = vunpack.c.l.b16 %v552
        %v805 = vunpack.c.h.b16 %v552
        %v806 = vunpack.c.l.b16 %v553
        %v807 = vunpack.c.h.b16 %v553
        %v808 = vunpack.c.l.b16 %v554
        %v809 = vunpack.c.h.b16 %v554
        %v810 = vunpack.c.l.b16 %v555
        %v811 = vunpack.c.h.b16 %v555
        %v812 = vunpack.c.l.b16 %v556
        %v813 = vunpack.c.h.b16 %v556
        %v814 = vunpack.c.l.b16 %v557
        %v815 = vunpack.c.h.b16 %v557
        %v816 = vunpack.c.l.b16 %v558
        %v817 = vunpack.c.h.b16 %v558
        %v818 = vunpack.c.l.b16 %v559
        %v819 = vunpack.c.h.b16 %v559
        %v820 = vunpack.c.l.b16 %v560
        %v821 = vunpack.c.h.b16 %v560
        %v822 = vunpack.c.l.b16 %v561
        %v823 = vunpack.c.h.b16 %v561
        %v824 = vunpack.c.l.b16 %v562
        %v825 = vunpack.c.h.b16 %v562
        %v826 = vunpack.c.l.b16 %v563
        %v827 = vunpack.c.h.b16 %v563
        %v828 = vunpack.c.l.b16 %v564
        %v829 = vunpack.c.h.b16 %v564
        %v830 = vunpack.c.l.b16 %v565
        %v831 = vunpack.c.h.b16 %v565
        %v832 = vunpack.c.l.b16 %v566
        %v833 = vunpack.c.h.b16 %v566
        %v834 = vunpack.c.l.b16 %v567
        %v835 = vunpack.c.h.b16 %v567
        %v836 = vunpack.c.l.b16 %v568
        %v837 = vunpack.c.h.b16 %v568
        %v838 = vunpack.c.l.b16 %v569
        %v839 = vunpack.c.h.b16 %v569
        %v840 = vunpack.c.l.b16 %v570
        %v841 = vunpack.c.h.b16 %v570
        %v842 = vunpack.c.l.b16 %v571
        %v843 = vunpack.c.h.b16 %v571
        %v844 = vpack.c.b16 %v718, %v716
        %v845 = vpack.c.b16 %v719, %v717
        %v846 = vpack.c.b16 %v722, %v720
        %v847 = vpack.c.b16 %v723, %v721
        %v848 = vpack.c.b16 %v726, %v724
        %v849 = vpack.c.b16 %v727, %v725
        %v850 = vpack.c.b16 %v730, %v728
        %v851 = vpack.c.b16 %v731, %v729
        %v852 = vpack.c.b16 %v734, %v732
        %v853 = vpack.c.b16 %v735, %v733
        %v854 = vpack.c.b16 %v738, %v736
        %v855 = vpack.c.b16 %v739, %v737
        %v856 = vpack.c.b16 %v742, %v740
        %v857 = vpack.c.b16 %v743, %v741
        %v858 = vpack.c.b16 %v746, %v744
        %v859 = vpack.c.b16 %v747, %v745
        %v860 = vpack.c.b16 %v750, %v748
        %v861 = vpack.c.b16 %v751, %v749
        %v862 = vpack.c.b16 %v754, %v752
        %v863 = vpack.c.b16 %v755, %v753
        %v864 = vpack.c.b16 %v758, %v756
        %v865 = vpack.c.b16 %v759, %v757
        %v866 = vpack.c.b16 %v762, %v760
        %v867 = vpack.c.b16 %v763, %v761
        %v868 = vpack.c.b16 %v766, %v764
        %v869 = vpack.c.b16 %v767, %v765
        %v870 = vpack.c.b16 %v770, %v768
        %v871 = vpack.c.b16 %v771, %v769
        %v872 = vpack.c.b16 %v774, %v772
        %v873 = vpack.c.b16 %v775, %v773
        %v874 = vpack.c.b16 %v778, %v776
        %v875 = vpack.c.b16 %v779, %v777
        %v876 = vpack.c.b16 %v782, %v780
        %v877 = vpack.c.b16 %v783, %v781
        %v878 = vpack.c.b16 %v786, %v784
        %v879 = vpack.c.b16 %v787, %v785
        %v880 = vpack.c.b16 %v790, %v788
        %v881 = vpack.c.b16 %v791, %v789
        %v882 = vpack.c.b16 %v794, %v792
        %v883 = vpack.c.b16 %v795, %v793
        %v884 = vpack.c.b16 %v798, %v796
        %v885 = vpack.c.b16 %v799, %v797
        %v886 = vpack.c.b16 %v802, %v800
        %v887 = vpack.c.b16 %v803, %v801
        %v888 = vpack.c.b16 %v806, %v804
        %v889 = vpack.c.b16 %v807, %v805
        %v890 = vpack.c.b16 %v810, %v808
        %v891 = vpack.c.b16 %v811, %v809
        %v892 = vpack.c.b16 %v814, %v812
        %v893 = vpack.c.b16 %v815, %v813
        %v894 = vpack.c.b16 %v818, %v816
        %v895 = vpack.c.b16 %v819, %v817
        %v896 = vpack.c.b16 %v822, %v820
        %v897 = vpack.c.b16 %v823, %v821
        %v898 = vpack.c.b16 %v826, %v824
        %v899 = vpack.c.b16 %v827, %v825
        %v900 = vpack.c.b16 %v830, %v828
        %v901 = vpack.c.b16 %v831, %v829
        %v902 = vpack.c.b16 %v834, %v832
        %v903 = vpack.c.b16 %v835, %v833
        %v904 = vpack.c.b16 %v838, %v836
        %v905 = vpack.c.b16 %v839, %v837
        %v906 = vpack.c.b16 %v842, %v840
        %v907 = vpack.c.b16 %v843, %v841
        %972 = vmatprep.subr.bf16.mxu0 %v845
        %973 = vmatpush1.bf16.msra.mxu0 %v844
        %974 = vmatprep.subr.bf16.mxu0 %v847
        %975 = vmatpush1.bf16.msra.mxu0 %v846
        %976 = vmatprep.subr.bf16.mxu0 %v849
        %977 = vmatpush1.bf16.msra.mxu0 %v848
        %978 = vmatprep.subr.bf16.mxu0 %v851
        %979 = vmatpush1.bf16.msra.mxu0 %v850
        %980 = vmatprep.subr.bf16.mxu0 %v853
        %981 = vmatpush1.bf16.msra.mxu0 %v852
        %982 = vmatprep.subr.bf16.mxu0 %v855
        %983 = vmatpush1.bf16.msra.mxu0 %v854
        %984 = vmatprep.subr.bf16.mxu0 %v857
        %985 = vmatpush1.bf16.msra.mxu0 %v856
        %986 = vmatprep.subr.bf16.mxu0 %v859
        %987 = vmatpush1.bf16.msra.mxu0 %v858
        %988 = vmatprep.subr.bf16.mxu0 %v861
        %989 = vmatpush1.bf16.msra.mxu0 %v860
        %990 = vmatprep.subr.bf16.mxu0 %v863
        %991 = vmatpush1.bf16.msra.mxu0 %v862
        %992 = vmatprep.subr.bf16.mxu0 %v865
        %993 = vmatpush1.bf16.msra.mxu0 %v864
        %994 = vmatprep.subr.bf16.mxu0 %v867
        %995 = vmatpush1.bf16.msra.mxu0 %v866
        %996 = vmatprep.subr.bf16.mxu0 %v869
        %997 = vmatpush1.bf16.msra.mxu0 %v868
        %998 = vmatprep.subr.bf16.mxu0 %v871
        %999 = vmatpush1.bf16.msra.mxu0 %v870
        %1000 = vmatprep.subr.bf16.mxu0 %v873
        %1001 = vmatpush1.bf16.msra.mxu0 %v872
        %1002 = vmatprep.subr.bf16.mxu0 %v875
        %1003 = vmatpush1.bf16.msra.mxu0 %v874
        %1004 = vmatprep.mubr.bf16.mxu0 %v621
        %1005 = vmatmul.mubr.bf16.gmra.mrb[0].mxu0 %v620
        %v1006 = vpop.f32.mrb[0].mxu0
        %v1007 = vadd.f32 0.0, %v1006
        %v1008 = vpop.f32.mrb[0].mxu0
        %v1009 = vadd.f32 0.0, %v1008
        %v1010 = vpop.f32.mrb[0].mxu0
        %v1011 = vadd.f32 0.0, %v1010
        %v1012 = vpop.f32.mrb[0].mxu0
        %v1013 = vadd.f32 0.0, %v1012
        %1014 = vmatprep.mubr.bf16.mxu0 %v625
        %1015 = vmatmul.mubr.bf16.gmra.mrb[0].mxu0 %v624
        %v1016 = vpop.f32.mrb[0].mxu0
        %v1017 = vadd.f32 0.0, %v1016
        %v1018 = vpop.f32.mrb[0].mxu0
        %v1019 = vadd.f32 0.0, %v1018
        %v1020 = vpop.f32.mrb[0].mxu0
        %v1021 = vadd.f32 0.0, %v1020
        %v1022 = vpop.f32.mrb[0].mxu0
        %v1023 = vadd.f32 0.0, %v1022
        %1024 = vmatprep.mubr.bf16.mxu0 %v629
        %1025 = vmatmul.mubr.bf16.gmra.mrb[0].mxu0 %v628
        %v1026 = vpop.f32.mrb[0].mxu0
        %v1027 = vadd.f32 0.0, %v1026
        %v1028 = vpop.f32.mrb[0].mxu0
        %v1029 = vadd.f32 0.0, %v1028
        %v1030 = vpop.f32.mrb[0].mxu0
        %v1031 = vadd.f32 0.0, %v1030
        %v1032 = vpop.f32.mrb[0].mxu0
        %v1033 = vadd.f32 0.0, %v1032
        %1034 = vmatprep.mubr.bf16.mxu0 %v633
        %1035 = vmatmul.mubr.bf16.gmra.mrb[0].mxu0 %v632
        %v1036 = vpop.f32.mrb[0].mxu0
        %v1037 = vadd.f32 0.0, %v1036
        %v1038 = vpop.f32.mrb[0].mxu0
        %v1039 = vadd.f32 0.0, %v1038
        %v1040 = vpop.f32.mrb[0].mxu0
        %v1041 = vadd.f32 0.0, %v1040
        %v1042 = vpop.f32.mrb[0].mxu0
        %v1043 = vadd.f32 0.0, %v1042
        %1044 = vdwg.mxu0
        %1045 = vmatprep.subr.bf16.mxu0 %v877
        %1046 = vmatpush1.bf16.msra.mxu0 %v876
        %1047 = vmatprep.subr.bf16.mxu0 %v879
        %1048 = vmatpush1.bf16.msra.mxu0 %v878
        %1049 = vmatprep.subr.bf16.mxu0 %v881
        %1050 = vmatpush1.bf16.msra.mxu0 %v880
        %1051 = vmatprep.subr.bf16.mxu0 %v883
        %1052 = vmatpush1.bf16.msra.mxu0 %v882
        %1053 = vmatprep.subr.bf16.mxu0 %v885
        %1054 = vmatpush1.bf16.msra.mxu0 %v884
        %1055 = vmatprep.subr.bf16.mxu0 %v887
        %1056 = vmatpush1.bf16.msra.mxu0 %v886
        %1057 = vmatprep.subr.bf16.mxu0 %v889
        %1058 = vmatpush1.bf16.msra.mxu0 %v888
        %1059 = vmatprep.subr.bf16.mxu0 %v891
        %1060 = vmatpush1.bf16.msra.mxu0 %v890
        %1061 = vmatprep.subr.bf16.mxu0 %v893
        %1062 = vmatpush1.bf16.msra.mxu0 %v892
        %1063 = vmatprep.subr.bf16.mxu0 %v895
        %1064 = vmatpush1.bf16.msra.mxu0 %v894
        %1065 = vmatprep.subr.bf16.mxu0 %v897
        %1066 = vmatpush1.bf16.msra.mxu0 %v896
        %1067 = vmatprep.subr.bf16.mxu0 %v899
        %1068 = vmatpush1.bf16.msra.mxu0 %v898
        %1069 = vmatprep.subr.bf16.mxu0 %v901
        %1070 = vmatpush1.bf16.msra.mxu0 %v900
        %1071 = vmatprep.subr.bf16.mxu0 %v903
        %1072 = vmatpush1.bf16.msra.mxu0 %v902
        %1073 = vmatprep.subr.bf16.mxu0 %v905
        %1074 = vmatpush1.bf16.msra.mxu0 %v904
        %1075 = vmatprep.subr.bf16.mxu0 %v907
        %1076 = vmatpush1.bf16.msra.mxu0 %v906
        %1077 = vmatprep.mubr.bf16.mxu0 %v623
        %1078 = vmatmul.mubr.bf16.gmra.mrb[0].mxu0 %v622
        %v1079 = vpop.f32.mrb[0].mxu0
        %v1080 = vadd.f32 %v1007, %v1079
        %v1081 = vpop.f32.mrb[0].mxu0
        %v1082 = vadd.f32 %v1009, %v1081
        %v1083 = vpop.f32.mrb[0].mxu0
        %v1084 = vadd.f32 %v1011, %v1083
        %v1085 = vpop.f32.mrb[0].mxu0
        %v1086 = vadd.f32 %v1013, %v1085
        %1087 = vmatprep.mubr.bf16.mxu0 %v627
        %1088 = vmatmul.mubr.bf16.gmra.mrb[0].mxu0 %v626
        %v1089 = vpop.f32.mrb[0].mxu0
        %v1090 = vadd.f32 %v1017, %v1089
        %v1091 = vpop.f32.mrb[0].mxu0
        %v1092 = vadd.f32 %v1019, %v1091
        %v1093 = vpop.f32.mrb[0].mxu0
        %v1094 = vadd.f32 %v1021, %v1093
        %v1095 = vpop.f32.mrb[0].mxu0
        %v1096 = vadd.f32 %v1023, %v1095
        %1097 = vmatprep.mubr.bf16.mxu0 %v631
        %1098 = vmatmul.mubr.bf16.gmra.mrb[0].mxu0 %v630
        %v1099 = vpop.f32.mrb[0].mxu0
        %v1100 = vadd.f32 %v1027, %v1099
        %v1101 = vpop.f32.mrb[0].mxu0
        %v1102 = vadd.f32 %v1029, %v1101
        %v1103 = vpop.f32.mrb[0].mxu0
        %v1104 = vadd.f32 %v1031, %v1103
        %v1105 = vpop.f32.mrb[0].mxu0
        %v1106 = vadd.f32 %v1033, %v1105
        %1107 = vmatprep.mubr.bf16.mxu0 %v635
        %1108 = vmatmul.mubr.bf16.gmra.mrb[0].mxu0 %v634
        %v1109 = vpop.f32.mrb[0].mxu0
        %v1110 = vadd.f32 %v1037, %v1109
        %v1111 = vpop.f32.mrb[0].mxu0
        %v1112 = vadd.f32 %v1039, %v1111
        %v1113 = vpop.f32.mrb[0].mxu0
        %v1114 = vadd.f32 %v1041, %v1113
        %v1115 = vpop.f32.mrb[0].mxu0
        %v1116 = vadd.f32 %v1043, %v1115
        %1117 = vdwg.mxu0
        %v1118 = vld [vmem:[%s2] sm:$0xf]
        %v1119 = vld [vmem:[%s2 + $0x4] sm:$0xf]
        %v1120 = vld [vmem:[%s2 + $0x8] sm:$0xf]
        %v1121 = vld [vmem:[%s2 + $0xc] sm:$0xf]
        %v1122 = vld [vmem:[%s2 + $0x10] sm:$0xf]
        %v1123 = vld [vmem:[%s2 + $0x14] sm:$0xf]
        %v1124 = vld [vmem:[%s2 + $0x18] sm:$0xf]
        %v1125 = vld [vmem:[%s2 + $0x1c] sm:$0xf]
        %v1126 = vld [vmem:[%s2 + $0x20] sm:$0xf]
        %v1127 = vld [vmem:[%s2 + $0x24] sm:$0xf]
        %v1128 = vld [vmem:[%s2 + $0x28] sm:$0xf]
        %v1129 = vld [vmem:[%s2 + $0x2c] sm:$0xf]
        %v1130 = vld [vmem:[%s2 + $0x30] sm:$0xf]
        %v1131 = vld [vmem:[%s2 + $0x34] sm:$0xf]
        %v1132 = vld [vmem:[%s2 + $0x38] sm:$0xf]
        %v1133 = vld [vmem:[%s2 + $0x3c] sm:$0xf]
        %v1134 = vld [vmem:[%s2 + $0x40] sm:$0xf]
        %v1135 = vld [vmem:[%s2 + $0x44] sm:$0xf]
        %v1136 = vld [vmem:[%s2 + $0x48] sm:$0xf]
        %v1137 = vld [vmem:[%s2 + $0x4c] sm:$0xf]
        %v1138 = vld [vmem:[%s2 + $0x50] sm:$0xf]
        %v1139 = vld [vmem:[%s2 + $0x54] sm:$0xf]
        %v1140 = vld [vmem:[%s2 + $0x58] sm:$0xf]
        %v1141 = vld [vmem:[%s2 + $0x5c] sm:$0xf]
        %v1142 = vld [vmem:[%s2 + $0x60] sm:$0xf]
        %v1143 = vld [vmem:[%s2 + $0x64] sm:$0xf]
        %v1144 = vld [vmem:[%s2 + $0x68] sm:$0xf]
        %v1145 = vld [vmem:[%s2 + $0x6c] sm:$0xf]
        %v1146 = vld [vmem:[%s2 + $0x70] sm:$0xf]
        %v1147 = vld [vmem:[%s2 + $0x74] sm:$0xf]
        %v1148 = vld [vmem:[%s2 + $0x78] sm:$0xf]
        %v1149 = vld [vmem:[%s2 + $0x7c] sm:$0xf]
        %v1150 = vpack.c.bf16 %v1084, %v1080
        %v1151 = vpack.c.bf16 %v1086, %v1082
        %v1152 = vpack.c.bf16 %v1094, %v1090
        %v1153 = vpack.c.bf16 %v1096, %v1092
        %v1154 = vpack.c.bf16 %v1104, %v1100
        %v1155 = vpack.c.bf16 %v1106, %v1102
        %v1156 = vpack.c.bf16 %v1114, %v1110
        %v1157 = vpack.c.bf16 %v1116, %v1112
        %v1158 = vld [vmem:[#allocation11] sm:$0xff]
        %v1159 = vld [vmem:[#allocation11 + $0x8] sm:$0xff]
        %v1160 = vld [vmem:[#allocation11 + $0x10] sm:$0xff]
        %v1161 = vld [vmem:[#allocation11 + $0x18] sm:$0xff]
        %v1162 = vld [vmem:[#allocation11 + $0x20] sm:$0xff]
        %v1163 = vld [vmem:[#allocation11 + $0x28] sm:$0xff]
        %v1164 = vld [vmem:[#allocation11 + $0x30] sm:$0xff]
        %v1165 = vld [vmem:[#allocation11 + $0x38] sm:$0xff]
        %v1166 = vld [vmem:[#allocation11 + $0x40] sm:$0xff]
        %v1167 = vld [vmem:[#allocation11 + $0x48] sm:$0xff]
        %v1168 = vld [vmem:[#allocation11 + $0x50] sm:$0xff]
        %v1169 = vld [vmem:[#allocation11 + $0x58] sm:$0xff]
        %v1170 = vld [vmem:[#allocation11 + $0x60] sm:$0xff]
        %v1171 = vld [vmem:[#allocation11 + $0x68] sm:$0xff]
        %v1172 = vld [vmem:[#allocation11 + $0x70] sm:$0xff]
        %v1173 = vld [vmem:[#allocation11 + $0x78] sm:$0xff]
        %v1174 = vld [vmem:[#allocation11 + $0x80] sm:$0xff]
        %v1175 = vld [vmem:[#allocation11 + $0x88] sm:$0xff]
        %v1176 = vld [vmem:[#allocation11 + $0x90] sm:$0xff]
        %v1177 = vld [vmem:[#allocation11 + $0x98] sm:$0xff]
        %v1178 = vld [vmem:[#allocation11 + $0xa0] sm:$0xff]
        %v1179 = vld [vmem:[#allocation11 + $0xa8] sm:$0xff]
        %v1180 = vld [vmem:[#allocation11 + $0xb0] sm:$0xff]
        %v1181 = vld [vmem:[#allocation11 + $0xb8] sm:$0xff]
        %v1182 = vld [vmem:[#allocation11 + $0xc0] sm:$0xff]
        %v1183 = vld [vmem:[#allocation11 + $0xc8] sm:$0xff]
        %v1184 = vld [vmem:[#allocation11 + $0xd0] sm:$0xff]
        %v1185 = vld [vmem:[#allocation11 + $0xd8] sm:$0xff]
        %v1186 = vld [vmem:[#allocation11 + $0xe0] sm:$0xff]
        %v1187 = vld [vmem:[#allocation11 + $0xe8] sm:$0xff]
        %v1188 = vld [vmem:[#allocation11 + $0xf0] sm:$0xff]
        %v1189 = vld [vmem:[#allocation11 + $0xf8] sm:$0xff]
        %v1190 = vld [vmem:[#allocation11 + $0x100] sm:$0xff]
        %v1191 = vld [vmem:[#allocation11 + $0x108] sm:$0xff]
        %v1192 = vld [vmem:[#allocation11 + $0x110] sm:$0xff]
        %v1193 = vld [vmem:[#allocation11 + $0x118] sm:$0xff]
        %v1194 = vld [vmem:[#allocation11 + $0x120] sm:$0xff]
        %v1195 = vld [vmem:[#allocation11 + $0x128] sm:$0xff]
        %v1196 = vld [vmem:[#allocation11 + $0x130] sm:$0xff]
        %v1197 = vld [vmem:[#allocation11 + $0x138] sm:$0xff]
        %v1198 = vld [vmem:[#allocation11 + $0x140] sm:$0xff]
        %v1199 = vld [vmem:[#allocation11 + $0x148] sm:$0xff]
        %v1200 = vld [vmem:[#allocation11 + $0x150] sm:$0xff]
        %v1201 = vld [vmem:[#allocation11 + $0x158] sm:$0xff]
        %v1202 = vld [vmem:[#allocation11 + $0x160] sm:$0xff]
        %v1203 = vld [vmem:[#allocation11 + $0x168] sm:$0xff]
        %v1204 = vld [vmem:[#allocation11 + $0x170] sm:$0xff]
        %v1205 = vld [vmem:[#allocation11 + $0x178] sm:$0xff]
        %v1206 = vld [vmem:[#allocation11 + $0x180] sm:$0xff]
        %v1207 = vld [vmem:[#allocation11 + $0x188] sm:$0xff]
        %v1208 = vld [vmem:[#allocation11 + $0x190] sm:$0xff]
        %v1209 = vld [vmem:[#allocation11 + $0x198] sm:$0xff]
        %v1210 = vld [vmem:[#allocation11 + $0x1a0] sm:$0xff]
        %v1211 = vld [vmem:[#allocation11 + $0x1a8] sm:$0xff]
        %v1212 = vld [vmem:[#allocation11 + $0x1b0] sm:$0xff]
        %v1213 = vld [vmem:[#allocation11 + $0x1b8] sm:$0xff]
        %v1214 = vld [vmem:[#allocation11 + $0x1c0] sm:$0xff]
        %v1215 = vld [vmem:[#allocation11 + $0x1c8] sm:$0xff]
        %v1216 = vld [vmem:[#allocation11 + $0x1d0] sm:$0xff]
        %v1217 = vld [vmem:[#allocation11 + $0x1d8] sm:$0xff]
        %v1218 = vld [vmem:[#allocation11 + $0x1e0] sm:$0xff]
        %v1219 = vld [vmem:[#allocation11 + $0x1e8] sm:$0xff]
        %v1220 = vld [vmem:[#allocation11 + $0x1f0] sm:$0xff]
        %v1221 = vld [vmem:[#allocation11 + $0x1f8] sm:$0xff]
        %v1286 = vunpack.c.l.b16 %v444
        %v1287 = vunpack.c.h.b16 %v444
        %v1288 = vunpack.c.l.b16 %v445
        %v1289 = vunpack.c.h.b16 %v445
        %v1290 = vunpack.c.l.b16 %v446
        %v1291 = vunpack.c.h.b16 %v446
        %v1292 = vunpack.c.l.b16 %v447
        %v1293 = vunpack.c.h.b16 %v447
        %v1294 = vunpack.c.l.b16 %v448
        %v1295 = vunpack.c.h.b16 %v448
        %v1296 = vunpack.c.l.b16 %v449
        %v1297 = vunpack.c.h.b16 %v449
        %v1298 = vunpack.c.l.b16 %v450
        %v1299 = vunpack.c.h.b16 %v450
        %v1300 = vunpack.c.l.b16 %v451
        %v1301 = vunpack.c.h.b16 %v451
        %v1302 = vunpack.c.l.b16 %v452
        %v1303 = vunpack.c.h.b16 %v452
        %v1304 = vunpack.c.l.b16 %v453
        %v1305 = vunpack.c.h.b16 %v453
        %v1306 = vunpack.c.l.b16 %v454
        %v1307 = vunpack.c.h.b16 %v454
        %v1308 = vunpack.c.l.b16 %v455
        %v1309 = vunpack.c.h.b16 %v455
        %v1310 = vunpack.c.l.b16 %v456
        %v1311 = vunpack.c.h.b16 %v456
        %v1312 = vunpack.c.l.b16 %v457
        %v1313 = vunpack.c.h.b16 %v457
        %v1314 = vunpack.c.l.b16 %v458
        %v1315 = vunpack.c.h.b16 %v458
        %v1316 = vunpack.c.l.b16 %v459
        %v1317 = vunpack.c.h.b16 %v459
        %v1318 = vunpack.c.l.b16 %v460
        %v1319 = vunpack.c.h.b16 %v460
        %v1320 = vunpack.c.l.b16 %v461
        %v1321 = vunpack.c.h.b16 %v461
        %v1322 = vunpack.c.l.b16 %v462
        %v1323 = vunpack.c.h.b16 %v462
        %v1324 = vunpack.c.l.b16 %v463
        %v1325 = vunpack.c.h.b16 %v463
        %v1326 = vunpack.c.l.b16 %v464
        %v1327 = vunpack.c.h.b16 %v464
        %v1328 = vunpack.c.l.b16 %v465
        %v1329 = vunpack.c.h.b16 %v465
        %v1330 = vunpack.c.l.b16 %v466
        %v1331 = vunpack.c.h.b16 %v466
        %v1332 = vunpack.c.l.b16 %v467
        %v1333 = vunpack.c.h.b16 %v467
        %v1334 = vunpack.c.l.b16 %v468
        %v1335 = vunpack.c.h.b16 %v468
        %v1336 = vunpack.c.l.b16 %v469
        %v1337 = vunpack.c.h.b16 %v469
        %v1338 = vunpack.c.l.b16 %v470
        %v1339 = vunpack.c.h.b16 %v470
        %v1340 = vunpack.c.l.b16 %v471
        %v1341 = vunpack.c.h.b16 %v471
        %v1342 = vunpack.c.l.b16 %v472
        %v1343 = vunpack.c.h.b16 %v472
        %v1344 = vunpack.c.l.b16 %v473
        %v1345 = vunpack.c.h.b16 %v473
        %v1346 = vunpack.c.l.b16 %v474
        %v1347 = vunpack.c.h.b16 %v474
        %v1348 = vunpack.c.l.b16 %v475
        %v1349 = vunpack.c.h.b16 %v475
        %v1350 = vunpack.c.l.b16 %v476
        %v1351 = vunpack.c.h.b16 %v476
        %v1352 = vunpack.c.l.b16 %v477
        %v1353 = vunpack.c.h.b16 %v477
        %v1354 = vunpack.c.l.b16 %v478
        %v1355 = vunpack.c.h.b16 %v478
        %v1356 = vunpack.c.l.b16 %v479
        %v1357 = vunpack.c.h.b16 %v479
        %v1358 = vunpack.c.l.b16 %v480
        %v1359 = vunpack.c.h.b16 %v480
        %v1360 = vunpack.c.l.b16 %v481
        %v1361 = vunpack.c.h.b16 %v481
        %v1362 = vunpack.c.l.b16 %v482
        %v1363 = vunpack.c.h.b16 %v482
        %v1364 = vunpack.c.l.b16 %v483
        %v1365 = vunpack.c.h.b16 %v483
        %v1366 = vunpack.c.l.b16 %v484
        %v1367 = vunpack.c.h.b16 %v484
        %v1368 = vunpack.c.l.b16 %v485
        %v1369 = vunpack.c.h.b16 %v485
        %v1370 = vunpack.c.l.b16 %v486
        %v1371 = vunpack.c.h.b16 %v486
        %v1372 = vunpack.c.l.b16 %v487
        %v1373 = vunpack.c.h.b16 %v487
        %v1374 = vunpack.c.l.b16 %v488
        %v1375 = vunpack.c.h.b16 %v488
        %v1376 = vunpack.c.l.b16 %v489
        %v1377 = vunpack.c.h.b16 %v489
        %v1378 = vunpack.c.l.b16 %v490
        %v1379 = vunpack.c.h.b16 %v490
        %v1380 = vunpack.c.l.b16 %v491
        %v1381 = vunpack.c.h.b16 %v491
        %v1382 = vunpack.c.l.b16 %v492
        %v1383 = vunpack.c.h.b16 %v492
        %v1384 = vunpack.c.l.b16 %v493
        %v1385 = vunpack.c.h.b16 %v493
        %v1386 = vunpack.c.l.b16 %v494
        %v1387 = vunpack.c.h.b16 %v494
        %v1388 = vunpack.c.l.b16 %v495
        %v1389 = vunpack.c.h.b16 %v495
        %v1390 = vunpack.c.l.b16 %v496
        %v1391 = vunpack.c.h.b16 %v496
        %v1392 = vunpack.c.l.b16 %v497
        %v1393 = vunpack.c.h.b16 %v497
        %v1394 = vunpack.c.l.b16 %v498
        %v1395 = vunpack.c.h.b16 %v498
        %v1396 = vunpack.c.l.b16 %v499
        %v1397 = vunpack.c.h.b16 %v499
        %v1398 = vunpack.c.l.b16 %v500
        %v1399 = vunpack.c.h.b16 %v500
        %v1400 = vunpack.c.l.b16 %v501
        %v1401 = vunpack.c.h.b16 %v501
        %v1402 = vunpack.c.l.b16 %v502
        %v1403 = vunpack.c.h.b16 %v502
        %v1404 = vunpack.c.l.b16 %v503
        %v1405 = vunpack.c.h.b16 %v503
        %v1406 = vunpack.c.l.b16 %v504
        %v1407 = vunpack.c.h.b16 %v504
        %v1408 = vunpack.c.l.b16 %v505
        %v1409 = vunpack.c.h.b16 %v505
        %v1410 = vunpack.c.l.b16 %v506
        %v1411 = vunpack.c.h.b16 %v506
        %v1412 = vunpack.c.l.b16 %v507
        %v1413 = vunpack.c.h.b16 %v507
        %v1414 = vpack.c.b16 %v1290, %v1286
        %v1415 = vpack.c.b16 %v1291, %v1287
        %v1416 = vpack.c.b16 %v1292, %v1288
        %v1417 = vpack.c.b16 %v1293, %v1289
        %v1418 = vpack.c.b16 %v1298, %v1294
        %v1419 = vpack.c.b16 %v1299, %v1295
        %v1420 = vpack.c.b16 %v1300, %v1296
        %v1421 = vpack.c.b16 %v1301, %v1297
        %v1422 = vpack.c.b16 %v1306, %v1302
        %v1423 = vpack.c.b16 %v1307, %v1303
        %v1424 = vpack.c.b16 %v1308, %v1304
        %v1425 = vpack.c.b16 %v1309, %v1305
        %v1426 = vpack.c.b16 %v1314, %v1310
        %v1427 = vpack.c.b16 %v1315, %v1311
        %v1428 = vpack.c.b16 %v1316, %v1312
        %v1429 = vpack.c.b16 %v1317, %v1313
        %v1430 = vpack.c.b16 %v1322, %v1318
        %v1431 = vpack.c.b16 %v1323, %v1319
        %v1432 = vpack.c.b16 %v1324, %v1320
        %v1433 = vpack.c.b16 %v1325, %v1321
        %v1434 = vpack.c.b16 %v1330, %v1326
        %v1435 = vpack.c.b16 %v1331, %v1327
        %v1436 = vpack.c.b16 %v1332, %v1328
        %v1437 = vpack.c.b16 %v1333, %v1329
        %v1438 = vpack.c.b16 %v1338, %v1334
        %v1439 = vpack.c.b16 %v1339, %v1335
        %v1440 = vpack.c.b16 %v1340, %v1336
        %v1441 = vpack.c.b16 %v1341, %v1337
        %v1442 = vpack.c.b16 %v1346, %v1342
        %v1443 = vpack.c.b16 %v1347, %v1343
        %v1444 = vpack.c.b16 %v1348, %v1344
        %v1445 = vpack.c.b16 %v1349, %v1345
        %v1446 = vpack.c.b16 %v1354, %v1350
        %v1447 = vpack.c.b16 %v1355, %v1351
        %v1448 = vpack.c.b16 %v1356, %v1352
        %v1449 = vpack.c.b16 %v1357, %v1353
        %v1450 = vpack.c.b16 %v1362, %v1358
        %v1451 = vpack.c.b16 %v1363, %v1359
        %v1452 = vpack.c.b16 %v1364, %v1360
        %v1453 = vpack.c.b16 %v1365, %v1361
        %v1454 = vpack.c.b16 %v1370, %v1366
        %v1455 = vpack.c.b16 %v1371, %v1367
        %v1456 = vpack.c.b16 %v1372, %v1368
        %v1457 = vpack.c.b16 %v1373, %v1369
        %v1458 = vpack.c.b16 %v1378, %v1374
        %v1459 = vpack.c.b16 %v1379, %v1375
        %v1460 = vpack.c.b16 %v1380, %v1376
        %v1461 = vpack.c.b16 %v1381, %v1377
        %v1462 = vpack.c.b16 %v1386, %v1382
        %v1463 = vpack.c.b16 %v1387, %v1383
        %v1464 = vpack.c.b16 %v1388, %v1384
        %v1465 = vpack.c.b16 %v1389, %v1385
        %v1466 = vpack.c.b16 %v1394, %v1390
        %v1467 = vpack.c.b16 %v1395, %v1391
        %v1468 = vpack.c.b16 %v1396, %v1392
        %v1469 = vpack.c.b16 %v1397, %v1393
        %v1470 = vpack.c.b16 %v1402, %v1398
        %v1471 = vpack.c.b16 %v1403, %v1399
        %v1472 = vpack.c.b16 %v1404, %v1400
        %v1473 = vpack.c.b16 %v1405, %v1401
        %v1474 = vpack.c.b16 %v1410, %v1406
        %v1475 = vpack.c.b16 %v1411, %v1407
        %v1476 = vpack.c.b16 %v1412, %v1408
        %v1477 = vpack.c.b16 %v1413, %v1409
        %v1606 = vunpack.c.l.b16 %v1158
        %v1607 = vunpack.c.h.b16 %v1158
        %v1608 = vunpack.c.l.b16 %v1159
        %v1609 = vunpack.c.h.b16 %v1159
        %v1610 = vunpack.c.l.b16 %v1160
        %v1611 = vunpack.c.h.b16 %v1160
        %v1612 = vunpack.c.l.b16 %v1161
        %v1613 = vunpack.c.h.b16 %v1161
        %v1614 = vunpack.c.l.b16 %v1162
        %v1615 = vunpack.c.h.b16 %v1162
        %v1616 = vunpack.c.l.b16 %v1163
        %v1617 = vunpack.c.h.b16 %v1163
        %v1618 = vunpack.c.l.b16 %v1164
        %v1619 = vunpack.c.h.b16 %v1164
        %v1620 = vunpack.c.l.b16 %v1165
        %v1621 = vunpack.c.h.b16 %v1165
        %v1622 = vunpack.c.l.b16 %v1166
        %v1623 = vunpack.c.h.b16 %v1166
        %v1624 = vunpack.c.l.b16 %v1167
        %v1625 = vunpack.c.h.b16 %v1167
        %v1626 = vunpack.c.l.b16 %v1168
        %v1627 = vunpack.c.h.b16 %v1168
        %v1628 = vunpack.c.l.b16 %v1169
        %v1629 = vunpack.c.h.b16 %v1169
        %v1630 = vunpack.c.l.b16 %v1170
        %v1631 = vunpack.c.h.b16 %v1170
        %v1632 = vunpack.c.l.b16 %v1171
        %v1633 = vunpack.c.h.b16 %v1171
        %v1634 = vunpack.c.l.b16 %v1172
        %v1635 = vunpack.c.h.b16 %v1172
        %v1636 = vunpack.c.l.b16 %v1173
        %v1637 = vunpack.c.h.b16 %v1173
        %v1638 = vunpack.c.l.b16 %v1174
        %v1639 = vunpack.c.h.b16 %v1174
        %v1640 = vunpack.c.l.b16 %v1175
        %v1641 = vunpack.c.h.b16 %v1175
        %v1642 = vunpack.c.l.b16 %v1176
        %v1643 = vunpack.c.h.b16 %v1176
        %v1644 = vunpack.c.l.b16 %v1177
        %v1645 = vunpack.c.h.b16 %v1177
        %v1646 = vunpack.c.l.b16 %v1178
        %v1647 = vunpack.c.h.b16 %v1178
        %v1648 = vunpack.c.l.b16 %v1179
        %v1649 = vunpack.c.h.b16 %v1179
        %v1650 = vunpack.c.l.b16 %v1180
        %v1651 = vunpack.c.h.b16 %v1180
        %v1652 = vunpack.c.l.b16 %v1181
        %v1653 = vunpack.c.h.b16 %v1181
        %v1654 = vunpack.c.l.b16 %v1182
        %v1655 = vunpack.c.h.b16 %v1182
        %v1656 = vunpack.c.l.b16 %v1183
        %v1657 = vunpack.c.h.b16 %v1183
        %v1658 = vunpack.c.l.b16 %v1184
        %v1659 = vunpack.c.h.b16 %v1184
        %v1660 = vunpack.c.l.b16 %v1185
        %v1661 = vunpack.c.h.b16 %v1185
        %v1662 = vunpack.c.l.b16 %v1186
        %v1663 = vunpack.c.h.b16 %v1186
        %v1664 = vunpack.c.l.b16 %v1187
        %v1665 = vunpack.c.h.b16 %v1187
        %v1666 = vunpack.c.l.b16 %v1188
        %v1667 = vunpack.c.h.b16 %v1188
        %v1668 = vunpack.c.l.b16 %v1189
        %v1669 = vunpack.c.h.b16 %v1189
        %v1670 = vunpack.c.l.b16 %v1190
        %v1671 = vunpack.c.h.b16 %v1190
        %v1672 = vunpack.c.l.b16 %v1191
        %v1673 = vunpack.c.h.b16 %v1191
        %v1674 = vunpack.c.l.b16 %v1192
        %v1675 = vunpack.c.h.b16 %v1192
        %v1676 = vunpack.c.l.b16 %v1193
        %v1677 = vunpack.c.h.b16 %v1193
        %v1678 = vunpack.c.l.b16 %v1194
        %v1679 = vunpack.c.h.b16 %v1194
        %v1680 = vunpack.c.l.b16 %v1195
        %v1681 = vunpack.c.h.b16 %v1195
        %v1682 = vunpack.c.l.b16 %v1196
        %v1683 = vunpack.c.h.b16 %v1196
        %v1684 = vunpack.c.l.b16 %v1197
        %v1685 = vunpack.c.h.b16 %v1197
        %v1686 = vunpack.c.l.b16 %v1198
        %v1687 = vunpack.c.h.b16 %v1198
        %v1688 = vunpack.c.l.b16 %v1199
        %v1689 = vunpack.c.h.b16 %v1199
        %v1690 = vunpack.c.l.b16 %v1200
        %v1691 = vunpack.c.h.b16 %v1200
        %v1692 = vunpack.c.l.b16 %v1201
        %v1693 = vunpack.c.h.b16 %v1201
        %v1694 = vunpack.c.l.b16 %v1202
        %v1695 = vunpack.c.h.b16 %v1202
        %v1696 = vunpack.c.l.b16 %v1203
        %v1697 = vunpack.c.h.b16 %v1203
        %v1698 = vunpack.c.l.b16 %v1204
        %v1699 = vunpack.c.h.b16 %v1204
        %v1700 = vunpack.c.l.b16 %v1205
        %v1701 = vunpack.c.h.b16 %v1205
        %v1702 = vunpack.c.l.b16 %v1206
        %v1703 = vunpack.c.h.b16 %v1206
        %v1704 = vunpack.c.l.b16 %v1207
        %v1705 = vunpack.c.h.b16 %v1207
        %v1706 = vunpack.c.l.b16 %v1208
        %v1707 = vunpack.c.h.b16 %v1208
        %v1708 = vunpack.c.l.b16 %v1209
        %v1709 = vunpack.c.h.b16 %v1209
        %v1710 = vunpack.c.l.b16 %v1210
        %v1711 = vunpack.c.h.b16 %v1210
        %v1712 = vunpack.c.l.b16 %v1211
        %v1713 = vunpack.c.h.b16 %v1211
        %v1714 = vunpack.c.l.b16 %v1212
        %v1715 = vunpack.c.h.b16 %v1212
        %v1716 = vunpack.c.l.b16 %v1213
        %v1717 = vunpack.c.h.b16 %v1213
        %v1718 = vunpack.c.l.b16 %v1214
        %v1719 = vunpack.c.h.b16 %v1214
        %v1720 = vunpack.c.l.b16 %v1215
        %v1721 = vunpack.c.h.b16 %v1215
        %v1722 = vunpack.c.l.b16 %v1216
        %v1723 = vunpack.c.h.b16 %v1216
        %v1724 = vunpack.c.l.b16 %v1217
        %v1725 = vunpack.c.h.b16 %v1217
        %v1726 = vunpack.c.l.b16 %v1218
        %v1727 = vunpack.c.h.b16 %v1218
        %v1728 = vunpack.c.l.b16 %v1219
        %v1729 = vunpack.c.h.b16 %v1219
        %v1730 = vunpack.c.l.b16 %v1220
        %v1731 = vunpack.c.h.b16 %v1220
        %v1732 = vunpack.c.l.b16 %v1221
        %v1733 = vunpack.c.h.b16 %v1221
        %v1734 = vpack.c.b16 %v1608, %v1606
        %v1735 = vpack.c.b16 %v1609, %v1607
        %v1736 = vpack.c.b16 %v1612, %v1610
        %v1737 = vpack.c.b16 %v1613, %v1611
        %v1738 = vpack.c.b16 %v1616, %v1614
        %v1739 = vpack.c.b16 %v1617, %v1615
        %v1740 = vpack.c.b16 %v1620, %v1618
        %v1741 = vpack.c.b16 %v1621, %v1619
        %v1742 = vpack.c.b16 %v1624, %v1622
        %v1743 = vpack.c.b16 %v1625, %v1623
        %v1744 = vpack.c.b16 %v1628, %v1626
        %v1745 = vpack.c.b16 %v1629, %v1627
        %v1746 = vpack.c.b16 %v1632, %v1630
        %v1747 = vpack.c.b16 %v1633, %v1631
        %v1748 = vpack.c.b16 %v1636, %v1634
        %v1749 = vpack.c.b16 %v1637, %v1635
        %v1750 = vpack.c.b16 %v1640, %v1638
        %v1751 = vpack.c.b16 %v1641, %v1639
        %v1752 = vpack.c.b16 %v1644, %v1642
        %v1753 = vpack.c.b16 %v1645, %v1643
        %v1754 = vpack.c.b16 %v1648, %v1646
        %v1755 = vpack.c.b16 %v1649, %v1647
        %v1756 = vpack.c.b16 %v1652, %v1650
        %v1757 = vpack.c.b16 %v1653, %v1651
        %v1758 = vpack.c.b16 %v1656, %v1654
        %v1759 = vpack.c.b16 %v1657, %v1655
        %v1760 = vpack.c.b16 %v1660, %v1658
        %v1761 = vpack.c.b16 %v1661, %v1659
        %v1762 = vpack.c.b16 %v1664, %v1662
        %v1763 = vpack.c.b16 %v1665, %v1663
        %v1764 = vpack.c.b16 %v1668, %v1666
        %v1765 = vpack.c.b16 %v1669, %v1667
        %v1766 = vpack.c.b16 %v1672, %v1670
        %v1767 = vpack.c.b16 %v1673, %v1671
        %v1768 = vpack.c.b16 %v1676, %v1674
        %v1769 = vpack.c.b16 %v1677, %v1675
        %v1770 = vpack.c.b16 %v1680, %v1678
        %v1771 = vpack.c.b16 %v1681, %v1679
        %v1772 = vpack.c.b16 %v1684, %v1682
        %v1773 = vpack.c.b16 %v1685, %v1683
        %v1774 = vpack.c.b16 %v1688, %v1686
        %v1775 = vpack.c.b16 %v1689, %v1687
        %v1776 = vpack.c.b16 %v1692, %v1690
        %v1777 = vpack.c.b16 %v1693, %v1691
        %v1778 = vpack.c.b16 %v1696, %v1694
        %v1779 = vpack.c.b16 %v1697, %v1695
        %v1780 = vpack.c.b16 %v1700, %v1698
        %v1781 = vpack.c.b16 %v1701, %v1699
        %v1782 = vpack.c.b16 %v1704, %v1702
        %v1783 = vpack.c.b16 %v1705, %v1703
        %v1784 = vpack.c.b16 %v1708, %v1706
        %v1785 = vpack.c.b16 %v1709, %v1707
        %v1786 = vpack.c.b16 %v1712, %v1710
        %v1787 = vpack.c.b16 %v1713, %v1711
        %v1788 = vpack.c.b16 %v1716, %v1714
        %v1789 = vpack.c.b16 %v1717, %v1715
        %v1790 = vpack.c.b16 %v1720, %v1718
        %v1791 = vpack.c.b16 %v1721, %v1719
        %v1792 = vpack.c.b16 %v1724, %v1722
        %v1793 = vpack.c.b16 %v1725, %v1723
        %v1794 = vpack.c.b16 %v1728, %v1726
        %v1795 = vpack.c.b16 %v1729, %v1727
        %v1796 = vpack.c.b16 %v1732, %v1730
        %v1797 = vpack.c.b16 %v1733, %v1731
        %1862 = vmatprep.subr.bf16.mxu0 %v1735
        %1863 = vmatpush1.bf16.msra.mxu0 %v1734
        %1864 = vmatprep.subr.bf16.mxu0 %v1737
        %1865 = vmatpush1.bf16.msra.mxu0 %v1736
        %1866 = vmatprep.subr.bf16.mxu0 %v1739
        %1867 = vmatpush1.bf16.msra.mxu0 %v1738
        %1868 = vmatprep.subr.bf16.mxu0 %v1741
        %1869 = vmatpush1.bf16.msra.mxu0 %v1740
        %1870 = vmatprep.subr.bf16.mxu0 %v1743
        %1871 = vmatpush1.bf16.msra.mxu0 %v1742
        %1872 = vmatprep.subr.bf16.mxu0 %v1745
        %1873 = vmatpush1.bf16.msra.mxu0 %v1744
        %1874 = vmatprep.subr.bf16.mxu0 %v1747
        %1875 = vmatpush1.bf16.msra.mxu0 %v1746
        %1876 = vmatprep.subr.bf16.mxu0 %v1749
        %1877 = vmatpush1.bf16.msra.mxu0 %v1748
        %1878 = vmatprep.subr.bf16.mxu0 %v1751
        %1879 = vmatpush1.bf16.msra.mxu0 %v1750
        %1880 = vmatprep.subr.bf16.mxu0 %v1753
        %1881 = vmatpush1.bf16.msra.mxu0 %v1752
        %1882 = vmatprep.subr.bf16.mxu0 %v1755
        %1883 = vmatpush1.bf16.msra.mxu0 %v1754
        %1884 = vmatprep.subr.bf16.mxu0 %v1757
        %1885 = vmatpush1.bf16.msra.mxu0 %v1756
        %1886 = vmatprep.subr.bf16.mxu0 %v1759
        %1887 = vmatpush1.bf16.msra.mxu0 %v1758
        %1888 = vmatprep.subr.bf16.mxu0 %v1761
        %1889 = vmatpush1.bf16.msra.mxu0 %v1760
        %1890 = vmatprep.subr.bf16.mxu0 %v1763
        %1891 = vmatpush1.bf16.msra.mxu0 %v1762
        %1892 = vmatprep.subr.bf16.mxu0 %v1765
        %1893 = vmatpush1.bf16.msra.mxu0 %v1764
        %1894 = vmatprep.mubr.bf16.mxu0 %v1415
        %1895 = vmatmul.mubr.bf16.gmra.mrb[0].mxu0 %v1414
        %v1896 = vpop.f32.mrb[0].mxu0
        %v1897 = vadd.f32 0.0, %v1896
        %v1898 = vpop.f32.mrb[0].mxu0
        %v1899 = vadd.f32 0.0, %v1898
        %v1900 = vpop.f32.mrb[0].mxu0
        %v1901 = vadd.f32 0.0, %v1900
        %v1902 = vpop.f32.mrb[0].mxu0
        %v1903 = vadd.f32 0.0, %v1902
        %1904 = vmatprep.mubr.bf16.mxu0 %v1419
        %1905 = vmatmul.mubr.bf16.gmra.mrb[0].mxu0 %v1418
        %v1906 = vpop.f32.mrb[0].mxu0
        %v1907 = vadd.f32 0.0, %v1906
        %v1908 = vpop.f32.mrb[0].mxu0
        %v1909 = vadd.f32 0.0, %v1908
        %v1910 = vpop.f32.mrb[0].mxu0
        %v1911 = vadd.f32 0.0, %v1910
        %v1912 = vpop.f32.mrb[0].mxu0
        %v1913 = vadd.f32 0.0, %v1912
        %1914 = vmatprep.mubr.bf16.mxu0 %v1423
        %1915 = vmatmul.mubr.bf16.gmra.mrb[0].mxu0 %v1422
        %v1916 = vpop.f32.mrb[0].mxu0
        %v1917 = vadd.f32 0.0, %v1916
        %v1918 = vpop.f32.mrb[0].mxu0
        %v1919 = vadd.f32 0.0, %v1918
        %v1920 = vpop.f32.mrb[0].mxu0
        %v1921 = vadd.f32 0.0, %v1920
        %v1922 = vpop.f32.mrb[0].mxu0
        %v1923 = vadd.f32 0.0, %v1922
        %1924 = vmatprep.mubr.bf16.mxu0 %v1427
        %1925 = vmatmul.mubr.bf16.gmra.mrb[0].mxu0 %v1426
        %v1926 = vpop.f32.mrb[0].mxu0
        %v1927 = vadd.f32 0.0, %v1926
        %v1928 = vpop.f32.mrb[0].mxu0
        %v1929 = vadd.f32 0.0, %v1928
        %v1930 = vpop.f32.mrb[0].mxu0
        %v1931 = vadd.f32 0.0, %v1930
        %v1932 = vpop.f32.mrb[0].mxu0
        %v1933 = vadd.f32 0.0, %v1932
        %1934 = vmatprep.mubr.bf16.mxu0 %v1431
        %1935 = vmatmul.mubr.bf16.gmra.mrb[0].mxu0 %v1430
        %v1936 = vpop.f32.mrb[0].mxu0
        %v1937 = vadd.f32 0.0, %v1936
        %v1938 = vpop.f32.mrb[0].mxu0
        %v1939 = vadd.f32 0.0, %v1938
        %v1940 = vpop.f32.mrb[0].mxu0
        %v1941 = vadd.f32 0.0, %v1940
        %v1942 = vpop.f32.mrb[0].mxu0
        %v1943 = vadd.f32 0.0, %v1942
        %1944 = vmatprep.mubr.bf16.mxu0 %v1435
        %1945 = vmatmul.mubr.bf16.gmra.mrb[0].mxu0 %v1434
        %v1946 = vpop.f32.mrb[0].mxu0
        %v1947 = vadd.f32 0.0, %v1946
        %v1948 = vpop.f32.mrb[0].mxu0
        %v1949 = vadd.f32 0.0, %v1948
        %v1950 = vpop.f32.mrb[0].mxu0
        %v1951 = vadd.f32 0.0, %v1950
        %v1952 = vpop.f32.mrb[0].mxu0
        %v1953 = vadd.f32 0.0, %v1952
        %1954 = vmatprep.mubr.bf16.mxu0 %v1439
        %1955 = vmatmul.mubr.bf16.gmra.mrb[0].mxu0 %v1438
        %v1956 = vpop.f32.mrb[0].mxu0
        %v1957 = vadd.f32 0.0, %v1956
        %v1958 = vpop.f32.mrb[0].mxu0
        %v1959 = vadd.f32 0.0, %v1958
        %v1960 = vpop.f32.mrb[0].mxu0
        %v1961 = vadd.f32 0.0, %v1960
        %v1962 = vpop.f32.mrb[0].mxu0
        %v1963 = vadd.f32 0.0, %v1962
        %1964 = vmatprep.mubr.bf16.mxu0 %v1443
        %1965 = vmatmul.mubr.bf16.gmra.mrb[0].mxu0 %v1442
        %v1966 = vpop.f32.mrb[0].mxu0
        %v1967 = vadd.f32 0.0, %v1966
        %v1968 = vpop.f32.mrb[0].mxu0
        %v1969 = vadd.f32 0.0, %v1968
        %v1970 = vpop.f32.mrb[0].mxu0
        %v1971 = vadd.f32 0.0, %v1970
        %v1972 = vpop.f32.mrb[0].mxu0
        %v1973 = vadd.f32 0.0, %v1972
        %1974 = vmatprep.mubr.bf16.mxu0 %v1447
        %1975 = vmatmul.mubr.bf16.gmra.mrb[0].mxu0 %v1446
        %v1976 = vpop.f32.mrb[0].mxu0
        %v1977 = vadd.f32 0.0, %v1976
        %v1978 = vpop.f32.mrb[0].mxu0
        %v1979 = vadd.f32 0.0, %v1978
        %v1980 = vpop.f32.mrb[0].mxu0
        %v1981 = vadd.f32 0.0, %v1980
        %v1982 = vpop.f32.mrb[0].mxu0
        %v1983 = vadd.f32 0.0, %v1982
        %1984 = vmatprep.mubr.bf16.mxu0 %v1451
        %1985 = vmatmul.mubr.bf16.gmra.mrb[0].mxu0 %v1450
        %v1986 = vpop.f32.mrb[0].mxu0
        %v1987 = vadd.f32 0.0, %v1986
        %v1988 = vpop.f32.mrb[0].mxu0
        %v1989 = vadd.f32 0.0, %v1988
        %v1990 = vpop.f32.mrb[0].mxu0
        %v1991 = vadd.f32 0.0, %v1990
        %v1992 = vpop.f32.mrb[0].mxu0
        %v1993 = vadd.f32 0.0, %v1992
        %1994 = vmatprep.mubr.bf16.mxu0 %v1455
        %1995 = vmatmul.mubr.bf16.gmra.mrb[0].mxu0 %v1454
        %v1996 = vpop.f32.mrb[0].mxu0
        %v1997 = vadd.f32 0.0, %v1996
        %v1998 = vpop.f32.mrb[0].mxu0
        %v1999 = vadd.f32 0.0, %v1998
        %v2000 = vpop.f32.mrb[0].mxu0
        %v2001 = vadd.f32 0.0, %v2000
        %v2002 = vpop.f32.mrb[0].mxu0
        %v2003 = vadd.f32 0.0, %v2002
        %2004 = vmatprep.mubr.bf16.mxu0 %v1459
        %2005 = vmatmul.mubr.bf16.gmra.mrb[0].mxu0 %v1458
        %v2006 = vpop.f32.mrb[0].mxu0
        %v2007 = vadd.f32 0.0, %v2006
        %v2008 = vpop.f32.mrb[0].mxu0
        %v2009 = vadd.f32 0.0, %v2008
        %v2010 = vpop.f32.mrb[0].mxu0
        %v2011 = vadd.f32 0.0, %v2010
        %v2012 = vpop.f32.mrb[0].mxu0
        %v2013 = vadd.f32 0.0, %v2012
        %2014 = vmatprep.mubr.bf16.mxu0 %v1463
        %2015 = vmatmul.mubr.bf16.gmra.mrb[0].mxu0 %v1462
        %v2016 = vpop.f32.mrb[0].mxu0
        %v2017 = vadd.f32 0.0, %v2016
        %v2018 = vpop.f32.mrb[0].mxu0
        %v2019 = vadd.f32 0.0, %v2018
        %v2020 = vpop.f32.mrb[0].mxu0
        %v2021 = vadd.f32 0.0, %v2020
        %v2022 = vpop.f32.mrb[0].mxu0
        %v2023 = vadd.f32 0.0, %v2022
        %2024 = vmatprep.mubr.bf16.mxu0 %v1467
        %2025 = vmatmul.mubr.bf16.gmra.mrb[0].mxu0 %v1466
        %v2026 = vpop.f32.mrb[0].mxu0
        %v2027 = vadd.f32 0.0, %v2026
        %v2028 = vpop.f32.mrb[0].mxu0
        %v2029 = vadd.f32 0.0, %v2028
        %v2030 = vpop.f32.mrb[0].mxu0
        %v2031 = vadd.f32 0.0, %v2030
        %v2032 = vpop.f32.mrb[0].mxu0
        %v2033 = vadd.f32 0.0, %v2032
        %2034 = vmatprep.mubr.bf16.mxu0 %v1471
        %2035 = vmatmul.mubr.bf16.gmra.mrb[0].mxu0 %v1470
        %v2036 = vpop.f32.mrb[0].mxu0
        %v2037 = vadd.f32 0.0, %v2036
        %v2038 = vpop.f32.mrb[0].mxu0
        %v2039 = vadd.f32 0.0, %v2038
        %v2040 = vpop.f32.mrb[0].mxu0
        %v2041 = vadd.f32 0.0, %v2040
        %v2042 = vpop.f32.mrb[0].mxu0
        %v2043 = vadd.f32 0.0, %v2042
        %2044 = vmatprep.mubr.bf16.mxu0 %v1475
        %2045 = vmatmul.mubr.bf16.gmra.mrb[0].mxu0 %v1474
        %v2046 = vpop.f32.mrb[0].mxu0
        %v2047 = vadd.f32 0.0, %v2046
        %v2048 = vpop.f32.mrb[0].mxu0
        %v2049 = vadd.f32 0.0, %v2048
        %v2050 = vpop.f32.mrb[0].mxu0
        %v2051 = vadd.f32 0.0, %v2050
        %v2052 = vpop.f32.mrb[0].mxu0
        %v2053 = vadd.f32 0.0, %v2052
        %2054 = vdwg.mxu0
        %2055 = vmatprep.subr.bf16.mxu0 %v1767
        %2056 = vmatpush1.bf16.msra.mxu0 %v1766
        %2057 = vmatprep.subr.bf16.mxu0 %v1769
        %2058 = vmatpush1.bf16.msra.mxu0 %v1768
        %2059 = vmatprep.subr.bf16.mxu0 %v1771
        %2060 = vmatpush1.bf16.msra.mxu0 %v1770
        %2061 = vmatprep.subr.bf16.mxu0 %v1773
        %2062 = vmatpush1.bf16.msra.mxu0 %v1772
        %2063 = vmatprep.subr.bf16.mxu0 %v1775
        %2064 = vmatpush1.bf16.msra.mxu0 %v1774
        %2065 = vmatprep.subr.bf16.mxu0 %v1777
        %2066 = vmatpush1.bf16.msra.mxu0 %v1776
        %2067 = vmatprep.subr.bf16.mxu0 %v1779
        %2068 = vmatpush1.bf16.msra.mxu0 %v1778
        %2069 = vmatprep.subr.bf16.mxu0 %v1781
        %2070 = vmatpush1.bf16.msra.mxu0 %v1780
        %2071 = vmatprep.subr.bf16.mxu0 %v1783
        %2072 = vmatpush1.bf16.msra.mxu0 %v1782
        %2073 = vmatprep.subr.bf16.mxu0 %v1785
        %2074 = vmatpush1.bf16.msra.mxu0 %v1784
        %2075 = vmatprep.subr.bf16.mxu0 %v1787
        %2076 = vmatpush1.bf16.msra.mxu0 %v1786
        %2077 = vmatprep.subr.bf16.mxu0 %v1789
        %2078 = vmatpush1.bf16.msra.mxu0 %v1788
        %2079 = vmatprep.subr.bf16.mxu0 %v1791
        %2080 = vmatpush1.bf16.msra.mxu0 %v1790
        %2081 = vmatprep.subr.bf16.mxu0 %v1793
        %2082 = vmatpush1.bf16.msra.mxu0 %v1792
        %2083 = vmatprep.subr.bf16.mxu0 %v1795
        %2084 = vmatpush1.bf16.msra.mxu0 %v1794
        %2085 = vmatprep.subr.bf16.mxu0 %v1797
        %2086 = vmatpush1.bf16.msra.mxu0 %v1796
        %2087 = vmatprep.mubr.bf16.mxu0 %v1417
        %2088 = vmatmul.mubr.bf16.gmra.mrb[0].mxu0 %v1416
        %v2089 = vpop.f32.mrb[0].mxu0
        %v2090 = vadd.f32 %v1897, %v2089
        %v2091 = vpop.f32.mrb[0].mxu0
        %v2092 = vadd.f32 %v1899, %v2091
        %v2093 = vpop.f32.mrb[0].mxu0
        %v2094 = vadd.f32 %v1901, %v2093
        %v2095 = vpop.f32.mrb[0].mxu0
        %v2096 = vadd.f32 %v1903, %v2095
        %2097 = vmatprep.mubr.bf16.mxu0 %v1421
        %2098 = vmatmul.mubr.bf16.gmra.mrb[0].mxu0 %v1420
        %v2099 = vpop.f32.mrb[0].mxu0
        %v2100 = vadd.f32 %v1907, %v2099
        %v2101 = vpop.f32.mrb[0].mxu0
        %v2102 = vadd.f32 %v1909, %v2101
        %v2103 = vpop.f32.mrb[0].mxu0
        %v2104 = vadd.f32 %v1911, %v2103
        %v2105 = vpop.f32.mrb[0].mxu0
        %v2106 = vadd.f32 %v1913, %v2105
        %2107 = vmatprep.mubr.bf16.mxu0 %v1425
        %2108 = vmatmul.mubr.bf16.gmra.mrb[0].mxu0 %v1424
        %v2109 = vpop.f32.mrb[0].mxu0
        %v2110 = vadd.f32 %v1917, %v2109
        %v2111 = vpop.f32.mrb[0].mxu0
        %v2112 = vadd.f32 %v1919, %v2111
        %v2113 = vpop.f32.mrb[0].mxu0
        %v2114 = vadd.f32 %v1921, %v2113
        %v2115 = vpop.f32.mrb[0].mxu0
        %v2116 = vadd.f32 %v1923, %v2115
        %2117 = vmatprep.mubr.bf16.mxu0 %v1429
        %2118 = vmatmul.mubr.bf16.gmra.mrb[0].mxu0 %v1428
        %v2119 = vpop.f32.mrb[0].mxu0
        %v2120 = vadd.f32 %v1927, %v2119
        %v2121 = vpop.f32.mrb[0].mxu0
        %v2122 = vadd.f32 %v1929, %v2121
        %v2123 = vpop.f32.mrb[0].mxu0
        %v2124 = vadd.f32 %v1931, %v2123
        %v2125 = vpop.f32.mrb[0].mxu0
        %v2126 = vadd.f32 %v1933, %v2125
        %2127 = vmatprep.mubr.bf16.mxu0 %v1433
        %2128 = vmatmul.mubr.bf16.gmra.mrb[0].mxu0 %v1432
        %v2129 = vpop.f32.mrb[0].mxu0
        %v2130 = vadd.f32 %v1937, %v2129
        %v2131 = vpop.f32.mrb[0].mxu0
        %v2132 = vadd.f32 %v1939, %v2131
        %v2133 = vpop.f32.mrb[0].mxu0
        %v2134 = vadd.f32 %v1941, %v2133
        %v2135 = vpop.f32.mrb[0].mxu0
        %v2136 = vadd.f32 %v1943, %v2135
        %2137 = vmatprep.mubr.bf16.mxu0 %v1437
        %2138 = vmatmul.mubr.bf16.gmra.mrb[0].mxu0 %v1436
        %v2139 = vpop.f32.mrb[0].mxu0
        %v2140 = vadd.f32 %v1947, %v2139
        %v2141 = vpop.f32.mrb[0].mxu0
        %v2142 = vadd.f32 %v1949, %v2141
        %v2143 = vpop.f32.mrb[0].mxu0
        %v2144 = vadd.f32 %v1951, %v2143
        %v2145 = vpop.f32.mrb[0].mxu0
        %v2146 = vadd.f32 %v1953, %v2145
        %2147 = vmatprep.mubr.bf16.mxu0 %v1441
        %2148 = vmatmul.mubr.bf16.gmra.mrb[0].mxu0 %v1440
        %v2149 = vpop.f32.mrb[0].mxu0
        %v2150 = vadd.f32 %v1957, %v2149
        %v2151 = vpop.f32.mrb[0].mxu0
        %v2152 = vadd.f32 %v1959, %v2151
        %v2153 = vpop.f32.mrb[0].mxu0
        %v2154 = vadd.f32 %v1961, %v2153
        %v2155 = vpop.f32.mrb[0].mxu0
        %v2156 = vadd.f32 %v1963, %v2155
        %2157 = vmatprep.mubr.bf16.mxu0 %v1445
        %2158 = vmatmul.mubr.bf16.gmra.mrb[0].mxu0 %v1444
        %v2159 = vpop.f32.mrb[0].mxu0
        %v2160 = vadd.f32 %v1967, %v2159
        %v2161 = vpop.f32.mrb[0].mxu0
        %v2162 = vadd.f32 %v1969, %v2161
        %v2163 = vpop.f32.mrb[0].mxu0
        %v2164 = vadd.f32 %v1971, %v2163
        %v2165 = vpop.f32.mrb[0].mxu0
        %v2166 = vadd.f32 %v1973, %v2165
        %2167 = vmatprep.mubr.bf16.mxu0 %v1449
        %2168 = vmatmul.mubr.bf16.gmra.mrb[0].mxu0 %v1448
        %v2169 = vpop.f32.mrb[0].mxu0
        %v2170 = vadd.f32 %v1977, %v2169
        %v2171 = vpop.f32.mrb[0].mxu0
        %v2172 = vadd.f32 %v1979, %v2171
        %v2173 = vpop.f32.mrb[0].mxu0
        %v2174 = vadd.f32 %v1981, %v2173
        %v2175 = vpop.f32.mrb[0].mxu0
        %v2176 = vadd.f32 %v1983, %v2175
        %2177 = vmatprep.mubr.bf16.mxu0 %v1453
        %2178 = vmatmul.mubr.bf16.gmra.mrb[0].mxu0 %v1452
        %v2179 = vpop.f32.mrb[0].mxu0
        %v2180 = vadd.f32 %v1987, %v2179
        %v2181 = vpop.f32.mrb[0].mxu0
        %v2182 = vadd.f32 %v1989, %v2181
        %v2183 = vpop.f32.mrb[0].mxu0
        %v2184 = vadd.f32 %v1991, %v2183
        %v2185 = vpop.f32.mrb[0].mxu0
        %v2186 = vadd.f32 %v1993, %v2185
        %2187 = vmatprep.mubr.bf16.mxu0 %v1457
        %2188 = vmatmul.mubr.bf16.gmra.mrb[0].mxu0 %v1456
        %v2189 = vpop.f32.mrb[0].mxu0
        %v2190 = vadd.f32 %v1997, %v2189
        %v2191 = vpop.f32.mrb[0].mxu0
        %v2192 = vadd.f32 %v1999, %v2191
        %v2193 = vpop.f32.mrb[0].mxu0
        %v2194 = vadd.f32 %v2001, %v2193
        %v2195 = vpop.f32.mrb[0].mxu0
        %v2196 = vadd.f32 %v2003, %v2195
        %2197 = vmatprep.mubr.bf16.mxu0 %v1461
        %2198 = vmatmul.mubr.bf16.gmra.mrb[0].mxu0 %v1460
        %v2199 = vpop.f32.mrb[0].mxu0
        %v2200 = vadd.f32 %v2007, %v2199
        %v2201 = vpop.f32.mrb[0].mxu0
        %v2202 = vadd.f32 %v2009, %v2201
        %v2203 = vpop.f32.mrb[0].mxu0
        %v2204 = vadd.f32 %v2011, %v2203
        %v2205 = vpop.f32.mrb[0].mxu0
        %v2206 = vadd.f32 %v2013, %v2205
        %2207 = vmatprep.mubr.bf16.mxu0 %v1465
        %2208 = vmatmul.mubr.bf16.gmra.mrb[0].mxu0 %v1464
        %v2209 = vpop.f32.mrb[0].mxu0
        %v2210 = vadd.f32 %v2017, %v2209
        %v2211 = vpop.f32.mrb[0].mxu0
        %v2212 = vadd.f32 %v2019, %v2211
        %v2213 = vpop.f32.mrb[0].mxu0
        %v2214 = vadd.f32 %v2021, %v2213
        %v2215 = vpop.f32.mrb[0].mxu0
        %v2216 = vadd.f32 %v2023, %v2215
        %2217 = vmatprep.mubr.bf16.mxu0 %v1469
        %2218 = vmatmul.mubr.bf16.gmra.mrb[0].mxu0 %v1468
        %v2219 = vpop.f32.mrb[0].mxu0
        %v2220 = vadd.f32 %v2027, %v2219
        %v2221 = vpop.f32.mrb[0].mxu0
        %v2222 = vadd.f32 %v2029, %v2221
        %v2223 = vpop.f32.mrb[0].mxu0
        %v2224 = vadd.f32 %v2031, %v2223
        %v2225 = vpop.f32.mrb[0].mxu0
        %v2226 = vadd.f32 %v2033, %v2225
        %2227 = vmatprep.mubr.bf16.mxu0 %v1473
        %2228 = vmatmul.mubr.bf16.gmra.mrb[0].mxu0 %v1472
        %v2229 = vpop.f32.mrb[0].mxu0
        %v2230 = vadd.f32 %v2037, %v2229
        %v2231 = vpop.f32.mrb[0].mxu0
        %v2232 = vadd.f32 %v2039, %v2231
        %v2233 = vpop.f32.mrb[0].mxu0
        %v2234 = vadd.f32 %v2041, %v2233
        %v2235 = vpop.f32.mrb[0].mxu0
        %v2236 = vadd.f32 %v2043, %v2235
        %2237 = vmatprep.mubr.bf16.mxu0 %v1477
        %2238 = vmatmul.mubr.bf16.gmra.mrb[0].mxu0 %v1476
        %v2239 = vpop.f32.mrb[0].mxu0
        %v2240 = vadd.f32 %v2047, %v2239
        %v2241 = vpop.f32.mrb[0].mxu0
        %v2242 = vadd.f32 %v2049, %v2241
        %v2243 = vpop.f32.mrb[0].mxu0
        %v2244 = vadd.f32 %v2051, %v2243
        %v2245 = vpop.f32.mrb[0].mxu0
        %v2246 = vadd.f32 %v2053, %v2245
        %2247 = vdwg.mxu0
        %v2280 = vunpack.c.l.b16 %v1118
        %v2281 = vunpack.c.l.b16 %v1119
        %v2282 = vunpack.c.l.b16 %v1120
        %v2283 = vunpack.c.l.b16 %v1121
        %v2284 = vunpack.c.l.b16 %v1122
        %v2285 = vunpack.c.l.b16 %v1123
        %v2286 = vunpack.c.l.b16 %v1124
        %v2287 = vunpack.c.l.b16 %v1125
        %v2288 = vunpack.c.l.b16 %v1126
        %v2289 = vunpack.c.l.b16 %v1127
        %v2290 = vunpack.c.l.b16 %v1128
        %v2291 = vunpack.c.l.b16 %v1129
        %v2292 = vunpack.c.l.b16 %v1130
        %v2293 = vunpack.c.l.b16 %v1131
        %v2294 = vunpack.c.l.b16 %v1132
        %v2295 = vunpack.c.l.b16 %v1133
        %v2296 = vunpack.c.l.b16 %v1134
        %v2297 = vunpack.c.l.b16 %v1135
        %v2298 = vunpack.c.l.b16 %v1136
        %v2299 = vunpack.c.l.b16 %v1137
        %v2300 = vunpack.c.l.b16 %v1138
        %v2301 = vunpack.c.l.b16 %v1139
        %v2302 = vunpack.c.l.b16 %v1140
        %v2303 = vunpack.c.l.b16 %v1141
        %v2304 = vunpack.c.l.b16 %v1142
        %v2305 = vunpack.c.l.b16 %v1143
        %v2306 = vunpack.c.l.b16 %v1144
        %v2307 = vunpack.c.l.b16 %v1145
        %v2308 = vunpack.c.l.b16 %v1146
        %v2309 = vunpack.c.l.b16 %v1147
        %v2310 = vunpack.c.l.b16 %v1148
        %v2311 = vunpack.c.l.b16 %v1149
        %v2312 = vpack.c.b16 %v2281, %v2280
        %v2313 = vpack.c.b16 %v2283, %v2282
        %v2314 = vpack.c.b16 %v2285, %v2284
        %v2315 = vpack.c.b16 %v2287, %v2286
        %v2316 = vpack.c.b16 %v2289, %v2288
        %v2317 = vpack.c.b16 %v2291, %v2290
        %v2318 = vpack.c.b16 %v2293, %v2292
        %v2319 = vpack.c.b16 %v2295, %v2294
        %v2320 = vpack.c.b16 %v2297, %v2296
        %v2321 = vpack.c.b16 %v2299, %v2298
        %v2322 = vpack.c.b16 %v2301, %v2300
        %v2323 = vpack.c.b16 %v2303, %v2302
        %v2324 = vpack.c.b16 %v2305, %v2304
        %v2325 = vpack.c.b16 %v2307, %v2306
        %v2326 = vpack.c.b16 %v2309, %v2308
        %v2327 = vpack.c.b16 %v2311, %v2310
        %vm2328 = vcmask 523264
        %v2330 = vsel %vm2328, %v2312, 0
        %v2333 = vsel %vm2328, %v2313, 0
        %v2336 = vsel %vm2328, %v2314, 0
        %v2339 = vsel %vm2328, %v2315, 0
        %v2342 = vsel %vm2328, %v2316, 0
        %v2345 = vsel %vm2328, %v2317, 0
        %v2348 = vsel %vm2328, %v2318, 0
        %v2351 = vsel %vm2328, %v2319, 0
        %v2354 = vsel %vm2328, %v2320, 0
        %v2357 = vsel %vm2328, %v2321, 0
        %v2360 = vsel %vm2328, %v2322, 0
        %v2363 = vsel %vm2328, %v2323, 0
        %v2366 = vsel %vm2328, %v2324, 0
        %v2369 = vsel %vm2328, %v2325, 0
        %v2372 = vsel %vm2328, %v2326, 0
        %v2375 = vsel %vm2328, %v2327, 0
        %2377 = vmatprep.subr.bf16.mxu0 %v1151
        %2378 = vmatpush1.bf16.msra.mxu0 %v1150
        %2379 = vmatprep.subr.bf16.mxu0 %v1153
        %2380 = vmatpush1.bf16.msra.mxu0 %v1152
        %2381 = vmatprep.subr.bf16.mxu0 %v1155
        %2382 = vmatpush1.bf16.msra.mxu0 %v1154
        %2383 = vmatprep.subr.bf16.mxu0 %v1157
        %2384 = vmatpush1.bf16.msra.mxu0 %v1156
        %2385 = vmatprep.subr.bf16.mxu0 0
        %2386 = vmatpush1.bf16.msra.mxu0 0
        %2387 = vmatprep.subr.bf16.mxu0 0
        %2388 = vmatpush1.bf16.msra.mxu0 0
        %2389 = vmatprep.subr.bf16.mxu0 0
        %2390 = vmatpush1.bf16.msra.mxu0 0
        %2391 = vmatprep.subr.bf16.mxu0 0
        %2392 = vmatpush1.bf16.msra.mxu0 0
        %2393 = vmatprep.subr.bf16.mxu0 0
        %2394 = vmatpush1.bf16.msra.mxu0 0
        %2395 = vmatprep.subr.bf16.mxu0 0
        %2396 = vmatpush1.bf16.msra.mxu0 0
        %2397 = vmatprep.subr.bf16.mxu0 0
        %2398 = vmatpush1.bf16.msra.mxu0 0
        %2399 = vmatprep.subr.bf16.mxu0 0
        %2400 = vmatpush1.bf16.msra.mxu0 0
        %2401 = vmatprep.subr.bf16.mxu0 0
        %2402 = vmatpush1.bf16.msra.mxu0 0
        %2403 = vmatprep.subr.bf16.mxu0 0
        %2404 = vmatpush1.bf16.msra.mxu0 0
        %2405 = vmatprep.subr.bf16.mxu0 0
        %2406 = vmatpush1.bf16.msra.mxu0 0
        %2407 = vmatprep.subr.bf16.mxu0 0
        %2408 = vmatpush1.bf16.msra.mxu0 0
        %2409 = vmatprep.mubr.bf16.mxu0 0
        %2410 = vmatmul.mubr.bf16.gmra.mrb[0].mxu0 %v2330
        %v2411 = vpop.f32.mrb[0].mxu0
        %v2412 = vadd.f32 %v2090, %v2411
        %v2413 = vpop.f32.mrb[0].mxu0
        %v2414 = vadd.f32 %v2092, %v2413
        %v2415 = vpop.f32.mrb[0].mxu0
        %v2416 = vadd.f32 %v2094, %v2415
        %v2417 = vpop.f32.mrb[0].mxu0
        %v2418 = vadd.f32 %v2096, %v2417
        %2419 = vmatprep.mubr.bf16.mxu0 0
        %2420 = vmatmul.mubr.bf16.gmra.mrb[0].mxu0 %v2333
        %v2421 = vpop.f32.mrb[0].mxu0
        %v2422 = vadd.f32 %v2100, %v2421
        %v2423 = vpop.f32.mrb[0].mxu0
        %v2424 = vadd.f32 %v2102, %v2423
        %v2425 = vpop.f32.mrb[0].mxu0
        %v2426 = vadd.f32 %v2104, %v2425
        %v2427 = vpop.f32.mrb[0].mxu0
        %v2428 = vadd.f32 %v2106, %v2427
        %2429 = vmatprep.mubr.bf16.mxu0 0
        %2430 = vmatmul.mubr.bf16.gmra.mrb[0].mxu0 %v2336
        %v2431 = vpop.f32.mrb[0].mxu0
        %v2432 = vadd.f32 %v2110, %v2431
        %v2433 = vpop.f32.mrb[0].mxu0
        %v2434 = vadd.f32 %v2112, %v2433
        %v2435 = vpop.f32.mrb[0].mxu0
        %v2436 = vadd.f32 %v2114, %v2435
        %v2437 = vpop.f32.mrb[0].mxu0
        %v2438 = vadd.f32 %v2116, %v2437
        %2439 = vmatprep.mubr.bf16.mxu0 0
        %2440 = vmatmul.mubr.bf16.gmra.mrb[0].mxu0 %v2339
        %v2441 = vpop.f32.mrb[0].mxu0
        %v2442 = vadd.f32 %v2120, %v2441
        %v2443 = vpop.f32.mrb[0].mxu0
        %v2444 = vadd.f32 %v2122, %v2443
        %v2445 = vpop.f32.mrb[0].mxu0
        %v2446 = vadd.f32 %v2124, %v2445
        %v2447 = vpop.f32.mrb[0].mxu0
        %v2448 = vadd.f32 %v2126, %v2447
        %2449 = vmatprep.mubr.bf16.mxu0 0
        %2450 = vmatmul.mubr.bf16.gmra.mrb[0].mxu0 %v2342
        %v2451 = vpop.f32.mrb[0].mxu0
        %v2452 = vadd.f32 %v2130, %v2451
        %v2453 = vpop.f32.mrb[0].mxu0
        %v2454 = vadd.f32 %v2132, %v2453
        %v2455 = vpop.f32.mrb[0].mxu0
        %v2456 = vadd.f32 %v2134, %v2455
        %v2457 = vpop.f32.mrb[0].mxu0
        %v2458 = vadd.f32 %v2136, %v2457
        %2459 = vmatprep.mubr.bf16.mxu0 0
        %2460 = vmatmul.mubr.bf16.gmra.mrb[0].mxu0 %v2345
        %v2461 = vpop.f32.mrb[0].mxu0
        %v2462 = vadd.f32 %v2140, %v2461
        %v2463 = vpop.f32.mrb[0].mxu0
        %v2464 = vadd.f32 %v2142, %v2463
        %v2465 = vpop.f32.mrb[0].mxu0
        %v2466 = vadd.f32 %v2144, %v2465
        %v2467 = vpop.f32.mrb[0].mxu0
        %v2468 = vadd.f32 %v2146, %v2467
        %2469 = vmatprep.mubr.bf16.mxu0 0
        %2470 = vmatmul.mubr.bf16.gmra.mrb[0].mxu0 %v2348
        %v2471 = vpop.f32.mrb[0].mxu0
        %v2472 = vadd.f32 %v2150, %v2471
        %v2473 = vpop.f32.mrb[0].mxu0
        %v2474 = vadd.f32 %v2152, %v2473
        %v2475 = vpop.f32.mrb[0].mxu0
        %v2476 = vadd.f32 %v2154, %v2475
        %v2477 = vpop.f32.mrb[0].mxu0
        %v2478 = vadd.f32 %v2156, %v2477
        %2479 = vmatprep.mubr.bf16.mxu0 0
        %2480 = vmatmul.mubr.bf16.gmra.mrb[0].mxu0 %v2351
        %v2481 = vpop.f32.mrb[0].mxu0
        %v2482 = vadd.f32 %v2160, %v2481
        %v2483 = vpop.f32.mrb[0].mxu0
        %v2484 = vadd.f32 %v2162, %v2483
        %v2485 = vpop.f32.mrb[0].mxu0
        %v2486 = vadd.f32 %v2164, %v2485
        %v2487 = vpop.f32.mrb[0].mxu0
        %v2488 = vadd.f32 %v2166, %v2487
        %2489 = vmatprep.mubr.bf16.mxu0 0
        %2490 = vmatmul.mubr.bf16.gmra.mrb[0].mxu0 %v2354
        %v2491 = vpop.f32.mrb[0].mxu0
        %v2492 = vadd.f32 %v2170, %v2491
        %v2493 = vpop.f32.mrb[0].mxu0
        %v2494 = vadd.f32 %v2172, %v2493
        %v2495 = vpop.f32.mrb[0].mxu0
        %v2496 = vadd.f32 %v2174, %v2495
        %v2497 = vpop.f32.mrb[0].mxu0
        %v2498 = vadd.f32 %v2176, %v2497
        %2499 = vmatprep.mubr.bf16.mxu0 0
        %2500 = vmatmul.mubr.bf16.gmra.mrb[0].mxu0 %v2357
        %v2501 = vpop.f32.mrb[0].mxu0
        %v2502 = vadd.f32 %v2180, %v2501
        %v2503 = vpop.f32.mrb[0].mxu0
        %v2504 = vadd.f32 %v2182, %v2503
        %v2505 = vpop.f32.mrb[0].mxu0
        %v2506 = vadd.f32 %v2184, %v2505
        %v2507 = vpop.f32.mrb[0].mxu0
        %v2508 = vadd.f32 %v2186, %v2507
        %2509 = vmatprep.mubr.bf16.mxu0 0
        %2510 = vmatmul.mubr.bf16.gmra.mrb[0].mxu0 %v2360
        %v2511 = vpop.f32.mrb[0].mxu0
        %v2512 = vadd.f32 %v2190, %v2511
        %v2513 = vpop.f32.mrb[0].mxu0
        %v2514 = vadd.f32 %v2192, %v2513
        %v2515 = vpop.f32.mrb[0].mxu0
        %v2516 = vadd.f32 %v2194, %v2515
        %v2517 = vpop.f32.mrb[0].mxu0
        %v2518 = vadd.f32 %v2196, %v2517
        %2519 = vmatprep.mubr.bf16.mxu0 0
        %2520 = vmatmul.mubr.bf16.gmra.mrb[0].mxu0 %v2363
        %v2521 = vpop.f32.mrb[0].mxu0
        %v2522 = vadd.f32 %v2200, %v2521
        %v2523 = vpop.f32.mrb[0].mxu0
        %v2524 = vadd.f32 %v2202, %v2523
        %v2525 = vpop.f32.mrb[0].mxu0
        %v2526 = vadd.f32 %v2204, %v2525
        %v2527 = vpop.f32.mrb[0].mxu0
        %v2528 = vadd.f32 %v2206, %v2527
        %2529 = vmatprep.mubr.bf16.mxu0 0
        %2530 = vmatmul.mubr.bf16.gmra.mrb[0].mxu0 %v2366
        %v2531 = vpop.f32.mrb[0].mxu0
        %v2532 = vadd.f32 %v2210, %v2531
        %v2533 = vpop.f32.mrb[0].mxu0
        %v2534 = vadd.f32 %v2212, %v2533
        %v2535 = vpop.f32.mrb[0].mxu0
        %v2536 = vadd.f32 %v2214, %v2535
        %v2537 = vpop.f32.mrb[0].mxu0
        %v2538 = vadd.f32 %v2216, %v2537
        %2539 = vmatprep.mubr.bf16.mxu0 0
        %2540 = vmatmul.mubr.bf16.gmra.mrb[0].mxu0 %v2369
        %v2541 = vpop.f32.mrb[0].mxu0
        %v2542 = vadd.f32 %v2220, %v2541
        %v2543 = vpop.f32.mrb[0].mxu0
        %v2544 = vadd.f32 %v2222, %v2543
        %v2545 = vpop.f32.mrb[0].mxu0
        %v2546 = vadd.f32 %v2224, %v2545
        %v2547 = vpop.f32.mrb[0].mxu0
        %v2548 = vadd.f32 %v2226, %v2547
        %2549 = vmatprep.mubr.bf16.mxu0 0
        %2550 = vmatmul.mubr.bf16.gmra.mrb[0].mxu0 %v2372
        %v2551 = vpop.f32.mrb[0].mxu0
        %v2552 = vadd.f32 %v2230, %v2551
        %v2553 = vpop.f32.mrb[0].mxu0
        %v2554 = vadd.f32 %v2232, %v2553
        %v2555 = vpop.f32.mrb[0].mxu0
        %v2556 = vadd.f32 %v2234, %v2555
        %v2557 = vpop.f32.mrb[0].mxu0
        %v2558 = vadd.f32 %v2236, %v2557
        %2559 = vmatprep.mubr.bf16.mxu0 0
        %2560 = vmatmul.mubr.bf16.gmra.mrb[0].mxu0 %v2375
        %v2561 = vpop.f32.mrb[0].mxu0
        %v2562 = vadd.f32 %v2240, %v2561
        %v2563 = vpop.f32.mrb[0].mxu0
        %v2564 = vadd.f32 %v2242, %v2563
        %v2565 = vpop.f32.mrb[0].mxu0
        %v2566 = vadd.f32 %v2244, %v2565
        %v2567 = vpop.f32.mrb[0].mxu0
        %v2568 = vadd.f32 %v2246, %v2567
        %2569 = vdwg.mxu0
        %v2570 = vld [vmem:[#allocation13] sm:$0x3]
        %v2572 = vlaneseq
        %v2573 = vshrl.u32 %v2572, 7
        %v2574 = vsub.s32 0, %v2573
        %v2575 = vrot.slane %v2570, %v2574
        %v2576 = vlaneseq
        %v2577 = vshrl.u32 %v2576, 7
        %v2578 = vsub.s32 1, %v2577
        %v2579 = vrot.slane %v2570, %v2578
        %v2582 = vadd.f32 %v2412, %v2575
        %v2583 = vadd.f32 %v2414, %v2579
        %v2584 = vadd.f32 %v2416, %v2575
        %v2585 = vadd.f32 %v2418, %v2579
        %v2586 = vadd.f32 %v2422, %v2575
        %v2587 = vadd.f32 %v2424, %v2579
        %v2588 = vadd.f32 %v2426, %v2575
        %v2589 = vadd.f32 %v2428, %v2579
        %v2590 = vadd.f32 %v2432, %v2575
        %v2591 = vadd.f32 %v2434, %v2579
        %v2592 = vadd.f32 %v2436, %v2575
        %v2593 = vadd.f32 %v2438, %v2579
        %v2594 = vadd.f32 %v2442, %v2575
        %v2595 = vadd.f32 %v2444, %v2579
        %v2596 = vadd.f32 %v2446, %v2575
        %v2597 = vadd.f32 %v2448, %v2579
        %v2598 = vadd.f32 %v2452, %v2575
        %v2599 = vadd.f32 %v2454, %v2579
        %v2600 = vadd.f32 %v2456, %v2575
        %v2601 = vadd.f32 %v2458, %v2579
        %v2602 = vadd.f32 %v2462, %v2575
        %v2603 = vadd.f32 %v2464, %v2579
        %v2604 = vadd.f32 %v2466, %v2575
        %v2605 = vadd.f32 %v2468, %v2579
        %v2606 = vadd.f32 %v2472, %v2575
        %v2607 = vadd.f32 %v2474, %v2579
        %v2608 = vadd.f32 %v2476, %v2575
        %v2609 = vadd.f32 %v2478, %v2579
        %v2610 = vadd.f32 %v2482, %v2575
        %v2611 = vadd.f32 %v2484, %v2579
        %v2612 = vadd.f32 %v2486, %v2575
        %v2613 = vadd.f32 %v2488, %v2579
        %v2614 = vadd.f32 %v2492, %v2575
        %v2615 = vadd.f32 %v2494, %v2579
        %v2616 = vadd.f32 %v2496, %v2575
        %v2617 = vadd.f32 %v2498, %v2579
        %v2618 = vadd.f32 %v2502, %v2575
        %v2619 = vadd.f32 %v2504, %v2579
        %v2620 = vadd.f32 %v2506, %v2575
        %v2621 = vadd.f32 %v2508, %v2579
        %v2622 = vadd.f32 %v2512, %v2575
        %v2623 = vadd.f32 %v2514, %v2579
        %v2624 = vadd.f32 %v2516, %v2575
        %v2625 = vadd.f32 %v2518, %v2579
        %v2626 = vadd.f32 %v2522, %v2575
        %v2627 = vadd.f32 %v2524, %v2579
        %v2628 = vadd.f32 %v2526, %v2575
        %v2629 = vadd.f32 %v2528, %v2579
        %v2630 = vadd.f32 %v2532, %v2575
        %v2631 = vadd.f32 %v2534, %v2579
        %v2632 = vadd.f32 %v2536, %v2575
        %v2633 = vadd.f32 %v2538, %v2579
        %v2634 = vadd.f32 %v2542, %v2575
        %v2635 = vadd.f32 %v2544, %v2579
        %v2636 = vadd.f32 %v2546, %v2575
        %v2637 = vadd.f32 %v2548, %v2579
        %v2638 = vadd.f32 %v2552, %v2575
        %v2639 = vadd.f32 %v2554, %v2579
        %v2640 = vadd.f32 %v2556, %v2575
        %v2641 = vadd.f32 %v2558, %v2579
        %v2642 = vadd.f32 %v2562, %v2575
        %v2643 = vadd.f32 %v2564, %v2579
        %v2644 = vadd.f32 %v2566, %v2575
        %v2645 = vadd.f32 %v2568, %v2579
        %v2646 = vmax.f32 %v2582, 0.0
        %v2647 = vmax.f32 %v2583, 0.0
        %v2648 = vmax.f32 %v2584, 0.0
        %v2649 = vmax.f32 %v2585, 0.0
        %v2650 = vmax.f32 %v2586, 0.0
        %v2651 = vmax.f32 %v2587, 0.0
        %v2652 = vmax.f32 %v2588, 0.0
        %v2653 = vmax.f32 %v2589, 0.0
        %v2654 = vmax.f32 %v2590, 0.0
        %v2655 = vmax.f32 %v2591, 0.0
        %v2656 = vmax.f32 %v2592, 0.0
        %v2657 = vmax.f32 %v2593, 0.0
        %v2658 = vmax.f32 %v2594, 0.0
        %v2659 = vmax.f32 %v2595, 0.0
        %v2660 = vmax.f32 %v2596, 0.0
        %v2661 = vmax.f32 %v2597, 0.0
        %v2662 = vmax.f32 %v2598, 0.0
        %v2663 = vmax.f32 %v2599, 0.0
        %v2664 = vmax.f32 %v2600, 0.0
        %v2665 = vmax.f32 %v2601, 0.0
        %v2666 = vmax.f32 %v2602, 0.0
        %v2667 = vmax.f32 %v2603, 0.0
        %v2668 = vmax.f32 %v2604, 0.0
        %v2669 = vmax.f32 %v2605, 0.0
        %v2670 = vmax.f32 %v2606, 0.0
        %v2671 = vmax.f32 %v2607, 0.0
        %v2672 = vmax.f32 %v2608, 0.0
        %v2673 = vmax.f32 %v2609, 0.0
        %v2674 = vmax.f32 %v2610, 0.0
        %v2675 = vmax.f32 %v2611, 0.0
        %v2676 = vmax.f32 %v2612, 0.0
        %v2677 = vmax.f32 %v2613, 0.0
        %v2678 = vmax.f32 %v2614, 0.0
        %v2679 = vmax.f32 %v2615, 0.0
        %v2680 = vmax.f32 %v2616, 0.0
        %v2681 = vmax.f32 %v2617, 0.0
        %v2682 = vmax.f32 %v2618, 0.0
        %v2683 = vmax.f32 %v2619, 0.0
        %v2684 = vmax.f32 %v2620, 0.0
        %v2685 = vmax.f32 %v2621, 0.0
        %v2686 = vmax.f32 %v2622, 0.0
        %v2687 = vmax.f32 %v2623, 0.0
        %v2688 = vmax.f32 %v2624, 0.0
        %v2689 = vmax.f32 %v2625, 0.0
        %v2690 = vmax.f32 %v2626, 0.0
        %v2691 = vmax.f32 %v2627, 0.0
        %v2692 = vmax.f32 %v2628, 0.0
        %v2693 = vmax.f32 %v2629, 0.0
        %v2694 = vmax.f32 %v2630, 0.0
        %v2695 = vmax.f32 %v2631, 0.0
        %v2696 = vmax.f32 %v2632, 0.0
        %v2697 = vmax.f32 %v2633, 0.0
        %v2698 = vmax.f32 %v2634, 0.0
        %v2699 = vmax.f32 %v2635, 0.0
        %v2700 = vmax.f32 %v2636, 0.0
        %v2701 = vmax.f32 %v2637, 0.0
        %v2702 = vmax.f32 %v2638, 0.0
        %v2703 = vmax.f32 %v2639, 0.0
        %v2704 = vmax.f32 %v2640, 0.0
        %v2705 = vmax.f32 %v2641, 0.0
        %v2706 = vmax.f32 %v2642, 0.0
        %v2707 = vmax.f32 %v2643, 0.0
        %v2708 = vmax.f32 %v2644, 0.0
        %v2709 = vmax.f32 %v2645, 0.0
        %2710 = vst [vmem:[#allocation4] sm:$0xff] 0.0
        %2711 = vst [vmem:[#allocation4 + $0x8] sm:$0xff] 0.0
        %2712 = vst [vmem:[#allocation4 + $0x10] sm:$0xff] 0.0
        %2713 = vst [vmem:[#allocation4 + $0x18] sm:$0xff] 0.0
        %2714 = vst [vmem:[#allocation4 + $0x220] sm:$0xff] 0.0
        %2715 = vst [vmem:[#allocation4 + $0x228] sm:$0xff] 0.0
        %2716 = vst [vmem:[#allocation4 + $0x230] sm:$0xff] 0.0
        %2717 = vst [vmem:[#allocation4 + $0x238] sm:$0xff] 0.0
        %2718 = vst [vmem:[#allocation4 + $0x20] sm:$0xff] %v2646
        %2719 = vst [vmem:[#allocation4 + $0x28] sm:$0xff] %v2647
        %2720 = vst [vmem:[#allocation4 + $0x30] sm:$0xff] %v2648
        %2721 = vst [vmem:[#allocation4 + $0x38] sm:$0xff] %v2649
        %2722 = vst [vmem:[#allocation4 + $0x40] sm:$0xff] %v2650
        %2723 = vst [vmem:[#allocation4 + $0x48] sm:$0xff] %v2651
        %2724 = vst [vmem:[#allocation4 + $0x50] sm:$0xff] %v2652
        %2725 = vst [vmem:[#allocation4 + $0x58] sm:$0xff] %v2653
        %2726 = vst [vmem:[#allocation4 + $0x60] sm:$0xff] %v2654
        %2727 = vst [vmem:[#allocation4 + $0x68] sm:$0xff] %v2655
        %2728 = vst [vmem:[#allocation4 + $0x70] sm:$0xff] %v2656
        %2729 = vst [vmem:[#allocation4 + $0x78] sm:$0xff] %v2657
        %2730 = vst [vmem:[#allocation4 + $0x80] sm:$0xff] %v2658
        %2731 = vst [vmem:[#allocation4 + $0x88] sm:$0xff] %v2659
        %2732 = vst [vmem:[#allocation4 + $0x90] sm:$0xff] %v2660
        %2733 = vst [vmem:[#allocation4 + $0x98] sm:$0xff] %v2661
        %2734 = vst [vmem:[#allocation4 + $0xa0] sm:$0xff] %v2662
        %2735 = vst [vmem:[#allocation4 + $0xa8] sm:$0xff] %v2663
        %2736 = vst [vmem:[#allocation4 + $0xb0] sm:$0xff] %v2664
        %2737 = vst [vmem:[#allocation4 + $0xb8] sm:$0xff] %v2665
        %2738 = vst [vmem:[#allocation4 + $0xc0] sm:$0xff] %v2666
        %2739 = vst [vmem:[#allocation4 + $0xc8] sm:$0xff] %v2667
        %2740 = vst [vmem:[#allocation4 + $0xd0] sm:$0xff] %v2668
        %2741 = vst [vmem:[#allocation4 + $0xd8] sm:$0xff] %v2669
        %2742 = vst [vmem:[#allocation4 + $0xe0] sm:$0xff] %v2670
        %2743 = vst [vmem:[#allocation4 + $0xe8] sm:$0xff] %v2671
        %2744 = vst [vmem:[#allocation4 + $0xf0] sm:$0xff] %v2672
        %2745 = vst [vmem:[#allocation4 + $0xf8] sm:$0xff] %v2673
        %2746 = vst [vmem:[#allocation4 + $0x100] sm:$0xff] %v2674
        %2747 = vst [vmem:[#allocation4 + $0x108] sm:$0xff] %v2675
        %2748 = vst [vmem:[#allocation4 + $0x110] sm:$0xff] %v2676
        %2749 = vst [vmem:[#allocation4 + $0x118] sm:$0xff] %v2677
        %2750 = vst [vmem:[#allocation4 + $0x120] sm:$0xff] %v2678
        %2751 = vst [vmem:[#allocation4 + $0x128] sm:$0xff] %v2679
        %2752 = vst [vmem:[#allocation4 + $0x130] sm:$0xff] %v2680
        %2753 = vst [vmem:[#allocation4 + $0x138] sm:$0xff] %v2681
        %2754 = vst [vmem:[#allocation4 + $0x140] sm:$0xff] %v2682
        %2755 = vst [vmem:[#allocation4 + $0x148] sm:$0xff] %v2683
        %2756 = vst [vmem:[#allocation4 + $0x150] sm:$0xff] %v2684
        %2757 = vst [vmem:[#allocation4 + $0x158] sm:$0xff] %v2685
        %2758 = vst [vmem:[#allocation4 + $0x160] sm:$0xff] %v2686
        %2759 = vst [vmem:[#allocation4 + $0x168] sm:$0xff] %v2687
        %2760 = vst [vmem:[#allocation4 + $0x170] sm:$0xff] %v2688
        %2761 = vst [vmem:[#allocation4 + $0x178] sm:$0xff] %v2689
        %2762 = vst [vmem:[#allocation4 + $0x180] sm:$0xff] %v2690
        %2763 = vst [vmem:[#allocation4 + $0x188] sm:$0xff] %v2691
        %2764 = vst [vmem:[#allocation4 + $0x190] sm:$0xff] %v2692
        %2765 = vst [vmem:[#allocation4 + $0x198] sm:$0xff] %v2693
        %2766 = vst [vmem:[#allocation4 + $0x1a0] sm:$0xff] %v2694
        %2767 = vst [vmem:[#allocation4 + $0x1a8] sm:$0xff] %v2695
        %2768 = vst [vmem:[#allocation4 + $0x1b0] sm:$0xff] %v2696
        %2769 = vst [vmem:[#allocation4 + $0x1b8] sm:$0xff] %v2697
        %2770 = vst [vmem:[#allocation4 + $0x1c0] sm:$0xff] %v2698
        %2771 = vst [vmem:[#allocation4 + $0x1c8] sm:$0xff] %v2699
        %2772 = vst [vmem:[#allocation4 + $0x1d0] sm:$0xff] %v2700
        %2773 = vst [vmem:[#allocation4 + $0x1d8] sm:$0xff] %v2701
        %2774 = vst [vmem:[#allocation4 + $0x1e0] sm:$0xff] %v2702
        %2775 = vst [vmem:[#allocation4 + $0x1e8] sm:$0xff] %v2703
        %2776 = vst [vmem:[#allocation4 + $0x1f0] sm:$0xff] %v2704
        %2777 = vst [vmem:[#allocation4 + $0x1f8] sm:$0xff] %v2705
        %2778 = vst [vmem:[#allocation4 + $0x200] sm:$0xff] %v2706
        %2779 = vst [vmem:[#allocation4 + $0x208] sm:$0xff] %v2707
        %2780 = vst [vmem:[#allocation4 + $0x210] sm:$0xff] %v2708
        %2781 = vst [vmem:[#allocation4 + $0x218] sm:$0xff] %v2709
        %v2782 = vld [vmem:[#allocation4] sm:$0xff]
        %v2783 = vld [vmem:[#allocation4 + $0x8] sm:$0xff]
        %v2784 = vld [vmem:[#allocation4 + $0x10] sm:$0xff]
        %v2785 = vld [vmem:[#allocation4 + $0x18] sm:$0xff]
        %v2786 = vld [vmem:[#allocation4 + $0x20] sm:$0xff]
        %v2787 = vld [vmem:[#allocation4 + $0x28] sm:$0xff]
        %v2788 = vld [vmem:[#allocation4 + $0x30] sm:$0xff]
        %v2789 = vld [vmem:[#allocation4 + $0x38] sm:$0xff]
        %v2790 = vld [vmem:[#allocation4 + $0x40] sm:$0xff]
        %v2791 = vld [vmem:[#allocation4 + $0x48] sm:$0xff]
        %v2792 = vld [vmem:[#allocation4 + $0x50] sm:$0xff]
        %v2793 = vld [vmem:[#allocation4 + $0x58] sm:$0xff]
        %v2794 = vld [vmem:[#allocation4 + $0x60] sm:$0xff]
        %v2795 = vld [vmem:[#allocation4 + $0x68] sm:$0xff]
        %v2796 = vld [vmem:[#allocation4 + $0x70] sm:$0xff]
        %v2797 = vld [vmem:[#allocation4 + $0x78] sm:$0xff]
        %v2798 = vld [vmem:[#allocation4 + $0x80] sm:$0xff]
        %v2799 = vld [vmem:[#allocation4 + $0x88] sm:$0xff]
        %v2800 = vld [vmem:[#allocation4 + $0x90] sm:$0xff]
        %v2801 = vld [vmem:[#allocation4 + $0x98] sm:$0xff]
        %v2802 = vld [vmem:[#allocation4 + $0xa0] sm:$0xff]
        %v2803 = vld [vmem:[#allocation4 + $0xa8] sm:$0xff]
        %v2804 = vld [vmem:[#allocation4 + $0xb0] sm:$0xff]
        %v2805 = vld [vmem:[#allocation4 + $0xb8] sm:$0xff]
        %v2806 = vld [vmem:[#allocation4 + $0xc0] sm:$0xff]
        %v2807 = vld [vmem:[#allocation4 + $0xc8] sm:$0xff]
        %v2808 = vld [vmem:[#allocation4 + $0xd0] sm:$0xff]
        %v2809 = vld [vmem:[#allocation4 + $0xd8] sm:$0xff]
        %v2810 = vld [vmem:[#allocation4 + $0xe0] sm:$0xff]
        %v2811 = vld [vmem:[#allocation4 + $0xe8] sm:$0xff]
        %v2812 = vld [vmem:[#allocation4 + $0xf0] sm:$0xff]
        %v2813 = vld [vmem:[#allocation4 + $0xf8] sm:$0xff]
        %v2814 = vld [vmem:[#allocation4 + $0x100] sm:$0xff]
        %v2815 = vld [vmem:[#allocation4 + $0x108] sm:$0xff]
        %v2816 = vld [vmem:[#allocation4 + $0x110] sm:$0xff]
        %v2817 = vld [vmem:[#allocation4 + $0x118] sm:$0xff]
        %v2818 = vld [vmem:[#allocation4 + $0x120] sm:$0xff]
        %v2819 = vld [vmem:[#allocation4 + $0x128] sm:$0xff]
        %v2820 = vld [vmem:[#allocation4 + $0x130] sm:$0xff]
        %v2821 = vld [vmem:[#allocation4 + $0x138] sm:$0xff]
        %v2822 = vld [vmem:[#allocation4 + $0x140] sm:$0xff]
        %v2823 = vld [vmem:[#allocation4 + $0x148] sm:$0xff]
        %v2824 = vld [vmem:[#allocation4 + $0x150] sm:$0xff]
        %v2825 = vld [vmem:[#allocation4 + $0x158] sm:$0xff]
        %v2826 = vld [vmem:[#allocation4 + $0x160] sm:$0xff]
        %v2827 = vld [vmem:[#allocation4 + $0x168] sm:$0xff]
        %v2828 = vld [vmem:[#allocation4 + $0x170] sm:$0xff]
        %v2829 = vld [vmem:[#allocation4 + $0x178] sm:$0xff]
        %v2830 = vld [vmem:[#allocation4 + $0x180] sm:$0xff]
        %v2831 = vld [vmem:[#allocation4 + $0x188] sm:$0xff]
        %v2832 = vld [vmem:[#allocation4 + $0x190] sm:$0xff]
        %v2833 = vld [vmem:[#allocation4 + $0x198] sm:$0xff]
        %v2834 = vld [vmem:[#allocation4 + $0x1a0] sm:$0xff]
        %v2835 = vld [vmem:[#allocation4 + $0x1a8] sm:$0xff]
        %v2836 = vld [vmem:[#allocation4 + $0x1b0] sm:$0xff]
        %v2837 = vld [vmem:[#allocation4 + $0x1b8] sm:$0xff]
        %v2838 = vld [vmem:[#allocation4 + $0x1c0] sm:$0xff]
        %v2839 = vld [vmem:[#allocation4 + $0x1c8] sm:$0xff]
        %v2840 = vld [vmem:[#allocation4 + $0x1d0] sm:$0xff]
        %v2841 = vld [vmem:[#allocation4 + $0x1d8] sm:$0xff]
        %v2842 = vld [vmem:[#allocation4 + $0x1e0] sm:$0xff]
        %v2843 = vld [vmem:[#allocation4 + $0x1e8] sm:$0xff]
        %v2844 = vld [vmem:[#allocation4 + $0x1f0] sm:$0xff]
        %v2845 = vld [vmem:[#allocation4 + $0x1f8] sm:$0xff]
        %v2846 = vld [vmem:[#allocation4 + $0x200] sm:$0xff]
        %v2847 = vld [vmem:[#allocation4 + $0x208] sm:$0xff]
        %v2848 = vld [vmem:[#allocation4 + $0x210] sm:$0xff]
        %v2849 = vld [vmem:[#allocation4 + $0x218] sm:$0xff]
        %v2850 = vld [vmem:[#allocation4 + $0x220] sm:$0xff]
        %v2851 = vld [vmem:[#allocation4 + $0x228] sm:$0xff]
        %v2852 = vld [vmem:[#allocation4 + $0x230] sm:$0xff]
        %v2853 = vld [vmem:[#allocation4 + $0x238] sm:$0xff]
        %v2854 = vlaneseq
        %v2855 = vshrl.u32 %v2854, 7
        %v2856 = vadd.s32 %v2855, 8
        %v2857 = vadd.s32 %v2855, 16
        %v2858 = vadd.s32 %v2855, 24
        %v2859 = vadd.s32 %v2855, 32
        %v2860 = vadd.s32 %v2855, 40
        %v2861 = vadd.s32 %v2855, 48
        %v2862 = vadd.s32 %v2855, 56
        %v2863 = vadd.s32 %v2855, 64
        %v2864 = vadd.s32 %v2855, 72
        %v2865 = vadd.s32 %v2855, 80
        %v2866 = vadd.s32 %v2855, 88
        %v2867 = vadd.s32 %v2855, 96
        %v2868 = vadd.s32 %v2855, 104
        %v2869 = vadd.s32 %v2855, 112
        %v2870 = vadd.s32 %v2855, 120
        %v2871 = vadd.s32 %v2855, 128
        %v2872 = vadd.s32 %v2855, 136
        %v2873 = vadd.s32 %v2855, 144
        %v2874 = vadd.s32 %v2855, 152
        %v2875 = vadd.s32 %v2855, 160
        %v2876 = vadd.s32 %v2855, 168
        %v2877 = vadd.s32 %v2855, 176
        %v2878 = vadd.s32 %v2855, 184
        %v2879 = vadd.s32 %v2855, 192
        %v2880 = vadd.s32 %v2855, 200
        %v2881 = vadd.s32 %v2855, 208
        %v2882 = vadd.s32 %v2855, 216
        %v2883 = vadd.s32 %v2855, 224
        %v2884 = vadd.s32 %v2855, 232
        %v2885 = vadd.s32 %v2855, 240
        %v2886 = vadd.s32 %v2855, 248
        %v2887 = vadd.s32 %v2855, 256
        %v2888 = vadd.s32 %v2855, 264
        %v2889 = vadd.s32 %v2855, 272
        %v2890 = vadd.s32 %v2855, 280
        %vm2891 = vcmp.lt.s32.totalorder %v2855, 0
        %v2892 = vsub.s32 0, %v2855
        %v2893 = vsel %vm2891, %v2892, %v2855
        %v2894 = vshrl.u32 %v2893, 4
        %v2895 = vand.u32 %v2893, 15
        %v2896 = vsub.s32 0, %v2895
        %v2897 = vsel %vm2891, %v2896, %v2895
        %vm2898 = vcmp.lt.s32.totalorder %v2856, 0
        %v2899 = vsub.s32 0, %v2856
        %v2900 = vsel %vm2898, %v2899, %v2856
        %v2901 = vshrl.u32 %v2900, 4
        %v2902 = vand.u32 %v2900, 15
        %v2903 = vsub.s32 0, %v2902
        %v2904 = vsel %vm2898, %v2903, %v2902
        %vm2905 = vcmp.lt.s32.totalorder %v2857, 0
        %v2906 = vsub.s32 0, %v2857
        %v2907 = vsel %vm2905, %v2906, %v2857
        %v2908 = vshrl.u32 %v2907, 4
        %v2909 = vand.u32 %v2907, 15
        %v2910 = vsub.s32 0, %v2909
        %v2911 = vsel %vm2905, %v2910, %v2909
        %vm2912 = vcmp.lt.s32.totalorder %v2858, 0
        %v2913 = vsub.s32 0, %v2858
        %v2914 = vsel %vm2912, %v2913, %v2858
        %v2915 = vshrl.u32 %v2914, 4
        %v2916 = vand.u32 %v2914, 15
        %v2917 = vsub.s32 0, %v2916
        %v2918 = vsel %vm2912, %v2917, %v2916
        %vm2919 = vcmp.lt.s32.totalorder %v2859, 0
        %v2920 = vsub.s32 0, %v2859
        %v2921 = vsel %vm2919, %v2920, %v2859
        %v2922 = vshrl.u32 %v2921, 4
        %v2923 = vand.u32 %v2921, 15
        %v2924 = vsub.s32 0, %v2923
        %v2925 = vsel %vm2919, %v2924, %v2923
        %vm2926 = vcmp.lt.s32.totalorder %v2860, 0
        %v2927 = vsub.s32 0, %v2860
        %v2928 = vsel %vm2926, %v2927, %v2860
        %v2929 = vshrl.u32 %v2928, 4
        %v2930 = vand.u32 %v2928, 15
        %v2931 = vsub.s32 0, %v2930
        %v2932 = vsel %vm2926, %v2931, %v2930
        %vm2933 = vcmp.lt.s32.totalorder %v2861, 0
        %v2934 = vsub.s32 0, %v2861
        %v2935 = vsel %vm2933, %v2934, %v2861
        %v2936 = vshrl.u32 %v2935, 4
        %v2937 = vand.u32 %v2935, 15
        %v2938 = vsub.s32 0, %v2937
        %v2939 = vsel %vm2933, %v2938, %v2937
        %vm2940 = vcmp.lt.s32.totalorder %v2862, 0
        %v2941 = vsub.s32 0, %v2862
        %v2942 = vsel %vm2940, %v2941, %v2862
        %v2943 = vshrl.u32 %v2942, 4
        %v2944 = vand.u32 %v2942, 15
        %v2945 = vsub.s32 0, %v2944
        %v2946 = vsel %vm2940, %v2945, %v2944
        %vm2947 = vcmp.lt.s32.totalorder %v2863, 0
        %v2948 = vsub.s32 0, %v2863
        %v2949 = vsel %vm2947, %v2948, %v2863
        %v2950 = vshrl.u32 %v2949, 4
        %v2951 = vand.u32 %v2949, 15
        %v2952 = vsub.s32 0, %v2951
        %v2953 = vsel %vm2947, %v2952, %v2951
        %vm2954 = vcmp.lt.s32.totalorder %v2864, 0
        %v2955 = vsub.s32 0, %v2864
        %v2956 = vsel %vm2954, %v2955, %v2864
        %v2957 = vshrl.u32 %v2956, 4
        %v2958 = vand.u32 %v2956, 15
        %v2959 = vsub.s32 0, %v2958
        %v2960 = vsel %vm2954, %v2959, %v2958
        %vm2961 = vcmp.lt.s32.totalorder %v2865, 0
        %v2962 = vsub.s32 0, %v2865
        %v2963 = vsel %vm2961, %v2962, %v2865
        %v2964 = vshrl.u32 %v2963, 4
        %v2965 = vand.u32 %v2963, 15
        %v2966 = vsub.s32 0, %v2965
        %v2967 = vsel %vm2961, %v2966, %v2965
        %vm2968 = vcmp.lt.s32.totalorder %v2866, 0
        %v2969 = vsub.s32 0, %v2866
        %v2970 = vsel %vm2968, %v2969, %v2866
        %v2971 = vshrl.u32 %v2970, 4
        %v2972 = vand.u32 %v2970, 15
        %v2973 = vsub.s32 0, %v2972
        %v2974 = vsel %vm2968, %v2973, %v2972
        %vm2975 = vcmp.lt.s32.totalorder %v2867, 0
        %v2976 = vsub.s32 0, %v2867
        %v2977 = vsel %vm2975, %v2976, %v2867
        %v2978 = vshrl.u32 %v2977, 4
        %v2979 = vand.u32 %v2977, 15
        %v2980 = vsub.s32 0, %v2979
        %v2981 = vsel %vm2975, %v2980, %v2979
        %vm2982 = vcmp.lt.s32.totalorder %v2868, 0
        %v2983 = vsub.s32 0, %v2868
        %v2984 = vsel %vm2982, %v2983, %v2868
        %v2985 = vshrl.u32 %v2984, 4
        %v2986 = vand.u32 %v2984, 15
        %v2987 = vsub.s32 0, %v2986
        %v2988 = vsel %vm2982, %v2987, %v2986
        %vm2989 = vcmp.lt.s32.totalorder %v2869, 0
        %v2990 = vsub.s32 0, %v2869
        %v2991 = vsel %vm2989, %v2990, %v2869
        %v2992 = vshrl.u32 %v2991, 4
        %v2993 = vand.u32 %v2991, 15
        %v2994 = vsub.s32 0, %v2993
        %v2995 = vsel %vm2989, %v2994, %v2993
        %vm2996 = vcmp.lt.s32.totalorder %v2870, 0
        %v2997 = vsub.s32 0, %v2870
        %v2998 = vsel %vm2996, %v2997, %v2870
        %v2999 = vshrl.u32 %v2998, 4
        %v3000 = vand.u32 %v2998, 15
        %v3001 = vsub.s32 0, %v3000
        %v3002 = vsel %vm2996, %v3001, %v3000
        %vm3003 = vcmp.lt.s32.totalorder %v2871, 0
        %v3004 = vsub.s32 0, %v2871
        %v3005 = vsel %vm3003, %v3004, %v2871
        %v3006 = vshrl.u32 %v3005, 4
        %v3007 = vand.u32 %v3005, 15
        %v3008 = vsub.s32 0, %v3007
        %v3009 = vsel %vm3003, %v3008, %v3007
        %vm3010 = vcmp.lt.s32.totalorder %v2872, 0
        %v3011 = vsub.s32 0, %v2872
        %v3012 = vsel %vm3010, %v3011, %v2872
        %v3013 = vshrl.u32 %v3012, 4
        %v3014 = vand.u32 %v3012, 15
        %v3015 = vsub.s32 0, %v3014
        %v3016 = vsel %vm3010, %v3015, %v3014
        %vm3017 = vcmp.lt.s32.totalorder %v2873, 0
        %v3018 = vsub.s32 0, %v2873
        %v3019 = vsel %vm3017, %v3018, %v2873
        %v3020 = vshrl.u32 %v3019, 4
        %v3021 = vand.u32 %v3019, 15
        %v3022 = vsub.s32 0, %v3021
        %v3023 = vsel %vm3017, %v3022, %v3021
        %vm3024 = vcmp.lt.s32.totalorder %v2874, 0
        %v3025 = vsub.s32 0, %v2874
        %v3026 = vsel %vm3024, %v3025, %v2874
        %v3027 = vshrl.u32 %v3026, 4
        %v3028 = vand.u32 %v3026, 15
        %v3029 = vsub.s32 0, %v3028
        %v3030 = vsel %vm3024, %v3029, %v3028
        %vm3031 = vcmp.lt.s32.totalorder %v2875, 0
        %v3032 = vsub.s32 0, %v2875
        %v3033 = vsel %vm3031, %v3032, %v2875
        %v3034 = vshrl.u32 %v3033, 4
        %v3035 = vand.u32 %v3033, 15
        %v3036 = vsub.s32 0, %v3035
        %v3037 = vsel %vm3031, %v3036, %v3035
        %vm3038 = vcmp.lt.s32.totalorder %v2876, 0
        %v3039 = vsub.s32 0, %v2876
        %v3040 = vsel %vm3038, %v3039, %v2876
        %v3041 = vshrl.u32 %v3040, 4
        %v3042 = vand.u32 %v3040, 15
        %v3043 = vsub.s32 0, %v3042
        %v3044 = vsel %vm3038, %v3043, %v3042
        %vm3045 = vcmp.lt.s32.totalorder %v2877, 0
        %v3046 = vsub.s32 0, %v2877
        %v3047 = vsel %vm3045, %v3046, %v2877
        %v3048 = vshrl.u32 %v3047, 4
        %v3049 = vand.u32 %v3047, 15
        %v3050 = vsub.s32 0, %v3049
        %v3051 = vsel %vm3045, %v3050, %v3049
        %vm3052 = vcmp.lt.s32.totalorder %v2878, 0
        %v3053 = vsub.s32 0, %v2878
        %v3054 = vsel %vm3052, %v3053, %v2878
        %v3055 = vshrl.u32 %v3054, 4
        %v3056 = vand.u32 %v3054, 15
        %v3057 = vsub.s32 0, %v3056
        %v3058 = vsel %vm3052, %v3057, %v3056
        %vm3059 = vcmp.lt.s32.totalorder %v2879, 0
        %v3060 = vsub.s32 0, %v2879
        %v3061 = vsel %vm3059, %v3060, %v2879
        %v3062 = vshrl.u32 %v3061, 4
        %v3063 = vand.u32 %v3061, 15
        %v3064 = vsub.s32 0, %v3063
        %v3065 = vsel %vm3059, %v3064, %v3063
        %vm3066 = vcmp.lt.s32.totalorder %v2880, 0
        %v3067 = vsub.s32 0, %v2880
        %v3068 = vsel %vm3066, %v3067, %v2880
        %v3069 = vshrl.u32 %v3068, 4
        %v3070 = vand.u32 %v3068, 15
        %v3071 = vsub.s32 0, %v3070
        %v3072 = vsel %vm3066, %v3071, %v3070
        %vm3073 = vcmp.lt.s32.totalorder %v2881, 0
        %v3074 = vsub.s32 0, %v2881
        %v3075 = vsel %vm3073, %v3074, %v2881
        %v3076 = vshrl.u32 %v3075, 4
        %v3077 = vand.u32 %v3075, 15
        %v3078 = vsub.s32 0, %v3077
        %v3079 = vsel %vm3073, %v3078, %v3077
        %vm3080 = vcmp.lt.s32.totalorder %v2882, 0
        %v3081 = vsub.s32 0, %v2882
        %v3082 = vsel %vm3080, %v3081, %v2882
        %v3083 = vshrl.u32 %v3082, 4
        %v3084 = vand.u32 %v3082, 15
        %v3085 = vsub.s32 0, %v3084
        %v3086 = vsel %vm3080, %v3085, %v3084
        %vm3087 = vcmp.lt.s32.totalorder %v2883, 0
        %v3088 = vsub.s32 0, %v2883
        %v3089 = vsel %vm3087, %v3088, %v2883
        %v3090 = vshrl.u32 %v3089, 4
        %v3091 = vand.u32 %v3089, 15
        %v3092 = vsub.s32 0, %v3091
        %v3093 = vsel %vm3087, %v3092, %v3091
        %vm3094 = vcmp.lt.s32.totalorder %v2884, 0
        %v3095 = vsub.s32 0, %v2884
        %v3096 = vsel %vm3094, %v3095, %v2884
        %v3097 = vshrl.u32 %v3096, 4
        %v3098 = vand.u32 %v3096, 15
        %v3099 = vsub.s32 0, %v3098
        %v3100 = vsel %vm3094, %v3099, %v3098
        %vm3101 = vcmp.lt.s32.totalorder %v2885, 0
        %v3102 = vsub.s32 0, %v2885
        %v3103 = vsel %vm3101, %v3102, %v2885
        %v3104 = vshrl.u32 %v3103, 4
        %v3105 = vand.u32 %v3103, 15
        %v3106 = vsub.s32 0, %v3105
        %v3107 = vsel %vm3101, %v3106, %v3105
        %vm3108 = vcmp.lt.s32.totalorder %v2886, 0
        %v3109 = vsub.s32 0, %v2886
        %v3110 = vsel %vm3108, %v3109, %v2886
        %v3111 = vshrl.u32 %v3110, 4
        %v3112 = vand.u32 %v3110, 15
        %v3113 = vsub.s32 0, %v3112
        %v3114 = vsel %vm3108, %v3113, %v3112
        %vm3115 = vcmp.lt.s32.totalorder %v2887, 0
        %v3116 = vsub.s32 0, %v2887
        %v3117 = vsel %vm3115, %v3116, %v2887
        %v3118 = vshrl.u32 %v3117, 4
        %v3119 = vand.u32 %v3117, 15
        %v3120 = vsub.s32 0, %v3119
        %v3121 = vsel %vm3115, %v3120, %v3119
        %vm3122 = vcmp.lt.s32.totalorder %v2888, 0
        %v3123 = vsub.s32 0, %v2888
        %v3124 = vsel %vm3122, %v3123, %v2888
        %v3125 = vshrl.u32 %v3124, 4
        %v3126 = vand.u32 %v3124, 15
        %v3127 = vsub.s32 0, %v3126
        %v3128 = vsel %vm3122, %v3127, %v3126
        %vm3129 = vcmp.lt.s32.totalorder %v2889, 0
        %v3130 = vsub.s32 0, %v2889
        %v3131 = vsel %vm3129, %v3130, %v2889
        %v3132 = vshrl.u32 %v3131, 4
        %v3133 = vand.u32 %v3131, 15
        %v3134 = vsub.s32 0, %v3133
        %v3135 = vsel %vm3129, %v3134, %v3133
        %vm3136 = vcmp.lt.s32.totalorder %v2890, 0
        %v3137 = vsub.s32 0, %v2890
        %v3138 = vsel %vm3136, %v3137, %v2890
        %v3139 = vshrl.u32 %v3138, 4
        %v3140 = vand.u32 %v3138, 15
        %v3141 = vsub.s32 0, %v3140
        %v3142 = vsel %vm3136, %v3141, %v3140
        %vm3143 = vcmp.ne.s32.totalorder %v2897, 0
        %vm3144 = vcmp.ne.s32.totalorder %v2904, 0
        %vm3145 = vcmp.ne.s32.totalorder %v2911, 0
        %vm3146 = vcmp.ne.s32.totalorder %v2918, 0
        %vm3147 = vcmp.ne.s32.totalorder %v2925, 0
        %vm3148 = vcmp.ne.s32.totalorder %v2932, 0
        %vm3149 = vcmp.ne.s32.totalorder %v2939, 0
        %vm3150 = vcmp.ne.s32.totalorder %v2946, 0
        %vm3151 = vcmp.ne.s32.totalorder %v2953, 0
        %vm3152 = vcmp.ne.s32.totalorder %v2960, 0
        %vm3153 = vcmp.ne.s32.totalorder %v2967, 0
        %vm3154 = vcmp.ne.s32.totalorder %v2974, 0
        %vm3155 = vcmp.ne.s32.totalorder %v2981, 0
        %vm3156 = vcmp.ne.s32.totalorder %v2988, 0
        %vm3157 = vcmp.ne.s32.totalorder %v2995, 0
        %vm3158 = vcmp.ne.s32.totalorder %v3002, 0
        %vm3159 = vcmp.ne.s32.totalorder %v3009, 0
        %vm3160 = vcmp.ne.s32.totalorder %v3016, 0
        %vm3161 = vcmp.ne.s32.totalorder %v3023, 0
        %vm3162 = vcmp.ne.s32.totalorder %v3030, 0
        %vm3163 = vcmp.ne.s32.totalorder %v3037, 0
        %vm3164 = vcmp.ne.s32.totalorder %v3044, 0
        %vm3165 = vcmp.ne.s32.totalorder %v3051, 0
        %vm3166 = vcmp.ne.s32.totalorder %v3058, 0
        %vm3167 = vcmp.ne.s32.totalorder %v3065, 0
        %vm3168 = vcmp.ne.s32.totalorder %v3072, 0
        %vm3169 = vcmp.ne.s32.totalorder %v3079, 0
        %vm3170 = vcmp.ne.s32.totalorder %v3086, 0
        %vm3171 = vcmp.ne.s32.totalorder %v3093, 0
        %vm3172 = vcmp.ne.s32.totalorder %v3100, 0
        %vm3173 = vcmp.ne.s32.totalorder %v3107, 0
        %vm3174 = vcmp.ne.s32.totalorder %v3114, 0
        %vm3175 = vcmp.ne.s32.totalorder %v3121, 0
        %vm3176 = vcmp.ne.s32.totalorder %v3128, 0
        %vm3177 = vcmp.ne.s32.totalorder %v3135, 0
        %vm3178 = vcmp.ne.s32.totalorder %v3142, 0
        %vm3179 = vcmp.lt.s32.totalorder %v2897, 0
        %vm3180 = vcmp.lt.s32.totalorder %v2904, 0
        %vm3181 = vcmp.lt.s32.totalorder %v2911, 0
        %vm3182 = vcmp.lt.s32.totalorder %v2918, 0
        %vm3183 = vcmp.lt.s32.totalorder %v2925, 0
        %vm3184 = vcmp.lt.s32.totalorder %v2932, 0
        %vm3185 = vcmp.lt.s32.totalorder %v2939, 0
        %vm3186 = vcmp.lt.s32.totalorder %v2946, 0
        %vm3187 = vcmp.lt.s32.totalorder %v2953, 0
        %vm3188 = vcmp.lt.s32.totalorder %v2960, 0
        %vm3189 = vcmp.lt.s32.totalorder %v2967, 0
        %vm3190 = vcmp.lt.s32.totalorder %v2974, 0
        %vm3191 = vcmp.lt.s32.totalorder %v2981, 0
        %vm3192 = vcmp.lt.s32.totalorder %v2988, 0
        %vm3193 = vcmp.lt.s32.totalorder %v2995, 0
        %vm3194 = vcmp.lt.s32.totalorder %v3002, 0
        %vm3195 = vcmp.lt.s32.totalorder %v3009, 0
        %vm3196 = vcmp.lt.s32.totalorder %v3016, 0
        %vm3197 = vcmp.lt.s32.totalorder %v3023, 0
        %vm3198 = vcmp.lt.s32.totalorder %v3030, 0
        %vm3199 = vcmp.lt.s32.totalorder %v3037, 0
        %vm3200 = vcmp.lt.s32.totalorder %v3044, 0
        %vm3201 = vcmp.lt.s32.totalorder %v3051, 0
        %vm3202 = vcmp.lt.s32.totalorder %v3058, 0
        %vm3203 = vcmp.lt.s32.totalorder %v3065, 0
        %vm3204 = vcmp.lt.s32.totalorder %v3072, 0
        %vm3205 = vcmp.lt.s32.totalorder %v3079, 0
        %vm3206 = vcmp.lt.s32.totalorder %v3086, 0
        %vm3207 = vcmp.lt.s32.totalorder %v3093, 0
        %vm3208 = vcmp.lt.s32.totalorder %v3100, 0
        %vm3209 = vcmp.lt.s32.totalorder %v3107, 0
        %vm3210 = vcmp.lt.s32.totalorder %v3114, 0
        %vm3211 = vcmp.lt.s32.totalorder %v3121, 0
        %vm3212 = vcmp.lt.s32.totalorder %v3128, 0
        %vm3213 = vcmp.lt.s32.totalorder %v3135, 0
        %vm3214 = vcmp.lt.s32.totalorder %v3142, 0
        %vm3215 = vmand %vm3179, %vm3143
        %vm3216 = vmand %vm3180, %vm3144
        %vm3217 = vmand %vm3181, %vm3145
        %vm3218 = vmand %vm3182, %vm3146
        %vm3219 = vmand %vm3183, %vm3147
        %vm3220 = vmand %vm3184, %vm3148
        %vm3221 = vmand %vm3185, %vm3149
        %vm3222 = vmand %vm3186, %vm3150
        %vm3223 = vmand %vm3187, %vm3151
        %vm3224 = vmand %vm3188, %vm3152
        %vm3225 = vmand %vm3189, %vm3153
        %vm3226 = vmand %vm3190, %vm3154
        %vm3227 = vmand %vm3191, %vm3155
        %vm3228 = vmand %vm3192, %vm3156
        %vm3229 = vmand %vm3193, %vm3157
        %vm3230 = vmand %vm3194, %vm3158
        %vm3231 = vmand %vm3195, %vm3159
        %vm3232 = vmand %vm3196, %vm3160
        %vm3233 = vmand %vm3197, %vm3161
        %vm3234 = vmand %vm3198, %vm3162
        %vm3235 = vmand %vm3199, %vm3163
        %vm3236 = vmand %vm3200, %vm3164
        %vm3237 = vmand %vm3201, %vm3165
        %vm3238 = vmand %vm3202, %vm3166
        %vm3239 = vmand %vm3203, %vm3167
        %vm3240 = vmand %vm3204, %vm3168
        %vm3241 = vmand %vm3205, %vm3169
        %vm3242 = vmand %vm3206, %vm3170
        %vm3243 = vmand %vm3207, %vm3171
        %vm3244 = vmand %vm3208, %vm3172
        %vm3245 = vmand %vm3209, %vm3173
        %vm3246 = vmand %vm3210, %vm3174
        %vm3247 = vmand %vm3211, %vm3175
        %vm3248 = vmand %vm3212, %vm3176
        %vm3249 = vmand %vm3213, %vm3177
        %vm3250 = vmand %vm3214, %vm3178
        %v3251 = vadd.s32 %v2897, 16
        %v3252 = vadd.s32 %v2904, 16
        %v3253 = vadd.s32 %v2911, 16
        %v3254 = vadd.s32 %v2918, 16
        %v3255 = vadd.s32 %v2925, 16
        %v3256 = vadd.s32 %v2932, 16
        %v3257 = vadd.s32 %v2939, 16
        %v3258 = vadd.s32 %v2946, 16
        %v3259 = vadd.s32 %v2953, 16
        %v3260 = vadd.s32 %v2960, 16
        %v3261 = vadd.s32 %v2967, 16
        %v3262 = vadd.s32 %v2974, 16
        %v3263 = vadd.s32 %v2981, 16
        %v3264 = vadd.s32 %v2988, 16
        %v3265 = vadd.s32 %v2995, 16
        %v3266 = vadd.s32 %v3002, 16
        %v3267 = vadd.s32 %v3009, 16
        %v3268 = vadd.s32 %v3016, 16
        %v3269 = vadd.s32 %v3023, 16
        %v3270 = vadd.s32 %v3030, 16
        %v3271 = vadd.s32 %v3037, 16
        %v3272 = vadd.s32 %v3044, 16
        %v3273 = vadd.s32 %v3051, 16
        %v3274 = vadd.s32 %v3058, 16
        %v3275 = vadd.s32 %v3065, 16
        %v3276 = vadd.s32 %v3072, 16
        %v3277 = vadd.s32 %v3079, 16
        %v3278 = vadd.s32 %v3086, 16
        %v3279 = vadd.s32 %v3093, 16
        %v3280 = vadd.s32 %v3100, 16
        %v3281 = vadd.s32 %v3107, 16
        %v3282 = vadd.s32 %v3114, 16
        %v3283 = vadd.s32 %v3121, 16
        %v3284 = vadd.s32 %v3128, 16
        %v3285 = vadd.s32 %v3135, 16
        %v3286 = vadd.s32 %v3142, 16
        %v3287 = vsel %vm3215, %v3251, %v2897
        %v3288 = vsel %vm3216, %v3252, %v2904
        %v3289 = vsel %vm3217, %v3253, %v2911
        %v3290 = vsel %vm3218, %v3254, %v2918
        %v3291 = vsel %vm3219, %v3255, %v2925
        %v3292 = vsel %vm3220, %v3256, %v2932
        %v3293 = vsel %vm3221, %v3257, %v2939
        %v3294 = vsel %vm3222, %v3258, %v2946
        %v3295 = vsel %vm3223, %v3259, %v2953
        %v3296 = vsel %vm3224, %v3260, %v2960
        %v3297 = vsel %vm3225, %v3261, %v2967
        %v3298 = vsel %vm3226, %v3262, %v2974
        %v3299 = vsel %vm3227, %v3263, %v2981
        %v3300 = vsel %vm3228, %v3264, %v2988
        %v3301 = vsel %vm3229, %v3265, %v2995
        %v3302 = vsel %vm3230, %v3266, %v3002
        %v3303 = vsel %vm3231, %v3267, %v3009
        %v3304 = vsel %vm3232, %v3268, %v3016
        %v3305 = vsel %vm3233, %v3269, %v3023
        %v3306 = vsel %vm3234, %v3270, %v3030
        %v3307 = vsel %vm3235, %v3271, %v3037
        %v3308 = vsel %vm3236, %v3272, %v3044
        %v3309 = vsel %vm3237, %v3273, %v3051
        %v3310 = vsel %vm3238, %v3274, %v3058
        %v3311 = vsel %vm3239, %v3275, %v3065
        %v3312 = vsel %vm3240, %v3276, %v3072
        %v3313 = vsel %vm3241, %v3277, %v3079
        %v3314 = vsel %vm3242, %v3278, %v3086
        %v3315 = vsel %vm3243, %v3279, %v3093
        %v3316 = vsel %vm3244, %v3280, %v3100
        %v3317 = vsel %vm3245, %v3281, %v3107
        %v3318 = vsel %vm3246, %v3282, %v3114
        %v3319 = vsel %vm3247, %v3283, %v3121
        %v3320 = vsel %vm3248, %v3284, %v3128
        %v3321 = vsel %vm3249, %v3285, %v3135
        %v3322 = vsel %vm3250, %v3286, %v3142
        %vm3323 = vcmp.eq.s32.totalorder %v3287, 0
        %vm3324 = vcmp.eq.s32.totalorder %v3288, 0
        %vm3325 = vcmp.eq.s32.totalorder %v3289, 0
        %vm3326 = vcmp.eq.s32.totalorder %v3290, 0
        %vm3327 = vcmp.eq.s32.totalorder %v3291, 0
        %vm3328 = vcmp.eq.s32.totalorder %v3292, 0
        %vm3329 = vcmp.eq.s32.totalorder %v3293, 0
        %vm3330 = vcmp.eq.s32.totalorder %v3294, 0
        %vm3331 = vcmp.eq.s32.totalorder %v3295, 0
        %vm3332 = vcmp.eq.s32.totalorder %v3296, 0
        %vm3333 = vcmp.eq.s32.totalorder %v3297, 0
        %vm3334 = vcmp.eq.s32.totalorder %v3298, 0
        %vm3335 = vcmp.eq.s32.totalorder %v3299, 0
        %vm3336 = vcmp.eq.s32.totalorder %v3300, 0
        %vm3337 = vcmp.eq.s32.totalorder %v3301, 0
        %vm3338 = vcmp.eq.s32.totalorder %v3302, 0
        %vm3339 = vcmp.eq.s32.totalorder %v3303, 0
        %vm3340 = vcmp.eq.s32.totalorder %v3304, 0
        %vm3341 = vcmp.eq.s32.totalorder %v3305, 0
        %vm3342 = vcmp.eq.s32.totalorder %v3306, 0
        %vm3343 = vcmp.eq.s32.totalorder %v3307, 0
        %vm3344 = vcmp.eq.s32.totalorder %v3308, 0
        %vm3345 = vcmp.eq.s32.totalorder %v3309, 0
        %vm3346 = vcmp.eq.s32.totalorder %v3310, 0
        %vm3347 = vcmp.eq.s32.totalorder %v3311, 0
        %vm3348 = vcmp.eq.s32.totalorder %v3312, 0
        %vm3349 = vcmp.eq.s32.totalorder %v3313, 0
        %vm3350 = vcmp.eq.s32.totalorder %v3314, 0
        %vm3351 = vcmp.eq.s32.totalorder %v3315, 0
        %vm3352 = vcmp.eq.s32.totalorder %v3316, 0
        %vm3353 = vcmp.eq.s32.totalorder %v3317, 0
        %vm3354 = vcmp.eq.s32.totalorder %v3318, 0
        %vm3355 = vcmp.eq.s32.totalorder %v3319, 0
        %vm3356 = vcmp.eq.s32.totalorder %v3320, 0
        %vm3357 = vcmp.eq.s32.totalorder %v3321, 0
        %vm3358 = vcmp.eq.s32.totalorder %v3322, 0
        %v3359 = vrot.slane %v2782, 7
        %v3360 = vrot.slane %v2783, 7
        %v3361 = vrot.slane %v2784, 7
        %v3362 = vrot.slane %v2785, 7
        %v3363 = vrot.slane %v2786, 7
        %v3364 = vrot.slane %v2787, 7
        %v3365 = vrot.slane %v2788, 7
        %v3366 = vrot.slane %v2789, 7
        %v3367 = vrot.slane %v2790, 7
        %v3368 = vrot.slane %v2791, 7
        %v3369 = vrot.slane %v2792, 7
        %v3370 = vrot.slane %v2793, 7
        %v3371 = vrot.slane %v2794, 7
        %v3372 = vrot.slane %v2795, 7
        %v3373 = vrot.slane %v2796, 7
        %v3374 = vrot.slane %v2797, 7
        %v3375 = vrot.slane %v2798, 7
        %v3376 = vrot.slane %v2799, 7
        %v3377 = vrot.slane %v2800, 7
        %v3378 = vrot.slane %v2801, 7
        %v3379 = vrot.slane %v2802, 7
        %v3380 = vrot.slane %v2803, 7
        %v3381 = vrot.slane %v2804, 7
        %v3382 = vrot.slane %v2805, 7
        %v3383 = vrot.slane %v2806, 7
        %v3384 = vrot.slane %v2807, 7
        %v3385 = vrot.slane %v2808, 7
        %v3386 = vrot.slane %v2809, 7
        %v3387 = vrot.slane %v2810, 7
        %v3388 = vrot.slane %v2811, 7
        %v3389 = vrot.slane %v2812, 7
        %v3390 = vrot.slane %v2813, 7
        %v3391 = vrot.slane %v2814, 7
        %v3392 = vrot.slane %v2815, 7
        %v3393 = vrot.slane %v2816, 7
        %v3394 = vrot.slane %v2817, 7
        %v3395 = vrot.slane %v2818, 7
        %v3396 = vrot.slane %v2819, 7
        %v3397 = vrot.slane %v2820, 7
        %v3398 = vrot.slane %v2821, 7
        %v3399 = vrot.slane %v2822, 7
        %v3400 = vrot.slane %v2823, 7
        %v3401 = vrot.slane %v2824, 7
        %v3402 = vrot.slane %v2825, 7
        %v3403 = vrot.slane %v2826, 7
        %v3404 = vrot.slane %v2827, 7
        %v3405 = vrot.slane %v2828, 7
        %v3406 = vrot.slane %v2829, 7
        %v3407 = vrot.slane %v2830, 7
        %v3408 = vrot.slane %v2831, 7
        %v3409 = vrot.slane %v2832, 7
        %v3410 = vrot.slane %v2833, 7
        %v3411 = vrot.slane %v2834, 7
        %v3412 = vrot.slane %v2835, 7
        %v3413 = vrot.slane %v2836, 7
        %v3414 = vrot.slane %v2837, 7
        %v3415 = vrot.slane %v2838, 7
        %v3416 = vrot.slane %v2839, 7
        %v3417 = vrot.slane %v2840, 7
        %v3418 = vrot.slane %v2841, 7
        %v3419 = vrot.slane %v2842, 7
        %v3420 = vrot.slane %v2843, 7
        %v3421 = vrot.slane %v2844, 7
        %v3422 = vrot.slane %v2845, 7
        %v3423 = vrot.slane %v2846, 7
        %v3424 = vrot.slane %v2847, 7
        %v3425 = vrot.slane %v2848, 7
        %v3426 = vrot.slane %v2849, 7
        %v3427 = vrot.slane %v2850, 7
        %v3428 = vrot.slane %v2851, 7
        %v3429 = vrot.slane %v2852, 7
        %v3430 = vrot.slane %v2853, 7
        %vm3431 = vcmp.lt.s32.totalorder %v2855, 1
        %v3432 = vsel %vm3431, %v3427, %v3429
        %v3433 = vsel %vm3431, %v3428, %v3430
        %v3434 = vsel %vm3431, %v3425, %v3427
        %v3435 = vsel %vm3431, %v3426, %v3428
        %v3436 = vsel %vm3431, %v3423, %v3425
        %v3437 = vsel %vm3431, %v3424, %v3426
        %v3438 = vsel %vm3431, %v3421, %v3423
        %v3439 = vsel %vm3431, %v3422, %v3424
        %v3440 = vsel %vm3431, %v3419, %v3421
        %v3441 = vsel %vm3431, %v3420, %v3422
        %v3442 = vsel %vm3431, %v3417, %v3419
        %v3443 = vsel %vm3431, %v3418, %v3420
        %v3444 = vsel %vm3431, %v3415, %v3417
        %v3445 = vsel %vm3431, %v3416, %v3418
        %v3446 = vsel %vm3431, %v3413, %v3415
        %v3447 = vsel %vm3431, %v3414, %v3416
        %v3448 = vsel %vm3431, %v3411, %v3413
        %v3449 = vsel %vm3431, %v3412, %v3414
        %v3450 = vsel %vm3431, %v3409, %v3411
        %v3451 = vsel %vm3431, %v3410, %v3412
        %v3452 = vsel %vm3431, %v3407, %v3409
        %v3453 = vsel %vm3431, %v3408, %v3410
        %v3454 = vsel %vm3431, %v3405, %v3407
        %v3455 = vsel %vm3431, %v3406, %v3408
        %v3456 = vsel %vm3431, %v3403, %v3405
        %v3457 = vsel %vm3431, %v3404, %v3406
        %v3458 = vsel %vm3431, %v3401, %v3403
        %v3459 = vsel %vm3431, %v3402, %v3404
        %v3460 = vsel %vm3431, %v3399, %v3401
        %v3461 = vsel %vm3431, %v3400, %v3402
        %v3462 = vsel %vm3431, %v3397, %v3399
        %v3463 = vsel %vm3431, %v3398, %v3400
        %v3464 = vsel %vm3431, %v3395, %v3397
        %v3465 = vsel %vm3431, %v3396, %v3398
        %v3466 = vsel %vm3431, %v3393, %v3395
        %v3467 = vsel %vm3431, %v3394, %v3396
        %v3468 = vsel %vm3431, %v3391, %v3393
        %v3469 = vsel %vm3431, %v3392, %v3394
        %v3470 = vsel %vm3431, %v3389, %v3391
        %v3471 = vsel %vm3431, %v3390, %v3392
        %v3472 = vsel %vm3431, %v3387, %v3389
        %v3473 = vsel %vm3431, %v3388, %v3390
        %v3474 = vsel %vm3431, %v3385, %v3387
        %v3475 = vsel %vm3431, %v3386, %v3388
        %v3476 = vsel %vm3431, %v3383, %v3385
        %v3477 = vsel %vm3431, %v3384, %v3386
        %v3478 = vsel %vm3431, %v3381, %v3383
        %v3479 = vsel %vm3431, %v3382, %v3384
        %v3480 = vsel %vm3431, %v3379, %v3381
        %v3481 = vsel %vm3431, %v3380, %v3382
        %v3482 = vsel %vm3431, %v3377, %v3379
        %v3483 = vsel %vm3431, %v3378, %v3380
        %v3484 = vsel %vm3431, %v3375, %v3377
        %v3485 = vsel %vm3431, %v3376, %v3378
        %v3486 = vsel %vm3431, %v3373, %v3375
        %v3487 = vsel %vm3431, %v3374, %v3376
        %v3488 = vsel %vm3431, %v3371, %v3373
        %v3489 = vsel %vm3431, %v3372, %v3374
        %v3490 = vsel %vm3431, %v3369, %v3371
        %v3491 = vsel %vm3431, %v3370, %v3372
        %v3492 = vsel %vm3431, %v3367, %v3369
        %v3493 = vsel %vm3431, %v3368, %v3370
        %v3494 = vsel %vm3431, %v3365, %v3367
        %v3495 = vsel %vm3431, %v3366, %v3368
        %v3496 = vsel %vm3431, %v3363, %v3365
        %v3497 = vsel %vm3431, %v3364, %v3366
        %v3498 = vsel %vm3431, %v3361, %v3363
        %v3499 = vsel %vm3431, %v3362, %v3364
        %v3500 = vsel %vm3431, %v3359, %v3361
        %v3501 = vsel %vm3431, %v3360, %v3362
        %v3502 = vsel %vm3431, %v3429, %v3359
        %v3503 = vsel %vm3431, %v3430, %v3360
        %v3504 = vsel %vm3323, 1, 0
        %v3505 = vsel %vm3324, 1, 0
        %v3506 = vsel %vm3325, 1, 0
        %v3507 = vsel %vm3326, 1, 0
        %v3508 = vsel %vm3327, 1, 0
        %v3509 = vsel %vm3328, 1, 0
        %v3510 = vsel %vm3329, 1, 0
        %v3511 = vsel %vm3330, 1, 0
        %v3512 = vsel %vm3331, 1, 0
        %v3513 = vsel %vm3332, 1, 0
        %v3514 = vsel %vm3333, 1, 0
        %v3515 = vsel %vm3334, 1, 0
        %v3516 = vsel %vm3335, 1, 0
        %v3517 = vsel %vm3336, 1, 0
        %v3518 = vsel %vm3337, 1, 0
        %v3519 = vsel %vm3338, 1, 0
        %v3520 = vsel %vm3339, 1, 0
        %v3521 = vsel %vm3340, 1, 0
        %v3522 = vsel %vm3341, 1, 0
        %v3523 = vsel %vm3342, 1, 0
        %v3524 = vsel %vm3343, 1, 0
        %v3525 = vsel %vm3344, 1, 0
        %v3526 = vsel %vm3345, 1, 0
        %v3527 = vsel %vm3346, 1, 0
        %v3528 = vsel %vm3347, 1, 0
        %v3529 = vsel %vm3348, 1, 0
        %v3530 = vsel %vm3349, 1, 0
        %v3531 = vsel %vm3350, 1, 0
        %v3532 = vsel %vm3351, 1, 0
        %v3533 = vsel %vm3352, 1, 0
        %v3534 = vsel %vm3353, 1, 0
        %v3535 = vsel %vm3354, 1, 0
        %v3536 = vsel %vm3355, 1, 0
        %v3537 = vsel %vm3356, 1, 0
        %v3538 = vsel %vm3357, 1, 0
        %v3539 = vsel %vm3358, 1, 0
        %vm3540 = vcmp.eq.s32.totalorder %v3504, 1
        %vm3541 = vcmp.eq.s32.totalorder %v3505, 1
        %vm3542 = vcmp.eq.s32.totalorder %v3506, 1
        %vm3543 = vcmp.eq.s32.totalorder %v3507, 1
        %vm3544 = vcmp.eq.s32.totalorder %v3508, 1
        %vm3545 = vcmp.eq.s32.totalorder %v3509, 1
        %vm3546 = vcmp.eq.s32.totalorder %v3510, 1
        %vm3547 = vcmp.eq.s32.totalorder %v3511, 1
        %vm3548 = vcmp.eq.s32.totalorder %v3512, 1
        %vm3549 = vcmp.eq.s32.totalorder %v3513, 1
        %vm3550 = vcmp.eq.s32.totalorder %v3514, 1
        %vm3551 = vcmp.eq.s32.totalorder %v3515, 1
        %vm3552 = vcmp.eq.s32.totalorder %v3516, 1
        %vm3553 = vcmp.eq.s32.totalorder %v3517, 1
        %vm3554 = vcmp.eq.s32.totalorder %v3518, 1
        %vm3555 = vcmp.eq.s32.totalorder %v3519, 1
        %vm3556 = vcmp.eq.s32.totalorder %v3520, 1
        %vm3557 = vcmp.eq.s32.totalorder %v3521, 1
        %vm3558 = vcmp.eq.s32.totalorder %v3522, 1
        %vm3559 = vcmp.eq.s32.totalorder %v3523, 1
        %vm3560 = vcmp.eq.s32.totalorder %v3524, 1
        %vm3561 = vcmp.eq.s32.totalorder %v3525, 1
        %vm3562 = vcmp.eq.s32.totalorder %v3526, 1
        %vm3563 = vcmp.eq.s32.totalorder %v3527, 1
        %vm3564 = vcmp.eq.s32.totalorder %v3528, 1
        %vm3565 = vcmp.eq.s32.totalorder %v3529, 1
        %vm3566 = vcmp.eq.s32.totalorder %v3530, 1
        %vm3567 = vcmp.eq.s32.totalorder %v3531, 1
        %vm3568 = vcmp.eq.s32.totalorder %v3532, 1
        %vm3569 = vcmp.eq.s32.totalorder %v3533, 1
        %vm3570 = vcmp.eq.s32.totalorder %v3534, 1
        %vm3571 = vcmp.eq.s32.totalorder %v3535, 1
        %vm3572 = vcmp.eq.s32.totalorder %v3536, 1
        %vm3573 = vcmp.eq.s32.totalorder %v3537, 1
        %vm3574 = vcmp.eq.s32.totalorder %v3538, 1
        %vm3575 = vcmp.eq.s32.totalorder %v3539, 1
        %v3576 = vsel %vm3540, 0.0, %v3502
        %v3577 = vsel %vm3540, 0.0, %v3503
        %v3578 = vsel %vm3541, 0.0, %v3500
        %v3579 = vsel %vm3541, 0.0, %v3501
        %v3580 = vsel %vm3542, 0.0, %v3498
        %v3581 = vsel %vm3542, 0.0, %v3499
        %v3582 = vsel %vm3543, 0.0, %v3496
        %v3583 = vsel %vm3543, 0.0, %v3497
        %v3584 = vsel %vm3544, 0.0, %v3494
        %v3585 = vsel %vm3544, 0.0, %v3495
        %v3586 = vsel %vm3545, 0.0, %v3492
        %v3587 = vsel %vm3545, 0.0, %v3493
        %v3588 = vsel %vm3546, 0.0, %v3490
        %v3589 = vsel %vm3546, 0.0, %v3491
        %v3590 = vsel %vm3547, 0.0, %v3488
        %v3591 = vsel %vm3547, 0.0, %v3489
        %v3592 = vsel %vm3548, 0.0, %v3486
        %v3593 = vsel %vm3548, 0.0, %v3487
        %v3594 = vsel %vm3549, 0.0, %v3484
        %v3595 = vsel %vm3549, 0.0, %v3485
        %v3596 = vsel %vm3550, 0.0, %v3482
        %v3597 = vsel %vm3550, 0.0, %v3483
        %v3598 = vsel %vm3551, 0.0, %v3480
        %v3599 = vsel %vm3551, 0.0, %v3481
        %v3600 = vsel %vm3552, 0.0, %v3478
        %v3601 = vsel %vm3552, 0.0, %v3479
        %v3602 = vsel %vm3553, 0.0, %v3476
        %v3603 = vsel %vm3553, 0.0, %v3477
        %v3604 = vsel %vm3554, 0.0, %v3474
        %v3605 = vsel %vm3554, 0.0, %v3475
        %v3606 = vsel %vm3555, 0.0, %v3472
        %v3607 = vsel %vm3555, 0.0, %v3473
        %v3608 = vsel %vm3556, 0.0, %v3470
        %v3609 = vsel %vm3556, 0.0, %v3471
        %v3610 = vsel %vm3557, 0.0, %v3468
        %v3611 = vsel %vm3557, 0.0, %v3469
        %v3612 = vsel %vm3558, 0.0, %v3466
        %v3613 = vsel %vm3558, 0.0, %v3467
        %v3614 = vsel %vm3559, 0.0, %v3464
        %v3615 = vsel %vm3559, 0.0, %v3465
        %v3616 = vsel %vm3560, 0.0, %v3462
        %v3617 = vsel %vm3560, 0.0, %v3463
        %v3618 = vsel %vm3561, 0.0, %v3460
        %v3619 = vsel %vm3561, 0.0, %v3461
        %v3620 = vsel %vm3562, 0.0, %v3458
        %v3621 = vsel %vm3562, 0.0, %v3459
        %v3622 = vsel %vm3563, 0.0, %v3456
        %v3623 = vsel %vm3563, 0.0, %v3457
        %v3624 = vsel %vm3564, 0.0, %v3454
        %v3625 = vsel %vm3564, 0.0, %v3455
        %v3626 = vsel %vm3565, 0.0, %v3452
        %v3627 = vsel %vm3565, 0.0, %v3453
        %v3628 = vsel %vm3566, 0.0, %v3450
        %v3629 = vsel %vm3566, 0.0, %v3451
        %v3630 = vsel %vm3567, 0.0, %v3448
        %v3631 = vsel %vm3567, 0.0, %v3449
        %v3632 = vsel %vm3568, 0.0, %v3446
        %v3633 = vsel %vm3568, 0.0, %v3447
        %v3634 = vsel %vm3569, 0.0, %v3444
        %v3635 = vsel %vm3569, 0.0, %v3445
        %v3636 = vsel %vm3570, 0.0, %v3442
        %v3637 = vsel %vm3570, 0.0, %v3443
        %v3638 = vsel %vm3571, 0.0, %v3440
        %v3639 = vsel %vm3571, 0.0, %v3441
        %v3640 = vsel %vm3572, 0.0, %v3438
        %v3641 = vsel %vm3572, 0.0, %v3439
        %v3642 = vsel %vm3573, 0.0, %v3436
        %v3643 = vsel %vm3573, 0.0, %v3437
        %v3644 = vsel %vm3574, 0.0, %v3434
        %v3645 = vsel %vm3574, 0.0, %v3435
        %v3646 = vsel %vm3575, 0.0, %v3432
        %v3647 = vsel %vm3575, 0.0, %v3433
        %v3648 = vpack.c.bf16 %v3578, %v3576
        %v3649 = vpack.c.bf16 %v3579, %v3577
        %v3650 = vpack.c.bf16 %v3582, %v3580
        %v3651 = vpack.c.bf16 %v3583, %v3581
        %v3652 = vpack.c.bf16 %v3586, %v3584
        %v3653 = vpack.c.bf16 %v3587, %v3585
        %v3654 = vpack.c.bf16 %v3590, %v3588
        %v3655 = vpack.c.bf16 %v3591, %v3589
        %v3656 = vpack.c.bf16 %v3594, %v3592
        %v3657 = vpack.c.bf16 %v3595, %v3593
        %v3658 = vpack.c.bf16 %v3598, %v3596
        %v3659 = vpack.c.bf16 %v3599, %v3597
        %v3660 = vpack.c.bf16 %v3602, %v3600
        %v3661 = vpack.c.bf16 %v3603, %v3601
        %v3662 = vpack.c.bf16 %v3606, %v3604
        %v3663 = vpack.c.bf16 %v3607, %v3605
        %v3664 = vpack.c.bf16 %v3610, %v3608
        %v3665 = vpack.c.bf16 %v3611, %v3609
        %v3666 = vpack.c.bf16 %v3614, %v3612
        %v3667 = vpack.c.bf16 %v3615, %v3613
        %v3668 = vpack.c.bf16 %v3618, %v3616
        %v3669 = vpack.c.bf16 %v3619, %v3617
        %v3670 = vpack.c.bf16 %v3622, %v3620
        %v3671 = vpack.c.bf16 %v3623, %v3621
        %v3672 = vpack.c.bf16 %v3626, %v3624
        %v3673 = vpack.c.bf16 %v3627, %v3625
        %v3674 = vpack.c.bf16 %v3630, %v3628
        %v3675 = vpack.c.bf16 %v3631, %v3629
        %v3676 = vpack.c.bf16 %v3634, %v3632
        %v3677 = vpack.c.bf16 %v3635, %v3633
        %v3678 = vpack.c.bf16 %v3638, %v3636
        %v3679 = vpack.c.bf16 %v3639, %v3637
        %v3680 = vpack.c.bf16 %v3642, %v3640
        %v3681 = vpack.c.bf16 %v3643, %v3641
        %v3682 = vpack.c.bf16 %v3646, %v3644
        %v3683 = vpack.c.bf16 %v3647, %v3645
        %v3684 = vpack.c.bf16 %v2784, %v2782
        %v3685 = vpack.c.bf16 %v2785, %v2783
        %v3686 = vpack.c.bf16 %v2788, %v2786
        %v3687 = vpack.c.bf16 %v2789, %v2787
        %v3688 = vpack.c.bf16 %v2792, %v2790
        %v3689 = vpack.c.bf16 %v2793, %v2791
        %v3690 = vpack.c.bf16 %v2796, %v2794
        %v3691 = vpack.c.bf16 %v2797, %v2795
        %v3692 = vpack.c.bf16 %v2800, %v2798
        %v3693 = vpack.c.bf16 %v2801, %v2799
        %v3694 = vpack.c.bf16 %v2804, %v2802
        %v3695 = vpack.c.bf16 %v2805, %v2803
        %v3696 = vpack.c.bf16 %v2808, %v2806
        %v3697 = vpack.c.bf16 %v2809, %v2807
        %v3698 = vpack.c.bf16 %v2812, %v2810
        %v3699 = vpack.c.bf16 %v2813, %v2811
        %v3700 = vpack.c.bf16 %v2816, %v2814
        %v3701 = vpack.c.bf16 %v2817, %v2815
        %v3702 = vpack.c.bf16 %v2820, %v2818
        %v3703 = vpack.c.bf16 %v2821, %v2819
        %v3704 = vpack.c.bf16 %v2824, %v2822
        %v3705 = vpack.c.bf16 %v2825, %v2823
        %v3706 = vpack.c.bf16 %v2828, %v2826
        %v3707 = vpack.c.bf16 %v2829, %v2827
        %v3708 = vpack.c.bf16 %v2832, %v2830
        %v3709 = vpack.c.bf16 %v2833, %v2831
        %v3710 = vpack.c.bf16 %v2836, %v2834
        %v3711 = vpack.c.bf16 %v2837, %v2835
        %v3712 = vpack.c.bf16 %v2840, %v2838
        %v3713 = vpack.c.bf16 %v2841, %v2839
        %v3714 = vpack.c.bf16 %v2844, %v2842
        %v3715 = vpack.c.bf16 %v2845, %v2843
        %v3716 = vpack.c.bf16 %v2848, %v2846
        %v3717 = vpack.c.bf16 %v2849, %v2847
        %v3718 = vpack.c.bf16 %v2852, %v2850
        %v3719 = vpack.c.bf16 %v2853, %v2851
        %vm3720 = vcmp.eq.s32.totalorder %v3287, 15
        %vm3721 = vcmp.eq.s32.totalorder %v3288, 15
        %vm3722 = vcmp.eq.s32.totalorder %v3289, 15
        %vm3723 = vcmp.eq.s32.totalorder %v3290, 15
        %vm3724 = vcmp.eq.s32.totalorder %v3291, 15
        %vm3725 = vcmp.eq.s32.totalorder %v3292, 15
        %vm3726 = vcmp.eq.s32.totalorder %v3293, 15
        %vm3727 = vcmp.eq.s32.totalorder %v3294, 15
        %vm3728 = vcmp.eq.s32.totalorder %v3295, 15
        %vm3729 = vcmp.eq.s32.totalorder %v3296, 15
        %vm3730 = vcmp.eq.s32.totalorder %v3297, 15
        %vm3731 = vcmp.eq.s32.totalorder %v3298, 15
        %vm3732 = vcmp.eq.s32.totalorder %v3299, 15
        %vm3733 = vcmp.eq.s32.totalorder %v3300, 15
        %vm3734 = vcmp.eq.s32.totalorder %v3301, 15
        %vm3735 = vcmp.eq.s32.totalorder %v3302, 15
        %vm3736 = vcmp.eq.s32.totalorder %v3303, 15
        %vm3737 = vcmp.eq.s32.totalorder %v3304, 15
        %vm3738 = vcmp.eq.s32.totalorder %v3305, 15
        %vm3739 = vcmp.eq.s32.totalorder %v3306, 15
        %vm3740 = vcmp.eq.s32.totalorder %v3307, 15
        %vm3741 = vcmp.eq.s32.totalorder %v3308, 15
        %vm3742 = vcmp.eq.s32.totalorder %v3309, 15
        %vm3743 = vcmp.eq.s32.totalorder %v3310, 15
        %vm3744 = vcmp.eq.s32.totalorder %v3311, 15
        %vm3745 = vcmp.eq.s32.totalorder %v3312, 15
        %vm3746 = vcmp.eq.s32.totalorder %v3313, 15
        %vm3747 = vcmp.eq.s32.totalorder %v3314, 15
        %vm3748 = vcmp.eq.s32.totalorder %v3315, 15
        %vm3749 = vcmp.eq.s32.totalorder %v3316, 15
        %vm3750 = vcmp.eq.s32.totalorder %v3317, 15
        %vm3751 = vcmp.eq.s32.totalorder %v3318, 15
        %vm3752 = vcmp.eq.s32.totalorder %v3319, 15
        %vm3753 = vcmp.eq.s32.totalorder %v3320, 15
        %vm3754 = vcmp.eq.s32.totalorder %v3321, 15
        %vm3755 = vcmp.eq.s32.totalorder %v3322, 15
        %v3756 = vrot.slane %v2782, 1
        %v3757 = vrot.slane %v2783, 1
        %v3758 = vrot.slane %v2784, 1
        %v3759 = vrot.slane %v2785, 1
        %v3760 = vrot.slane %v2786, 1
        %v3761 = vrot.slane %v2787, 1
        %v3762 = vrot.slane %v2788, 1
        %v3763 = vrot.slane %v2789, 1
        %v3764 = vrot.slane %v2790, 1
        %v3765 = vrot.slane %v2791, 1
        %v3766 = vrot.slane %v2792, 1
        %v3767 = vrot.slane %v2793, 1
        %v3768 = vrot.slane %v2794, 1
        %v3769 = vrot.slane %v2795, 1
        %v3770 = vrot.slane %v2796, 1
        %v3771 = vrot.slane %v2797, 1
        %v3772 = vrot.slane %v2798, 1
        %v3773 = vrot.slane %v2799, 1
        %v3774 = vrot.slane %v2800, 1
        %v3775 = vrot.slane %v2801, 1
        %v3776 = vrot.slane %v2802, 1
        %v3777 = vrot.slane %v2803, 1
        %v3778 = vrot.slane %v2804, 1
        %v3779 = vrot.slane %v2805, 1
        %v3780 = vrot.slane %v2806, 1
        %v3781 = vrot.slane %v2807, 1
        %v3782 = vrot.slane %v2808, 1
        %v3783 = vrot.slane %v2809, 1
        %v3784 = vrot.slane %v2810, 1
        %v3785 = vrot.slane %v2811, 1
        %v3786 = vrot.slane %v2812, 1
        %v3787 = vrot.slane %v2813, 1
        %v3788 = vrot.slane %v2814, 1
        %v3789 = vrot.slane %v2815, 1
        %v3790 = vrot.slane %v2816, 1
        %v3791 = vrot.slane %v2817, 1
        %v3792 = vrot.slane %v2818, 1
        %v3793 = vrot.slane %v2819, 1
        %v3794 = vrot.slane %v2820, 1
        %v3795 = vrot.slane %v2821, 1
        %v3796 = vrot.slane %v2822, 1
        %v3797 = vrot.slane %v2823, 1
        %v3798 = vrot.slane %v2824, 1
        %v3799 = vrot.slane %v2825, 1
        %v3800 = vrot.slane %v2826, 1
        %v3801 = vrot.slane %v2827, 1
        %v3802 = vrot.slane %v2828, 1
        %v3803 = vrot.slane %v2829, 1
        %v3804 = vrot.slane %v2830, 1
        %v3805 = vrot.slane %v2831, 1
        %v3806 = vrot.slane %v2832, 1
        %v3807 = vrot.slane %v2833, 1
        %v3808 = vrot.slane %v2834, 1
        %v3809 = vrot.slane %v2835, 1
        %v3810 = vrot.slane %v2836, 1
        %v3811 = vrot.slane %v2837, 1
        %v3812 = vrot.slane %v2838, 1
        %v3813 = vrot.slane %v2839, 1
        %v3814 = vrot.slane %v2840, 1
        %v3815 = vrot.slane %v2841, 1
        %v3816 = vrot.slane %v2842, 1
        %v3817 = vrot.slane %v2843, 1
        %v3818 = vrot.slane %v2844, 1
        %v3819 = vrot.slane %v2845, 1
        %v3820 = vrot.slane %v2846, 1
        %v3821 = vrot.slane %v2847, 1
        %v3822 = vrot.slane %v2848, 1
        %v3823 = vrot.slane %v2849, 1
        %v3824 = vrot.slane %v2850, 1
        %v3825 = vrot.slane %v2851, 1
        %v3826 = vrot.slane %v2852, 1
        %v3827 = vrot.slane %v2853, 1
        %vm3828 = vcmp.lt.s32.totalorder %v2855, 7
        %v3829 = vsel %vm3828, %v3824, %v3826
        %v3830 = vsel %vm3828, %v3825, %v3827
        %v3831 = vsel %vm3828, %v3822, %v3824
        %v3832 = vsel %vm3828, %v3823, %v3825
        %v3833 = vsel %vm3828, %v3820, %v3822
        %v3834 = vsel %vm3828, %v3821, %v3823
        %v3835 = vsel %vm3828, %v3818, %v3820
        %v3836 = vsel %vm3828, %v3819, %v3821
        %v3837 = vsel %vm3828, %v3816, %v3818
        %v3838 = vsel %vm3828, %v3817, %v3819
        %v3839 = vsel %vm3828, %v3814, %v3816
        %v3840 = vsel %vm3828, %v3815, %v3817
        %v3841 = vsel %vm3828, %v3812, %v3814
        %v3842 = vsel %vm3828, %v3813, %v3815
        %v3843 = vsel %vm3828, %v3810, %v3812
        %v3844 = vsel %vm3828, %v3811, %v3813
        %v3845 = vsel %vm3828, %v3808, %v3810
        %v3846 = vsel %vm3828, %v3809, %v3811
        %v3847 = vsel %vm3828, %v3806, %v3808
        %v3848 = vsel %vm3828, %v3807, %v3809
        %v3849 = vsel %vm3828, %v3804, %v3806
        %v3850 = vsel %vm3828, %v3805, %v3807
        %v3851 = vsel %vm3828, %v3802, %v3804
        %v3852 = vsel %vm3828, %v3803, %v3805
        %v3853 = vsel %vm3828, %v3800, %v3802
        %v3854 = vsel %vm3828, %v3801, %v3803
        %v3855 = vsel %vm3828, %v3798, %v3800
        %v3856 = vsel %vm3828, %v3799, %v3801
        %v3857 = vsel %vm3828, %v3796, %v3798
        %v3858 = vsel %vm3828, %v3797, %v3799
        %v3859 = vsel %vm3828, %v3794, %v3796
        %v3860 = vsel %vm3828, %v3795, %v3797
        %v3861 = vsel %vm3828, %v3792, %v3794
        %v3862 = vsel %vm3828, %v3793, %v3795
        %v3863 = vsel %vm3828, %v3790, %v3792
        %v3864 = vsel %vm3828, %v3791, %v3793
        %v3865 = vsel %vm3828, %v3788, %v3790
        %v3866 = vsel %vm3828, %v3789, %v3791
        %v3867 = vsel %vm3828, %v3786, %v3788
        %v3868 = vsel %vm3828, %v3787, %v3789
        %v3869 = vsel %vm3828, %v3784, %v3786
        %v3870 = vsel %vm3828, %v3785, %v3787
        %v3871 = vsel %vm3828, %v3782, %v3784
        %v3872 = vsel %vm3828, %v3783, %v3785
        %v3873 = vsel %vm3828, %v3780, %v3782
        %v3874 = vsel %vm3828, %v3781, %v3783
        %v3875 = vsel %vm3828, %v3778, %v3780
        %v3876 = vsel %vm3828, %v3779, %v3781
        %v3877 = vsel %vm3828, %v3776, %v3778
        %v3878 = vsel %vm3828, %v3777, %v3779
        %v3879 = vsel %vm3828, %v3774, %v3776
        %v3880 = vsel %vm3828, %v3775, %v3777
        %v3881 = vsel %vm3828, %v3772, %v3774
        %v3882 = vsel %vm3828, %v3773, %v3775
        %v3883 = vsel %vm3828, %v3770, %v3772
        %v3884 = vsel %vm3828, %v3771, %v3773
        %v3885 = vsel %vm3828, %v3768, %v3770
        %v3886 = vsel %vm3828, %v3769, %v3771
        %v3887 = vsel %vm3828, %v3766, %v3768
        %v3888 = vsel %vm3828, %v3767, %v3769
        %v3889 = vsel %vm3828, %v3764, %v3766
        %v3890 = vsel %vm3828, %v3765, %v3767
        %v3891 = vsel %vm3828, %v3762, %v3764
        %v3892 = vsel %vm3828, %v3763, %v3765
        %v3893 = vsel %vm3828, %v3760, %v3762
        %v3894 = vsel %vm3828, %v3761, %v3763
        %v3895 = vsel %vm3828, %v3758, %v3760
        %v3896 = vsel %vm3828, %v3759, %v3761
        %v3897 = vsel %vm3828, %v3756, %v3758
        %v3898 = vsel %vm3828, %v3757, %v3759
        %v3899 = vsel %vm3828, %v3826, %v3756
        %v3900 = vsel %vm3828, %v3827, %v3757
        %v3901 = vsel %vm3720, 1, 0
        %v3902 = vsel %vm3721, 1, 0
        %v3903 = vsel %vm3722, 1, 0
        %v3904 = vsel %vm3723, 1, 0
        %v3905 = vsel %vm3724, 1, 0
        %v3906 = vsel %vm3725, 1, 0
        %v3907 = vsel %vm3726, 1, 0
        %v3908 = vsel %vm3727, 1, 0
        %v3909 = vsel %vm3728, 1, 0
        %v3910 = vsel %vm3729, 1, 0
        %v3911 = vsel %vm3730, 1, 0
        %v3912 = vsel %vm3731, 1, 0
        %v3913 = vsel %vm3732, 1, 0
        %v3914 = vsel %vm3733, 1, 0
        %v3915 = vsel %vm3734, 1, 0
        %v3916 = vsel %vm3735, 1, 0
        %v3917 = vsel %vm3736, 1, 0
        %v3918 = vsel %vm3737, 1, 0
        %v3919 = vsel %vm3738, 1, 0
        %v3920 = vsel %vm3739, 1, 0
        %v3921 = vsel %vm3740, 1, 0
        %v3922 = vsel %vm3741, 1, 0
        %v3923 = vsel %vm3742, 1, 0
        %v3924 = vsel %vm3743, 1, 0
        %v3925 = vsel %vm3744, 1, 0
        %v3926 = vsel %vm3745, 1, 0
        %v3927 = vsel %vm3746, 1, 0
        %v3928 = vsel %vm3747, 1, 0
        %v3929 = vsel %vm3748, 1, 0
        %v3930 = vsel %vm3749, 1, 0
        %v3931 = vsel %vm3750, 1, 0
        %v3932 = vsel %vm3751, 1, 0
        %v3933 = vsel %vm3752, 1, 0
        %v3934 = vsel %vm3753, 1, 0
        %v3935 = vsel %vm3754, 1, 0
        %v3936 = vsel %vm3755, 1, 0
        %vm3937 = vcmp.eq.s32.totalorder %v3901, 1
        %vm3938 = vcmp.eq.s32.totalorder %v3902, 1
        %vm3939 = vcmp.eq.s32.totalorder %v3903, 1
        %vm3940 = vcmp.eq.s32.totalorder %v3904, 1
        %vm3941 = vcmp.eq.s32.totalorder %v3905, 1
        %vm3942 = vcmp.eq.s32.totalorder %v3906, 1
        %vm3943 = vcmp.eq.s32.totalorder %v3907, 1
        %vm3944 = vcmp.eq.s32.totalorder %v3908, 1
        %vm3945 = vcmp.eq.s32.totalorder %v3909, 1
        %vm3946 = vcmp.eq.s32.totalorder %v3910, 1
        %vm3947 = vcmp.eq.s32.totalorder %v3911, 1
        %vm3948 = vcmp.eq.s32.totalorder %v3912, 1
        %vm3949 = vcmp.eq.s32.totalorder %v3913, 1
        %vm3950 = vcmp.eq.s32.totalorder %v3914, 1
        %vm3951 = vcmp.eq.s32.totalorder %v3915, 1
        %vm3952 = vcmp.eq.s32.totalorder %v3916, 1
        %vm3953 = vcmp.eq.s32.totalorder %v3917, 1
        %vm3954 = vcmp.eq.s32.totalorder %v3918, 1
        %vm3955 = vcmp.eq.s32.totalorder %v3919, 1
        %vm3956 = vcmp.eq.s32.totalorder %v3920, 1
        %vm3957 = vcmp.eq.s32.totalorder %v3921, 1
        %vm3958 = vcmp.eq.s32.totalorder %v3922, 1
        %vm3959 = vcmp.eq.s32.totalorder %v3923, 1
        %vm3960 = vcmp.eq.s32.totalorder %v3924, 1
        %vm3961 = vcmp.eq.s32.totalorder %v3925, 1
        %vm3962 = vcmp.eq.s32.totalorder %v3926, 1
        %vm3963 = vcmp.eq.s32.totalorder %v3927, 1
        %vm3964 = vcmp.eq.s32.totalorder %v3928, 1
        %vm3965 = vcmp.eq.s32.totalorder %v3929, 1
        %vm3966 = vcmp.eq.s32.totalorder %v3930, 1
        %vm3967 = vcmp.eq.s32.totalorder %v3931, 1
        %vm3968 = vcmp.eq.s32.totalorder %v3932, 1
        %vm3969 = vcmp.eq.s32.totalorder %v3933, 1
        %vm3970 = vcmp.eq.s32.totalorder %v3934, 1
        %vm3971 = vcmp.eq.s32.totalorder %v3935, 1
        %vm3972 = vcmp.eq.s32.totalorder %v3936, 1
        %v3973 = vsel %vm3937, 0.0, %v3897
        %v3974 = vsel %vm3937, 0.0, %v3898
        %v3975 = vsel %vm3938, 0.0, %v3895
        %v3976 = vsel %vm3938, 0.0, %v3896
        %v3977 = vsel %vm3939, 0.0, %v3893
        %v3978 = vsel %vm3939, 0.0, %v3894
        %v3979 = vsel %vm3940, 0.0, %v3891
        %v3980 = vsel %vm3940, 0.0, %v3892
        %v3981 = vsel %vm3941, 0.0, %v3889
        %v3982 = vsel %vm3941, 0.0, %v3890
        %v3983 = vsel %vm3942, 0.0, %v3887
        %v3984 = vsel %vm3942, 0.0, %v3888
        %v3985 = vsel %vm3943, 0.0, %v3885
        %v3986 = vsel %vm3943, 0.0, %v3886
        %v3987 = vsel %vm3944, 0.0, %v3883
        %v3988 = vsel %vm3944, 0.0, %v3884
        %v3989 = vsel %vm3945, 0.0, %v3881
        %v3990 = vsel %vm3945, 0.0, %v3882
        %v3991 = vsel %vm3946, 0.0, %v3879
        %v3992 = vsel %vm3946, 0.0, %v3880
        %v3993 = vsel %vm3947, 0.0, %v3877
        %v3994 = vsel %vm3947, 0.0, %v3878
        %v3995 = vsel %vm3948, 0.0, %v3875
        %v3996 = vsel %vm3948, 0.0, %v3876
        %v3997 = vsel %vm3949, 0.0, %v3873
        %v3998 = vsel %vm3949, 0.0, %v3874
        %v3999 = vsel %vm3950, 0.0, %v3871
        %v4000 = vsel %vm3950, 0.0, %v3872
        %v4001 = vsel %vm3951, 0.0, %v3869
        %v4002 = vsel %vm3951, 0.0, %v3870
        %v4003 = vsel %vm3952, 0.0, %v3867
        %v4004 = vsel %vm3952, 0.0, %v3868
        %v4005 = vsel %vm3953, 0.0, %v3865
        %v4006 = vsel %vm3953, 0.0, %v3866
        %v4007 = vsel %vm3954, 0.0, %v3863
        %v4008 = vsel %vm3954, 0.0, %v3864
        %v4009 = vsel %vm3955, 0.0, %v3861
        %v4010 = vsel %vm3955, 0.0, %v3862
        %v4011 = vsel %vm3956, 0.0, %v3859
        %v4012 = vsel %vm3956, 0.0, %v3860
        %v4013 = vsel %vm3957, 0.0, %v3857
        %v4014 = vsel %vm3957, 0.0, %v3858
        %v4015 = vsel %vm3958, 0.0, %v3855
        %v4016 = vsel %vm3958, 0.0, %v3856
        %v4017 = vsel %vm3959, 0.0, %v3853
        %v4018 = vsel %vm3959, 0.0, %v3854
        %v4019 = vsel %vm3960, 0.0, %v3851
        %v4020 = vsel %vm3960, 0.0, %v3852
        %v4021 = vsel %vm3961, 0.0, %v3849
        %v4022 = vsel %vm3961, 0.0, %v3850
        %v4023 = vsel %vm3962, 0.0, %v3847
        %v4024 = vsel %vm3962, 0.0, %v3848
        %v4025 = vsel %vm3963, 0.0, %v3845
        %v4026 = vsel %vm3963, 0.0, %v3846
        %v4027 = vsel %vm3964, 0.0, %v3843
        %v4028 = vsel %vm3964, 0.0, %v3844
        %v4029 = vsel %vm3965, 0.0, %v3841
        %v4030 = vsel %vm3965, 0.0, %v3842
        %v4031 = vsel %vm3966, 0.0, %v3839
        %v4032 = vsel %vm3966, 0.0, %v3840
        %v4033 = vsel %vm3967, 0.0, %v3837
        %v4034 = vsel %vm3967, 0.0, %v3838
        %v4035 = vsel %vm3968, 0.0, %v3835
        %v4036 = vsel %vm3968, 0.0, %v3836
        %v4037 = vsel %vm3969, 0.0, %v3833
        %v4038 = vsel %vm3969, 0.0, %v3834
        %v4039 = vsel %vm3970, 0.0, %v3831
        %v4040 = vsel %vm3970, 0.0, %v3832
        %v4041 = vsel %vm3971, 0.0, %v3829
        %v4042 = vsel %vm3971, 0.0, %v3830
        %v4043 = vsel %vm3972, 0.0, %v3899
        %v4044 = vsel %vm3972, 0.0, %v3900
        %v4045 = vpack.c.bf16 %v3975, %v3973
        %v4046 = vpack.c.bf16 %v3976, %v3974
        %v4047 = vpack.c.bf16 %v3979, %v3977
        %v4048 = vpack.c.bf16 %v3980, %v3978
        %v4049 = vpack.c.bf16 %v3983, %v3981
        %v4050 = vpack.c.bf16 %v3984, %v3982
        %v4051 = vpack.c.bf16 %v3987, %v3985
        %v4052 = vpack.c.bf16 %v3988, %v3986
        %v4053 = vpack.c.bf16 %v3991, %v3989
        %v4054 = vpack.c.bf16 %v3992, %v3990
        %v4055 = vpack.c.bf16 %v3995, %v3993
        %v4056 = vpack.c.bf16 %v3996, %v3994
        %v4057 = vpack.c.bf16 %v3999, %v3997
        %v4058 = vpack.c.bf16 %v4000, %v3998
        %v4059 = vpack.c.bf16 %v4003, %v4001
        %v4060 = vpack.c.bf16 %v4004, %v4002
        %v4061 = vpack.c.bf16 %v4007, %v4005
        %v4062 = vpack.c.bf16 %v4008, %v4006
        %v4063 = vpack.c.bf16 %v4011, %v4009
        %v4064 = vpack.c.bf16 %v4012, %v4010
        %v4065 = vpack.c.bf16 %v4015, %v4013
        %v4066 = vpack.c.bf16 %v4016, %v4014
        %v4067 = vpack.c.bf16 %v4019, %v4017
        %v4068 = vpack.c.bf16 %v4020, %v4018
        %v4069 = vpack.c.bf16 %v4023, %v4021
        %v4070 = vpack.c.bf16 %v4024, %v4022
        %v4071 = vpack.c.bf16 %v4027, %v4025
        %v4072 = vpack.c.bf16 %v4028, %v4026
        %v4073 = vpack.c.bf16 %v4031, %v4029
        %v4074 = vpack.c.bf16 %v4032, %v4030
        %v4075 = vpack.c.bf16 %v4035, %v4033
        %v4076 = vpack.c.bf16 %v4036, %v4034
        %v4077 = vpack.c.bf16 %v4039, %v4037
        %v4078 = vpack.c.bf16 %v4040, %v4038
        %v4079 = vpack.c.bf16 %v4043, %v4041
        %v4080 = vpack.c.bf16 %v4044, %v4042
        %s4081 = smul.u32 4, 288
        %s4082 = smul.u32 %s4081, 2
        %s4083 = sshll.u32 %s4082, 4
        %4084 = dma.done [#allocation3], %s4083
        %v4085 = vld [vmem:[#allocation2] sm:$0xff]
        %v4086 = vld [vmem:[#allocation2 + $0x8] sm:$0xff]
        %v4087 = vld [vmem:[#allocation2 + $0x10] sm:$0xff]
        %v4088 = vld [vmem:[#allocation2 + $0x18] sm:$0xff]
        %v4089 = vld [vmem:[#allocation2 + $0x20] sm:$0xff]
        %v4090 = vld [vmem:[#allocation2 + $0x28] sm:$0xff]
        %v4091 = vld [vmem:[#allocation2 + $0x30] sm:$0xff]
        %v4092 = vld [vmem:[#allocation2 + $0x38] sm:$0xff]
        %v4093 = vld [vmem:[#allocation2 + $0x40] sm:$0xff]
        %v4094 = vld [vmem:[#allocation2 + $0x48] sm:$0xff]
        %v4095 = vld [vmem:[#allocation2 + $0x50] sm:$0xff]
        %v4096 = vld [vmem:[#allocation2 + $0x58] sm:$0xff]
        %v4097 = vld [vmem:[#allocation2 + $0x60] sm:$0xff]
        %v4098 = vld [vmem:[#allocation2 + $0x68] sm:$0xff]
        %v4099 = vld [vmem:[#allocation2 + $0x70] sm:$0xff]
        %v4100 = vld [vmem:[#allocation2 + $0x78] sm:$0xff]
        %v4101 = vld [vmem:[#allocation2 + $0x80] sm:$0xff]
        %v4102 = vld [vmem:[#allocation2 + $0x88] sm:$0xff]
        %v4103 = vld [vmem:[#allocation2 + $0x90] sm:$0xff]
        %v4104 = vld [vmem:[#allocation2 + $0x98] sm:$0xff]
        %v4105 = vld [vmem:[#allocation2 + $0xa0] sm:$0xff]
        %v4106 = vld [vmem:[#allocation2 + $0xa8] sm:$0xff]
        %v4107 = vld [vmem:[#allocation2 + $0xb0] sm:$0xff]
        %v4108 = vld [vmem:[#allocation2 + $0xb8] sm:$0xff]
        %v4109 = vld [vmem:[#allocation2 + $0xc0] sm:$0xff]
        %v4110 = vld [vmem:[#allocation2 + $0xc8] sm:$0xff]
        %v4111 = vld [vmem:[#allocation2 + $0xd0] sm:$0xff]
        %v4112 = vld [vmem:[#allocation2 + $0xd8] sm:$0xff]
        %v4113 = vld [vmem:[#allocation2 + $0xe0] sm:$0xff]
        %v4114 = vld [vmem:[#allocation2 + $0xe8] sm:$0xff]
        %v4115 = vld [vmem:[#allocation2 + $0xf0] sm:$0xff]
        %v4116 = vld [vmem:[#allocation2 + $0xf8] sm:$0xff]
        %v4117 = vld [vmem:[#allocation2 + $0x100] sm:$0xff]
        %v4118 = vld [vmem:[#allocation2 + $0x108] sm:$0xff]
        %v4119 = vld [vmem:[#allocation2 + $0x110] sm:$0xff]
        %v4120 = vld [vmem:[#allocation2 + $0x118] sm:$0xff]
        %v4121 = vld [vmem:[#allocation2 + $0x120] sm:$0xff]
        %v4122 = vld [vmem:[#allocation2 + $0x128] sm:$0xff]
        %v4123 = vld [vmem:[#allocation2 + $0x130] sm:$0xff]
        %v4124 = vld [vmem:[#allocation2 + $0x138] sm:$0xff]
        %v4125 = vld [vmem:[#allocation2 + $0x140] sm:$0xff]
        %v4126 = vld [vmem:[#allocation2 + $0x148] sm:$0xff]
        %v4127 = vld [vmem:[#allocation2 + $0x150] sm:$0xff]
        %v4128 = vld [vmem:[#allocation2 + $0x158] sm:$0xff]
        %v4129 = vld [vmem:[#allocation2 + $0x160] sm:$0xff]
        %v4130 = vld [vmem:[#allocation2 + $0x168] sm:$0xff]
        %v4131 = vld [vmem:[#allocation2 + $0x170] sm:$0xff]
        %v4132 = vld [vmem:[#allocation2 + $0x178] sm:$0xff]
        %v4133 = vld [vmem:[#allocation2 + $0x180] sm:$0xff]
        %v4134 = vld [vmem:[#allocation2 + $0x188] sm:$0xff]
        %v4135 = vld [vmem:[#allocation2 + $0x190] sm:$0xff]
        %v4136 = vld [vmem:[#allocation2 + $0x198] sm:$0xff]
        %v4137 = vld [vmem:[#allocation2 + $0x1a0] sm:$0xff]
        %v4138 = vld [vmem:[#allocation2 + $0x1a8] sm:$0xff]
        %v4139 = vld [vmem:[#allocation2 + $0x1b0] sm:$0xff]
        %v4140 = vld [vmem:[#allocation2 + $0x1b8] sm:$0xff]
        %v4141 = vld [vmem:[#allocation2 + $0x1c0] sm:$0xff]
        %v4142 = vld [vmem:[#allocation2 + $0x1c8] sm:$0xff]
        %v4143 = vld [vmem:[#allocation2 + $0x1d0] sm:$0xff]
        %v4144 = vld [vmem:[#allocation2 + $0x1d8] sm:$0xff]
        %v4145 = vld [vmem:[#allocation2 + $0x1e0] sm:$0xff]
        %v4146 = vld [vmem:[#allocation2 + $0x1e8] sm:$0xff]
        %v4147 = vld [vmem:[#allocation2 + $0x1f0] sm:$0xff]
        %v4148 = vld [vmem:[#allocation2 + $0x1f8] sm:$0xff]
        %v4149 = vld [vmem:[#allocation2 + $0x200] sm:$0xff]
        %v4150 = vld [vmem:[#allocation2 + $0x208] sm:$0xff]
        %v4151 = vld [vmem:[#allocation2 + $0x210] sm:$0xff]
        %v4152 = vld [vmem:[#allocation2 + $0x218] sm:$0xff]
        %v4153 = vld [vmem:[#allocation2 + $0x220] sm:$0xff]
        %v4154 = vld [vmem:[#allocation2 + $0x228] sm:$0xff]
        %v4155 = vld [vmem:[#allocation2 + $0x230] sm:$0xff]
        %v4156 = vld [vmem:[#allocation2 + $0x238] sm:$0xff]
        %v4157 = vld [vmem:[#allocation2 + $0x240] sm:$0xff]
        %v4158 = vld [vmem:[#allocation2 + $0x248] sm:$0xff]
        %v4159 = vld [vmem:[#allocation2 + $0x250] sm:$0xff]
        %v4160 = vld [vmem:[#allocation2 + $0x258] sm:$0xff]
        %v4161 = vld [vmem:[#allocation2 + $0x260] sm:$0xff]
        %v4162 = vld [vmem:[#allocation2 + $0x268] sm:$0xff]
        %v4163 = vld [vmem:[#allocation2 + $0x270] sm:$0xff]
        %v4164 = vld [vmem:[#allocation2 + $0x278] sm:$0xff]
        %v4165 = vld [vmem:[#allocation2 + $0x280] sm:$0xff]
        %v4166 = vld [vmem:[#allocation2 + $0x288] sm:$0xff]
        %v4167 = vld [vmem:[#allocation2 + $0x290] sm:$0xff]
        %v4168 = vld [vmem:[#allocation2 + $0x298] sm:$0xff]
        %v4169 = vld [vmem:[#allocation2 + $0x2a0] sm:$0xff]
        %v4170 = vld [vmem:[#allocation2 + $0x2a8] sm:$0xff]
        %v4171 = vld [vmem:[#allocation2 + $0x2b0] sm:$0xff]
        %v4172 = vld [vmem:[#allocation2 + $0x2b8] sm:$0xff]
        %v4173 = vld [vmem:[#allocation2 + $0x2c0] sm:$0xff]
        %v4174 = vld [vmem:[#allocation2 + $0x2c8] sm:$0xff]
        %v4175 = vld [vmem:[#allocation2 + $0x2d0] sm:$0xff]
        %v4176 = vld [vmem:[#allocation2 + $0x2d8] sm:$0xff]
        %v4177 = vld [vmem:[#allocation2 + $0x2e0] sm:$0xff]
        %v4178 = vld [vmem:[#allocation2 + $0x2e8] sm:$0xff]
        %v4179 = vld [vmem:[#allocation2 + $0x2f0] sm:$0xff]
        %v4180 = vld [vmem:[#allocation2 + $0x2f8] sm:$0xff]
        %v4181 = vld [vmem:[#allocation2 + $0x300] sm:$0xff]
        %v4182 = vld [vmem:[#allocation2 + $0x308] sm:$0xff]
        %v4183 = vld [vmem:[#allocation2 + $0x310] sm:$0xff]
        %v4184 = vld [vmem:[#allocation2 + $0x318] sm:$0xff]
        %v4185 = vld [vmem:[#allocation2 + $0x320] sm:$0xff]
        %v4186 = vld [vmem:[#allocation2 + $0x328] sm:$0xff]
        %v4187 = vld [vmem:[#allocation2 + $0x330] sm:$0xff]
        %v4188 = vld [vmem:[#allocation2 + $0x338] sm:$0xff]
        %v4189 = vld [vmem:[#allocation2 + $0x340] sm:$0xff]
        %v4190 = vld [vmem:[#allocation2 + $0x348] sm:$0xff]
        %v4191 = vld [vmem:[#allocation2 + $0x350] sm:$0xff]
        %v4192 = vld [vmem:[#allocation2 + $0x358] sm:$0xff]
        %v4193 = vld [vmem:[#allocation2 + $0x360] sm:$0xff]
        %v4194 = vld [vmem:[#allocation2 + $0x368] sm:$0xff]
        %v4195 = vld [vmem:[#allocation2 + $0x370] sm:$0xff]
        %v4196 = vld [vmem:[#allocation2 + $0x378] sm:$0xff]
        %v4197 = vld [vmem:[#allocation2 + $0x380] sm:$0xff]
        %v4198 = vld [vmem:[#allocation2 + $0x388] sm:$0xff]
        %v4199 = vld [vmem:[#allocation2 + $0x390] sm:$0xff]
        %v4200 = vld [vmem:[#allocation2 + $0x398] sm:$0xff]
        %v4201 = vld [vmem:[#allocation2 + $0x3a0] sm:$0xff]
        %v4202 = vld [vmem:[#allocation2 + $0x3a8] sm:$0xff]
        %v4203 = vld [vmem:[#allocation2 + $0x3b0] sm:$0xff]
        %v4204 = vld [vmem:[#allocation2 + $0x3b8] sm:$0xff]
        %v4205 = vld [vmem:[#allocation2 + $0x3c0] sm:$0xff]
        %v4206 = vld [vmem:[#allocation2 + $0x3c8] sm:$0xff]
        %v4207 = vld [vmem:[#allocation2 + $0x3d0] sm:$0xff]
        %v4208 = vld [vmem:[#allocation2 + $0x3d8] sm:$0xff]
        %v4209 = vld [vmem:[#allocation2 + $0x3e0] sm:$0xff]
        %v4210 = vld [vmem:[#allocation2 + $0x3e8] sm:$0xff]
        %v4211 = vld [vmem:[#allocation2 + $0x3f0] sm:$0xff]
        %v4212 = vld [vmem:[#allocation2 + $0x3f8] sm:$0xff]
        %v4213 = vld [vmem:[#allocation2 + $0x400] sm:$0xff]
        %v4214 = vld [vmem:[#allocation2 + $0x408] sm:$0xff]
        %v4215 = vld [vmem:[#allocation2 + $0x410] sm:$0xff]
        %v4216 = vld [vmem:[#allocation2 + $0x418] sm:$0xff]
        %v4217 = vld [vmem:[#allocation2 + $0x420] sm:$0xff]
        %v4218 = vld [vmem:[#allocation2 + $0x428] sm:$0xff]
        %v4219 = vld [vmem:[#allocation2 + $0x430] sm:$0xff]
        %v4220 = vld [vmem:[#allocation2 + $0x438] sm:$0xff]
        %v4221 = vld [vmem:[#allocation2 + $0x440] sm:$0xff]
        %v4222 = vld [vmem:[#allocation2 + $0x448] sm:$0xff]
        %v4223 = vld [vmem:[#allocation2 + $0x450] sm:$0xff]
        %v4224 = vld [vmem:[#allocation2 + $0x458] sm:$0xff]
        %v4225 = vld [vmem:[#allocation2 + $0x460] sm:$0xff]
        %v4226 = vld [vmem:[#allocation2 + $0x468] sm:$0xff]
        %v4227 = vld [vmem:[#allocation2 + $0x470] sm:$0xff]
        %v4228 = vld [vmem:[#allocation2 + $0x478] sm:$0xff]
        %v4229 = vld [vmem:[#allocation2 + $0x480] sm:$0xff]
        %v4230 = vld [vmem:[#allocation2 + $0x488] sm:$0xff]
        %v4231 = vld [vmem:[#allocation2 + $0x490] sm:$0xff]
        %v4232 = vld [vmem:[#allocation2 + $0x498] sm:$0xff]
        %v4233 = vld [vmem:[#allocation2 + $0x4a0] sm:$0xff]
        %v4234 = vld [vmem:[#allocation2 + $0x4a8] sm:$0xff]
        %v4235 = vld [vmem:[#allocation2 + $0x4b0] sm:$0xff]
        %v4236 = vld [vmem:[#allocation2 + $0x4b8] sm:$0xff]
        %v4237 = vld [vmem:[#allocation2 + $0x4c0] sm:$0xff]
        %v4238 = vld [vmem:[#allocation2 + $0x4c8] sm:$0xff]
        %v4239 = vld [vmem:[#allocation2 + $0x4d0] sm:$0xff]
        %v4240 = vld [vmem:[#allocation2 + $0x4d8] sm:$0xff]
        %v4241 = vld [vmem:[#allocation2 + $0x4e0] sm:$0xff]
        %v4242 = vld [vmem:[#allocation2 + $0x4e8] sm:$0xff]
        %v4243 = vld [vmem:[#allocation2 + $0x4f0] sm:$0xff]
        %v4244 = vld [vmem:[#allocation2 + $0x4f8] sm:$0xff]
        %v4245 = vld [vmem:[#allocation2 + $0x500] sm:$0xff]
        %v4246 = vld [vmem:[#allocation2 + $0x508] sm:$0xff]
        %v4247 = vld [vmem:[#allocation2 + $0x510] sm:$0xff]
        %v4248 = vld [vmem:[#allocation2 + $0x518] sm:$0xff]
        %v4249 = vld [vmem:[#allocation2 + $0x520] sm:$0xff]
        %v4250 = vld [vmem:[#allocation2 + $0x528] sm:$0xff]
        %v4251 = vld [vmem:[#allocation2 + $0x530] sm:$0xff]
        %v4252 = vld [vmem:[#allocation2 + $0x538] sm:$0xff]
        %v4253 = vld [vmem:[#allocation2 + $0x540] sm:$0xff]
        %v4254 = vld [vmem:[#allocation2 + $0x548] sm:$0xff]
        %v4255 = vld [vmem:[#allocation2 + $0x550] sm:$0xff]
        %v4256 = vld [vmem:[#allocation2 + $0x558] sm:$0xff]
        %v4257 = vld [vmem:[#allocation2 + $0x560] sm:$0xff]
        %v4258 = vld [vmem:[#allocation2 + $0x568] sm:$0xff]
        %v4259 = vld [vmem:[#allocation2 + $0x570] sm:$0xff]
        %v4260 = vld [vmem:[#allocation2 + $0x578] sm:$0xff]
        %v4261 = vld [vmem:[#allocation2 + $0x580] sm:$0xff]
        %v4262 = vld [vmem:[#allocation2 + $0x588] sm:$0xff]
        %v4263 = vld [vmem:[#allocation2 + $0x590] sm:$0xff]
        %v4264 = vld [vmem:[#allocation2 + $0x598] sm:$0xff]
        %v4265 = vld [vmem:[#allocation2 + $0x5a0] sm:$0xff]
        %v4266 = vld [vmem:[#allocation2 + $0x5a8] sm:$0xff]
        %v4267 = vld [vmem:[#allocation2 + $0x5b0] sm:$0xff]
        %v4268 = vld [vmem:[#allocation2 + $0x5b8] sm:$0xff]
        %v4269 = vld [vmem:[#allocation2 + $0x5c0] sm:$0xff]
        %v4270 = vld [vmem:[#allocation2 + $0x5c8] sm:$0xff]
        %v4271 = vld [vmem:[#allocation2 + $0x5d0] sm:$0xff]
        %v4272 = vld [vmem:[#allocation2 + $0x5d8] sm:$0xff]
        %v4273 = vld [vmem:[#allocation2 + $0x5e0] sm:$0xff]
        %v4274 = vld [vmem:[#allocation2 + $0x5e8] sm:$0xff]
        %v4275 = vld [vmem:[#allocation2 + $0x5f0] sm:$0xff]
        %v4276 = vld [vmem:[#allocation2 + $0x5f8] sm:$0xff]
        %v4277 = vld [vmem:[#allocation2 + $0x600] sm:$0xff]
        %v4278 = vld [vmem:[#allocation2 + $0x608] sm:$0xff]
        %v4279 = vld [vmem:[#allocation2 + $0x610] sm:$0xff]
        %v4280 = vld [vmem:[#allocation2 + $0x618] sm:$0xff]
        %v4281 = vld [vmem:[#allocation2 + $0x620] sm:$0xff]
        %v4282 = vld [vmem:[#allocation2 + $0x628] sm:$0xff]
        %v4283 = vld [vmem:[#allocation2 + $0x630] sm:$0xff]
        %v4284 = vld [vmem:[#allocation2 + $0x638] sm:$0xff]
        %v4285 = vld [vmem:[#allocation2 + $0x640] sm:$0xff]
        %v4286 = vld [vmem:[#allocation2 + $0x648] sm:$0xff]
        %v4287 = vld [vmem:[#allocation2 + $0x650] sm:$0xff]
        %v4288 = vld [vmem:[#allocation2 + $0x658] sm:$0xff]
        %v4289 = vld [vmem:[#allocation2 + $0x660] sm:$0xff]
        %v4290 = vld [vmem:[#allocation2 + $0x668] sm:$0xff]
        %v4291 = vld [vmem:[#allocation2 + $0x670] sm:$0xff]
        %v4292 = vld [vmem:[#allocation2 + $0x678] sm:$0xff]
        %v4293 = vld [vmem:[#allocation2 + $0x680] sm:$0xff]
        %v4294 = vld [vmem:[#allocation2 + $0x688] sm:$0xff]
        %v4295 = vld [vmem:[#allocation2 + $0x690] sm:$0xff]
        %v4296 = vld [vmem:[#allocation2 + $0x698] sm:$0xff]
        %v4297 = vld [vmem:[#allocation2 + $0x6a0] sm:$0xff]
        %v4298 = vld [vmem:[#allocation2 + $0x6a8] sm:$0xff]
        %v4299 = vld [vmem:[#allocation2 + $0x6b0] sm:$0xff]
        %v4300 = vld [vmem:[#allocation2 + $0x6b8] sm:$0xff]
        %v4301 = vld [vmem:[#allocation2 + $0x6c0] sm:$0xff]
        %v4302 = vld [vmem:[#allocation2 + $0x6c8] sm:$0xff]
        %v4303 = vld [vmem:[#allocation2 + $0x6d0] sm:$0xff]
        %v4304 = vld [vmem:[#allocation2 + $0x6d8] sm:$0xff]
        %v4305 = vld [vmem:[#allocation2 + $0x6e0] sm:$0xff]
        %v4306 = vld [vmem:[#allocation2 + $0x6e8] sm:$0xff]
        %v4307 = vld [vmem:[#allocation2 + $0x6f0] sm:$0xff]
        %v4308 = vld [vmem:[#allocation2 + $0x6f8] sm:$0xff]
        %v4309 = vld [vmem:[#allocation2 + $0x700] sm:$0xff]
        %v4310 = vld [vmem:[#allocation2 + $0x708] sm:$0xff]
        %v4311 = vld [vmem:[#allocation2 + $0x710] sm:$0xff]
        %v4312 = vld [vmem:[#allocation2 + $0x718] sm:$0xff]
        %v4313 = vld [vmem:[#allocation2 + $0x720] sm:$0xff]
        %v4314 = vld [vmem:[#allocation2 + $0x728] sm:$0xff]
        %v4315 = vld [vmem:[#allocation2 + $0x730] sm:$0xff]
        %v4316 = vld [vmem:[#allocation2 + $0x738] sm:$0xff]
        %v4317 = vld [vmem:[#allocation2 + $0x740] sm:$0xff]
        %v4318 = vld [vmem:[#allocation2 + $0x748] sm:$0xff]
        %v4319 = vld [vmem:[#allocation2 + $0x750] sm:$0xff]
        %v4320 = vld [vmem:[#allocation2 + $0x758] sm:$0xff]
        %v4321 = vld [vmem:[#allocation2 + $0x760] sm:$0xff]
        %v4322 = vld [vmem:[#allocation2 + $0x768] sm:$0xff]
        %v4323 = vld [vmem:[#allocation2 + $0x770] sm:$0xff]
        %v4324 = vld [vmem:[#allocation2 + $0x778] sm:$0xff]
        %v4325 = vld [vmem:[#allocation2 + $0x780] sm:$0xff]
        %v4326 = vld [vmem:[#allocation2 + $0x788] sm:$0xff]
        %v4327 = vld [vmem:[#allocation2 + $0x790] sm:$0xff]
        %v4328 = vld [vmem:[#allocation2 + $0x798] sm:$0xff]
        %v4329 = vld [vmem:[#allocation2 + $0x7a0] sm:$0xff]
        %v4330 = vld [vmem:[#allocation2 + $0x7a8] sm:$0xff]
        %v4331 = vld [vmem:[#allocation2 + $0x7b0] sm:$0xff]
        %v4332 = vld [vmem:[#allocation2 + $0x7b8] sm:$0xff]
        %v4333 = vld [vmem:[#allocation2 + $0x7c0] sm:$0xff]
        %v4334 = vld [vmem:[#allocation2 + $0x7c8] sm:$0xff]
        %v4335 = vld [vmem:[#allocation2 + $0x7d0] sm:$0xff]
        %v4336 = vld [vmem:[#allocation2 + $0x7d8] sm:$0xff]
        %v4337 = vld [vmem:[#allocation2 + $0x7e0] sm:$0xff]
        %v4338 = vld [vmem:[#allocation2 + $0x7e8] sm:$0xff]
        %v4339 = vld [vmem:[#allocation2 + $0x7f0] sm:$0xff]
        %v4340 = vld [vmem:[#allocation2 + $0x7f8] sm:$0xff]
        %v4341 = vld [vmem:[#allocation2 + $0x800] sm:$0xff]
        %v4342 = vld [vmem:[#allocation2 + $0x808] sm:$0xff]
        %v4343 = vld [vmem:[#allocation2 + $0x810] sm:$0xff]
        %v4344 = vld [vmem:[#allocation2 + $0x818] sm:$0xff]
        %v4345 = vld [vmem:[#allocation2 + $0x820] sm:$0xff]
        %v4346 = vld [vmem:[#allocation2 + $0x828] sm:$0xff]
        %v4347 = vld [vmem:[#allocation2 + $0x830] sm:$0xff]
        %v4348 = vld [vmem:[#allocation2 + $0x838] sm:$0xff]
        %v4349 = vld [vmem:[#allocation2 + $0x840] sm:$0xff]
        %v4350 = vld [vmem:[#allocation2 + $0x848] sm:$0xff]
        %v4351 = vld [vmem:[#allocation2 + $0x850] sm:$0xff]
        %v4352 = vld [vmem:[#allocation2 + $0x858] sm:$0xff]
        %v4353 = vld [vmem:[#allocation2 + $0x860] sm:$0xff]
        %v4354 = vld [vmem:[#allocation2 + $0x868] sm:$0xff]
        %v4355 = vld [vmem:[#allocation2 + $0x870] sm:$0xff]
        %v4356 = vld [vmem:[#allocation2 + $0x878] sm:$0xff]
        %v4357 = vld [vmem:[#allocation2 + $0x880] sm:$0xff]
        %v4358 = vld [vmem:[#allocation2 + $0x888] sm:$0xff]
        %v4359 = vld [vmem:[#allocation2 + $0x890] sm:$0xff]
        %v4360 = vld [vmem:[#allocation2 + $0x898] sm:$0xff]
        %v4361 = vld [vmem:[#allocation2 + $0x8a0] sm:$0xff]
        %v4362 = vld [vmem:[#allocation2 + $0x8a8] sm:$0xff]
        %v4363 = vld [vmem:[#allocation2 + $0x8b0] sm:$0xff]
        %v4364 = vld [vmem:[#allocation2 + $0x8b8] sm:$0xff]
        %v4365 = vld [vmem:[#allocation2 + $0x8c0] sm:$0xff]
        %v4366 = vld [vmem:[#allocation2 + $0x8c8] sm:$0xff]
        %v4367 = vld [vmem:[#allocation2 + $0x8d0] sm:$0xff]
        %v4368 = vld [vmem:[#allocation2 + $0x8d8] sm:$0xff]
        %v4369 = vld [vmem:[#allocation2 + $0x8e0] sm:$0xff]
        %v4370 = vld [vmem:[#allocation2 + $0x8e8] sm:$0xff]
        %v4371 = vld [vmem:[#allocation2 + $0x8f0] sm:$0xff]
        %v4372 = vld [vmem:[#allocation2 + $0x8f8] sm:$0xff]
        %v4373 = vld [vmem:[#allocation14] sm:$0x3]
        %v4375 = vlaneseq
        %v4376 = vshrl.u32 %v4375, 7
        %v4377 = vsub.s32 0, %v4376
        %v4378 = vrot.slane %v4373, %v4377
        %v4379 = vlaneseq
        %v4380 = vshrl.u32 %v4379, 7
        %v4381 = vsub.s32 1, %v4380
        %v4382 = vrot.slane %v4373, %v4381
        %4385 = vmatprep.subr.bf16.mxu0 %v4086
        %4386 = vmatpush1.bf16.msra.mxu0 %v4085
        %4387 = vmatprep.subr.bf16.mxu0 %v4088
        %4388 = vmatpush1.bf16.msra.mxu0 %v4087
        %4389 = vmatprep.subr.bf16.mxu0 %v4090
        %4390 = vmatpush1.bf16.msra.mxu0 %v4089
        %4391 = vmatprep.subr.bf16.mxu0 %v4092
        %4392 = vmatpush1.bf16.msra.mxu0 %v4091
        %4393 = vmatprep.subr.bf16.mxu0 %v4094
        %4394 = vmatpush1.bf16.msra.mxu0 %v4093
        %4395 = vmatprep.subr.bf16.mxu0 %v4096
        %4396 = vmatpush1.bf16.msra.mxu0 %v4095
        %4397 = vmatprep.subr.bf16.mxu0 %v4098
        %4398 = vmatpush1.bf16.msra.mxu0 %v4097
        %4399 = vmatprep.subr.bf16.mxu0 %v4100
        %4400 = vmatpush1.bf16.msra.mxu0 %v4099
        %4401 = vmatprep.subr.bf16.mxu0 %v4102
        %4402 = vmatpush1.bf16.msra.mxu0 %v4101
        %4403 = vmatprep.subr.bf16.mxu0 %v4104
        %4404 = vmatpush1.bf16.msra.mxu0 %v4103
        %4405 = vmatprep.subr.bf16.mxu0 %v4106
        %4406 = vmatpush1.bf16.msra.mxu0 %v4105
        %4407 = vmatprep.subr.bf16.mxu0 %v4108
        %4408 = vmatpush1.bf16.msra.mxu0 %v4107
        %4409 = vmatprep.subr.bf16.mxu0 %v4110
        %4410 = vmatpush1.bf16.msra.mxu0 %v4109
        %4411 = vmatprep.subr.bf16.mxu0 %v4112
        %4412 = vmatpush1.bf16.msra.mxu0 %v4111
        %4413 = vmatprep.subr.bf16.mxu0 %v4114
        %4414 = vmatpush1.bf16.msra.mxu0 %v4113
        %4415 = vmatprep.subr.bf16.mxu0 %v4116
        %4416 = vmatpush1.bf16.msra.mxu0 %v4115
        %4417 = vmatprep.mubr.bf16.mxu0 %v3649
        %4418 = vmatmul.mubr.bf16.gmra.mrb[0].mxu0 %v3648
        %v4419 = vpop.f32.mrb[0].mxu0
        %v4420 = vadd.f32 %v4378, %v4419
        %v4421 = vpop.f32.mrb[0].mxu0
        %v4422 = vadd.f32 %v4382, %v4421
        %v4423 = vpop.f32.mrb[0].mxu0
        %v4424 = vadd.f32 %v4378, %v4423
        %v4425 = vpop.f32.mrb[0].mxu0
        %v4426 = vadd.f32 %v4382, %v4425
        %4427 = vmatprep.mubr.bf16.mxu0 %v3651
        %4428 = vmatmul.mubr.bf16.gmra.mrb[0].mxu0 %v3650
        %v4429 = vpop.f32.mrb[0].mxu0
        %v4430 = vadd.f32 %v4378, %v4429
        %v4431 = vpop.f32.mrb[0].mxu0
        %v4432 = vadd.f32 %v4382, %v4431
        %v4433 = vpop.f32.mrb[0].mxu0
        %v4434 = vadd.f32 %v4378, %v4433
        %v4435 = vpop.f32.mrb[0].mxu0
        %v4436 = vadd.f32 %v4382, %v4435
        %4437 = vmatprep.mubr.bf16.mxu0 %v3653
        %4438 = vmatmul.mubr.bf16.gmra.mrb[0].mxu0 %v3652
        %v4439 = vpop.f32.mrb[0].mxu0
        %v4440 = vadd.f32 %v4378, %v4439
        %v4441 = vpop.f32.mrb[0].mxu0
        %v4442 = vadd.f32 %v4382, %v4441
        %v4443 = vpop.f32.mrb[0].mxu0
        %v4444 = vadd.f32 %v4378, %v4443
        %v4445 = vpop.f32.mrb[0].mxu0
        %v4446 = vadd.f32 %v4382, %v4445
        %4447 = vmatprep.mubr.bf16.mxu0 %v3655
        %4448 = vmatmul.mubr.bf16.gmra.mrb[0].mxu0 %v3654
        %v4449 = vpop.f32.mrb[0].mxu0
        %v4450 = vadd.f32 %v4378, %v4449
        %v4451 = vpop.f32.mrb[0].mxu0
        %v4452 = vadd.f32 %v4382, %v4451
        %v4453 = vpop.f32.mrb[0].mxu0
        %v4454 = vadd.f32 %v4378, %v4453
        %v4455 = vpop.f32.mrb[0].mxu0
        %v4456 = vadd.f32 %v4382, %v4455
        %4457 = vmatprep.mubr.bf16.mxu0 %v3657
        %4458 = vmatmul.mubr.bf16.gmra.mrb[0].mxu0 %v3656
        %v4459 = vpop.f32.mrb[0].mxu0
        %v4460 = vadd.f32 %v4378, %v4459
        %v4461 = vpop.f32.mrb[0].mxu0
        %v4462 = vadd.f32 %v4382, %v4461
        %v4463 = vpop.f32.mrb[0].mxu0
        %v4464 = vadd.f32 %v4378, %v4463
        %v4465 = vpop.f32.mrb[0].mxu0
        %v4466 = vadd.f32 %v4382, %v4465
        %4467 = vmatprep.mubr.bf16.mxu0 %v3659
        %4468 = vmatmul.mubr.bf16.gmra.mrb[0].mxu0 %v3658
        %v4469 = vpop.f32.mrb[0].mxu0
        %v4470 = vadd.f32 %v4378, %v4469
        %v4471 = vpop.f32.mrb[0].mxu0
        %v4472 = vadd.f32 %v4382, %v4471
        %v4473 = vpop.f32.mrb[0].mxu0
        %v4474 = vadd.f32 %v4378, %v4473
        %v4475 = vpop.f32.mrb[0].mxu0
        %v4476 = vadd.f32 %v4382, %v4475
        %4477 = vmatprep.mubr.bf16.mxu0 %v3661
        %4478 = vmatmul.mubr.bf16.gmra.mrb[0].mxu0 %v3660
        %v4479 = vpop.f32.mrb[0].mxu0
        %v4480 = vadd.f32 %v4378, %v4479
        %v4481 = vpop.f32.mrb[0].mxu0
        %v4482 = vadd.f32 %v4382, %v4481
        %v4483 = vpop.f32.mrb[0].mxu0
        %v4484 = vadd.f32 %v4378, %v4483
        %v4485 = vpop.f32.mrb[0].mxu0
        %v4486 = vadd.f32 %v4382, %v4485
        %4487 = vmatprep.mubr.bf16.mxu0 %v3663
        %4488 = vmatmul.mubr.bf16.gmra.mrb[0].mxu0 %v3662
        %v4489 = vpop.f32.mrb[0].mxu0
        %v4490 = vadd.f32 %v4378, %v4489
        %v4491 = vpop.f32.mrb[0].mxu0
        %v4492 = vadd.f32 %v4382, %v4491
        %v4493 = vpop.f32.mrb[0].mxu0
        %v4494 = vadd.f32 %v4378, %v4493
        %v4495 = vpop.f32.mrb[0].mxu0
        %v4496 = vadd.f32 %v4382, %v4495
        %4497 = vmatprep.mubr.bf16.mxu0 %v3665
        %4498 = vmatmul.mubr.bf16.gmra.mrb[0].mxu0 %v3664
        %v4499 = vpop.f32.mrb[0].mxu0
        %v4500 = vadd.f32 %v4378, %v4499
        %v4501 = vpop.f32.mrb[0].mxu0
        %v4502 = vadd.f32 %v4382, %v4501
        %v4503 = vpop.f32.mrb[0].mxu0
        %v4504 = vadd.f32 %v4378, %v4503
        %v4505 = vpop.f32.mrb[0].mxu0
        %v4506 = vadd.f32 %v4382, %v4505
        %4507 = vmatprep.mubr.bf16.mxu0 %v3667
        %4508 = vmatmul.mubr.bf16.gmra.mrb[0].mxu0 %v3666
        %v4509 = vpop.f32.mrb[0].mxu0
        %v4510 = vadd.f32 %v4378, %v4509
        %v4511 = vpop.f32.mrb[0].mxu0
        %v4512 = vadd.f32 %v4382, %v4511
        %v4513 = vpop.f32.mrb[0].mxu0
        %v4514 = vadd.f32 %v4378, %v4513
        %v4515 = vpop.f32.mrb[0].mxu0
        %v4516 = vadd.f32 %v4382, %v4515
        %4517 = vmatprep.mubr.bf16.mxu0 %v3669
        %4518 = vmatmul.mubr.bf16.gmra.mrb[0].mxu0 %v3668
        %v4519 = vpop.f32.mrb[0].mxu0
        %v4520 = vadd.f32 %v4378, %v4519
        %v4521 = vpop.f32.mrb[0].mxu0
        %v4522 = vadd.f32 %v4382, %v4521
        %v4523 = vpop.f32.mrb[0].mxu0
        %v4524 = vadd.f32 %v4378, %v4523
        %v4525 = vpop.f32.mrb[0].mxu0
        %v4526 = vadd.f32 %v4382, %v4525
        %4527 = vmatprep.mubr.bf16.mxu0 %v3671
        %4528 = vmatmul.mubr.bf16.gmra.mrb[0].mxu0 %v3670
        %v4529 = vpop.f32.mrb[0].mxu0
        %v4530 = vadd.f32 %v4378, %v4529
        %v4531 = vpop.f32.mrb[0].mxu0
        %v4532 = vadd.f32 %v4382, %v4531
        %v4533 = vpop.f32.mrb[0].mxu0
        %v4534 = vadd.f32 %v4378, %v4533
        %v4535 = vpop.f32.mrb[0].mxu0
        %v4536 = vadd.f32 %v4382, %v4535
        %4537 = vmatprep.mubr.bf16.mxu0 %v3673
        %4538 = vmatmul.mubr.bf16.gmra.mrb[0].mxu0 %v3672
        %v4539 = vpop.f32.mrb[0].mxu0
        %v4540 = vadd.f32 %v4378, %v4539
        %v4541 = vpop.f32.mrb[0].mxu0
        %v4542 = vadd.f32 %v4382, %v4541
        %v4543 = vpop.f32.mrb[0].mxu0
        %v4544 = vadd.f32 %v4378, %v4543
        %v4545 = vpop.f32.mrb[0].mxu0
        %v4546 = vadd.f32 %v4382, %v4545
        %4547 = vmatprep.mubr.bf16.mxu0 %v3675
        %4548 = vmatmul.mubr.bf16.gmra.mrb[0].mxu0 %v3674
        %v4549 = vpop.f32.mrb[0].mxu0
        %v4550 = vadd.f32 %v4378, %v4549
        %v4551 = vpop.f32.mrb[0].mxu0
        %v4552 = vadd.f32 %v4382, %v4551
        %v4553 = vpop.f32.mrb[0].mxu0
        %v4554 = vadd.f32 %v4378, %v4553
        %v4555 = vpop.f32.mrb[0].mxu0
        %v4556 = vadd.f32 %v4382, %v4555
        %4557 = vmatprep.mubr.bf16.mxu0 %v3677
        %4558 = vmatmul.mubr.bf16.gmra.mrb[0].mxu0 %v3676
        %v4559 = vpop.f32.mrb[0].mxu0
        %v4560 = vadd.f32 %v4378, %v4559
        %v4561 = vpop.f32.mrb[0].mxu0
        %v4562 = vadd.f32 %v4382, %v4561
        %v4563 = vpop.f32.mrb[0].mxu0
        %v4564 = vadd.f32 %v4378, %v4563
        %v4565 = vpop.f32.mrb[0].mxu0
        %v4566 = vadd.f32 %v4382, %v4565
        %4567 = vmatprep.mubr.bf16.mxu0 %v3679
        %4568 = vmatmul.mubr.bf16.gmra.mrb[0].mxu0 %v3678
        %v4569 = vpop.f32.mrb[0].mxu0
        %v4570 = vadd.f32 %v4378, %v4569
        %v4571 = vpop.f32.mrb[0].mxu0
        %v4572 = vadd.f32 %v4382, %v4571
        %v4573 = vpop.f32.mrb[0].mxu0
        %v4574 = vadd.f32 %v4378, %v4573
        %v4575 = vpop.f32.mrb[0].mxu0
        %v4576 = vadd.f32 %v4382, %v4575
        %4577 = vdwg.mxu0
        %4578 = vmatprep.subr.bf16.mxu0 %v4118
        %4579 = vmatpush1.bf16.msra.mxu0 %v4117
        %4580 = vmatprep.subr.bf16.mxu0 %v4120
        %4581 = vmatpush1.bf16.msra.mxu0 %v4119
        %4582 = vmatprep.subr.bf16.mxu0 %v4122
        %4583 = vmatpush1.bf16.msra.mxu0 %v4121
        %4584 = vmatprep.subr.bf16.mxu0 %v4124
        %4585 = vmatpush1.bf16.msra.mxu0 %v4123
        %4586 = vmatprep.subr.bf16.mxu0 %v4126
        %4587 = vmatpush1.bf16.msra.mxu0 %v4125
        %4588 = vmatprep.subr.bf16.mxu0 %v4128
        %4589 = vmatpush1.bf16.msra.mxu0 %v4127
        %4590 = vmatprep.subr.bf16.mxu0 %v4130
        %4591 = vmatpush1.bf16.msra.mxu0 %v4129
        %4592 = vmatprep.subr.bf16.mxu0 %v4132
        %4593 = vmatpush1.bf16.msra.mxu0 %v4131
        %4594 = vmatprep.subr.bf16.mxu0 %v4134
        %4595 = vmatpush1.bf16.msra.mxu0 %v4133
        %4596 = vmatprep.subr.bf16.mxu0 %v4136
        %4597 = vmatpush1.bf16.msra.mxu0 %v4135
        %4598 = vmatprep.subr.bf16.mxu0 %v4138
        %4599 = vmatpush1.bf16.msra.mxu0 %v4137
        %4600 = vmatprep.subr.bf16.mxu0 %v4140
        %4601 = vmatpush1.bf16.msra.mxu0 %v4139
        %4602 = vmatprep.subr.bf16.mxu0 %v4142
        %4603 = vmatpush1.bf16.msra.mxu0 %v4141
        %4604 = vmatprep.subr.bf16.mxu0 %v4144
        %4605 = vmatpush1.bf16.msra.mxu0 %v4143
        %4606 = vmatprep.subr.bf16.mxu0 %v4146
        %4607 = vmatpush1.bf16.msra.mxu0 %v4145
        %4608 = vmatprep.subr.bf16.mxu0 %v4148
        %4609 = vmatpush1.bf16.msra.mxu0 %v4147
        %4610 = vmatprep.mubr.bf16.mxu0 %v3651
        %4611 = vmatmul.mubr.bf16.gmra.mrb[0].mxu0 %v3650
        %v4612 = vpop.f32.mrb[0].mxu0
        %v4613 = vadd.f32 %v4420, %v4612
        %v4614 = vpop.f32.mrb[0].mxu0
        %v4615 = vadd.f32 %v4422, %v4614
        %v4616 = vpop.f32.mrb[0].mxu0
        %v4617 = vadd.f32 %v4424, %v4616
        %v4618 = vpop.f32.mrb[0].mxu0
        %v4619 = vadd.f32 %v4426, %v4618
        %4620 = vmatprep.mubr.bf16.mxu0 %v3653
        %4621 = vmatmul.mubr.bf16.gmra.mrb[0].mxu0 %v3652
        %v4622 = vpop.f32.mrb[0].mxu0
        %v4623 = vadd.f32 %v4430, %v4622
        %v4624 = vpop.f32.mrb[0].mxu0
        %v4625 = vadd.f32 %v4432, %v4624
        %v4626 = vpop.f32.mrb[0].mxu0
        %v4627 = vadd.f32 %v4434, %v4626
        %v4628 = vpop.f32.mrb[0].mxu0
        %v4629 = vadd.f32 %v4436, %v4628
        %4630 = vmatprep.mubr.bf16.mxu0 %v3655
        %4631 = vmatmul.mubr.bf16.gmra.mrb[0].mxu0 %v3654
        %v4632 = vpop.f32.mrb[0].mxu0
        %v4633 = vadd.f32 %v4440, %v4632
        %v4634 = vpop.f32.mrb[0].mxu0
        %v4635 = vadd.f32 %v4442, %v4634
        %v4636 = vpop.f32.mrb[0].mxu0
        %v4637 = vadd.f32 %v4444, %v4636
        %v4638 = vpop.f32.mrb[0].mxu0
        %v4639 = vadd.f32 %v4446, %v4638
        %4640 = vmatprep.mubr.bf16.mxu0 %v3657
        %4641 = vmatmul.mubr.bf16.gmra.mrb[0].mxu0 %v3656
        %v4642 = vpop.f32.mrb[0].mxu0
        %v4643 = vadd.f32 %v4450, %v4642
        %v4644 = vpop.f32.mrb[0].mxu0
        %v4645 = vadd.f32 %v4452, %v4644
        %v4646 = vpop.f32.mrb[0].mxu0
        %v4647 = vadd.f32 %v4454, %v4646
        %v4648 = vpop.f32.mrb[0].mxu0
        %v4649 = vadd.f32 %v4456, %v4648
        %4650 = vmatprep.mubr.bf16.mxu0 %v3659
        %4651 = vmatmul.mubr.bf16.gmra.mrb[0].mxu0 %v3658
        %v4652 = vpop.f32.mrb[0].mxu0
        %v4653 = vadd.f32 %v4460, %v4652
        %v4654 = vpop.f32.mrb[0].mxu0
        %v4655 = vadd.f32 %v4462, %v4654
        %v4656 = vpop.f32.mrb[0].mxu0
        %v4657 = vadd.f32 %v4464, %v4656
        %v4658 = vpop.f32.mrb[0].mxu0
        %v4659 = vadd.f32 %v4466, %v4658
        %4660 = vmatprep.mubr.bf16.mxu0 %v3661
        %4661 = vmatmul.mubr.bf16.gmra.mrb[0].mxu0 %v3660
        %v4662 = vpop.f32.mrb[0].mxu0
        %v4663 = vadd.f32 %v4470, %v4662
        %v4664 = vpop.f32.mrb[0].mxu0
        %v4665 = vadd.f32 %v4472, %v4664
        %v4666 = vpop.f32.mrb[0].mxu0
        %v4667 = vadd.f32 %v4474, %v4666
        %v4668 = vpop.f32.mrb[0].mxu0
        %v4669 = vadd.f32 %v4476, %v4668
        %4670 = vmatprep.mubr.bf16.mxu0 %v3663
        %4671 = vmatmul.mubr.bf16.gmra.mrb[0].mxu0 %v3662
        %v4672 = vpop.f32.mrb[0].mxu0
        %v4673 = vadd.f32 %v4480, %v4672
        %v4674 = vpop.f32.mrb[0].mxu0
        %v4675 = vadd.f32 %v4482, %v4674
        %v4676 = vpop.f32.mrb[0].mxu0
        %v4677 = vadd.f32 %v4484, %v4676
        %v4678 = vpop.f32.mrb[0].mxu0
        %v4679 = vadd.f32 %v4486, %v4678
        %4680 = vmatprep.mubr.bf16.mxu0 %v3665
        %4681 = vmatmul.mubr.bf16.gmra.mrb[0].mxu0 %v3664
        %v4682 = vpop.f32.mrb[0].mxu0
        %v4683 = vadd.f32 %v4490, %v4682
        %v4684 = vpop.f32.mrb[0].mxu0
        %v4685 = vadd.f32 %v4492, %v4684
        %v4686 = vpop.f32.mrb[0].mxu0
        %v4687 = vadd.f32 %v4494, %v4686
        %v4688 = vpop.f32.mrb[0].mxu0
        %v4689 = vadd.f32 %v4496, %v4688
        %4690 = vmatprep.mubr.bf16.mxu0 %v3667
        %4691 = vmatmul.mubr.bf16.gmra.mrb[0].mxu0 %v3666
        %v4692 = vpop.f32.mrb[0].mxu0
        %v4693 = vadd.f32 %v4500, %v4692
        %v4694 = vpop.f32.mrb[0].mxu0
        %v4695 = vadd.f32 %v4502, %v4694
        %v4696 = vpop.f32.mrb[0].mxu0
        %v4697 = vadd.f32 %v4504, %v4696
        %v4698 = vpop.f32.mrb[0].mxu0
        %v4699 = vadd.f32 %v4506, %v4698
        %4700 = vmatprep.mubr.bf16.mxu0 %v3669
        %4701 = vmatmul.mubr.bf16.gmra.mrb[0].mxu0 %v3668
        %v4702 = vpop.f32.mrb[0].mxu0
        %v4703 = vadd.f32 %v4510, %v4702
        %v4704 = vpop.f32.mrb[0].mxu0
        %v4705 = vadd.f32 %v4512, %v4704
        %v4706 = vpop.f32.mrb[0].mxu0
        %v4707 = vadd.f32 %v4514, %v4706
        %v4708 = vpop.f32.mrb[0].mxu0
        %v4709 = vadd.f32 %v4516, %v4708
        %4710 = vmatprep.mubr.bf16.mxu0 %v3671
        %4711 = vmatmul.mubr.bf16.gmra.mrb[0].mxu0 %v3670
        %v4712 = vpop.f32.mrb[0].mxu0
        %v4713 = vadd.f32 %v4520, %v4712
        %v4714 = vpop.f32.mrb[0].mxu0
        %v4715 = vadd.f32 %v4522, %v4714
        %v4716 = vpop.f32.mrb[0].mxu0
        %v4717 = vadd.f32 %v4524, %v4716
        %v4718 = vpop.f32.mrb[0].mxu0
        %v4719 = vadd.f32 %v4526, %v4718
        %4720 = vmatprep.mubr.bf16.mxu0 %v3673
        %4721 = vmatmul.mubr.bf16.gmra.mrb[0].mxu0 %v3672
        %v4722 = vpop.f32.mrb[0].mxu0
        %v4723 = vadd.f32 %v4530, %v4722
        %v4724 = vpop.f32.mrb[0].mxu0
        %v4725 = vadd.f32 %v4532, %v4724
        %v4726 = vpop.f32.mrb[0].mxu0
        %v4727 = vadd.f32 %v4534, %v4726
        %v4728 = vpop.f32.mrb[0].mxu0
        %v4729 = vadd.f32 %v4536, %v4728
        %4730 = vmatprep.mubr.bf16.mxu0 %v3675
        %4731 = vmatmul.mubr.bf16.gmra.mrb[0].mxu0 %v3674
        %v4732 = vpop.f32.mrb[0].mxu0
        %v4733 = vadd.f32 %v4540, %v4732
        %v4734 = vpop.f32.mrb[0].mxu0
        %v4735 = vadd.f32 %v4542, %v4734
        %v4736 = vpop.f32.mrb[0].mxu0
        %v4737 = vadd.f32 %v4544, %v4736
        %v4738 = vpop.f32.mrb[0].mxu0
        %v4739 = vadd.f32 %v4546, %v4738
        %4740 = vmatprep.mubr.bf16.mxu0 %v3677
        %4741 = vmatmul.mubr.bf16.gmra.mrb[0].mxu0 %v3676
        %v4742 = vpop.f32.mrb[0].mxu0
        %v4743 = vadd.f32 %v4550, %v4742
        %v4744 = vpop.f32.mrb[0].mxu0
        %v4745 = vadd.f32 %v4552, %v4744
        %v4746 = vpop.f32.mrb[0].mxu0
        %v4747 = vadd.f32 %v4554, %v4746
        %v4748 = vpop.f32.mrb[0].mxu0
        %v4749 = vadd.f32 %v4556, %v4748
        %4750 = vmatprep.mubr.bf16.mxu0 %v3679
        %4751 = vmatmul.mubr.bf16.gmra.mrb[0].mxu0 %v3678
        %v4752 = vpop.f32.mrb[0].mxu0
        %v4753 = vadd.f32 %v4560, %v4752
        %v4754 = vpop.f32.mrb[0].mxu0
        %v4755 = vadd.f32 %v4562, %v4754
        %v4756 = vpop.f32.mrb[0].mxu0
        %v4757 = vadd.f32 %v4564, %v4756
        %v4758 = vpop.f32.mrb[0].mxu0
        %v4759 = vadd.f32 %v4566, %v4758
        %4760 = vmatprep.mubr.bf16.mxu0 %v3681
        %4761 = vmatmul.mubr.bf16.gmra.mrb[0].mxu0 %v3680
        %v4762 = vpop.f32.mrb[0].mxu0
        %v4763 = vadd.f32 %v4570, %v4762
        %v4764 = vpop.f32.mrb[0].mxu0
        %v4765 = vadd.f32 %v4572, %v4764
        %v4766 = vpop.f32.mrb[0].mxu0
        %v4767 = vadd.f32 %v4574, %v4766
        %v4768 = vpop.f32.mrb[0].mxu0
        %v4769 = vadd.f32 %v4576, %v4768
        %4770 = vdwg.mxu0
        %4771 = vmatprep.subr.bf16.mxu0 %v4150
        %4772 = vmatpush1.bf16.msra.mxu0 %v4149
        %4773 = vmatprep.subr.bf16.mxu0 %v4152
        %4774 = vmatpush1.bf16.msra.mxu0 %v4151
        %4775 = vmatprep.subr.bf16.mxu0 %v4154
        %4776 = vmatpush1.bf16.msra.mxu0 %v4153
        %4777 = vmatprep.subr.bf16.mxu0 %v4156
        %4778 = vmatpush1.bf16.msra.mxu0 %v4155
        %4779 = vmatprep.subr.bf16.mxu0 %v4158
        %4780 = vmatpush1.bf16.msra.mxu0 %v4157
        %4781 = vmatprep.subr.bf16.mxu0 %v4160
        %4782 = vmatpush1.bf16.msra.mxu0 %v4159
        %4783 = vmatprep.subr.bf16.mxu0 %v4162
        %4784 = vmatpush1.bf16.msra.mxu0 %v4161
        %4785 = vmatprep.subr.bf16.mxu0 %v4164
        %4786 = vmatpush1.bf16.msra.mxu0 %v4163
        %4787 = vmatprep.subr.bf16.mxu0 %v4166
        %4788 = vmatpush1.bf16.msra.mxu0 %v4165
        %4789 = vmatprep.subr.bf16.mxu0 %v4168
        %4790 = vmatpush1.bf16.msra.mxu0 %v4167
        %4791 = vmatprep.subr.bf16.mxu0 %v4170
        %4792 = vmatpush1.bf16.msra.mxu0 %v4169
        %4793 = vmatprep.subr.bf16.mxu0 %v4172
        %4794 = vmatpush1.bf16.msra.mxu0 %v4171
        %4795 = vmatprep.subr.bf16.mxu0 %v4174
        %4796 = vmatpush1.bf16.msra.mxu0 %v4173
        %4797 = vmatprep.subr.bf16.mxu0 %v4176
        %4798 = vmatpush1.bf16.msra.mxu0 %v4175
        %4799 = vmatprep.subr.bf16.mxu0 %v4178
        %4800 = vmatpush1.bf16.msra.mxu0 %v4177
        %4801 = vmatprep.subr.bf16.mxu0 %v4180
        %4802 = vmatpush1.bf16.msra.mxu0 %v4179
        %4803 = vmatprep.mubr.bf16.mxu0 %v3653
        %4804 = vmatmul.mubr.bf16.gmra.mrb[0].mxu0 %v3652
        %v4805 = vpop.f32.mrb[0].mxu0
        %v4806 = vadd.f32 %v4613, %v4805
        %v4807 = vpop.f32.mrb[0].mxu0
        %v4808 = vadd.f32 %v4615, %v4807
        %v4809 = vpop.f32.mrb[0].mxu0
        %v4810 = vadd.f32 %v4617, %v4809
        %v4811 = vpop.f32.mrb[0].mxu0
        %v4812 = vadd.f32 %v4619, %v4811
        %4813 = vmatprep.mubr.bf16.mxu0 %v3655
        %4814 = vmatmul.mubr.bf16.gmra.mrb[0].mxu0 %v3654
        %v4815 = vpop.f32.mrb[0].mxu0
        %v4816 = vadd.f32 %v4623, %v4815
        %v4817 = vpop.f32.mrb[0].mxu0
        %v4818 = vadd.f32 %v4625, %v4817
        %v4819 = vpop.f32.mrb[0].mxu0
        %v4820 = vadd.f32 %v4627, %v4819
        %v4821 = vpop.f32.mrb[0].mxu0
        %v4822 = vadd.f32 %v4629, %v4821
        %4823 = vmatprep.mubr.bf16.mxu0 %v3657
        %4824 = vmatmul.mubr.bf16.gmra.mrb[0].mxu0 %v3656
        %v4825 = vpop.f32.mrb[0].mxu0
        %v4826 = vadd.f32 %v4633, %v4825
        %v4827 = vpop.f32.mrb[0].mxu0
        %v4828 = vadd.f32 %v4635, %v4827
        %v4829 = vpop.f32.mrb[0].mxu0
        %v4830 = vadd.f32 %v4637, %v4829
        %v4831 = vpop.f32.mrb[0].mxu0
        %v4832 = vadd.f32 %v4639, %v4831
        %4833 = vmatprep.mubr.bf16.mxu0 %v3659
        %4834 = vmatmul.mubr.bf16.gmra.mrb[0].mxu0 %v3658
        %v4835 = vpop.f32.mrb[0].mxu0
        %v4836 = vadd.f32 %v4643, %v4835
        %v4837 = vpop.f32.mrb[0].mxu0
        %v4838 = vadd.f32 %v4645, %v4837
        %v4839 = vpop.f32.mrb[0].mxu0
        %v4840 = vadd.f32 %v4647, %v4839
        %v4841 = vpop.f32.mrb[0].mxu0
        %v4842 = vadd.f32 %v4649, %v4841
        %4843 = vmatprep.mubr.bf16.mxu0 %v3661
        %4844 = vmatmul.mubr.bf16.gmra.mrb[0].mxu0 %v3660
        %v4845 = vpop.f32.mrb[0].mxu0
        %v4846 = vadd.f32 %v4653, %v4845
        %v4847 = vpop.f32.mrb[0].mxu0
        %v4848 = vadd.f32 %v4655, %v4847
        %v4849 = vpop.f32.mrb[0].mxu0
        %v4850 = vadd.f32 %v4657, %v4849
        %v4851 = vpop.f32.mrb[0].mxu0
        %v4852 = vadd.f32 %v4659, %v4851
        %4853 = vmatprep.mubr.bf16.mxu0 %v3663
        %4854 = vmatmul.mubr.bf16.gmra.mrb[0].mxu0 %v3662
        %v4855 = vpop.f32.mrb[0].mxu0
        %v4856 = vadd.f32 %v4663, %v4855
        %v4857 = vpop.f32.mrb[0].mxu0
        %v4858 = vadd.f32 %v4665, %v4857
        %v4859 = vpop.f32.mrb[0].mxu0
        %v4860 = vadd.f32 %v4667, %v4859
        %v4861 = vpop.f32.mrb[0].mxu0
        %v4862 = vadd.f32 %v4669, %v4861
        %4863 = vmatprep.mubr.bf16.mxu0 %v3665
        %4864 = vmatmul.mubr.bf16.gmra.mrb[0].mxu0 %v3664
        %v4865 = vpop.f32.mrb[0].mxu0
        %v4866 = vadd.f32 %v4673, %v4865
        %v4867 = vpop.f32.mrb[0].mxu0
        %v4868 = vadd.f32 %v4675, %v4867
        %v4869 = vpop.f32.mrb[0].mxu0
        %v4870 = vadd.f32 %v4677, %v4869
        %v4871 = vpop.f32.mrb[0].mxu0
        %v4872 = vadd.f32 %v4679, %v4871
        %4873 = vmatprep.mubr.bf16.mxu0 %v3667
        %4874 = vmatmul.mubr.bf16.gmra.mrb[0].mxu0 %v3666
        %v4875 = vpop.f32.mrb[0].mxu0
        %v4876 = vadd.f32 %v4683, %v4875
        %v4877 = vpop.f32.mrb[0].mxu0
        %v4878 = vadd.f32 %v4685, %v4877
        %v4879 = vpop.f32.mrb[0].mxu0
        %v4880 = vadd.f32 %v4687, %v4879
        %v4881 = vpop.f32.mrb[0].mxu0
        %v4882 = vadd.f32 %v4689, %v4881
        %4883 = vmatprep.mubr.bf16.mxu0 %v3669
        %4884 = vmatmul.mubr.bf16.gmra.mrb[0].mxu0 %v3668
        %v4885 = vpop.f32.mrb[0].mxu0
        %v4886 = vadd.f32 %v4693, %v4885
        %v4887 = vpop.f32.mrb[0].mxu0
        %v4888 = vadd.f32 %v4695, %v4887
        %v4889 = vpop.f32.mrb[0].mxu0
        %v4890 = vadd.f32 %v4697, %v4889
        %v4891 = vpop.f32.mrb[0].mxu0
        %v4892 = vadd.f32 %v4699, %v4891
        %4893 = vmatprep.mubr.bf16.mxu0 %v3671
        %4894 = vmatmul.mubr.bf16.gmra.mrb[0].mxu0 %v3670
        %v4895 = vpop.f32.mrb[0].mxu0
        %v4896 = vadd.f32 %v4703, %v4895
        %v4897 = vpop.f32.mrb[0].mxu0
        %v4898 = vadd.f32 %v4705, %v4897
        %v4899 = vpop.f32.mrb[0].mxu0
        %v4900 = vadd.f32 %v4707, %v4899
        %v4901 = vpop.f32.mrb[0].mxu0
        %v4902 = vadd.f32 %v4709, %v4901
        %4903 = vmatprep.mubr.bf16.mxu0 %v3673
        %4904 = vmatmul.mubr.bf16.gmra.mrb[0].mxu0 %v3672
        %v4905 = vpop.f32.mrb[0].mxu0
        %v4906 = vadd.f32 %v4713, %v4905
        %v4907 = vpop.f32.mrb[0].mxu0
        %v4908 = vadd.f32 %v4715, %v4907
        %v4909 = vpop.f32.mrb[0].mxu0
        %v4910 = vadd.f32 %v4717, %v4909
        %v4911 = vpop.f32.mrb[0].mxu0
        %v4912 = vadd.f32 %v4719, %v4911
        %4913 = vmatprep.mubr.bf16.mxu0 %v3675
        %4914 = vmatmul.mubr.bf16.gmra.mrb[0].mxu0 %v3674
        %v4915 = vpop.f32.mrb[0].mxu0
        %v4916 = vadd.f32 %v4723, %v4915
        %v4917 = vpop.f32.mrb[0].mxu0
        %v4918 = vadd.f32 %v4725, %v4917
        %v4919 = vpop.f32.mrb[0].mxu0
        %v4920 = vadd.f32 %v4727, %v4919
        %v4921 = vpop.f32.mrb[0].mxu0
        %v4922 = vadd.f32 %v4729, %v4921
        %4923 = vmatprep.mubr.bf16.mxu0 %v3677
        %4924 = vmatmul.mubr.bf16.gmra.mrb[0].mxu0 %v3676
        %v4925 = vpop.f32.mrb[0].mxu0
        %v4926 = vadd.f32 %v4733, %v4925
        %v4927 = vpop.f32.mrb[0].mxu0
        %v4928 = vadd.f32 %v4735, %v4927
        %v4929 = vpop.f32.mrb[0].mxu0
        %v4930 = vadd.f32 %v4737, %v4929
        %v4931 = vpop.f32.mrb[0].mxu0
        %v4932 = vadd.f32 %v4739, %v4931
        %4933 = vmatprep.mubr.bf16.mxu0 %v3679
        %4934 = vmatmul.mubr.bf16.gmra.mrb[0].mxu0 %v3678
        %v4935 = vpop.f32.mrb[0].mxu0
        %v4936 = vadd.f32 %v4743, %v4935
        %v4937 = vpop.f32.mrb[0].mxu0
        %v4938 = vadd.f32 %v4745, %v4937
        %v4939 = vpop.f32.mrb[0].mxu0
        %v4940 = vadd.f32 %v4747, %v4939
        %v4941 = vpop.f32.mrb[0].mxu0
        %v4942 = vadd.f32 %v4749, %v4941
        %4943 = vmatprep.mubr.bf16.mxu0 %v3681
        %4944 = vmatmul.mubr.bf16.gmra.mrb[0].mxu0 %v3680
        %v4945 = vpop.f32.mrb[0].mxu0
        %v4946 = vadd.f32 %v4753, %v4945
        %v4947 = vpop.f32.mrb[0].mxu0
        %v4948 = vadd.f32 %v4755, %v4947
        %v4949 = vpop.f32.mrb[0].mxu0
        %v4950 = vadd.f32 %v4757, %v4949
        %v4951 = vpop.f32.mrb[0].mxu0
        %v4952 = vadd.f32 %v4759, %v4951
        %4953 = vmatprep.mubr.bf16.mxu0 %v3683
        %4954 = vmatmul.mubr.bf16.gmra.mrb[0].mxu0 %v3682
        %v4955 = vpop.f32.mrb[0].mxu0
        %v4956 = vadd.f32 %v4763, %v4955
        %v4957 = vpop.f32.mrb[0].mxu0
        %v4958 = vadd.f32 %v4765, %v4957
        %v4959 = vpop.f32.mrb[0].mxu0
        %v4960 = vadd.f32 %v4767, %v4959
        %v4961 = vpop.f32.mrb[0].mxu0
        %v4962 = vadd.f32 %v4769, %v4961
        %4963 = vdwg.mxu0
        %4964 = vmatprep.subr.bf16.mxu0 %v4182
        %4965 = vmatpush1.bf16.msra.mxu0 %v4181
        %4966 = vmatprep.subr.bf16.mxu0 %v4184
        %4967 = vmatpush1.bf16.msra.mxu0 %v4183
        %4968 = vmatprep.subr.bf16.mxu0 %v4186
        %4969 = vmatpush1.bf16.msra.mxu0 %v4185
        %4970 = vmatprep.subr.bf16.mxu0 %v4188
        %4971 = vmatpush1.bf16.msra.mxu0 %v4187
        %4972 = vmatprep.subr.bf16.mxu0 %v4190
        %4973 = vmatpush1.bf16.msra.mxu0 %v4189
        %4974 = vmatprep.subr.bf16.mxu0 %v4192
        %4975 = vmatpush1.bf16.msra.mxu0 %v4191
        %4976 = vmatprep.subr.bf16.mxu0 %v4194
        %4977 = vmatpush1.bf16.msra.mxu0 %v4193
        %4978 = vmatprep.subr.bf16.mxu0 %v4196
        %4979 = vmatpush1.bf16.msra.mxu0 %v4195
        %4980 = vmatprep.subr.bf16.mxu0 %v4198
        %4981 = vmatpush1.bf16.msra.mxu0 %v4197
        %4982 = vmatprep.subr.bf16.mxu0 %v4200
        %4983 = vmatpush1.bf16.msra.mxu0 %v4199
        %4984 = vmatprep.subr.bf16.mxu0 %v4202
        %4985 = vmatpush1.bf16.msra.mxu0 %v4201
        %4986 = vmatprep.subr.bf16.mxu0 %v4204
        %4987 = vmatpush1.bf16.msra.mxu0 %v4203
        %4988 = vmatprep.subr.bf16.mxu0 %v4206
        %4989 = vmatpush1.bf16.msra.mxu0 %v4205
        %4990 = vmatprep.subr.bf16.mxu0 %v4208
        %4991 = vmatpush1.bf16.msra.mxu0 %v4207
        %4992 = vmatprep.subr.bf16.mxu0 %v4210
        %4993 = vmatpush1.bf16.msra.mxu0 %v4209
        %4994 = vmatprep.subr.bf16.mxu0 %v4212
        %4995 = vmatpush1.bf16.msra.mxu0 %v4211
        %4996 = vmatprep.mubr.bf16.mxu0 %v3685
        %4997 = vmatmul.mubr.bf16.gmra.mrb[0].mxu0 %v3684
        %v4998 = vpop.f32.mrb[0].mxu0
        %v4999 = vadd.f32 %v4806, %v4998
        %v5000 = vpop.f32.mrb[0].mxu0
        %v5001 = vadd.f32 %v4808, %v5000
        %v5002 = vpop.f32.mrb[0].mxu0
        %v5003 = vadd.f32 %v4810, %v5002
        %v5004 = vpop.f32.mrb[0].mxu0
        %v5005 = vadd.f32 %v4812, %v5004
        %5006 = vmatprep.mubr.bf16.mxu0 %v3687
        %5007 = vmatmul.mubr.bf16.gmra.mrb[0].mxu0 %v3686
        %v5008 = vpop.f32.mrb[0].mxu0
        %v5009 = vadd.f32 %v4816, %v5008
        %v5010 = vpop.f32.mrb[0].mxu0
        %v5011 = vadd.f32 %v4818, %v5010
        %v5012 = vpop.f32.mrb[0].mxu0
        %v5013 = vadd.f32 %v4820, %v5012
        %v5014 = vpop.f32.mrb[0].mxu0
        %v5015 = vadd.f32 %v4822, %v5014
        %5016 = vmatprep.mubr.bf16.mxu0 %v3689
        %5017 = vmatmul.mubr.bf16.gmra.mrb[0].mxu0 %v3688
        %v5018 = vpop.f32.mrb[0].mxu0
        %v5019 = vadd.f32 %v4826, %v5018
        %v5020 = vpop.f32.mrb[0].mxu0
        %v5021 = vadd.f32 %v4828, %v5020
        %v5022 = vpop.f32.mrb[0].mxu0
        %v5023 = vadd.f32 %v4830, %v5022
        %v5024 = vpop.f32.mrb[0].mxu0
        %v5025 = vadd.f32 %v4832, %v5024
        %5026 = vmatprep.mubr.bf16.mxu0 %v3691
        %5027 = vmatmul.mubr.bf16.gmra.mrb[0].mxu0 %v3690
        %v5028 = vpop.f32.mrb[0].mxu0
        %v5029 = vadd.f32 %v4836, %v5028
        %v5030 = vpop.f32.mrb[0].mxu0
        %v5031 = vadd.f32 %v4838, %v5030
        %v5032 = vpop.f32.mrb[0].mxu0
        %v5033 = vadd.f32 %v4840, %v5032
        %v5034 = vpop.f32.mrb[0].mxu0
        %v5035 = vadd.f32 %v4842, %v5034
        %5036 = vmatprep.mubr.bf16.mxu0 %v3693
        %5037 = vmatmul.mubr.bf16.gmra.mrb[0].mxu0 %v3692
        %v5038 = vpop.f32.mrb[0].mxu0
        %v5039 = vadd.f32 %v4846, %v5038
        %v5040 = vpop.f32.mrb[0].mxu0
        %v5041 = vadd.f32 %v4848, %v5040
        %v5042 = vpop.f32.mrb[0].mxu0
        %v5043 = vadd.f32 %v4850, %v5042
        %v5044 = vpop.f32.mrb[0].mxu0
        %v5045 = vadd.f32 %v4852, %v5044
        %5046 = vmatprep.mubr.bf16.mxu0 %v3695
        %5047 = vmatmul.mubr.bf16.gmra.mrb[0].mxu0 %v3694
        %v5048 = vpop.f32.mrb[0].mxu0
        %v5049 = vadd.f32 %v4856, %v5048
        %v5050 = vpop.f32.mrb[0].mxu0
        %v5051 = vadd.f32 %v4858, %v5050
        %v5052 = vpop.f32.mrb[0].mxu0
        %v5053 = vadd.f32 %v4860, %v5052
        %v5054 = vpop.f32.mrb[0].mxu0
        %v5055 = vadd.f32 %v4862, %v5054
        %5056 = vmatprep.mubr.bf16.mxu0 %v3697
        %5057 = vmatmul.mubr.bf16.gmra.mrb[0].mxu0 %v3696
        %v5058 = vpop.f32.mrb[0].mxu0
        %v5059 = vadd.f32 %v4866, %v5058
        %v5060 = vpop.f32.mrb[0].mxu0
        %v5061 = vadd.f32 %v4868, %v5060
        %v5062 = vpop.f32.mrb[0].mxu0
        %v5063 = vadd.f32 %v4870, %v5062
        %v5064 = vpop.f32.mrb[0].mxu0
        %v5065 = vadd.f32 %v4872, %v5064
        %5066 = vmatprep.mubr.bf16.mxu0 %v3699
        %5067 = vmatmul.mubr.bf16.gmra.mrb[0].mxu0 %v3698
        %v5068 = vpop.f32.mrb[0].mxu0
        %v5069 = vadd.f32 %v4876, %v5068
        %v5070 = vpop.f32.mrb[0].mxu0
        %v5071 = vadd.f32 %v4878, %v5070
        %v5072 = vpop.f32.mrb[0].mxu0
        %v5073 = vadd.f32 %v4880, %v5072
        %v5074 = vpop.f32.mrb[0].mxu0
        %v5075 = vadd.f32 %v4882, %v5074
        %5076 = vmatprep.mubr.bf16.mxu0 %v3701
        %5077 = vmatmul.mubr.bf16.gmra.mrb[0].mxu0 %v3700
        %v5078 = vpop.f32.mrb[0].mxu0
        %v5079 = vadd.f32 %v4886, %v5078
        %v5080 = vpop.f32.mrb[0].mxu0
        %v5081 = vadd.f32 %v4888, %v5080
        %v5082 = vpop.f32.mrb[0].mxu0
        %v5083 = vadd.f32 %v4890, %v5082
        %v5084 = vpop.f32.mrb[0].mxu0
        %v5085 = vadd.f32 %v4892, %v5084
        %5086 = vmatprep.mubr.bf16.mxu0 %v3703
        %5087 = vmatmul.mubr.bf16.gmra.mrb[0].mxu0 %v3702
        %v5088 = vpop.f32.mrb[0].mxu0
        %v5089 = vadd.f32 %v4896, %v5088
        %v5090 = vpop.f32.mrb[0].mxu0
        %v5091 = vadd.f32 %v4898, %v5090
        %v5092 = vpop.f32.mrb[0].mxu0
        %v5093 = vadd.f32 %v4900, %v5092
        %v5094 = vpop.f32.mrb[0].mxu0
        %v5095 = vadd.f32 %v4902, %v5094
        %5096 = vmatprep.mubr.bf16.mxu0 %v3705
        %5097 = vmatmul.mubr.bf16.gmra.mrb[0].mxu0 %v3704
        %v5098 = vpop.f32.mrb[0].mxu0
        %v5099 = vadd.f32 %v4906, %v5098
        %v5100 = vpop.f32.mrb[0].mxu0
        %v5101 = vadd.f32 %v4908, %v5100
        %v5102 = vpop.f32.mrb[0].mxu0
        %v5103 = vadd.f32 %v4910, %v5102
        %v5104 = vpop.f32.mrb[0].mxu0
        %v5105 = vadd.f32 %v4912, %v5104
        %5106 = vmatprep.mubr.bf16.mxu0 %v3707
        %5107 = vmatmul.mubr.bf16.gmra.mrb[0].mxu0 %v3706
        %v5108 = vpop.f32.mrb[0].mxu0
        %v5109 = vadd.f32 %v4916, %v5108
        %v5110 = vpop.f32.mrb[0].mxu0
        %v5111 = vadd.f32 %v4918, %v5110
        %v5112 = vpop.f32.mrb[0].mxu0
        %v5113 = vadd.f32 %v4920, %v5112
        %v5114 = vpop.f32.mrb[0].mxu0
        %v5115 = vadd.f32 %v4922, %v5114
        %5116 = vmatprep.mubr.bf16.mxu0 %v3709
        %5117 = vmatmul.mubr.bf16.gmra.mrb[0].mxu0 %v3708
        %v5118 = vpop.f32.mrb[0].mxu0
        %v5119 = vadd.f32 %v4926, %v5118
        %v5120 = vpop.f32.mrb[0].mxu0
        %v5121 = vadd.f32 %v4928, %v5120
        %v5122 = vpop.f32.mrb[0].mxu0
        %v5123 = vadd.f32 %v4930, %v5122
        %v5124 = vpop.f32.mrb[0].mxu0
        %v5125 = vadd.f32 %v4932, %v5124
        %5126 = vmatprep.mubr.bf16.mxu0 %v3711
        %5127 = vmatmul.mubr.bf16.gmra.mrb[0].mxu0 %v3710
        %v5128 = vpop.f32.mrb[0].mxu0
        %v5129 = vadd.f32 %v4936, %v5128
        %v5130 = vpop.f32.mrb[0].mxu0
        %v5131 = vadd.f32 %v4938, %v5130
        %v5132 = vpop.f32.mrb[0].mxu0
        %v5133 = vadd.f32 %v4940, %v5132
        %v5134 = vpop.f32.mrb[0].mxu0
        %v5135 = vadd.f32 %v4942, %v5134
        %5136 = vmatprep.mubr.bf16.mxu0 %v3713
        %5137 = vmatmul.mubr.bf16.gmra.mrb[0].mxu0 %v3712
        %v5138 = vpop.f32.mrb[0].mxu0
        %v5139 = vadd.f32 %v4946, %v5138
        %v5140 = vpop.f32.mrb[0].mxu0
        %v5141 = vadd.f32 %v4948, %v5140
        %v5142 = vpop.f32.mrb[0].mxu0
        %v5143 = vadd.f32 %v4950, %v5142
        %v5144 = vpop.f32.mrb[0].mxu0
        %v5145 = vadd.f32 %v4952, %v5144
        %5146 = vmatprep.mubr.bf16.mxu0 %v3715
        %5147 = vmatmul.mubr.bf16.gmra.mrb[0].mxu0 %v3714
        %v5148 = vpop.f32.mrb[0].mxu0
        %v5149 = vadd.f32 %v4956, %v5148
        %v5150 = vpop.f32.mrb[0].mxu0
        %v5151 = vadd.f32 %v4958, %v5150
        %v5152 = vpop.f32.mrb[0].mxu0
        %v5153 = vadd.f32 %v4960, %v5152
        %v5154 = vpop.f32.mrb[0].mxu0
        %v5155 = vadd.f32 %v4962, %v5154
        %5156 = vdwg.mxu0
        %5157 = vmatprep.subr.bf16.mxu0 %v4214
        %5158 = vmatpush1.bf16.msra.mxu0 %v4213
        %5159 = vmatprep.subr.bf16.mxu0 %v4216
        %5160 = vmatpush1.bf16.msra.mxu0 %v4215
        %5161 = vmatprep.subr.bf16.mxu0 %v4218
        %5162 = vmatpush1.bf16.msra.mxu0 %v4217
        %5163 = vmatprep.subr.bf16.mxu0 %v4220
        %5164 = vmatpush1.bf16.msra.mxu0 %v4219
        %5165 = vmatprep.subr.bf16.mxu0 %v4222
        %5166 = vmatpush1.bf16.msra.mxu0 %v4221
        %5167 = vmatprep.subr.bf16.mxu0 %v4224
        %5168 = vmatpush1.bf16.msra.mxu0 %v4223
        %5169 = vmatprep.subr.bf16.mxu0 %v4226
        %5170 = vmatpush1.bf16.msra.mxu0 %v4225
        %5171 = vmatprep.subr.bf16.mxu0 %v4228
        %5172 = vmatpush1.bf16.msra.mxu0 %v4227
        %5173 = vmatprep.subr.bf16.mxu0 %v4230
        %5174 = vmatpush1.bf16.msra.mxu0 %v4229
        %5175 = vmatprep.subr.bf16.mxu0 %v4232
        %5176 = vmatpush1.bf16.msra.mxu0 %v4231
        %5177 = vmatprep.subr.bf16.mxu0 %v4234
        %5178 = vmatpush1.bf16.msra.mxu0 %v4233
        %5179 = vmatprep.subr.bf16.mxu0 %v4236
        %5180 = vmatpush1.bf16.msra.mxu0 %v4235
        %5181 = vmatprep.subr.bf16.mxu0 %v4238
        %5182 = vmatpush1.bf16.msra.mxu0 %v4237
        %5183 = vmatprep.subr.bf16.mxu0 %v4240
        %5184 = vmatpush1.bf16.msra.mxu0 %v4239
        %5185 = vmatprep.subr.bf16.mxu0 %v4242
        %5186 = vmatpush1.bf16.msra.mxu0 %v4241
        %5187 = vmatprep.subr.bf16.mxu0 %v4244
        %5188 = vmatpush1.bf16.msra.mxu0 %v4243
        %5189 = vmatprep.mubr.bf16.mxu0 %v3687
        %5190 = vmatmul.mubr.bf16.gmra.mrb[0].mxu0 %v3686
        %v5191 = vpop.f32.mrb[0].mxu0
        %v5192 = vadd.f32 %v4999, %v5191
        %v5193 = vpop.f32.mrb[0].mxu0
        %v5194 = vadd.f32 %v5001, %v5193
        %v5195 = vpop.f32.mrb[0].mxu0
        %v5196 = vadd.f32 %v5003, %v5195
        %v5197 = vpop.f32.mrb[0].mxu0
        %v5198 = vadd.f32 %v5005, %v5197
        %5199 = vmatprep.mubr.bf16.mxu0 %v3689
        %5200 = vmatmul.mubr.bf16.gmra.mrb[0].mxu0 %v3688
        %v5201 = vpop.f32.mrb[0].mxu0
        %v5202 = vadd.f32 %v5009, %v5201
        %v5203 = vpop.f32.mrb[0].mxu0
        %v5204 = vadd.f32 %v5011, %v5203
        %v5205 = vpop.f32.mrb[0].mxu0
        %v5206 = vadd.f32 %v5013, %v5205
        %v5207 = vpop.f32.mrb[0].mxu0
        %v5208 = vadd.f32 %v5015, %v5207
        %5209 = vmatprep.mubr.bf16.mxu0 %v3691
        %5210 = vmatmul.mubr.bf16.gmra.mrb[0].mxu0 %v3690
        %v5211 = vpop.f32.mrb[0].mxu0
        %v5212 = vadd.f32 %v5019, %v5211
        %v5213 = vpop.f32.mrb[0].mxu0
        %v5214 = vadd.f32 %v5021, %v5213
        %v5215 = vpop.f32.mrb[0].mxu0
        %v5216 = vadd.f32 %v5023, %v5215
        %v5217 = vpop.f32.mrb[0].mxu0
        %v5218 = vadd.f32 %v5025, %v5217
        %5219 = vmatprep.mubr.bf16.mxu0 %v3693
        %5220 = vmatmul.mubr.bf16.gmra.mrb[0].mxu0 %v3692
        %v5221 = vpop.f32.mrb[0].mxu0
        %v5222 = vadd.f32 %v5029, %v5221
        %v5223 = vpop.f32.mrb[0].mxu0
        %v5224 = vadd.f32 %v5031, %v5223
        %v5225 = vpop.f32.mrb[0].mxu0
        %v5226 = vadd.f32 %v5033, %v5225
        %v5227 = vpop.f32.mrb[0].mxu0
        %v5228 = vadd.f32 %v5035, %v5227
        %5229 = vmatprep.mubr.bf16.mxu0 %v3695
        %5230 = vmatmul.mubr.bf16.gmra.mrb[0].mxu0 %v3694
        %v5231 = vpop.f32.mrb[0].mxu0
        %v5232 = vadd.f32 %v5039, %v5231
        %v5233 = vpop.f32.mrb[0].mxu0
        %v5234 = vadd.f32 %v5041, %v5233
        %v5235 = vpop.f32.mrb[0].mxu0
        %v5236 = vadd.f32 %v5043, %v5235
        %v5237 = vpop.f32.mrb[0].mxu0
        %v5238 = vadd.f32 %v5045, %v5237
        %5239 = vmatprep.mubr.bf16.mxu0 %v3697
        %5240 = vmatmul.mubr.bf16.gmra.mrb[0].mxu0 %v3696
        %v5241 = vpop.f32.mrb[0].mxu0
        %v5242 = vadd.f32 %v5049, %v5241
        %v5243 = vpop.f32.mrb[0].mxu0
        %v5244 = vadd.f32 %v5051, %v5243
        %v5245 = vpop.f32.mrb[0].mxu0
        %v5246 = vadd.f32 %v5053, %v5245
        %v5247 = vpop.f32.mrb[0].mxu0
        %v5248 = vadd.f32 %v5055, %v5247
        %5249 = vmatprep.mubr.bf16.mxu0 %v3699
        %5250 = vmatmul.mubr.bf16.gmra.mrb[0].mxu0 %v3698
        %v5251 = vpop.f32.mrb[0].mxu0
        %v5252 = vadd.f32 %v5059, %v5251
        %v5253 = vpop.f32.mrb[0].mxu0
        %v5254 = vadd.f32 %v5061, %v5253
        %v5255 = vpop.f32.mrb[0].mxu0
        %v5256 = vadd.f32 %v5063, %v5255
        %v5257 = vpop.f32.mrb[0].mxu0
        %v5258 = vadd.f32 %v5065, %v5257
        %5259 = vmatprep.mubr.bf16.mxu0 %v3701
        %5260 = vmatmul.mubr.bf16.gmra.mrb[0].mxu0 %v3700
        %v5261 = vpop.f32.mrb[0].mxu0
        %v5262 = vadd.f32 %v5069, %v5261
        %v5263 = vpop.f32.mrb[0].mxu0
        %v5264 = vadd.f32 %v5071, %v5263
        %v5265 = vpop.f32.mrb[0].mxu0
        %v5266 = vadd.f32 %v5073, %v5265
        %v5267 = vpop.f32.mrb[0].mxu0
        %v5268 = vadd.f32 %v5075, %v5267
        %5269 = vmatprep.mubr.bf16.mxu0 %v3703
        %5270 = vmatmul.mubr.bf16.gmra.mrb[0].mxu0 %v3702
        %v5271 = vpop.f32.mrb[0].mxu0
        %v5272 = vadd.f32 %v5079, %v5271
        %v5273 = vpop.f32.mrb[0].mxu0
        %v5274 = vadd.f32 %v5081, %v5273
        %v5275 = vpop.f32.mrb[0].mxu0
        %v5276 = vadd.f32 %v5083, %v5275
        %v5277 = vpop.f32.mrb[0].mxu0
        %v5278 = vadd.f32 %v5085, %v5277
        %5279 = vmatprep.mubr.bf16.mxu0 %v3705
        %5280 = vmatmul.mubr.bf16.gmra.mrb[0].mxu0 %v3704
        %v5281 = vpop.f32.mrb[0].mxu0
        %v5282 = vadd.f32 %v5089, %v5281
        %v5283 = vpop.f32.mrb[0].mxu0
        %v5284 = vadd.f32 %v5091, %v5283
        %v5285 = vpop.f32.mrb[0].mxu0
        %v5286 = vadd.f32 %v5093, %v5285
        %v5287 = vpop.f32.mrb[0].mxu0
        %v5288 = vadd.f32 %v5095, %v5287
        %5289 = vmatprep.mubr.bf16.mxu0 %v3707
        %5290 = vmatmul.mubr.bf16.gmra.mrb[0].mxu0 %v3706
        %v5291 = vpop.f32.mrb[0].mxu0
        %v5292 = vadd.f32 %v5099, %v5291
        %v5293 = vpop.f32.mrb[0].mxu0
        %v5294 = vadd.f32 %v5101, %v5293
        %v5295 = vpop.f32.mrb[0].mxu0
        %v5296 = vadd.f32 %v5103, %v5295
        %v5297 = vpop.f32.mrb[0].mxu0
        %v5298 = vadd.f32 %v5105, %v5297
        %5299 = vmatprep.mubr.bf16.mxu0 %v3709
        %5300 = vmatmul.mubr.bf16.gmra.mrb[0].mxu0 %v3708
        %v5301 = vpop.f32.mrb[0].mxu0
        %v5302 = vadd.f32 %v5109, %v5301
        %v5303 = vpop.f32.mrb[0].mxu0
        %v5304 = vadd.f32 %v5111, %v5303
        %v5305 = vpop.f32.mrb[0].mxu0
        %v5306 = vadd.f32 %v5113, %v5305
        %v5307 = vpop.f32.mrb[0].mxu0
        %v5308 = vadd.f32 %v5115, %v5307
        %5309 = vmatprep.mubr.bf16.mxu0 %v3711
        %5310 = vmatmul.mubr.bf16.gmra.mrb[0].mxu0 %v3710
        %v5311 = vpop.f32.mrb[0].mxu0
        %v5312 = vadd.f32 %v5119, %v5311
        %v5313 = vpop.f32.mrb[0].mxu0
        %v5314 = vadd.f32 %v5121, %v5313
        %v5315 = vpop.f32.mrb[0].mxu0
        %v5316 = vadd.f32 %v5123, %v5315
        %v5317 = vpop.f32.mrb[0].mxu0
        %v5318 = vadd.f32 %v5125, %v5317
        %5319 = vmatprep.mubr.bf16.mxu0 %v3713
        %5320 = vmatmul.mubr.bf16.gmra.mrb[0].mxu0 %v3712
        %v5321 = vpop.f32.mrb[0].mxu0
        %v5322 = vadd.f32 %v5129, %v5321
        %v5323 = vpop.f32.mrb[0].mxu0
        %v5324 = vadd.f32 %v5131, %v5323
        %v5325 = vpop.f32.mrb[0].mxu0
        %v5326 = vadd.f32 %v5133, %v5325
        %v5327 = vpop.f32.mrb[0].mxu0
        %v5328 = vadd.f32 %v5135, %v5327
        %5329 = vmatprep.mubr.bf16.mxu0 %v3715
        %5330 = vmatmul.mubr.bf16.gmra.mrb[0].mxu0 %v3714
        %v5331 = vpop.f32.mrb[0].mxu0
        %v5332 = vadd.f32 %v5139, %v5331
        %v5333 = vpop.f32.mrb[0].mxu0
        %v5334 = vadd.f32 %v5141, %v5333
        %v5335 = vpop.f32.mrb[0].mxu0
        %v5336 = vadd.f32 %v5143, %v5335
        %v5337 = vpop.f32.mrb[0].mxu0
        %v5338 = vadd.f32 %v5145, %v5337
        %5339 = vmatprep.mubr.bf16.mxu0 %v3717
        %5340 = vmatmul.mubr.bf16.gmra.mrb[0].mxu0 %v3716
        %v5341 = vpop.f32.mrb[0].mxu0
        %v5342 = vadd.f32 %v5149, %v5341
        %v5343 = vpop.f32.mrb[0].mxu0
        %v5344 = vadd.f32 %v5151, %v5343
        %v5345 = vpop.f32.mrb[0].mxu0
        %v5346 = vadd.f32 %v5153, %v5345
        %v5347 = vpop.f32.mrb[0].mxu0
        %v5348 = vadd.f32 %v5155, %v5347
        %5349 = vdwg.mxu0
        %5350 = vmatprep.subr.bf16.mxu0 %v4246
        %5351 = vmatpush1.bf16.msra.mxu0 %v4245
        %5352 = vmatprep.subr.bf16.mxu0 %v4248
        %5353 = vmatpush1.bf16.msra.mxu0 %v4247
        %5354 = vmatprep.subr.bf16.mxu0 %v4250
        %5355 = vmatpush1.bf16.msra.mxu0 %v4249
        %5356 = vmatprep.subr.bf16.mxu0 %v4252
        %5357 = vmatpush1.bf16.msra.mxu0 %v4251
        %5358 = vmatprep.subr.bf16.mxu0 %v4254
        %5359 = vmatpush1.bf16.msra.mxu0 %v4253
        %5360 = vmatprep.subr.bf16.mxu0 %v4256
        %5361 = vmatpush1.bf16.msra.mxu0 %v4255
        %5362 = vmatprep.subr.bf16.mxu0 %v4258
        %5363 = vmatpush1.bf16.msra.mxu0 %v4257
        %5364 = vmatprep.subr.bf16.mxu0 %v4260
        %5365 = vmatpush1.bf16.msra.mxu0 %v4259
        %5366 = vmatprep.subr.bf16.mxu0 %v4262
        %5367 = vmatpush1.bf16.msra.mxu0 %v4261
        %5368 = vmatprep.subr.bf16.mxu0 %v4264
        %5369 = vmatpush1.bf16.msra.mxu0 %v4263
        %5370 = vmatprep.subr.bf16.mxu0 %v4266
        %5371 = vmatpush1.bf16.msra.mxu0 %v4265
        %5372 = vmatprep.subr.bf16.mxu0 %v4268
        %5373 = vmatpush1.bf16.msra.mxu0 %v4267
        %5374 = vmatprep.subr.bf16.mxu0 %v4270
        %5375 = vmatpush1.bf16.msra.mxu0 %v4269
        %5376 = vmatprep.subr.bf16.mxu0 %v4272
        %5377 = vmatpush1.bf16.msra.mxu0 %v4271
        %5378 = vmatprep.subr.bf16.mxu0 %v4274
        %5379 = vmatpush1.bf16.msra.mxu0 %v4273
        %5380 = vmatprep.subr.bf16.mxu0 %v4276
        %5381 = vmatpush1.bf16.msra.mxu0 %v4275
        %5382 = vmatprep.mubr.bf16.mxu0 %v3689
        %5383 = vmatmul.mubr.bf16.gmra.mrb[0].mxu0 %v3688
        %v5384 = vpop.f32.mrb[0].mxu0
        %v5385 = vadd.f32 %v5192, %v5384
        %v5386 = vpop.f32.mrb[0].mxu0
        %v5387 = vadd.f32 %v5194, %v5386
        %v5388 = vpop.f32.mrb[0].mxu0
        %v5389 = vadd.f32 %v5196, %v5388
        %v5390 = vpop.f32.mrb[0].mxu0
        %v5391 = vadd.f32 %v5198, %v5390
        %5392 = vmatprep.mubr.bf16.mxu0 %v3691
        %5393 = vmatmul.mubr.bf16.gmra.mrb[0].mxu0 %v3690
        %v5394 = vpop.f32.mrb[0].mxu0
        %v5395 = vadd.f32 %v5202, %v5394
        %v5396 = vpop.f32.mrb[0].mxu0
        %v5397 = vadd.f32 %v5204, %v5396
        %v5398 = vpop.f32.mrb[0].mxu0
        %v5399 = vadd.f32 %v5206, %v5398
        %v5400 = vpop.f32.mrb[0].mxu0
        %v5401 = vadd.f32 %v5208, %v5400
        %5402 = vmatprep.mubr.bf16.mxu0 %v3693
        %5403 = vmatmul.mubr.bf16.gmra.mrb[0].mxu0 %v3692
        %v5404 = vpop.f32.mrb[0].mxu0
        %v5405 = vadd.f32 %v5212, %v5404
        %v5406 = vpop.f32.mrb[0].mxu0
        %v5407 = vadd.f32 %v5214, %v5406
        %v5408 = vpop.f32.mrb[0].mxu0
        %v5409 = vadd.f32 %v5216, %v5408
        %v5410 = vpop.f32.mrb[0].mxu0
        %v5411 = vadd.f32 %v5218, %v5410
        %5412 = vmatprep.mubr.bf16.mxu0 %v3695
        %5413 = vmatmul.mubr.bf16.gmra.mrb[0].mxu0 %v3694
        %v5414 = vpop.f32.mrb[0].mxu0
        %v5415 = vadd.f32 %v5222, %v5414
        %v5416 = vpop.f32.mrb[0].mxu0
        %v5417 = vadd.f32 %v5224, %v5416
        %v5418 = vpop.f32.mrb[0].mxu0
        %v5419 = vadd.f32 %v5226, %v5418
        %v5420 = vpop.f32.mrb[0].mxu0
        %v5421 = vadd.f32 %v5228, %v5420
        %5422 = vmatprep.mubr.bf16.mxu0 %v3697
        %5423 = vmatmul.mubr.bf16.gmra.mrb[0].mxu0 %v3696
        %v5424 = vpop.f32.mrb[0].mxu0
        %v5425 = vadd.f32 %v5232, %v5424
        %v5426 = vpop.f32.mrb[0].mxu0
        %v5427 = vadd.f32 %v5234, %v5426
        %v5428 = vpop.f32.mrb[0].mxu0
        %v5429 = vadd.f32 %v5236, %v5428
        %v5430 = vpop.f32.mrb[0].mxu0
        %v5431 = vadd.f32 %v5238, %v5430
        %5432 = vmatprep.mubr.bf16.mxu0 %v3699
        %5433 = vmatmul.mubr.bf16.gmra.mrb[0].mxu0 %v3698
        %v5434 = vpop.f32.mrb[0].mxu0
        %v5435 = vadd.f32 %v5242, %v5434
        %v5436 = vpop.f32.mrb[0].mxu0
        %v5437 = vadd.f32 %v5244, %v5436
        %v5438 = vpop.f32.mrb[0].mxu0
        %v5439 = vadd.f32 %v5246, %v5438
        %v5440 = vpop.f32.mrb[0].mxu0
        %v5441 = vadd.f32 %v5248, %v5440
        %5442 = vmatprep.mubr.bf16.mxu0 %v3701
        %5443 = vmatmul.mubr.bf16.gmra.mrb[0].mxu0 %v3700
        %v5444 = vpop.f32.mrb[0].mxu0
        %v5445 = vadd.f32 %v5252, %v5444
        %v5446 = vpop.f32.mrb[0].mxu0
        %v5447 = vadd.f32 %v5254, %v5446
        %v5448 = vpop.f32.mrb[0].mxu0
        %v5449 = vadd.f32 %v5256, %v5448
        %v5450 = vpop.f32.mrb[0].mxu0
        %v5451 = vadd.f32 %v5258, %v5450
        %5452 = vmatprep.mubr.bf16.mxu0 %v3703
        %5453 = vmatmul.mubr.bf16.gmra.mrb[0].mxu0 %v3702
        %v5454 = vpop.f32.mrb[0].mxu0
        %v5455 = vadd.f32 %v5262, %v5454
        %v5456 = vpop.f32.mrb[0].mxu0
        %v5457 = vadd.f32 %v5264, %v5456
        %v5458 = vpop.f32.mrb[0].mxu0
        %v5459 = vadd.f32 %v5266, %v5458
        %v5460 = vpop.f32.mrb[0].mxu0
        %v5461 = vadd.f32 %v5268, %v5460
        %5462 = vmatprep.mubr.bf16.mxu0 %v3705
        %5463 = vmatmul.mubr.bf16.gmra.mrb[0].mxu0 %v3704
        %v5464 = vpop.f32.mrb[0].mxu0
        %v5465 = vadd.f32 %v5272, %v5464
        %v5466 = vpop.f32.mrb[0].mxu0
        %v5467 = vadd.f32 %v5274, %v5466
        %v5468 = vpop.f32.mrb[0].mxu0
        %v5469 = vadd.f32 %v5276, %v5468
        %v5470 = vpop.f32.mrb[0].mxu0
        %v5471 = vadd.f32 %v5278, %v5470
        %5472 = vmatprep.mubr.bf16.mxu0 %v3707
        %5473 = vmatmul.mubr.bf16.gmra.mrb[0].mxu0 %v3706
        %v5474 = vpop.f32.mrb[0].mxu0
        %v5475 = vadd.f32 %v5282, %v5474
        %v5476 = vpop.f32.mrb[0].mxu0
        %v5477 = vadd.f32 %v5284, %v5476
        %v5478 = vpop.f32.mrb[0].mxu0
        %v5479 = vadd.f32 %v5286, %v5478
        %v5480 = vpop.f32.mrb[0].mxu0
        %v5481 = vadd.f32 %v5288, %v5480
        %5482 = vmatprep.mubr.bf16.mxu0 %v3709
        %5483 = vmatmul.mubr.bf16.gmra.mrb[0].mxu0 %v3708
        %v5484 = vpop.f32.mrb[0].mxu0
        %v5485 = vadd.f32 %v5292, %v5484
        %v5486 = vpop.f32.mrb[0].mxu0
        %v5487 = vadd.f32 %v5294, %v5486
        %v5488 = vpop.f32.mrb[0].mxu0
        %v5489 = vadd.f32 %v5296, %v5488
        %v5490 = vpop.f32.mrb[0].mxu0
        %v5491 = vadd.f32 %v5298, %v5490
        %5492 = vmatprep.mubr.bf16.mxu0 %v3711
        %5493 = vmatmul.mubr.bf16.gmra.mrb[0].mxu0 %v3710
        %v5494 = vpop.f32.mrb[0].mxu0
        %v5495 = vadd.f32 %v5302, %v5494
        %v5496 = vpop.f32.mrb[0].mxu0
        %v5497 = vadd.f32 %v5304, %v5496
        %v5498 = vpop.f32.mrb[0].mxu0
        %v5499 = vadd.f32 %v5306, %v5498
        %v5500 = vpop.f32.mrb[0].mxu0
        %v5501 = vadd.f32 %v5308, %v5500
        %5502 = vmatprep.mubr.bf16.mxu0 %v3713
        %5503 = vmatmul.mubr.bf16.gmra.mrb[0].mxu0 %v3712
        %v5504 = vpop.f32.mrb[0].mxu0
        %v5505 = vadd.f32 %v5312, %v5504
        %v5506 = vpop.f32.mrb[0].mxu0
        %v5507 = vadd.f32 %v5314, %v5506
        %v5508 = vpop.f32.mrb[0].mxu0
        %v5509 = vadd.f32 %v5316, %v5508
        %v5510 = vpop.f32.mrb[0].mxu0
        %v5511 = vadd.f32 %v5318, %v5510
        %5512 = vmatprep.mubr.bf16.mxu0 %v3715
        %5513 = vmatmul.mubr.bf16.gmra.mrb[0].mxu0 %v3714
        %v5514 = vpop.f32.mrb[0].mxu0
        %v5515 = vadd.f32 %v5322, %v5514
        %v5516 = vpop.f32.mrb[0].mxu0
        %v5517 = vadd.f32 %v5324, %v5516
        %v5518 = vpop.f32.mrb[0].mxu0
        %v5519 = vadd.f32 %v5326, %v5518
        %v5520 = vpop.f32.mrb[0].mxu0
        %v5521 = vadd.f32 %v5328, %v5520
        %5522 = vmatprep.mubr.bf16.mxu0 %v3717
        %5523 = vmatmul.mubr.bf16.gmra.mrb[0].mxu0 %v3716
        %v5524 = vpop.f32.mrb[0].mxu0
        %v5525 = vadd.f32 %v5332, %v5524
        %v5526 = vpop.f32.mrb[0].mxu0
        %v5527 = vadd.f32 %v5334, %v5526
        %v5528 = vpop.f32.mrb[0].mxu0
        %v5529 = vadd.f32 %v5336, %v5528
        %v5530 = vpop.f32.mrb[0].mxu0
        %v5531 = vadd.f32 %v5338, %v5530
        %5532 = vmatprep.mubr.bf16.mxu0 %v3719
        %5533 = vmatmul.mubr.bf16.gmra.mrb[0].mxu0 %v3718
        %v5534 = vpop.f32.mrb[0].mxu0
        %v5535 = vadd.f32 %v5342, %v5534
        %v5536 = vpop.f32.mrb[0].mxu0
        %v5537 = vadd.f32 %v5344, %v5536
        %v5538 = vpop.f32.mrb[0].mxu0
        %v5539 = vadd.f32 %v5346, %v5538
        %v5540 = vpop.f32.mrb[0].mxu0
        %v5541 = vadd.f32 %v5348, %v5540
        %5542 = vdwg.mxu0
        %5543 = vmatprep.subr.bf16.mxu0 %v4278
        %5544 = vmatpush1.bf16.msra.mxu0 %v4277
        %5545 = vmatprep.subr.bf16.mxu0 %v4280
        %5546 = vmatpush1.bf16.msra.mxu0 %v4279
        %5547 = vmatprep.subr.bf16.mxu0 %v4282
        %5548 = vmatpush1.bf16.msra.mxu0 %v4281
        %5549 = vmatprep.subr.bf16.mxu0 %v4284
        %5550 = vmatpush1.bf16.msra.mxu0 %v4283
        %5551 = vmatprep.subr.bf16.mxu0 %v4286
        %5552 = vmatpush1.bf16.msra.mxu0 %v4285
        %5553 = vmatprep.subr.bf16.mxu0 %v4288
        %5554 = vmatpush1.bf16.msra.mxu0 %v4287
        %5555 = vmatprep.subr.bf16.mxu0 %v4290
        %5556 = vmatpush1.bf16.msra.mxu0 %v4289
        %5557 = vmatprep.subr.bf16.mxu0 %v4292
        %5558 = vmatpush1.bf16.msra.mxu0 %v4291
        %5559 = vmatprep.subr.bf16.mxu0 %v4294
        %5560 = vmatpush1.bf16.msra.mxu0 %v4293
        %5561 = vmatprep.subr.bf16.mxu0 %v4296
        %5562 = vmatpush1.bf16.msra.mxu0 %v4295
        %5563 = vmatprep.subr.bf16.mxu0 %v4298
        %5564 = vmatpush1.bf16.msra.mxu0 %v4297
        %5565 = vmatprep.subr.bf16.mxu0 %v4300
        %5566 = vmatpush1.bf16.msra.mxu0 %v4299
        %5567 = vmatprep.subr.bf16.mxu0 %v4302
        %5568 = vmatpush1.bf16.msra.mxu0 %v4301
        %5569 = vmatprep.subr.bf16.mxu0 %v4304
        %5570 = vmatpush1.bf16.msra.mxu0 %v4303
        %5571 = vmatprep.subr.bf16.mxu0 %v4306
        %5572 = vmatpush1.bf16.msra.mxu0 %v4305
        %5573 = vmatprep.subr.bf16.mxu0 %v4308
        %5574 = vmatpush1.bf16.msra.mxu0 %v4307
        %5575 = vmatprep.mubr.bf16.mxu0 %v4046
        %5576 = vmatmul.mubr.bf16.gmra.mrb[0].mxu0 %v4045
        %v5577 = vpop.f32.mrb[0].mxu0
        %v5578 = vadd.f32 %v5385, %v5577
        %v5579 = vpop.f32.mrb[0].mxu0
        %v5580 = vadd.f32 %v5387, %v5579
        %v5581 = vpop.f32.mrb[0].mxu0
        %v5582 = vadd.f32 %v5389, %v5581
        %v5583 = vpop.f32.mrb[0].mxu0
        %v5584 = vadd.f32 %v5391, %v5583
        %5585 = vmatprep.mubr.bf16.mxu0 %v4048
        %5586 = vmatmul.mubr.bf16.gmra.mrb[0].mxu0 %v4047
        %v5587 = vpop.f32.mrb[0].mxu0
        %v5588 = vadd.f32 %v5395, %v5587
        %v5589 = vpop.f32.mrb[0].mxu0
        %v5590 = vadd.f32 %v5397, %v5589
        %v5591 = vpop.f32.mrb[0].mxu0
        %v5592 = vadd.f32 %v5399, %v5591
        %v5593 = vpop.f32.mrb[0].mxu0
        %v5594 = vadd.f32 %v5401, %v5593
        %5595 = vmatprep.mubr.bf16.mxu0 %v4050
        %5596 = vmatmul.mubr.bf16.gmra.mrb[0].mxu0 %v4049
        %v5597 = vpop.f32.mrb[0].mxu0
        %v5598 = vadd.f32 %v5405, %v5597
        %v5599 = vpop.f32.mrb[0].mxu0
        %v5600 = vadd.f32 %v5407, %v5599
        %v5601 = vpop.f32.mrb[0].mxu0
        %v5602 = vadd.f32 %v5409, %v5601
        %v5603 = vpop.f32.mrb[0].mxu0
        %v5604 = vadd.f32 %v5411, %v5603
        %5605 = vmatprep.mubr.bf16.mxu0 %v4052
        %5606 = vmatmul.mubr.bf16.gmra.mrb[0].mxu0 %v4051
        %v5607 = vpop.f32.mrb[0].mxu0
        %v5608 = vadd.f32 %v5415, %v5607
        %v5609 = vpop.f32.mrb[0].mxu0
        %v5610 = vadd.f32 %v5417, %v5609
        %v5611 = vpop.f32.mrb[0].mxu0
        %v5612 = vadd.f32 %v5419, %v5611
        %v5613 = vpop.f32.mrb[0].mxu0
        %v5614 = vadd.f32 %v5421, %v5613
        %5615 = vmatprep.mubr.bf16.mxu0 %v4054
        %5616 = vmatmul.mubr.bf16.gmra.mrb[0].mxu0 %v4053
        %v5617 = vpop.f32.mrb[0].mxu0
        %v5618 = vadd.f32 %v5425, %v5617
        %v5619 = vpop.f32.mrb[0].mxu0
        %v5620 = vadd.f32 %v5427, %v5619
        %v5621 = vpop.f32.mrb[0].mxu0
        %v5622 = vadd.f32 %v5429, %v5621
        %v5623 = vpop.f32.mrb[0].mxu0
        %v5624 = vadd.f32 %v5431, %v5623
        %5625 = vmatprep.mubr.bf16.mxu0 %v4056
        %5626 = vmatmul.mubr.bf16.gmra.mrb[0].mxu0 %v4055
        %v5627 = vpop.f32.mrb[0].mxu0
        %v5628 = vadd.f32 %v5435, %v5627
        %v5629 = vpop.f32.mrb[0].mxu0
        %v5630 = vadd.f32 %v5437, %v5629
        %v5631 = vpop.f32.mrb[0].mxu0
        %v5632 = vadd.f32 %v5439, %v5631
        %v5633 = vpop.f32.mrb[0].mxu0
        %v5634 = vadd.f32 %v5441, %v5633
        %5635 = vmatprep.mubr.bf16.mxu0 %v4058
        %5636 = vmatmul.mubr.bf16.gmra.mrb[0].mxu0 %v4057
        %v5637 = vpop.f32.mrb[0].mxu0
        %v5638 = vadd.f32 %v5445, %v5637
        %v5639 = vpop.f32.mrb[0].mxu0
        %v5640 = vadd.f32 %v5447, %v5639
        %v5641 = vpop.f32.mrb[0].mxu0
        %v5642 = vadd.f32 %v5449, %v5641
        %v5643 = vpop.f32.mrb[0].mxu0
        %v5644 = vadd.f32 %v5451, %v5643
        %5645 = vmatprep.mubr.bf16.mxu0 %v4060
        %5646 = vmatmul.mubr.bf16.gmra.mrb[0].mxu0 %v4059
        %v5647 = vpop.f32.mrb[0].mxu0
        %v5648 = vadd.f32 %v5455, %v5647
        %v5649 = vpop.f32.mrb[0].mxu0
        %v5650 = vadd.f32 %v5457, %v5649
        %v5651 = vpop.f32.mrb[0].mxu0
        %v5652 = vadd.f32 %v5459, %v5651
        %v5653 = vpop.f32.mrb[0].mxu0
        %v5654 = vadd.f32 %v5461, %v5653
        %5655 = vmatprep.mubr.bf16.mxu0 %v4062
        %5656 = vmatmul.mubr.bf16.gmra.mrb[0].mxu0 %v4061
        %v5657 = vpop.f32.mrb[0].mxu0
        %v5658 = vadd.f32 %v5465, %v5657
        %v5659 = vpop.f32.mrb[0].mxu0
        %v5660 = vadd.f32 %v5467, %v5659
        %v5661 = vpop.f32.mrb[0].mxu0
        %v5662 = vadd.f32 %v5469, %v5661
        %v5663 = vpop.f32.mrb[0].mxu0
        %v5664 = vadd.f32 %v5471, %v5663
        %5665 = vmatprep.mubr.bf16.mxu0 %v4064
        %5666 = vmatmul.mubr.bf16.gmra.mrb[0].mxu0 %v4063
        %v5667 = vpop.f32.mrb[0].mxu0
        %v5668 = vadd.f32 %v5475, %v5667
        %v5669 = vpop.f32.mrb[0].mxu0
        %v5670 = vadd.f32 %v5477, %v5669
        %v5671 = vpop.f32.mrb[0].mxu0
        %v5672 = vadd.f32 %v5479, %v5671
        %v5673 = vpop.f32.mrb[0].mxu0
        %v5674 = vadd.f32 %v5481, %v5673
        %5675 = vmatprep.mubr.bf16.mxu0 %v4066
        %5676 = vmatmul.mubr.bf16.gmra.mrb[0].mxu0 %v4065
        %v5677 = vpop.f32.mrb[0].mxu0
        %v5678 = vadd.f32 %v5485, %v5677
        %v5679 = vpop.f32.mrb[0].mxu0
        %v5680 = vadd.f32 %v5487, %v5679
        %v5681 = vpop.f32.mrb[0].mxu0
        %v5682 = vadd.f32 %v5489, %v5681
        %v5683 = vpop.f32.mrb[0].mxu0
        %v5684 = vadd.f32 %v5491, %v5683
        %5685 = vmatprep.mubr.bf16.mxu0 %v4068
        %5686 = vmatmul.mubr.bf16.gmra.mrb[0].mxu0 %v4067
        %v5687 = vpop.f32.mrb[0].mxu0
        %v5688 = vadd.f32 %v5495, %v5687
        %v5689 = vpop.f32.mrb[0].mxu0
        %v5690 = vadd.f32 %v5497, %v5689
        %v5691 = vpop.f32.mrb[0].mxu0
        %v5692 = vadd.f32 %v5499, %v5691
        %v5693 = vpop.f32.mrb[0].mxu0
        %v5694 = vadd.f32 %v5501, %v5693
        %5695 = vmatprep.mubr.bf16.mxu0 %v4070
        %5696 = vmatmul.mubr.bf16.gmra.mrb[0].mxu0 %v4069
        %v5697 = vpop.f32.mrb[0].mxu0
        %v5698 = vadd.f32 %v5505, %v5697
        %v5699 = vpop.f32.mrb[0].mxu0
        %v5700 = vadd.f32 %v5507, %v5699
        %v5701 = vpop.f32.mrb[0].mxu0
        %v5702 = vadd.f32 %v5509, %v5701
        %v5703 = vpop.f32.mrb[0].mxu0
        %v5704 = vadd.f32 %v5511, %v5703
        %5705 = vmatprep.mubr.bf16.mxu0 %v4072
        %5706 = vmatmul.mubr.bf16.gmra.mrb[0].mxu0 %v4071
        %v5707 = vpop.f32.mrb[0].mxu0
        %v5708 = vadd.f32 %v5515, %v5707
        %v5709 = vpop.f32.mrb[0].mxu0
        %v5710 = vadd.f32 %v5517, %v5709
        %v5711 = vpop.f32.mrb[0].mxu0
        %v5712 = vadd.f32 %v5519, %v5711
        %v5713 = vpop.f32.mrb[0].mxu0
        %v5714 = vadd.f32 %v5521, %v5713
        %5715 = vmatprep.mubr.bf16.mxu0 %v4074
        %5716 = vmatmul.mubr.bf16.gmra.mrb[0].mxu0 %v4073
        %v5717 = vpop.f32.mrb[0].mxu0
        %v5718 = vadd.f32 %v5525, %v5717
        %v5719 = vpop.f32.mrb[0].mxu0
        %v5720 = vadd.f32 %v5527, %v5719
        %v5721 = vpop.f32.mrb[0].mxu0
        %v5722 = vadd.f32 %v5529, %v5721
        %v5723 = vpop.f32.mrb[0].mxu0
        %v5724 = vadd.f32 %v5531, %v5723
        %5725 = vmatprep.mubr.bf16.mxu0 %v4076
        %5726 = vmatmul.mubr.bf16.gmra.mrb[0].mxu0 %v4075
        %v5727 = vpop.f32.mrb[0].mxu0
        %v5728 = vadd.f32 %v5535, %v5727
        %v5729 = vpop.f32.mrb[0].mxu0
        %v5730 = vadd.f32 %v5537, %v5729
        %v5731 = vpop.f32.mrb[0].mxu0
        %v5732 = vadd.f32 %v5539, %v5731
        %v5733 = vpop.f32.mrb[0].mxu0
        %v5734 = vadd.f32 %v5541, %v5733
        %5735 = vdwg.mxu0
        %5736 = vmatprep.subr.bf16.mxu0 %v4310
        %5737 = vmatpush1.bf16.msra.mxu0 %v4309
        %5738 = vmatprep.subr.bf16.mxu0 %v4312
        %5739 = vmatpush1.bf16.msra.mxu0 %v4311
        %5740 = vmatprep.subr.bf16.mxu0 %v4314
        %5741 = vmatpush1.bf16.msra.mxu0 %v4313
        %5742 = vmatprep.subr.bf16.mxu0 %v4316
        %5743 = vmatpush1.bf16.msra.mxu0 %v4315
        %5744 = vmatprep.subr.bf16.mxu0 %v4318
        %5745 = vmatpush1.bf16.msra.mxu0 %v4317
        %5746 = vmatprep.subr.bf16.mxu0 %v4320
        %5747 = vmatpush1.bf16.msra.mxu0 %v4319
        %5748 = vmatprep.subr.bf16.mxu0 %v4322
        %5749 = vmatpush1.bf16.msra.mxu0 %v4321
        %5750 = vmatprep.subr.bf16.mxu0 %v4324
        %5751 = vmatpush1.bf16.msra.mxu0 %v4323
        %5752 = vmatprep.subr.bf16.mxu0 %v4326
        %5753 = vmatpush1.bf16.msra.mxu0 %v4325
        %5754 = vmatprep.subr.bf16.mxu0 %v4328
        %5755 = vmatpush1.bf16.msra.mxu0 %v4327
        %5756 = vmatprep.subr.bf16.mxu0 %v4330
        %5757 = vmatpush1.bf16.msra.mxu0 %v4329
        %5758 = vmatprep.subr.bf16.mxu0 %v4332
        %5759 = vmatpush1.bf16.msra.mxu0 %v4331
        %5760 = vmatprep.subr.bf16.mxu0 %v4334
        %5761 = vmatpush1.bf16.msra.mxu0 %v4333
        %5762 = vmatprep.subr.bf16.mxu0 %v4336
        %5763 = vmatpush1.bf16.msra.mxu0 %v4335
        %5764 = vmatprep.subr.bf16.mxu0 %v4338
        %5765 = vmatpush1.bf16.msra.mxu0 %v4337
        %5766 = vmatprep.subr.bf16.mxu0 %v4340
        %5767 = vmatpush1.bf16.msra.mxu0 %v4339
        %5768 = vmatprep.mubr.bf16.mxu0 %v4048
        %5769 = vmatmul.mubr.bf16.gmra.mrb[0].mxu0 %v4047
        %v5770 = vpop.f32.mrb[0].mxu0
        %v5771 = vadd.f32 %v5578, %v5770
        %v5772 = vpop.f32.mrb[0].mxu0
        %v5773 = vadd.f32 %v5580, %v5772
        %v5774 = vpop.f32.mrb[0].mxu0
        %v5775 = vadd.f32 %v5582, %v5774
        %v5776 = vpop.f32.mrb[0].mxu0
        %v5777 = vadd.f32 %v5584, %v5776
        %5778 = vmatprep.mubr.bf16.mxu0 %v4050
        %5779 = vmatmul.mubr.bf16.gmra.mrb[0].mxu0 %v4049
        %v5780 = vpop.f32.mrb[0].mxu0
        %v5781 = vadd.f32 %v5588, %v5780
        %v5782 = vpop.f32.mrb[0].mxu0
        %v5783 = vadd.f32 %v5590, %v5782
        %v5784 = vpop.f32.mrb[0].mxu0
        %v5785 = vadd.f32 %v5592, %v5784
        %v5786 = vpop.f32.mrb[0].mxu0
        %v5787 = vadd.f32 %v5594, %v5786
        %5788 = vmatprep.mubr.bf16.mxu0 %v4052
        %5789 = vmatmul.mubr.bf16.gmra.mrb[0].mxu0 %v4051
        %v5790 = vpop.f32.mrb[0].mxu0
        %v5791 = vadd.f32 %v5598, %v5790
        %v5792 = vpop.f32.mrb[0].mxu0
        %v5793 = vadd.f32 %v5600, %v5792
        %v5794 = vpop.f32.mrb[0].mxu0
        %v5795 = vadd.f32 %v5602, %v5794
        %v5796 = vpop.f32.mrb[0].mxu0
        %v5797 = vadd.f32 %v5604, %v5796
        %5798 = vmatprep.mubr.bf16.mxu0 %v4054
        %5799 = vmatmul.mubr.bf16.gmra.mrb[0].mxu0 %v4053
        %v5800 = vpop.f32.mrb[0].mxu0
        %v5801 = vadd.f32 %v5608, %v5800
        %v5802 = vpop.f32.mrb[0].mxu0
        %v5803 = vadd.f32 %v5610, %v5802
        %v5804 = vpop.f32.mrb[0].mxu0
        %v5805 = vadd.f32 %v5612, %v5804
        %v5806 = vpop.f32.mrb[0].mxu0
        %v5807 = vadd.f32 %v5614, %v5806
        %5808 = vmatprep.mubr.bf16.mxu0 %v4056
        %5809 = vmatmul.mubr.bf16.gmra.mrb[0].mxu0 %v4055
        %v5810 = vpop.f32.mrb[0].mxu0
        %v5811 = vadd.f32 %v5618, %v5810
        %v5812 = vpop.f32.mrb[0].mxu0
        %v5813 = vadd.f32 %v5620, %v5812
        %v5814 = vpop.f32.mrb[0].mxu0
        %v5815 = vadd.f32 %v5622, %v5814
        %v5816 = vpop.f32.mrb[0].mxu0
        %v5817 = vadd.f32 %v5624, %v5816
        %5818 = vmatprep.mubr.bf16.mxu0 %v4058
        %5819 = vmatmul.mubr.bf16.gmra.mrb[0].mxu0 %v4057
        %v5820 = vpop.f32.mrb[0].mxu0
        %v5821 = vadd.f32 %v5628, %v5820
        %v5822 = vpop.f32.mrb[0].mxu0
        %v5823 = vadd.f32 %v5630, %v5822
        %v5824 = vpop.f32.mrb[0].mxu0
        %v5825 = vadd.f32 %v5632, %v5824
        %v5826 = vpop.f32.mrb[0].mxu0
        %v5827 = vadd.f32 %v5634, %v5826
        %5828 = vmatprep.mubr.bf16.mxu0 %v4060
        %5829 = vmatmul.mubr.bf16.gmra.mrb[0].mxu0 %v4059
        %v5830 = vpop.f32.mrb[0].mxu0
        %v5831 = vadd.f32 %v5638, %v5830
        %v5832 = vpop.f32.mrb[0].mxu0
        %v5833 = vadd.f32 %v5640, %v5832
        %v5834 = vpop.f32.mrb[0].mxu0
        %v5835 = vadd.f32 %v5642, %v5834
        %v5836 = vpop.f32.mrb[0].mxu0
        %v5837 = vadd.f32 %v5644, %v5836
        %5838 = vmatprep.mubr.bf16.mxu0 %v4062
        %5839 = vmatmul.mubr.bf16.gmra.mrb[0].mxu0 %v4061
        %v5840 = vpop.f32.mrb[0].mxu0
        %v5841 = vadd.f32 %v5648, %v5840
        %v5842 = vpop.f32.mrb[0].mxu0
        %v5843 = vadd.f32 %v5650, %v5842
        %v5844 = vpop.f32.mrb[0].mxu0
        %v5845 = vadd.f32 %v5652, %v5844
        %v5846 = vpop.f32.mrb[0].mxu0
        %v5847 = vadd.f32 %v5654, %v5846
        %5848 = vmatprep.mubr.bf16.mxu0 %v4064
        %5849 = vmatmul.mubr.bf16.gmra.mrb[0].mxu0 %v4063
        %v5850 = vpop.f32.mrb[0].mxu0
        %v5851 = vadd.f32 %v5658, %v5850
        %v5852 = vpop.f32.mrb[0].mxu0
        %v5853 = vadd.f32 %v5660, %v5852
        %v5854 = vpop.f32.mrb[0].mxu0
        %v5855 = vadd.f32 %v5662, %v5854
        %v5856 = vpop.f32.mrb[0].mxu0
        %v5857 = vadd.f32 %v5664, %v5856
        %5858 = vmatprep.mubr.bf16.mxu0 %v4066
        %5859 = vmatmul.mubr.bf16.gmra.mrb[0].mxu0 %v4065
        %v5860 = vpop.f32.mrb[0].mxu0
        %v5861 = vadd.f32 %v5668, %v5860
        %v5862 = vpop.f32.mrb[0].mxu0
        %v5863 = vadd.f32 %v5670, %v5862
        %v5864 = vpop.f32.mrb[0].mxu0
        %v5865 = vadd.f32 %v5672, %v5864
        %v5866 = vpop.f32.mrb[0].mxu0
        %v5867 = vadd.f32 %v5674, %v5866
        %5868 = vmatprep.mubr.bf16.mxu0 %v4068
        %5869 = vmatmul.mubr.bf16.gmra.mrb[0].mxu0 %v4067
        %v5870 = vpop.f32.mrb[0].mxu0
        %v5871 = vadd.f32 %v5678, %v5870
        %v5872 = vpop.f32.mrb[0].mxu0
        %v5873 = vadd.f32 %v5680, %v5872
        %v5874 = vpop.f32.mrb[0].mxu0
        %v5875 = vadd.f32 %v5682, %v5874
        %v5876 = vpop.f32.mrb[0].mxu0
        %v5877 = vadd.f32 %v5684, %v5876
        %5878 = vmatprep.mubr.bf16.mxu0 %v4070
        %5879 = vmatmul.mubr.bf16.gmra.mrb[0].mxu0 %v4069
        %v5880 = vpop.f32.mrb[0].mxu0
        %v5881 = vadd.f32 %v5688, %v5880
        %v5882 = vpop.f32.mrb[0].mxu0
        %v5883 = vadd.f32 %v5690, %v5882
        %v5884 = vpop.f32.mrb[0].mxu0
        %v5885 = vadd.f32 %v5692, %v5884
        %v5886 = vpop.f32.mrb[0].mxu0
        %v5887 = vadd.f32 %v5694, %v5886
        %5888 = vmatprep.mubr.bf16.mxu0 %v4072
        %5889 = vmatmul.mubr.bf16.gmra.mrb[0].mxu0 %v4071
        %v5890 = vpop.f32.mrb[0].mxu0
        %v5891 = vadd.f32 %v5698, %v5890
        %v5892 = vpop.f32.mrb[0].mxu0
        %v5893 = vadd.f32 %v5700, %v5892
        %v5894 = vpop.f32.mrb[0].mxu0
        %v5895 = vadd.f32 %v5702, %v5894
        %v5896 = vpop.f32.mrb[0].mxu0
        %v5897 = vadd.f32 %v5704, %v5896
        %5898 = vmatprep.mubr.bf16.mxu0 %v4074
        %5899 = vmatmul.mubr.bf16.gmra.mrb[0].mxu0 %v4073
        %v5900 = vpop.f32.mrb[0].mxu0
        %v5901 = vadd.f32 %v5708, %v5900
        %v5902 = vpop.f32.mrb[0].mxu0
        %v5903 = vadd.f32 %v5710, %v5902
        %v5904 = vpop.f32.mrb[0].mxu0
        %v5905 = vadd.f32 %v5712, %v5904
        %v5906 = vpop.f32.mrb[0].mxu0
        %v5907 = vadd.f32 %v5714, %v5906
        %5908 = vmatprep.mubr.bf16.mxu0 %v4076
        %5909 = vmatmul.mubr.bf16.gmra.mrb[0].mxu0 %v4075
        %v5910 = vpop.f32.mrb[0].mxu0
        %v5911 = vadd.f32 %v5718, %v5910
        %v5912 = vpop.f32.mrb[0].mxu0
        %v5913 = vadd.f32 %v5720, %v5912
        %v5914 = vpop.f32.mrb[0].mxu0
        %v5915 = vadd.f32 %v5722, %v5914
        %v5916 = vpop.f32.mrb[0].mxu0
        %v5917 = vadd.f32 %v5724, %v5916
        %5918 = vmatprep.mubr.bf16.mxu0 %v4078
        %5919 = vmatmul.mubr.bf16.gmra.mrb[0].mxu0 %v4077
        %v5920 = vpop.f32.mrb[0].mxu0
        %v5921 = vadd.f32 %v5728, %v5920
        %v5922 = vpop.f32.mrb[0].mxu0
        %v5923 = vadd.f32 %v5730, %v5922
        %v5924 = vpop.f32.mrb[0].mxu0
        %v5925 = vadd.f32 %v5732, %v5924
        %v5926 = vpop.f32.mrb[0].mxu0
        %v5927 = vadd.f32 %v5734, %v5926
        %5928 = vdwg.mxu0
        %5929 = vmatprep.subr.bf16.mxu0 %v4342
        %5930 = vmatpush1.bf16.msra.mxu0 %v4341
        %5931 = vmatprep.subr.bf16.mxu0 %v4344
        %5932 = vmatpush1.bf16.msra.mxu0 %v4343
        %5933 = vmatprep.subr.bf16.mxu0 %v4346
        %5934 = vmatpush1.bf16.msra.mxu0 %v4345
        %5935 = vmatprep.subr.bf16.mxu0 %v4348
        %5936 = vmatpush1.bf16.msra.mxu0 %v4347
        %5937 = vmatprep.subr.bf16.mxu0 %v4350
        %5938 = vmatpush1.bf16.msra.mxu0 %v4349
        %5939 = vmatprep.subr.bf16.mxu0 %v4352
        %5940 = vmatpush1.bf16.msra.mxu0 %v4351
        %5941 = vmatprep.subr.bf16.mxu0 %v4354
        %5942 = vmatpush1.bf16.msra.mxu0 %v4353
        %5943 = vmatprep.subr.bf16.mxu0 %v4356
        %5944 = vmatpush1.bf16.msra.mxu0 %v4355
        %5945 = vmatprep.subr.bf16.mxu0 %v4358
        %5946 = vmatpush1.bf16.msra.mxu0 %v4357
        %5947 = vmatprep.subr.bf16.mxu0 %v4360
        %5948 = vmatpush1.bf16.msra.mxu0 %v4359
        %5949 = vmatprep.subr.bf16.mxu0 %v4362
        %5950 = vmatpush1.bf16.msra.mxu0 %v4361
        %5951 = vmatprep.subr.bf16.mxu0 %v4364
        %5952 = vmatpush1.bf16.msra.mxu0 %v4363
        %5953 = vmatprep.subr.bf16.mxu0 %v4366
        %5954 = vmatpush1.bf16.msra.mxu0 %v4365
        %5955 = vmatprep.subr.bf16.mxu0 %v4368
        %5956 = vmatpush1.bf16.msra.mxu0 %v4367
        %5957 = vmatprep.subr.bf16.mxu0 %v4370
        %5958 = vmatpush1.bf16.msra.mxu0 %v4369
        %5959 = vmatprep.subr.bf16.mxu0 %v4372
        %5960 = vmatpush1.bf16.msra.mxu0 %v4371
        %5961 = vmatprep.mubr.bf16.mxu0 %v4050
        %5962 = vmatmul.mubr.bf16.gmra.mrb[0].mxu0 %v4049
        %v5963 = vpop.f32.mrb[0].mxu0
        %v5964 = vadd.f32 %v5771, %v5963
        %v5965 = vpop.f32.mrb[0].mxu0
        %v5966 = vadd.f32 %v5773, %v5965
        %v5967 = vpop.f32.mrb[0].mxu0
        %v5968 = vadd.f32 %v5775, %v5967
        %v5969 = vpop.f32.mrb[0].mxu0
        %v5970 = vadd.f32 %v5777, %v5969
        %5971 = vmatprep.mubr.bf16.mxu0 %v4052
        %5972 = vmatmul.mubr.bf16.gmra.mrb[0].mxu0 %v4051
        %v5973 = vpop.f32.mrb[0].mxu0
        %v5974 = vadd.f32 %v5781, %v5973
        %v5975 = vpop.f32.mrb[0].mxu0
        %v5976 = vadd.f32 %v5783, %v5975
        %v5977 = vpop.f32.mrb[0].mxu0
        %v5978 = vadd.f32 %v5785, %v5977
        %v5979 = vpop.f32.mrb[0].mxu0
        %v5980 = vadd.f32 %v5787, %v5979
        %5981 = vmatprep.mubr.bf16.mxu0 %v4054
        %5982 = vmatmul.mubr.bf16.gmra.mrb[0].mxu0 %v4053
        %v5983 = vpop.f32.mrb[0].mxu0
        %v5984 = vadd.f32 %v5791, %v5983
        %v5985 = vpop.f32.mrb[0].mxu0
        %v5986 = vadd.f32 %v5793, %v5985
        %v5987 = vpop.f32.mrb[0].mxu0
        %v5988 = vadd.f32 %v5795, %v5987
        %v5989 = vpop.f32.mrb[0].mxu0
        %v5990 = vadd.f32 %v5797, %v5989
        %5991 = vmatprep.mubr.bf16.mxu0 %v4056
        %5992 = vmatmul.mubr.bf16.gmra.mrb[0].mxu0 %v4055
        %v5993 = vpop.f32.mrb[0].mxu0
        %v5994 = vadd.f32 %v5801, %v5993
        %v5995 = vpop.f32.mrb[0].mxu0
        %v5996 = vadd.f32 %v5803, %v5995
        %v5997 = vpop.f32.mrb[0].mxu0
        %v5998 = vadd.f32 %v5805, %v5997
        %v5999 = vpop.f32.mrb[0].mxu0
        %v6000 = vadd.f32 %v5807, %v5999
        %6001 = vmatprep.mubr.bf16.mxu0 %v4058
        %6002 = vmatmul.mubr.bf16.gmra.mrb[0].mxu0 %v4057
        %v6003 = vpop.f32.mrb[0].mxu0
        %v6004 = vadd.f32 %v5811, %v6003
        %v6005 = vpop.f32.mrb[0].mxu0
        %v6006 = vadd.f32 %v5813, %v6005
        %v6007 = vpop.f32.mrb[0].mxu0
        %v6008 = vadd.f32 %v5815, %v6007
        %v6009 = vpop.f32.mrb[0].mxu0
        %v6010 = vadd.f32 %v5817, %v6009
        %6011 = vmatprep.mubr.bf16.mxu0 %v4060
        %6012 = vmatmul.mubr.bf16.gmra.mrb[0].mxu0 %v4059
        %v6013 = vpop.f32.mrb[0].mxu0
        %v6014 = vadd.f32 %v5821, %v6013
        %v6015 = vpop.f32.mrb[0].mxu0
        %v6016 = vadd.f32 %v5823, %v6015
        %v6017 = vpop.f32.mrb[0].mxu0
        %v6018 = vadd.f32 %v5825, %v6017
        %v6019 = vpop.f32.mrb[0].mxu0
        %v6020 = vadd.f32 %v5827, %v6019
        %6021 = vmatprep.mubr.bf16.mxu0 %v4062
        %6022 = vmatmul.mubr.bf16.gmra.mrb[0].mxu0 %v4061
        %v6023 = vpop.f32.mrb[0].mxu0
        %v6024 = vadd.f32 %v5831, %v6023
        %v6025 = vpop.f32.mrb[0].mxu0
        %v6026 = vadd.f32 %v5833, %v6025
        %v6027 = vpop.f32.mrb[0].mxu0
        %v6028 = vadd.f32 %v5835, %v6027
        %v6029 = vpop.f32.mrb[0].mxu0
        %v6030 = vadd.f32 %v5837, %v6029
        %6031 = vmatprep.mubr.bf16.mxu0 %v4064
        %6032 = vmatmul.mubr.bf16.gmra.mrb[0].mxu0 %v4063
        %v6033 = vpop.f32.mrb[0].mxu0
        %v6034 = vadd.f32 %v5841, %v6033
        %v6035 = vpop.f32.mrb[0].mxu0
        %v6036 = vadd.f32 %v5843, %v6035
        %v6037 = vpop.f32.mrb[0].mxu0
        %v6038 = vadd.f32 %v5845, %v6037
        %v6039 = vpop.f32.mrb[0].mxu0
        %v6040 = vadd.f32 %v5847, %v6039
        %6041 = vmatprep.mubr.bf16.mxu0 %v4066
        %6042 = vmatmul.mubr.bf16.gmra.mrb[0].mxu0 %v4065
        %v6043 = vpop.f32.mrb[0].mxu0
        %v6044 = vadd.f32 %v5851, %v6043
        %v6045 = vpop.f32.mrb[0].mxu0
        %v6046 = vadd.f32 %v5853, %v6045
        %v6047 = vpop.f32.mrb[0].mxu0
        %v6048 = vadd.f32 %v5855, %v6047
        %v6049 = vpop.f32.mrb[0].mxu0
        %v6050 = vadd.f32 %v5857, %v6049
        %6051 = vmatprep.mubr.bf16.mxu0 %v4068
        %6052 = vmatmul.mubr.bf16.gmra.mrb[0].mxu0 %v4067
        %v6053 = vpop.f32.mrb[0].mxu0
        %v6054 = vadd.f32 %v5861, %v6053
        %v6055 = vpop.f32.mrb[0].mxu0
        %v6056 = vadd.f32 %v5863, %v6055
        %v6057 = vpop.f32.mrb[0].mxu0
        %v6058 = vadd.f32 %v5865, %v6057
        %v6059 = vpop.f32.mrb[0].mxu0
        %v6060 = vadd.f32 %v5867, %v6059
        %6061 = vmatprep.mubr.bf16.mxu0 %v4070
        %6062 = vmatmul.mubr.bf16.gmra.mrb[0].mxu0 %v4069
        %v6063 = vpop.f32.mrb[0].mxu0
        %v6064 = vadd.f32 %v5871, %v6063
        %v6065 = vpop.f32.mrb[0].mxu0
        %v6066 = vadd.f32 %v5873, %v6065
        %v6067 = vpop.f32.mrb[0].mxu0
        %v6068 = vadd.f32 %v5875, %v6067
        %v6069 = vpop.f32.mrb[0].mxu0
        %v6070 = vadd.f32 %v5877, %v6069
        %6071 = vmatprep.mubr.bf16.mxu0 %v4072
        %6072 = vmatmul.mubr.bf16.gmra.mrb[0].mxu0 %v4071
        %v6073 = vpop.f32.mrb[0].mxu0
        %v6074 = vadd.f32 %v5881, %v6073
        %v6075 = vpop.f32.mrb[0].mxu0
        %v6076 = vadd.f32 %v5883, %v6075
        %v6077 = vpop.f32.mrb[0].mxu0
        %v6078 = vadd.f32 %v5885, %v6077
        %v6079 = vpop.f32.mrb[0].mxu0
        %v6080 = vadd.f32 %v5887, %v6079
        %6081 = vmatprep.mubr.bf16.mxu0 %v4074
        %6082 = vmatmul.mubr.bf16.gmra.mrb[0].mxu0 %v4073
        %v6083 = vpop.f32.mrb[0].mxu0
        %v6084 = vadd.f32 %v5891, %v6083
        %v6085 = vpop.f32.mrb[0].mxu0
        %v6086 = vadd.f32 %v5893, %v6085
        %v6087 = vpop.f32.mrb[0].mxu0
        %v6088 = vadd.f32 %v5895, %v6087
        %v6089 = vpop.f32.mrb[0].mxu0
        %v6090 = vadd.f32 %v5897, %v6089
        %6091 = vmatprep.mubr.bf16.mxu0 %v4076
        %6092 = vmatmul.mubr.bf16.gmra.mrb[0].mxu0 %v4075
        %v6093 = vpop.f32.mrb[0].mxu0
        %v6094 = vadd.f32 %v5901, %v6093
        %v6095 = vpop.f32.mrb[0].mxu0
        %v6096 = vadd.f32 %v5903, %v6095
        %v6097 = vpop.f32.mrb[0].mxu0
        %v6098 = vadd.f32 %v5905, %v6097
        %v6099 = vpop.f32.mrb[0].mxu0
        %v6100 = vadd.f32 %v5907, %v6099
        %6101 = vmatprep.mubr.bf16.mxu0 %v4078
        %6102 = vmatmul.mubr.bf16.gmra.mrb[0].mxu0 %v4077
        %v6103 = vpop.f32.mrb[0].mxu0
        %v6104 = vadd.f32 %v5911, %v6103
        %v6105 = vpop.f32.mrb[0].mxu0
        %v6106 = vadd.f32 %v5913, %v6105
        %v6107 = vpop.f32.mrb[0].mxu0
        %v6108 = vadd.f32 %v5915, %v6107
        %v6109 = vpop.f32.mrb[0].mxu0
        %v6110 = vadd.f32 %v5917, %v6109
        %6111 = vmatprep.mubr.bf16.mxu0 %v4080
        %6112 = vmatmul.mubr.bf16.gmra.mrb[0].mxu0 %v4079
        %v6113 = vpop.f32.mrb[0].mxu0
        %v6114 = vadd.f32 %v5921, %v6113
        %v6115 = vpop.f32.mrb[0].mxu0
        %v6116 = vadd.f32 %v5923, %v6115
        %v6117 = vpop.f32.mrb[0].mxu0
        %v6118 = vadd.f32 %v5925, %v6117
        %v6119 = vpop.f32.mrb[0].mxu0
        %v6120 = vadd.f32 %v5927, %v6119
        %6121 = vdwg.mxu0
        %v6122 = vmax.f32 %v5964, 0.0
        %v6123 = vmax.f32 %v5966, 0.0
        %v6124 = vmax.f32 %v5968, 0.0
        %v6125 = vmax.f32 %v5970, 0.0
        %v6126 = vmax.f32 %v5974, 0.0
        %v6127 = vmax.f32 %v5976, 0.0
        %v6128 = vmax.f32 %v5978, 0.0
        %v6129 = vmax.f32 %v5980, 0.0
        %v6130 = vmax.f32 %v5984, 0.0
        %v6131 = vmax.f32 %v5986, 0.0
        %v6132 = vmax.f32 %v5988, 0.0
        %v6133 = vmax.f32 %v5990, 0.0
        %v6134 = vmax.f32 %v5994, 0.0
        %v6135 = vmax.f32 %v5996, 0.0
        %v6136 = vmax.f32 %v5998, 0.0
        %v6137 = vmax.f32 %v6000, 0.0
        %v6138 = vmax.f32 %v6004, 0.0
        %v6139 = vmax.f32 %v6006, 0.0
        %v6140 = vmax.f32 %v6008, 0.0
        %v6141 = vmax.f32 %v6010, 0.0
        %v6142 = vmax.f32 %v6014, 0.0
        %v6143 = vmax.f32 %v6016, 0.0
        %v6144 = vmax.f32 %v6018, 0.0
        %v6145 = vmax.f32 %v6020, 0.0
        %v6146 = vmax.f32 %v6024, 0.0
        %v6147 = vmax.f32 %v6026, 0.0
        %v6148 = vmax.f32 %v6028, 0.0
        %v6149 = vmax.f32 %v6030, 0.0
        %v6150 = vmax.f32 %v6034, 0.0
        %v6151 = vmax.f32 %v6036, 0.0
        %v6152 = vmax.f32 %v6038, 0.0
        %v6153 = vmax.f32 %v6040, 0.0
        %v6154 = vmax.f32 %v6044, 0.0
        %v6155 = vmax.f32 %v6046, 0.0
        %v6156 = vmax.f32 %v6048, 0.0
        %v6157 = vmax.f32 %v6050, 0.0
        %v6158 = vmax.f32 %v6054, 0.0
        %v6159 = vmax.f32 %v6056, 0.0
        %v6160 = vmax.f32 %v6058, 0.0
        %v6161 = vmax.f32 %v6060, 0.0
        %v6162 = vmax.f32 %v6064, 0.0
        %v6163 = vmax.f32 %v6066, 0.0
        %v6164 = vmax.f32 %v6068, 0.0
        %v6165 = vmax.f32 %v6070, 0.0
        %v6166 = vmax.f32 %v6074, 0.0
        %v6167 = vmax.f32 %v6076, 0.0
        %v6168 = vmax.f32 %v6078, 0.0
        %v6169 = vmax.f32 %v6080, 0.0
        %v6170 = vmax.f32 %v6084, 0.0
        %v6171 = vmax.f32 %v6086, 0.0
        %v6172 = vmax.f32 %v6088, 0.0
        %v6173 = vmax.f32 %v6090, 0.0
        %v6174 = vmax.f32 %v6094, 0.0
        %v6175 = vmax.f32 %v6096, 0.0
        %v6176 = vmax.f32 %v6098, 0.0
        %v6177 = vmax.f32 %v6100, 0.0
        %v6178 = vmax.f32 %v6104, 0.0
        %v6179 = vmax.f32 %v6106, 0.0
        %v6180 = vmax.f32 %v6108, 0.0
        %v6181 = vmax.f32 %v6110, 0.0
        %v6182 = vmax.f32 %v6114, 0.0
        %v6183 = vmax.f32 %v6116, 0.0
        %v6184 = vmax.f32 %v6118, 0.0
        %v6185 = vmax.f32 %v6120, 0.0
        %v6186 = vpack.c.bf16 %v6124, %v6122
        %v6187 = vpack.c.bf16 %v6125, %v6123
        %v6188 = vpack.c.bf16 %v6128, %v6126
        %v6189 = vpack.c.bf16 %v6129, %v6127
        %v6190 = vpack.c.bf16 %v6132, %v6130
        %v6191 = vpack.c.bf16 %v6133, %v6131
        %v6192 = vpack.c.bf16 %v6136, %v6134
        %v6193 = vpack.c.bf16 %v6137, %v6135
        %v6194 = vpack.c.bf16 %v6140, %v6138
        %v6195 = vpack.c.bf16 %v6141, %v6139
        %v6196 = vpack.c.bf16 %v6144, %v6142
        %v6197 = vpack.c.bf16 %v6145, %v6143
        %v6198 = vpack.c.bf16 %v6148, %v6146
        %v6199 = vpack.c.bf16 %v6149, %v6147
        %v6200 = vpack.c.bf16 %v6152, %v6150
        %v6201 = vpack.c.bf16 %v6153, %v6151
        %v6202 = vpack.c.bf16 %v6156, %v6154
        %v6203 = vpack.c.bf16 %v6157, %v6155
        %v6204 = vpack.c.bf16 %v6160, %v6158
        %v6205 = vpack.c.bf16 %v6161, %v6159
        %v6206 = vpack.c.bf16 %v6164, %v6162
        %v6207 = vpack.c.bf16 %v6165, %v6163
        %v6208 = vpack.c.bf16 %v6168, %v6166
        %v6209 = vpack.c.bf16 %v6169, %v6167
        %v6210 = vpack.c.bf16 %v6172, %v6170
        %v6211 = vpack.c.bf16 %v6173, %v6171
        %v6212 = vpack.c.bf16 %v6176, %v6174
        %v6213 = vpack.c.bf16 %v6177, %v6175
        %v6214 = vpack.c.bf16 %v6180, %v6178
        %v6215 = vpack.c.bf16 %v6181, %v6179
        %v6216 = vpack.c.bf16 %v6184, %v6182
        %v6217 = vpack.c.bf16 %v6185, %v6183
        %v6250 = vunpack.c.l.b16 %v6186
        %v6251 = vunpack.c.l.b16 %v6187
        %v6252 = vunpack.c.h.b16 %v6186
        %v6253 = vunpack.c.h.b16 %v6187
        %v6254 = vunpack.c.l.b16 %v6188
        %v6255 = vunpack.c.l.b16 %v6189
        %v6256 = vunpack.c.h.b16 %v6188
        %v6257 = vunpack.c.h.b16 %v6189
        %v6258 = vunpack.c.l.b16 %v6190
        %v6259 = vunpack.c.l.b16 %v6191
        %v6260 = vunpack.c.h.b16 %v6190
        %v6261 = vunpack.c.h.b16 %v6191
        %v6262 = vunpack.c.l.b16 %v6192
        %v6263 = vunpack.c.l.b16 %v6193
        %v6264 = vunpack.c.h.b16 %v6192
        %v6265 = vunpack.c.h.b16 %v6193
        %v6266 = vunpack.c.l.b16 %v6194
        %v6267 = vunpack.c.l.b16 %v6195
        %v6268 = vunpack.c.h.b16 %v6194
        %v6269 = vunpack.c.h.b16 %v6195
        %v6270 = vunpack.c.l.b16 %v6196
        %v6271 = vunpack.c.l.b16 %v6197
        %v6272 = vunpack.c.h.b16 %v6196
        %v6273 = vunpack.c.h.b16 %v6197
        %v6274 = vunpack.c.l.b16 %v6198
        %v6275 = vunpack.c.l.b16 %v6199
        %v6276 = vunpack.c.h.b16 %v6198
        %v6277 = vunpack.c.h.b16 %v6199
        %v6278 = vunpack.c.l.b16 %v6200
        %v6279 = vunpack.c.l.b16 %v6201
        %v6280 = vunpack.c.h.b16 %v6200
        %v6281 = vunpack.c.h.b16 %v6201
        %v6282 = vunpack.c.l.b16 %v6202
        %v6283 = vunpack.c.l.b16 %v6203
        %v6284 = vunpack.c.h.b16 %v6202
        %v6285 = vunpack.c.h.b16 %v6203
        %v6286 = vunpack.c.l.b16 %v6204
        %v6287 = vunpack.c.l.b16 %v6205
        %v6288 = vunpack.c.h.b16 %v6204
        %v6289 = vunpack.c.h.b16 %v6205
        %v6290 = vunpack.c.l.b16 %v6206
        %v6291 = vunpack.c.l.b16 %v6207
        %v6292 = vunpack.c.h.b16 %v6206
        %v6293 = vunpack.c.h.b16 %v6207
        %v6294 = vunpack.c.l.b16 %v6208
        %v6295 = vunpack.c.l.b16 %v6209
        %v6296 = vunpack.c.h.b16 %v6208
        %v6297 = vunpack.c.h.b16 %v6209
        %v6298 = vunpack.c.l.b16 %v6210
        %v6299 = vunpack.c.l.b16 %v6211
        %v6300 = vunpack.c.h.b16 %v6210
        %v6301 = vunpack.c.h.b16 %v6211
        %v6302 = vunpack.c.l.b16 %v6212
        %v6303 = vunpack.c.l.b16 %v6213
        %v6304 = vunpack.c.h.b16 %v6212
        %v6305 = vunpack.c.h.b16 %v6213
        %v6306 = vunpack.c.l.b16 %v6214
        %v6307 = vunpack.c.l.b16 %v6215
        %v6308 = vunpack.c.h.b16 %v6214
        %v6309 = vunpack.c.h.b16 %v6215
        %v6310 = vunpack.c.l.b16 %v6216
        %v6311 = vunpack.c.l.b16 %v6217
        %v6312 = vunpack.c.h.b16 %v6216
        %v6313 = vunpack.c.h.b16 %v6217
        %v6314 = vpack.c.b16 %v6251, %v6250
        %v6315 = vpack.c.b16 %v6253, %v6252
        %v6316 = vpack.c.b16 %v6255, %v6254
        %v6317 = vpack.c.b16 %v6257, %v6256
        %v6318 = vpack.c.b16 %v6259, %v6258
        %v6319 = vpack.c.b16 %v6261, %v6260
        %v6320 = vpack.c.b16 %v6263, %v6262
        %v6321 = vpack.c.b16 %v6265, %v6264
        %v6322 = vpack.c.b16 %v6267, %v6266
        %v6323 = vpack.c.b16 %v6269, %v6268
        %v6324 = vpack.c.b16 %v6271, %v6270
        %v6325 = vpack.c.b16 %v6273, %v6272
        %v6326 = vpack.c.b16 %v6275, %v6274
        %v6327 = vpack.c.b16 %v6277, %v6276
        %v6328 = vpack.c.b16 %v6279, %v6278
        %v6329 = vpack.c.b16 %v6281, %v6280
        %v6330 = vpack.c.b16 %v6283, %v6282
        %v6331 = vpack.c.b16 %v6285, %v6284
        %v6332 = vpack.c.b16 %v6287, %v6286
        %v6333 = vpack.c.b16 %v6289, %v6288
        %v6334 = vpack.c.b16 %v6291, %v6290
        %v6335 = vpack.c.b16 %v6293, %v6292
        %v6336 = vpack.c.b16 %v6295, %v6294
        %v6337 = vpack.c.b16 %v6297, %v6296
        %v6338 = vpack.c.b16 %v6299, %v6298
        %v6339 = vpack.c.b16 %v6301, %v6300
        %v6340 = vpack.c.b16 %v6303, %v6302
        %v6341 = vpack.c.b16 %v6305, %v6304
        %v6342 = vpack.c.b16 %v6307, %v6306
        %v6343 = vpack.c.b16 %v6309, %v6308
        %v6344 = vpack.c.b16 %v6311, %v6310
        %v6345 = vpack.c.b16 %v6313, %v6312
        %6378 = vst [vmem:[%s391] sm:$0xff] %v6314
        %6379 = vst [vmem:[%s391 + $0x8] sm:$0xff] %v6315
        %6380 = vst [vmem:[%s391 + $0x10] sm:$0xff] %v6316
        %6381 = vst [vmem:[%s391 + $0x18] sm:$0xff] %v6317
        %6382 = vst [vmem:[%s391 + $0x20] sm:$0xff] %v6318
        %6383 = vst [vmem:[%s391 + $0x28] sm:$0xff] %v6319
        %6384 = vst [vmem:[%s391 + $0x30] sm:$0xff] %v6320
        %6385 = vst [vmem:[%s391 + $0x38] sm:$0xff] %v6321
        %6386 = vst [vmem:[%s391 + $0x40] sm:$0xff] %v6322
        %6387 = vst [vmem:[%s391 + $0x48] sm:$0xff] %v6323
        %6388 = vst [vmem:[%s391 + $0x50] sm:$0xff] %v6324
        %6389 = vst [vmem:[%s391 + $0x58] sm:$0xff] %v6325
        %6390 = vst [vmem:[%s391 + $0x60] sm:$0xff] %v6326
        %6391 = vst [vmem:[%s391 + $0x68] sm:$0xff] %v6327
        %6392 = vst [vmem:[%s391 + $0x70] sm:$0xff] %v6328
        %6393 = vst [vmem:[%s391 + $0x78] sm:$0xff] %v6329
        %6394 = vst [vmem:[%s391 + $0x80] sm:$0xff] %v6330
        %6395 = vst [vmem:[%s391 + $0x88] sm:$0xff] %v6331
        %6396 = vst [vmem:[%s391 + $0x90] sm:$0xff] %v6332
        %6397 = vst [vmem:[%s391 + $0x98] sm:$0xff] %v6333
        %6398 = vst [vmem:[%s391 + $0xa0] sm:$0xff] %v6334
        %6399 = vst [vmem:[%s391 + $0xa8] sm:$0xff] %v6335
        %6400 = vst [vmem:[%s391 + $0xb0] sm:$0xff] %v6336
        %6401 = vst [vmem:[%s391 + $0xb8] sm:$0xff] %v6337
        %6402 = vst [vmem:[%s391 + $0xc0] sm:$0xff] %v6338
        %6403 = vst [vmem:[%s391 + $0xc8] sm:$0xff] %v6339
        %6404 = vst [vmem:[%s391 + $0xd0] sm:$0xff] %v6340
        %6405 = vst [vmem:[%s391 + $0xd8] sm:$0xff] %v6341
        %6406 = vst [vmem:[%s391 + $0xe0] sm:$0xff] %v6342
        %6407 = vst [vmem:[%s391 + $0xe8] sm:$0xff] %v6343
        %6408 = vst [vmem:[%s391 + $0xf0] sm:$0xff] %v6344
        %6409 = vst [vmem:[%s391 + $0xf8] sm:$0xff] %v6345
        %s6410 = sand.u32 %s195, 1
        %s6411 = scalar_lea.sflag [#allocation7], %s6410
        %s6412 = sand.u32 %s195, 1
        %s6413 = smul.addr %s6412, 256
        %s6414 = scalar_lea.vmem [#allocation16], %s6413
        // Predicated region
        $region73: #{tpu_custom_call.1} parent=47 // pred_check
          %p6415 = pneg %p205
        $region74: #{tpu_custom_call.1} parent=47 // pred_check_branch
          %6417 = sbr.rel (%p6415) target = $region76
        $region75: #{tpu_custom_call.1} parent=47 // pred_region
          %s6419 = ssub.s32 4096, 4096
          %6420 = vsyncadd %s6411, %s6419
          %s6421 = smul.addr %s30, 64
          %s6422 = smul.addr %s6421, 64
          %s6423 = scalar_lea.hbm %s8, %s6422
          %s6424 = sshll.u32 %s6414, 4
          %s6425 = int_to_ptr.vmem [resolvable:$true] %s6424
          %6430 = dma.vmem_to_hbm [thread:$0]  %s6425, 4096, %s6423, %s6411, 128, 128, 8
        $region76: #{tpu_custom_call.1} parent=47 // pred_fallthru
          _
      $region48: #{tpu_custom_call.1} parent=5 // pred_fallthru
        _
      %p6431 = scmp.le.s32.totalorder 2, %s25
      // Predicated region
      $region77: #{tpu_custom_call.1} parent=5 // pred_check
        %p6432 = pneg %p6431
      $region78: #{tpu_custom_call.1} parent=5 // pred_check_branch
        %6434 = sbr.rel (%p6432) target = $region80
      $region79: #{tpu_custom_call.1} parent=5 // pred_region
        %s6435 = ssub.s32 %s25, 2
        // Predicated region
        $region81: #{tpu_custom_call.1} parent=79 // pred_check
          %p6436 = pneg %p211
        $region82: #{tpu_custom_call.1} parent=79 // pred_check_branch
          %6438 = sbr.rel (%p6436) target = $region84
        $region83: #{tpu_custom_call.1} parent=79 // pred_region
          %s6439 = sand.u32 %s196, 1
          %s6440 = scalar_lea.sflag [#allocation7], %s6439
          %s6441 = sand.u32 %s196, 1
          %s6442 = smul.addr %s6441, 256
          %s6443 = scalar_lea.vmem [#allocation16], %s6442
          %6444 = dma.done %s6440, 4096
        $region84: #{tpu_custom_call.1} parent=79 // pred_fallthru
          _
      $region80: #{tpu_custom_call.1} parent=5 // pred_fallthru
        _
    $region6: #{tpu_custom_call.1} parent=1 // loop_footer
      %s29 = sadd.s32 1, %s25
    $region7: #{tpu_custom_call.1} parent=1 // loop_footer_branch
      %24 = sbr.rel target = $region3
    $region8: #{tpu_custom_call.1} parent=1 // loop_exit
      _
    %6445 = vsyncpa [#allocation6], 1
    %s6446 = scalar_lea.sflag [#allocation6], 1
    %6447 = vsyncpa %s6446, 1
    %6448 = vsyncpa [#allocation9], 1
    %s6449 = scalar_lea.sflag [#allocation9], 1
    %6450 = vsyncpa %s6449, 1
    %6451 = vsyncpa [#allocation12], 1
    %6452 = vsyncpa [#allocation15], 1
    %6453 = vsyncpa [#allocation7], 1
    %s6454 = scalar_lea.sflag [#allocation7], 1
    %6455 = vsyncpa %s6454, 1
  %6456 = vsyncmov [#allocation3]
  %s6457 = vpop.sfrf %6456
  %p6458 = scmp.eq.s32.totalorder %s6457, 0
  %p6459 = pneg %p6458
  %6461 = shalt.err (%p6459)

</llo_original>
